<compile_context>
chip_gen: v7x
topology: tpu7x:2x2x1
jax: 0.10.0
libtpu: 0.0.40
codegen_flags: <defaults>
</compile_context>

<pallas_src>
import functools

import jax
import jax.numpy as jnp
import numpy as np
from jax.experimental import pallas as pl
from jax.experimental.pallas import tpu as pltpu

LANE = 128


def _const_spec(shape):
    zero = (0,) * len(shape)
    return pl.BlockSpec(tuple(shape), lambda b, _z=zero: _z)


# ----------------------------------------------------------------------------
# Fused kernel: conv1 -> conv2 -> conv3 -> fc -> out, all in VMEM.
# One grid step == one batch element (parallel across TCs on v7x).
# ----------------------------------------------------------------------------
def _dqn_kernel(x_ref, w1_ref, b1_ref, w2_ref, b2_ref, w3_ref, b3_ref,
                wfc_ref, bfc_ref, wout_ref, bout_ref, o_ref,
                *, oh1, ow1, oh2, ow2, oh3, ow3):
    f32, bf16 = jnp.float32, jnp.bfloat16
    c1p = w1_ref.shape[-1]                                    # 128

    # ---- conv1 (8x8 / stride 4): input already im2col'ed -> ONE matmul -----
    x = x_ref[0]                                              # (oh1*ow1, 64C) bf16
    a1 = jnp.dot(x, w1_ref[...], preferred_element_type=f32)
    a1 = jnp.maximum(a1 + b1_ref[...], 0.0).astype(bf16)      # cast once per layer
    a1 = a1.reshape(oh1, ow1, c1p)

    # ---- conv2 (4x4 / stride 2): space-to-depth-2 -> 4 matmuls with K=512 --
    a1r = a1.reshape(oh1 // 2, 2, ow1 // 2, 2, c1p)
    slabs = [a1r[:, dh, :, dw, :] for dh in range(2) for dw in range(2)]
    a1s2d = jnp.concatenate(slabs, axis=-1)                   # (oh1/2, ow1/2, 4*c1p)
    acc2 = None
    for kbh in range(2):
        for kbw in range(2):
            patch = a1s2d[kbh:kbh + oh2, kbw:kbw + ow2, :]
            p2 = patch.reshape(oh2 * ow2, 4 * c1p)
            d = jnp.dot(p2, w2_ref[kbh * 2 + kbw], preferred_element_type=f32)
            acc2 = d if acc2 is None else acc2 + d
    a2 = jnp.maximum(acc2 + b2_ref[...], 0.0).astype(bf16)
    a2 = a2.reshape(oh2, ow2, LANE)

    # ---- conv3 (3x3 / stride 1): lane-concat im2col -> ONE K=1152 matmul ---
    cols = [a2[kh:kh + oh3, kw:kw + ow3, :].reshape(oh3 * ow3, LANE)
            for kh in range(3) for kw in range(3)]
    p3 = jnp.concatenate(cols, axis=-1)                       # (oh3*ow3, 9*128)
    a3 = jnp.dot(p3, w3_ref[...], preferred_element_type=f32)
    a3 = jnp.maximum(a3 + b3_ref[...], 0.0).astype(bf16)      # (oh3*ow3, 128)

    # ---- fc + relu: flatten (h, w, c) along lanes -> ONE K=1152 matmul -----
    feat = jnp.concatenate([a3[p:p + 1, :] for p in range(oh3 * ow3)], axis=-1)
    h = jnp.dot(feat, wfc_ref[...], preferred_element_type=f32) + bfc_ref[...]
    h = jnp.maximum(h, 0.0).astype(bf16)                      # (1, 512)

    # ---- output head (num_actions padded to 128 -> lane-dense store) -------
    q = jnp.dot(h, wout_ref[...], preferred_element_type=f32) + bout_ref[...]
    o_ref[0] = jnp.broadcast_to(q, (8, LANE))


# ----------------------------------------------------------------------------
# Host-side (plain JAX) layout prep.
# ----------------------------------------------------------------------------
def _prep_input(x, oh1, ow1):
    """NCHW f32 -> (N, oh1*ow1, 64*C) bf16: space-to-depth-4 + conv1 im2col."""
    n, c, h, w = x.shape
    x = jnp.transpose(x, (0, 2, 3, 1))                        # NHWC
    x = x.reshape(n, h // 4, 4, w // 4, 4, c)
    x = jnp.transpose(x, (0, 1, 3, 2, 4, 5))                  # (n, hb, wb, dh, dw, c)
    x = x.reshape(n, h // 4, w // 4, 16 * c)                  # s2d-4, order (dh, dw, c)
    cols = [x[:, kb:kb + oh1, qb:qb + ow1, :]                 # 2x2 block-conv im2col
            for kb in range(2) for qb in range(2)]
    x = jnp.concatenate(cols, axis=-1)                        # (n, oh1, ow1, 64c)
    return x.reshape(n, oh1 * ow1, 64 * c).astype(jnp.bfloat16)


def _pack_conv1(w1):
    """(OC, C, 8, 8) OIHW -> single (64*C, 128) block matching wrapper im2col."""
    oc, cin = w1.shape[0], w1.shape[1]
    w = jnp.transpose(w1, (2, 3, 1, 0))                       # (kh, kw, c, oc)
    w = w.reshape(2, 4, 2, 4, cin, oc)                        # (kb, dh, qb, dw, c, oc)
    w = jnp.transpose(w, (0, 2, 1, 3, 4, 5))                  # (kb, qb, dh, dw, c, oc)
    w = w.reshape(64 * cin, oc)
    return jnp.pad(w, ((0, 0), (0, LANE - oc))).astype(jnp.bfloat16)


def _pack_conv2(w2):
    """(64, 32, 4, 4) OIHW -> (4, 512, 128) blocks matching in-kernel s2d-2."""
    oc, ic = w2.shape[0], w2.shape[1]
    w = jnp.transpose(w2, (2, 3, 1, 0))                       # (kh, kw, ic, oc)
    w = jnp.pad(w, ((0, 0), (0, 0), (0, LANE - ic), (0, LANE - oc)))
    w = w.reshape(2, 2, 2, 2, LANE, LANE)                     # (kbh, dh, kbw, dw, icP, ocP)
    w = jnp.transpose(w, (0, 2, 1, 3, 4, 5))                  # (kbh, kbw, dh, dw, icP, ocP)
    return w.reshape(4, 4 * LANE, LANE).astype(jnp.bfloat16)


def _pack_conv3(w3):
    """(64, 64, 3, 3) OIHW -> single (9*128, 128) im2col weight."""
    oc, ic, k, _ = w3.shape
    w = jnp.transpose(w3, (2, 3, 1, 0))                       # (k, k, ic, oc)
    w = jnp.pad(w, ((0, 0), (0, 0), (0, LANE - ic), (0, LANE - oc)))
    return w.reshape(k * k * LANE, LANE).astype(jnp.bfloat16)


def _pack_fc(wfc, c_real, oh, ow):
    """(c*oh*ow, 512) PyTorch (c,h,w)-ordered rows -> single (oh*ow*128, 512)."""
    dh = wfc.shape[1]
    w = wfc.reshape(c_real, oh, ow, dh)
    w = jnp.transpose(w, (1, 2, 0, 3))                        # (h, w, c, 512)
    w = jnp.pad(w, ((0, 0), (0, 0), (0, LANE - c_real), (0, 0)))
    return w.reshape(oh * ow * LANE, dh).astype(jnp.bfloat16)


def _pad_bias(b, width):
    return jnp.pad(b, (0, width - b.shape[0])).reshape(1, width).astype(jnp.float32)


# ----------------------------------------------------------------------------
# DQN module (parameters initialized deterministically in-script).
# ----------------------------------------------------------------------------
class DQNPallas:
    def __init__(self, input_shape, num_actions, key):
        self.input_shape = input_shape
        self.num_actions = num_actions
        c, h, w = input_shape

        def conv_out(x, k, s):
            return (x - k) // s + 1

        self.oh1, self.ow1 = conv_out(h, 8, 4), conv_out(w, 8, 4)
        self.oh2, self.ow2 = conv_out(self.oh1, 4, 2), conv_out(self.ow1, 4, 2)
        self.oh3, self.ow3 = conv_out(self.oh2, 3, 1), conv_out(self.ow2, 3, 1)
        self.feature_size = 64 * self.oh3 * self.ow3

        # TODO(synk): general spatial sizes would need zero-padding before the
        # space-to-depth transforms; this geometry avoids it.
        assert h % 4 == 0 and w % 4 == 0
        assert self.oh1 % 2 == 0 and self.ow1 % 2 == 0
        assert num_actions <= LANE

        ks = jax.random.split(key, 10)

        def init(k, shape, fan_in):
            bound = 1.0 / np.sqrt(fan_in)
            return jax.random.uniform(k, shape, jnp.float32, -bound, bound)

        # Canonical (PyTorch-layout) parameters; forward semantics match nn.Module.
        self.w1 = init(ks[0], (32, c, 8, 8), c * 8 * 8)
        self.b1 = init(ks[1], (32,), c * 8 * 8)
        self.w2 = init(ks[2], (64, 32, 4, 4), 32 * 4 * 4)
        self.b2 = init(ks[3], (64,), 32 * 4 * 4)
        self.w3 = init(ks[4], (64, 64, 3, 3), 64 * 3 * 3)
        self.b3 = init(ks[5], (64,), 64 * 3 * 3)
        self.wfc = init(ks[6], (self.feature_size, 512), self.feature_size)
        self.bfc = init(ks[7], (512,), self.feature_size)
        self.wout = init(ks[8], (512, num_actions), 512)
        self.bout = init(ks[9], (num_actions,), 512)

        # Packed / channel-padded / bf16 parameters consumed by the fused kernel.
        self.w1p = _pack_conv1(self.w1)                            # (64c, 128)
        self.b1p = _pad_bias(self.b1, LANE)
        self.w2p = _pack_conv2(self.w2)                            # (4, 512, 128)
        self.b2p = _pad_bias(self.b2, LANE)
        self.w3p = _pack_conv3(self.w3)                            # (1152, 128)
        self.b3p = _pad_bias(self.b3, LANE)
        self.wfcp = _pack_fc(self.wfc, 64, self.oh3, self.ow3)     # (1152, 512)
        self.bfcp = self.bfc.reshape(1, 512).astype(jnp.float32)
        self.woutp = jnp.pad(self.wout,
                             ((0, 0), (0, LANE - num_actions))).astype(jnp.bfloat16)
        self.boutp = _pad_bias(self.bout, LANE)

    def forward(self, x):
        # x: (N, C, H, W) float32 -- NCHW, identical to the PyTorch module.
        n = x.shape[0]
        xp = _prep_input(x, self.oh1, self.ow1)          # (n, oh1*ow1, 64C) bf16
        args = (xp, self.w1p, self.b1p, self.w2p, self.b2p, self.w3p,
                self.b3p, self.wfcp, self.bfcp, self.woutp, self.boutp)
        kernel = functools.partial(
            _dqn_kernel, oh1=self.oh1, ow1=self.ow1,
            oh2=self.oh2, ow2=self.ow2, oh3=self.oh3, ow3=self.ow3)
        in_specs = [pl.BlockSpec((1,) + xp.shape[1:], lambda b: (b, 0, 0))]
        in_specs += [_const_spec(a.shape) for a in args[1:]]
        qpad = pl.pallas_call(
            kernel,
            out_shape=jax.ShapeDtypeStruct((n, 8, LANE), jnp.float32),
            grid=(n,),
            in_specs=in_specs,
            out_specs=pl.BlockSpec((1, 8, LANE), lambda b: (b, 0, 0)),
            compiler_params=pltpu.CompilerParams(
                dimension_semantics=("parallel",)),
        )(*args)
        return qpad[:, 0, :self.num_actions]


# Pure-JAX reference (weights/input rounded to bf16 to match kernel operand
# precision; structure is exactly the PyTorch forward).
def forward_ref(m, x):
    r = lambda a: a.astype(jnp.bfloat16).astype(jnp.float32)

    def conv(x, w, b, s):
        y = jax.lax.conv_general_dilated(
            x, w, window_strides=(s, s), padding="VALID",
            dimension_numbers=("NCHW", "OIHW", "NCHW"))
        return jax.nn.relu(y + b.reshape(1, -1, 1, 1))

    x = r(x)
    x = conv(x, r(m.w1), m.b1, 4)
    x = conv(x, r(m.w2), m.b2, 2)
    x = conv(x, r(m.w3), m.b3, 1)
    x = x.reshape(x.shape[0], -1)
    x = jax.nn.relu(x @ r(m.wfc) + m.bfc)
    return x @ r(m.wout) + m.bout


if __name__ == "__main__":
    key = jax.random.PRNGKey(0)
    kp, kx = jax.random.split(key)

    input_shape = (4, 52, 52)   # (C, H, W); deep enough for all 3 convs
    num_actions = 6
    batch = 2

    model = DQNPallas(input_shape, num_actions, kp)
    x = jax.random.normal(kx, (batch,) + input_shape, jnp.float32)

    fwd = jax.jit(model.forward)
    q = jax.block_until_ready(fwd(x))

    q_ref = forward_ref(model, x)
    np.testing.assert_allclose(np.asarray(q), np.asarray(q_ref),
                               rtol=2e-2, atol=2e-2)
    assert q.shape == (batch, num_actions)

    print("KERNEL_OK")
</pallas_src>

<mosaic_0001>
module attributes {stable_mosaic.version = 11 : i64} {
  func.func @_dqn_kernel(%arg0: i32, %arg1: memref<1x144x256xbf16, #tpu.memory_space<vmem>>, %arg2: memref<256x128xbf16, #tpu.memory_space<vmem>>, %arg3: memref<1x128xf32, #tpu.memory_space<vmem>>, %arg4: memref<4x512x128xbf16, #tpu.memory_space<vmem>>, %arg5: memref<1x128xf32, #tpu.memory_space<vmem>>, %arg6: memref<1152x128xbf16, #tpu.memory_space<vmem>>, %arg7: memref<1x128xf32, #tpu.memory_space<vmem>>, %arg8: memref<1152x512xbf16, #tpu.memory_space<vmem>>, %arg9: memref<1x512xf32, #tpu.memory_space<vmem>>, %arg10: memref<512x128xbf16, #tpu.memory_space<vmem>>, %arg11: memref<1x128xf32, #tpu.memory_space<vmem>>, %arg12: memref<1x8x128xf32, #tpu.memory_space<vmem>>) attributes {dimension_semantics = [#tpu.dimension_semantics<parallel>], iteration_bounds = array<i64: 2>, scalar_prefetch = 0 : i64, scratch_operands = 0 : i64, tpu.core_type = #tpu.core_type<tc>, window_params = [{transform_indices = @transform_0, window_bounds = array<i64: 1, 144, 256>}, {pipeline_mode = #tpu.pipeline_mode<synchronous>, transform_indices = @transform_1, window_bounds = array<i64: 256, 128>}, {pipeline_mode = #tpu.pipeline_mode<synchronous>, transform_indices = @transform_2, window_bounds = array<i64: 1, 128>}, {pipeline_mode = #tpu.pipeline_mode<synchronous>, transform_indices = @transform_3, window_bounds = array<i64: 4, 512, 128>}, {pipeline_mode = #tpu.pipeline_mode<synchronous>, transform_indices = @transform_4, window_bounds = array<i64: 1, 128>}, {pipeline_mode = #tpu.pipeline_mode<synchronous>, transform_indices = @transform_5, window_bounds = array<i64: 1152, 128>}, {pipeline_mode = #tpu.pipeline_mode<synchronous>, transform_indices = @transform_6, window_bounds = array<i64: 1, 128>}, {pipeline_mode = #tpu.pipeline_mode<synchronous>, transform_indices = @transform_7, window_bounds = array<i64: 1152, 512>}, {pipeline_mode = #tpu.pipeline_mode<synchronous>, transform_indices = @transform_8, window_bounds = array<i64: 1, 512>}, {pipeline_mode = #tpu.pipeline_mode<synchronous>, transform_indices = @transform_9, window_bounds = array<i64: 512, 128>}, {pipeline_mode = #tpu.pipeline_mode<synchronous>, transform_indices = @transform_10, window_bounds = array<i64: 1, 128>}, {transform_indices = @transform_11, window_bounds = array<i64: 1, 8, 128>}]} {
    %c0 = arith.constant 0 : index
    %c0_0 = arith.constant 0 : index
    %c0_1 = arith.constant 0 : index
    %0 = vector.load %arg1[%c0, %c0_0, %c0_1] : memref<1x144x256xbf16, #tpu.memory_space<vmem>>, vector<1x144x256xbf16>
    %1 = vector.shape_cast %0 : vector<1x144x256xbf16> to vector<144x256xbf16>
    %c0_2 = arith.constant 0 : index
    %c0_3 = arith.constant 0 : index
    %2 = vector.load %arg2[%c0_2, %c0_3] : memref<256x128xbf16, #tpu.memory_space<vmem>>, vector<256x128xbf16>
    %cst = arith.constant dense<0.000000e+00> : vector<144x128xf32>
    %3 = tpu.matmul %1, %2, %cst {dimension_numbers = #tpu.dot_dimension_numbers<[1], [0], [0], [1], [0, 0, 1, 1], [], []>} : vector<144x256xbf16>, vector<256x128xbf16>, vector<144x128xf32> -> vector<144x128xf32>
    %c0_4 = arith.constant 0 : index
    %c0_5 = arith.constant 0 : index
    %4 = vector.load %arg3[%c0_4, %c0_5] : memref<1x128xf32, #tpu.memory_space<vmem>>, vector<1x128xf32>
    %5 = vector.broadcast %4 : vector<1x128xf32> to vector<144x128xf32>
    %6 = arith.addf %3, %5 : vector<144x128xf32>
    %cst_6 = arith.constant 0.000000e+00 : f32
    %7 = vector.broadcast %cst_6 : f32 to vector<144x128xf32>
    %8 = arith.maximumf %6, %7 : vector<144x128xf32>
    %9 = arith.truncf %8 : vector<144x128xf32> to vector<144x128xbf16>
    %10 = vector.shape_cast %9 : vector<144x128xbf16> to vector<12x12x128xbf16>
    %11 = vector.shape_cast %10 : vector<12x12x128xbf16> to vector<6x2x6x2x128xbf16>
    %12 = vector.extract_strided_slice %11 {offsets = [0, 0, 0, 0, 0], sizes = [6, 1, 6, 1, 128], strides = [1, 1, 1, 1, 1]} : vector<6x2x6x2x128xbf16> to vector<6x1x6x1x128xbf16>
    %13 = vector.shape_cast %12 : vector<6x1x6x1x128xbf16> to vector<6x6x128xbf16>
    %14 = vector.extract_strided_slice %11 {offsets = [0, 0, 0, 1, 0], sizes = [6, 1, 6, 1, 128], strides = [1, 1, 1, 1, 1]} : vector<6x2x6x2x128xbf16> to vector<6x1x6x1x128xbf16>
    %15 = vector.shape_cast %14 : vector<6x1x6x1x128xbf16> to vector<6x6x128xbf16>
    %16 = vector.extract_strided_slice %11 {offsets = [0, 1, 0, 0, 0], sizes = [6, 1, 6, 1, 128], strides = [1, 1, 1, 1, 1]} : vector<6x2x6x2x128xbf16> to vector<6x1x6x1x128xbf16>
    %17 = vector.shape_cast %16 : vector<6x1x6x1x128xbf16> to vector<6x6x128xbf16>
    %18 = vector.extract_strided_slice %11 {offsets = [0, 1, 0, 1, 0], sizes = [6, 1, 6, 1, 128], strides = [1, 1, 1, 1, 1]} : vector<6x2x6x2x128xbf16> to vector<6x1x6x1x128xbf16>
    %19 = vector.shape_cast %18 : vector<6x1x6x1x128xbf16> to vector<6x6x128xbf16>
    %20 = tpu.concatenate %13, %15, %17, %19 in 2 : vector<6x6x128xbf16>, vector<6x6x128xbf16>, vector<6x6x128xbf16>, vector<6x6x128xbf16> -> vector<6x6x512xbf16>
    %21 = vector.extract_strided_slice %20 {offsets = [0, 0, 0], sizes = [5, 5, 512], strides = [1, 1, 1]} : vector<6x6x512xbf16> to vector<5x5x512xbf16>
    %22 = vector.shape_cast %21 : vector<5x5x512xbf16> to vector<25x512xbf16>
    %c0_7 = arith.constant 0 : index
    %c0_8 = arith.constant 0 : index
    %c0_9 = arith.constant 0 : index
    %23 = vector.load %arg4[%c0_7, %c0_8, %c0_9] : memref<4x512x128xbf16, #tpu.memory_space<vmem>>, vector<1x512x128xbf16>
    %24 = vector.shape_cast %23 : vector<1x512x128xbf16> to vector<512x128xbf16>
    %cst_10 = arith.constant dense<0.000000e+00> : vector<25x128xf32>
    %25 = tpu.matmul %22, %24, %cst_10 {dimension_numbers = #tpu.dot_dimension_numbers<[1], [0], [0], [1], [0, 0, 1, 1], [], []>} : vector<25x512xbf16>, vector<512x128xbf16>, vector<25x128xf32> -> vector<25x128xf32>
    %26 = vector.extract_strided_slice %20 {offsets = [0, 1, 0], sizes = [5, 5, 512], strides = [1, 1, 1]} : vector<6x6x512xbf16> to vector<5x5x512xbf16>
    %27 = vector.shape_cast %26 : vector<5x5x512xbf16> to vector<25x512xbf16>
    %c1 = arith.constant 1 : index
    %c0_11 = arith.constant 0 : index
    %c0_12 = arith.constant 0 : index
    %28 = vector.load %arg4[%c1, %c0_11, %c0_12] : memref<4x512x128xbf16, #tpu.memory_space<vmem>>, vector<1x512x128xbf16>
    %29 = vector.shape_cast %28 : vector<1x512x128xbf16> to vector<512x128xbf16>
    %cst_13 = arith.constant dense<0.000000e+00> : vector<25x128xf32>
    %30 = tpu.matmul %27, %29, %cst_13 {dimension_numbers = #tpu.dot_dimension_numbers<[1], [0], [0], [1], [0, 0, 1, 1], [], []>} : vector<25x512xbf16>, vector<512x128xbf16>, vector<25x128xf32> -> vector<25x128xf32>
    %31 = arith.addf %25, %30 : vector<25x128xf32>
    %32 = vector.extract_strided_slice %20 {offsets = [1, 0, 0], sizes = [5, 5, 512], strides = [1, 1, 1]} : vector<6x6x512xbf16> to vector<5x5x512xbf16>
    %33 = vector.shape_cast %32 : vector<5x5x512xbf16> to vector<25x512xbf16>
    %c2 = arith.constant 2 : index
    %c0_14 = arith.constant 0 : index
    %c0_15 = arith.constant 0 : index
    %34 = vector.load %arg4[%c2, %c0_14, %c0_15] : memref<4x512x128xbf16, #tpu.memory_space<vmem>>, vector<1x512x128xbf16>
    %35 = vector.shape_cast %34 : vector<1x512x128xbf16> to vector<512x128xbf16>
    %cst_16 = arith.constant dense<0.000000e+00> : vector<25x128xf32>
    %36 = tpu.matmul %33, %35, %cst_16 {dimension_numbers = #tpu.dot_dimension_numbers<[1], [0], [0], [1], [0, 0, 1, 1], [], []>} : vector<25x512xbf16>, vector<512x128xbf16>, vector<25x128xf32> -> vector<25x128xf32>
    %37 = arith.addf %31, %36 : vector<25x128xf32>
    %38 = vector.extract_strided_slice %20 {offsets = [1, 1, 0], sizes = [5, 5, 512], strides = [1, 1, 1]} : vector<6x6x512xbf16> to vector<5x5x512xbf16>
    %39 = vector.shape_cast %38 : vector<5x5x512xbf16> to vector<25x512xbf16>
    %c3 = arith.constant 3 : index
    %c0_17 = arith.constant 0 : index
    %c0_18 = arith.constant 0 : index
    %40 = vector.load %arg4[%c3, %c0_17, %c0_18] : memref<4x512x128xbf16, #tpu.memory_space<vmem>>, vector<1x512x128xbf16>
    %41 = vector.shape_cast %40 : vector<1x512x128xbf16> to vector<512x128xbf16>
    %cst_19 = arith.constant dense<0.000000e+00> : vector<25x128xf32>
    %42 = tpu.matmul %39, %41, %cst_19 {dimension_numbers = #tpu.dot_dimension_numbers<[1], [0], [0], [1], [0, 0, 1, 1], [], []>} : vector<25x512xbf16>, vector<512x128xbf16>, vector<25x128xf32> -> vector<25x128xf32>
    %43 = arith.addf %37, %42 : vector<25x128xf32>
    %c0_20 = arith.constant 0 : index
    %c0_21 = arith.constant 0 : index
    %44 = vector.load %arg5[%c0_20, %c0_21] : memref<1x128xf32, #tpu.memory_space<vmem>>, vector<1x128xf32>
    %45 = vector.broadcast %44 : vector<1x128xf32> to vector<25x128xf32>
    %46 = arith.addf %43, %45 : vector<25x128xf32>
    %cst_22 = arith.constant 0.000000e+00 : f32
    %47 = vector.broadcast %cst_22 : f32 to vector<25x128xf32>
    %48 = arith.maximumf %46, %47 : vector<25x128xf32>
    %49 = arith.truncf %48 : vector<25x128xf32> to vector<25x128xbf16>
    %50 = vector.shape_cast %49 : vector<25x128xbf16> to vector<5x5x128xbf16>
    %51 = vector.extract_strided_slice %50 {offsets = [0, 0, 0], sizes = [3, 3, 128], strides = [1, 1, 1]} : vector<5x5x128xbf16> to vector<3x3x128xbf16>
    %52 = vector.shape_cast %51 : vector<3x3x128xbf16> to vector<9x128xbf16>
    %53 = vector.extract_strided_slice %50 {offsets = [0, 1, 0], sizes = [3, 3, 128], strides = [1, 1, 1]} : vector<5x5x128xbf16> to vector<3x3x128xbf16>
    %54 = vector.shape_cast %53 : vector<3x3x128xbf16> to vector<9x128xbf16>
    %55 = vector.extract_strided_slice %50 {offsets = [0, 2, 0], sizes = [3, 3, 128], strides = [1, 1, 1]} : vector<5x5x128xbf16> to vector<3x3x128xbf16>
    %56 = vector.shape_cast %55 : vector<3x3x128xbf16> to vector<9x128xbf16>
    %57 = vector.extract_strided_slice %50 {offsets = [1, 0, 0], sizes = [3, 3, 128], strides = [1, 1, 1]} : vector<5x5x128xbf16> to vector<3x3x128xbf16>
    %58 = vector.shape_cast %57 : vector<3x3x128xbf16> to vector<9x128xbf16>
    %59 = vector.extract_strided_slice %50 {offsets = [1, 1, 0], sizes = [3, 3, 128], strides = [1, 1, 1]} : vector<5x5x128xbf16> to vector<3x3x128xbf16>
    %60 = vector.shape_cast %59 : vector<3x3x128xbf16> to vector<9x128xbf16>
    %61 = vector.extract_strided_slice %50 {offsets = [1, 2, 0], sizes = [3, 3, 128], strides = [1, 1, 1]} : vector<5x5x128xbf16> to vector<3x3x128xbf16>
    %62 = vector.shape_cast %61 : vector<3x3x128xbf16> to vector<9x128xbf16>
    %63 = vector.extract_strided_slice %50 {offsets = [2, 0, 0], sizes = [3, 3, 128], strides = [1, 1, 1]} : vector<5x5x128xbf16> to vector<3x3x128xbf16>
    %64 = vector.shape_cast %63 : vector<3x3x128xbf16> to vector<9x128xbf16>
    %65 = vector.extract_strided_slice %50 {offsets = [2, 1, 0], sizes = [3, 3, 128], strides = [1, 1, 1]} : vector<5x5x128xbf16> to vector<3x3x128xbf16>
    %66 = vector.shape_cast %65 : vector<3x3x128xbf16> to vector<9x128xbf16>
    %67 = vector.extract_strided_slice %50 {offsets = [2, 2, 0], sizes = [3, 3, 128], strides = [1, 1, 1]} : vector<5x5x128xbf16> to vector<3x3x128xbf16>
    %68 = vector.shape_cast %67 : vector<3x3x128xbf16> to vector<9x128xbf16>
    %69 = tpu.concatenate %52, %54, %56, %58, %60, %62, %64, %66, %68 in 1 : vector<9x128xbf16>, vector<9x128xbf16>, vector<9x128xbf16>, vector<9x128xbf16>, vector<9x128xbf16>, vector<9x128xbf16>, vector<9x128xbf16>, vector<9x128xbf16>, vector<9x128xbf16> -> vector<9x1152xbf16>
    %c0_23 = arith.constant 0 : index
    %c0_24 = arith.constant 0 : index
    %70 = vector.load %arg6[%c0_23, %c0_24] : memref<1152x128xbf16, #tpu.memory_space<vmem>>, vector<1152x128xbf16>
    %cst_25 = arith.constant dense<0.000000e+00> : vector<9x128xf32>
    %71 = tpu.matmul %69, %70, %cst_25 {dimension_numbers = #tpu.dot_dimension_numbers<[1], [0], [0], [1], [0, 0, 1, 1], [], []>} : vector<9x1152xbf16>, vector<1152x128xbf16>, vector<9x128xf32> -> vector<9x128xf32>
    %c0_26 = arith.constant 0 : index
    %c0_27 = arith.constant 0 : index
    %72 = vector.load %arg7[%c0_26, %c0_27] : memref<1x128xf32, #tpu.memory_space<vmem>>, vector<1x128xf32>
    %73 = vector.broadcast %72 : vector<1x128xf32> to vector<9x128xf32>
    %74 = arith.addf %71, %73 : vector<9x128xf32>
    %cst_28 = arith.constant 0.000000e+00 : f32
    %75 = vector.broadcast %cst_28 : f32 to vector<9x128xf32>
    %76 = arith.maximumf %74, %75 : vector<9x128xf32>
    %77 = arith.truncf %76 : vector<9x128xf32> to vector<9x128xbf16>
    %78 = vector.extract_strided_slice %77 {offsets = [0, 0], sizes = [1, 128], strides = [1, 1]} : vector<9x128xbf16> to vector<1x128xbf16>
    %79 = vector.extract_strided_slice %77 {offsets = [1, 0], sizes = [1, 128], strides = [1, 1]} : vector<9x128xbf16> to vector<1x128xbf16>
    %80 = vector.extract_strided_slice %77 {offsets = [2, 0], sizes = [1, 128], strides = [1, 1]} : vector<9x128xbf16> to vector<1x128xbf16>
    %81 = vector.extract_strided_slice %77 {offsets = [3, 0], sizes = [1, 128], strides = [1, 1]} : vector<9x128xbf16> to vector<1x128xbf16>
    %82 = vector.extract_strided_slice %77 {offsets = [4, 0], sizes = [1, 128], strides = [1, 1]} : vector<9x128xbf16> to vector<1x128xbf16>
    %83 = vector.extract_strided_slice %77 {offsets = [5, 0], sizes = [1, 128], strides = [1, 1]} : vector<9x128xbf16> to vector<1x128xbf16>
    %84 = vector.extract_strided_slice %77 {offsets = [6, 0], sizes = [1, 128], strides = [1, 1]} : vector<9x128xbf16> to vector<1x128xbf16>
    %85 = vector.extract_strided_slice %77 {offsets = [7, 0], sizes = [1, 128], strides = [1, 1]} : vector<9x128xbf16> to vector<1x128xbf16>
    %86 = vector.extract_strided_slice %77 {offsets = [8, 0], sizes = [1, 128], strides = [1, 1]} : vector<9x128xbf16> to vector<1x128xbf16>
    %87 = tpu.concatenate %78, %79, %80, %81, %82, %83, %84, %85, %86 in 1 : vector<1x128xbf16>, vector<1x128xbf16>, vector<1x128xbf16>, vector<1x128xbf16>, vector<1x128xbf16>, vector<1x128xbf16>, vector<1x128xbf16>, vector<1x128xbf16>, vector<1x128xbf16> -> vector<1x1152xbf16>
    %c0_29 = arith.constant 0 : index
    %c0_30 = arith.constant 0 : index
    %88 = vector.load %arg8[%c0_29, %c0_30] : memref<1152x512xbf16, #tpu.memory_space<vmem>>, vector<1152x512xbf16>
    %cst_31 = arith.constant dense<0.000000e+00> : vector<1x512xf32>
    %89 = tpu.matmul %87, %88, %cst_31 {dimension_numbers = #tpu.dot_dimension_numbers<[1], [0], [0], [1], [0, 0, 1, 1], [], []>} : vector<1x1152xbf16>, vector<1152x512xbf16>, vector<1x512xf32> -> vector<1x512xf32>
    %c0_32 = arith.constant 0 : index
    %c0_33 = arith.constant 0 : index
    %90 = vector.load %arg9[%c0_32, %c0_33] : memref<1x512xf32, #tpu.memory_space<vmem>>, vector<1x512xf32>
    %91 = arith.addf %89, %90 : vector<1x512xf32>
    %cst_34 = arith.constant 0.000000e+00 : f32
    %92 = vector.broadcast %cst_34 : f32 to vector<1x512xf32>
    %93 = arith.maximumf %91, %92 : vector<1x512xf32>
    %94 = arith.truncf %93 : vector<1x512xf32> to vector<1x512xbf16>
    %c0_35 = arith.constant 0 : index
    %c0_36 = arith.constant 0 : index
    %95 = vector.load %arg10[%c0_35, %c0_36] : memref<512x128xbf16, #tpu.memory_space<vmem>>, vector<512x128xbf16>
    %cst_37 = arith.constant dense<0.000000e+00> : vector<1x128xf32>
    %96 = tpu.matmul %94, %95, %cst_37 {dimension_numbers = #tpu.dot_dimension_numbers<[1], [0], [0], [1], [0, 0, 1, 1], [], []>} : vector<1x512xbf16>, vector<512x128xbf16>, vector<1x128xf32> -> vector<1x128xf32>
    %c0_38 = arith.constant 0 : index
    %c0_39 = arith.constant 0 : index
    %97 = vector.load %arg11[%c0_38, %c0_39] : memref<1x128xf32, #tpu.memory_space<vmem>>, vector<1x128xf32>
    %98 = arith.addf %96, %97 : vector<1x128xf32>
    %99 = vector.shape_cast %98 : vector<1x128xf32> to vector<1x128xf32>
    %100 = vector.broadcast %99 : vector<1x128xf32> to vector<8x128xf32>
    %c0_40 = arith.constant 0 : index
    %c0_41 = arith.constant 0 : index
    %c0_42 = arith.constant 0 : index
    %101 = vector.load %arg12[%c0_40, %c0_41, %c0_42] : memref<1x8x128xf32, #tpu.memory_space<vmem>>, vector<1x8x128xf32>
    %102 = vector.shape_cast %101 : vector<1x8x128xf32> to vector<8x128xf32>
    %103 = vector.shape_cast %100 : vector<8x128xf32> to vector<1x8x128xf32>
    tpu.vector_store %arg12[%c0_40, %c0_41, %c0_42], %103 {strides = array<i32>} : memref<1x8x128xf32, #tpu.memory_space<vmem>>, vector<1x8x128xf32>,
    return
  }
  func.func @transform_0(%arg0: i32) -> (i32, i32, i32) {
    %c0_i32 = arith.constant 0 : i32
    %c0_i32_0 = arith.constant 0 : i32
    %c0_i32_1 = arith.constant 0 : i32
    return %arg0, %c0_i32, %c0_i32_0 : i32, i32, i32
  }
  func.func @transform_1(%arg0: i32) -> (i32, i32) {
    %c0_i32 = arith.constant 0 : i32
    %c0_i32_0 = arith.constant 0 : i32
    %c0_i32_1 = arith.constant 0 : i32
    return %c0_i32, %c0_i32_0 : i32, i32
  }
  func.func @transform_2(%arg0: i32) -> (i32, i32) {
    %c0_i32 = arith.constant 0 : i32
    %c0_i32_0 = arith.constant 0 : i32
    %c0_i32_1 = arith.constant 0 : i32
    return %c0_i32, %c0_i32_0 : i32, i32
  }
  func.func @transform_3(%arg0: i32) -> (i32, i32, i32) {
    %c0_i32 = arith.constant 0 : i32
    %c0_i32_0 = arith.constant 0 : i32
    %c0_i32_1 = arith.constant 0 : i32
    %c0_i32_2 = arith.constant 0 : i32
    return %c0_i32, %c0_i32_0, %c0_i32_1 : i32, i32, i32
  }
  func.func @transform_4(%arg0: i32) -> (i32, i32) {
    %c0_i32 = arith.constant 0 : i32
    %c0_i32_0 = arith.constant 0 : i32
    %c0_i32_1 = arith.constant 0 : i32
    return %c0_i32, %c0_i32_0 : i32, i32
  }
  func.func @transform_5(%arg0: i32) -> (i32, i32) {
    %c0_i32 = arith.constant 0 : i32
    %c0_i32_0 = arith.constant 0 : i32
    %c0_i32_1 = arith.constant 0 : i32
    return %c0_i32, %c0_i32_0 : i32, i32
  }
  func.func @transform_6(%arg0: i32) -> (i32, i32) {
    %c0_i32 = arith.constant 0 : i32
    %c0_i32_0 = arith.constant 0 : i32
    %c0_i32_1 = arith.constant 0 : i32
    return %c0_i32, %c0_i32_0 : i32, i32
  }
  func.func @transform_7(%arg0: i32) -> (i32, i32) {
    %c0_i32 = arith.constant 0 : i32
    %c0_i32_0 = arith.constant 0 : i32
    %c0_i32_1 = arith.constant 0 : i32
    return %c0_i32, %c0_i32_0 : i32, i32
  }
  func.func @transform_8(%arg0: i32) -> (i32, i32) {
    %c0_i32 = arith.constant 0 : i32
    %c0_i32_0 = arith.constant 0 : i32
    %c0_i32_1 = arith.constant 0 : i32
    return %c0_i32, %c0_i32_0 : i32, i32
  }
  func.func @transform_9(%arg0: i32) -> (i32, i32) {
    %c0_i32 = arith.constant 0 : i32
    %c0_i32_0 = arith.constant 0 : i32
    %c0_i32_1 = arith.constant 0 : i32
    return %c0_i32, %c0_i32_0 : i32, i32
  }
  func.func @transform_10(%arg0: i32) -> (i32, i32) {
    %c0_i32 = arith.constant 0 : i32
    %c0_i32_0 = arith.constant 0 : i32
    %c0_i32_1 = arith.constant 0 : i32
    return %c0_i32, %c0_i32_0 : i32, i32
  }
  func.func @transform_11(%arg0: i32) -> (i32, i32, i32) {
    %c0_i32 = arith.constant 0 : i32
    %c0_i32_0 = arith.constant 0 : i32
    %c0_i32_1 = arith.constant 0 : i32
    return %arg0, %c0_i32, %c0_i32_0 : i32, i32, i32
  }
}

</mosaic_0001>

<llo_original>
// kernel: forward.1
$region0: #{forward.1}
  #allocation0 [shape = 'u32[]', space=smem, size = 0x4, offset = 0x4, fixed_abs, tag = 'smem constant byte address 0x4 - core index']
  #allocation1 [shape = 'u32[144,128]{1,0:T(1,128)}', space=vmem, size = 0x12000, scoped, tag = 'internal scratch']
  %s0 = inlined_call_operand.vmem [shape: bf16[2,144,256], index: 0, kind: input, shape index: {}]
  %s1 = inlined_call_operand.vmem [shape: bf16[256,128], index: 1, kind: input, shape index: {}]
  %s2 = inlined_call_operand.vmem [shape: f32[1,128], index: 2, kind: input, shape index: {}]
  %s3 = inlined_call_operand.vmem [shape: bf16[4,512,128], index: 3, kind: input, shape index: {}]
  %s4 = inlined_call_operand.vmem [shape: f32[1,128], index: 4, kind: input, shape index: {}]
  %s5 = inlined_call_operand.vmem [shape: bf16[1152,128], index: 5, kind: input, shape index: {}]
  %s6 = inlined_call_operand.vmem [shape: f32[1,128], index: 6, kind: input, shape index: {}]
  %s7 = inlined_call_operand.vmem [shape: bf16[1152,512], index: 7, kind: input, shape index: {}]
  %s8 = inlined_call_operand.vmem [shape: f32[1,512], index: 8, kind: input, shape index: {}]
  %s9 = inlined_call_operand.vmem [shape: bf16[512,128], index: 9, kind: input, shape index: {}]
  %s10 = inlined_call_operand.vmem [shape: f32[1,128], index: 10, kind: input, shape index: {}]
  %s11 = inlined_call_operand.vmem [shape: f32[2,8,128], index: 11, kind: output, shape index: {}]
  %s12 = sld [smem:[#allocation0]]
  $region77: #{forward.1} parent=0
    _
  %s14 = ssub.s32 1, %s12
  %s15 = scalar_select 0, %s14, %s12
  loop: start=0, step=1, limit=4
  $region2: #{forward.1} parent=0 // loop_pre_header
    _
  $region3: #{forward.1} parent=0 // loop_header
    %s17 = sphi 0, %s21
    %p18 = scmp.ge.s32.totalorder %s17, 4
    %s27 = sphi 0, %s29
    %s30 = sphi 0, %s27
    %s31 = sphi 0, %s30
    %s47 = sphi 0, %s31
    %s51 = sphi 0, %s51
    %s53 = sphi 0, %s51
    %s54 = sphi 0, %s53
    %s68 = sphi 0, %s54
    %s72 = sphi 0, %s72
    %s74 = sphi 0, %s72
    %s75 = sphi 0, %s74
    %s89 = sphi 0, %s75
    %s93 = sphi 0, %s93
    %s95 = sphi 0, %s93
    %s96 = sphi 0, %s95
    %s110 = sphi 0, %s96
    %s114 = sphi 0, %s114
    %s116 = sphi 0, %s114
    %s117 = sphi 0, %s116
    %s131 = sphi 0, %s117
    %s135 = sphi 0, %s135
    %s137 = sphi 0, %s135
    %s138 = sphi 0, %s137
    %s152 = sphi 0, %s138
    %s156 = sphi 0, %s156
    %s158 = sphi 0, %s156
    %s159 = sphi 0, %s158
    %s173 = sphi 0, %s159
    %s177 = sphi 0, %s177
    %s179 = sphi 0, %s177
    %s180 = sphi 0, %s179
    %s194 = sphi 0, %s180
    %s198 = sphi 0, %s198
    %s200 = sphi 0, %s198
    %s201 = sphi 0, %s200
    %s215 = sphi 0, %s201
    %s219 = sphi 0, %s219
    %s221 = sphi 0, %s219
    %s222 = sphi 0, %s221
    %s236 = sphi 0, %s222
    %s240 = sphi 0, %s240
    %s242 = sphi 0, %s240
    %s243 = sphi 0, %s242
    %s257 = sphi 0, %s243
    %s263 = sphi 0, %s265
    %s266 = sphi 0, %s263
    %s267 = sphi 0, %s266
    %s283 = sphi 0, %s267
  $region4: #{forward.1} parent=0 // loop_header_branch
    %20 = sbr.rel (%p18) target = $region8
  $region5: #{forward.1} parent=0 // loop_body
    %s22 = ssub.s32 %s17, 1
    %s23 = ssub.s32 %s17, 2
    %s24 = sadd.s32 %s17, 1
    %s25 = ssub.s32 %s17, %s24
    %p26 = scmp.eq.s32.totalorder %s25, 0
    %s28 = sadd.s32 %s27, 1
    %s29 = scalar_select %p26, %s27, %s28
    %p32 = pneg %p26
    %p33 = scmp.eq.s32.totalorder %s17, 1
    %p34 = por %p32, %p33
    %p35 = scmp.ne.s32.totalorder %s27, %s30
    %p36 = scmp.eq.s32.totalorder %s17, 0
    %p37 = por %p35, %p36
    %p38 = scmp.ne.s32.totalorder %s27, %s30
    %p39 = scmp.eq.s32.totalorder %s22, 1
    %p40 = por %p38, %p39
    %p41 = scmp.ne.s32.totalorder %s30, %s31
    %p42 = scmp.eq.s32.totalorder %s22, 0
    %p43 = por %p41, %p42
    %p44 = scmp.ne.s32.totalorder %s30, %s31
    %p45 = scmp.eq.s32.totalorder %s23, 1
    %p46 = por %p44, %p45
    %p48 = scmp.ne.s32.totalorder %s31, %s47
    %p49 = scmp.eq.s32.totalorder %s23, 0
    %p50 = por %p48, %p49
    %s52 = sadd.s32 %s51, 1
    %p55 = scmp.eq.s32.totalorder %s17, 1
    %p56 = scmp.ne.s32.totalorder %s51, %s53
    %p57 = scmp.eq.s32.totalorder %s17, 0
    %p58 = por %p56, %p57
    %p59 = scmp.ne.s32.totalorder %s51, %s53
    %p60 = scmp.eq.s32.totalorder %s22, 1
    %p61 = por %p59, %p60
    %p62 = scmp.ne.s32.totalorder %s53, %s54
    %p63 = scmp.eq.s32.totalorder %s22, 0
    %p64 = por %p62, %p63
    %p65 = scmp.ne.s32.totalorder %s53, %s54
    %p66 = scmp.eq.s32.totalorder %s23, 1
    %p67 = por %p65, %p66
    %p69 = scmp.ne.s32.totalorder %s54, %s68
    %p70 = scmp.eq.s32.totalorder %s23, 0
    %p71 = por %p69, %p70
    %s73 = sadd.s32 %s72, 1
    %p76 = scmp.eq.s32.totalorder %s17, 1
    %p77 = scmp.ne.s32.totalorder %s72, %s74
    %p78 = scmp.eq.s32.totalorder %s17, 0
    %p79 = por %p77, %p78
    %p80 = scmp.ne.s32.totalorder %s72, %s74
    %p81 = scmp.eq.s32.totalorder %s22, 1
    %p82 = por %p80, %p81
    %p83 = scmp.ne.s32.totalorder %s74, %s75
    %p84 = scmp.eq.s32.totalorder %s22, 0
    %p85 = por %p83, %p84
    %p86 = scmp.ne.s32.totalorder %s74, %s75
    %p87 = scmp.eq.s32.totalorder %s23, 1
    %p88 = por %p86, %p87
    %p90 = scmp.ne.s32.totalorder %s75, %s89
    %p91 = scmp.eq.s32.totalorder %s23, 0
    %p92 = por %p90, %p91
    %s94 = sadd.s32 %s93, 1
    %p97 = scmp.eq.s32.totalorder %s17, 1
    %p98 = scmp.ne.s32.totalorder %s93, %s95
    %p99 = scmp.eq.s32.totalorder %s17, 0
    %p100 = por %p98, %p99
    %p101 = scmp.ne.s32.totalorder %s93, %s95
    %p102 = scmp.eq.s32.totalorder %s22, 1
    %p103 = por %p101, %p102
    %p104 = scmp.ne.s32.totalorder %s95, %s96
    %p105 = scmp.eq.s32.totalorder %s22, 0
    %p106 = por %p104, %p105
    %p107 = scmp.ne.s32.totalorder %s95, %s96
    %p108 = scmp.eq.s32.totalorder %s23, 1
    %p109 = por %p107, %p108
    %p111 = scmp.ne.s32.totalorder %s96, %s110
    %p112 = scmp.eq.s32.totalorder %s23, 0
    %p113 = por %p111, %p112
    %s115 = sadd.s32 %s114, 1
    %p118 = scmp.eq.s32.totalorder %s17, 1
    %p119 = scmp.ne.s32.totalorder %s114, %s116
    %p120 = scmp.eq.s32.totalorder %s17, 0
    %p121 = por %p119, %p120
    %p122 = scmp.ne.s32.totalorder %s114, %s116
    %p123 = scmp.eq.s32.totalorder %s22, 1
    %p124 = por %p122, %p123
    %p125 = scmp.ne.s32.totalorder %s116, %s117
    %p126 = scmp.eq.s32.totalorder %s22, 0
    %p127 = por %p125, %p126
    %p128 = scmp.ne.s32.totalorder %s116, %s117
    %p129 = scmp.eq.s32.totalorder %s23, 1
    %p130 = por %p128, %p129
    %p132 = scmp.ne.s32.totalorder %s117, %s131
    %p133 = scmp.eq.s32.totalorder %s23, 0
    %p134 = por %p132, %p133
    %s136 = sadd.s32 %s135, 1
    %p139 = scmp.eq.s32.totalorder %s17, 1
    %p140 = scmp.ne.s32.totalorder %s135, %s137
    %p141 = scmp.eq.s32.totalorder %s17, 0
    %p142 = por %p140, %p141
    %p143 = scmp.ne.s32.totalorder %s135, %s137
    %p144 = scmp.eq.s32.totalorder %s22, 1
    %p145 = por %p143, %p144
    %p146 = scmp.ne.s32.totalorder %s137, %s138
    %p147 = scmp.eq.s32.totalorder %s22, 0
    %p148 = por %p146, %p147
    %p149 = scmp.ne.s32.totalorder %s137, %s138
    %p150 = scmp.eq.s32.totalorder %s23, 1
    %p151 = por %p149, %p150
    %p153 = scmp.ne.s32.totalorder %s138, %s152
    %p154 = scmp.eq.s32.totalorder %s23, 0
    %p155 = por %p153, %p154
    %s157 = sadd.s32 %s156, 1
    %p160 = scmp.eq.s32.totalorder %s17, 1
    %p161 = scmp.ne.s32.totalorder %s156, %s158
    %p162 = scmp.eq.s32.totalorder %s17, 0
    %p163 = por %p161, %p162
    %p164 = scmp.ne.s32.totalorder %s156, %s158
    %p165 = scmp.eq.s32.totalorder %s22, 1
    %p166 = por %p164, %p165
    %p167 = scmp.ne.s32.totalorder %s158, %s159
    %p168 = scmp.eq.s32.totalorder %s22, 0
    %p169 = por %p167, %p168
    %p170 = scmp.ne.s32.totalorder %s158, %s159
    %p171 = scmp.eq.s32.totalorder %s23, 1
    %p172 = por %p170, %p171
    %p174 = scmp.ne.s32.totalorder %s159, %s173
    %p175 = scmp.eq.s32.totalorder %s23, 0
    %p176 = por %p174, %p175
    %s178 = sadd.s32 %s177, 1
    %p181 = scmp.eq.s32.totalorder %s17, 1
    %p182 = scmp.ne.s32.totalorder %s177, %s179
    %p183 = scmp.eq.s32.totalorder %s17, 0
    %p184 = por %p182, %p183
    %p185 = scmp.ne.s32.totalorder %s177, %s179
    %p186 = scmp.eq.s32.totalorder %s22, 1
    %p187 = por %p185, %p186
    %p188 = scmp.ne.s32.totalorder %s179, %s180
    %p189 = scmp.eq.s32.totalorder %s22, 0
    %p190 = por %p188, %p189
    %p191 = scmp.ne.s32.totalorder %s179, %s180
    %p192 = scmp.eq.s32.totalorder %s23, 1
    %p193 = por %p191, %p192
    %p195 = scmp.ne.s32.totalorder %s180, %s194
    %p196 = scmp.eq.s32.totalorder %s23, 0
    %p197 = por %p195, %p196
    %s199 = sadd.s32 %s198, 1
    %p202 = scmp.eq.s32.totalorder %s17, 1
    %p203 = scmp.ne.s32.totalorder %s198, %s200
    %p204 = scmp.eq.s32.totalorder %s17, 0
    %p205 = por %p203, %p204
    %p206 = scmp.ne.s32.totalorder %s198, %s200
    %p207 = scmp.eq.s32.totalorder %s22, 1
    %p208 = por %p206, %p207
    %p209 = scmp.ne.s32.totalorder %s200, %s201
    %p210 = scmp.eq.s32.totalorder %s22, 0
    %p211 = por %p209, %p210
    %p212 = scmp.ne.s32.totalorder %s200, %s201
    %p213 = scmp.eq.s32.totalorder %s23, 1
    %p214 = por %p212, %p213
    %p216 = scmp.ne.s32.totalorder %s201, %s215
    %p217 = scmp.eq.s32.totalorder %s23, 0
    %p218 = por %p216, %p217
    %s220 = sadd.s32 %s219, 1
    %p223 = scmp.eq.s32.totalorder %s17, 1
    %p224 = scmp.ne.s32.totalorder %s219, %s221
    %p225 = scmp.eq.s32.totalorder %s17, 0
    %p226 = por %p224, %p225
    %p227 = scmp.ne.s32.totalorder %s219, %s221
    %p228 = scmp.eq.s32.totalorder %s22, 1
    %p229 = por %p227, %p228
    %p230 = scmp.ne.s32.totalorder %s221, %s222
    %p231 = scmp.eq.s32.totalorder %s22, 0
    %p232 = por %p230, %p231
    %p233 = scmp.ne.s32.totalorder %s221, %s222
    %p234 = scmp.eq.s32.totalorder %s23, 1
    %p235 = por %p233, %p234
    %p237 = scmp.ne.s32.totalorder %s222, %s236
    %p238 = scmp.eq.s32.totalorder %s23, 0
    %p239 = por %p237, %p238
    %s241 = sadd.s32 %s240, 1
    %p244 = scmp.eq.s32.totalorder %s17, 1
    %p245 = scmp.ne.s32.totalorder %s240, %s242
    %p246 = scmp.eq.s32.totalorder %s17, 0
    %p247 = por %p245, %p246
    %p248 = scmp.ne.s32.totalorder %s240, %s242
    %p249 = scmp.eq.s32.totalorder %s22, 1
    %p250 = por %p248, %p249
    %p251 = scmp.ne.s32.totalorder %s242, %s243
    %p252 = scmp.eq.s32.totalorder %s22, 0
    %p253 = por %p251, %p252
    %p254 = scmp.ne.s32.totalorder %s242, %s243
    %p255 = scmp.eq.s32.totalorder %s23, 1
    %p256 = por %p254, %p255
    %p258 = scmp.ne.s32.totalorder %s243, %s257
    %p259 = scmp.eq.s32.totalorder %s23, 0
    %p260 = por %p258, %p259
    %s261 = ssub.s32 %s17, %s24
    %p262 = scmp.eq.s32.totalorder %s261, 0
    %s264 = sadd.s32 %s263, 1
    %s265 = scalar_select %p262, %s263, %s264
    %p268 = pneg %p262
    %p269 = scmp.eq.s32.totalorder %s17, 1
    %p270 = por %p268, %p269
    %p271 = scmp.ne.s32.totalorder %s263, %s266
    %p272 = scmp.eq.s32.totalorder %s17, 0
    %p273 = por %p271, %p272
    %p274 = scmp.ne.s32.totalorder %s263, %s266
    %p275 = scmp.eq.s32.totalorder %s22, 1
    %p276 = por %p274, %p275
    %p277 = scmp.ne.s32.totalorder %s266, %s267
    %p278 = scmp.eq.s32.totalorder %s22, 0
    %p279 = por %p277, %p278
    %p280 = scmp.ne.s32.totalorder %s266, %s267
    %p281 = scmp.eq.s32.totalorder %s23, 1
    %p282 = por %p280, %p281
    %p284 = scmp.ne.s32.totalorder %s267, %s283
    %p285 = scmp.eq.s32.totalorder %s23, 0
    %p286 = por %p284, %p285
    %p287 = scmp.le.s32.totalorder 1, %s17
    %p288 = scmp.lt.s32.totalorder %s17, 3
    %p289 = pnand %p287, %p288
    %p290 = pneg %p289
    // Predicated region
    $region9: #{forward.1} parent=5 // pred_check
      _
    $region10: #{forward.1} parent=5 // pred_check_branch
      %292 = sbr.rel (%p289) target = $region12
    $region11: #{forward.1} parent=5 // pred_region
      %s293 = ssub.s32 %s17, 1
      // Predicated region
      $region13: #{forward.1} parent=11 // pred_check
        %p294 = pneg %p64
      $region14: #{forward.1} parent=11 // pred_check_branch
        %296 = sbr.rel (%p294) target = $region16
      $region15: #{forward.1} parent=11 // pred_region
        _
      $region16: #{forward.1} parent=11 // pred_fallthru
        _
      // Predicated region
      $region17: #{forward.1} parent=11 // pred_check
        %p297 = pneg %p85
      $region18: #{forward.1} parent=11 // pred_check_branch
        %299 = sbr.rel (%p297) target = $region20
      $region19: #{forward.1} parent=11 // pred_region
        _
      $region20: #{forward.1} parent=11 // pred_fallthru
        _
      // Predicated region
      $region21: #{forward.1} parent=11 // pred_check
        %p300 = pneg %p106
      $region22: #{forward.1} parent=11 // pred_check_branch
        %302 = sbr.rel (%p300) target = $region24
      $region23: #{forward.1} parent=11 // pred_region
        _
      $region24: #{forward.1} parent=11 // pred_fallthru
        _
      // Predicated region
      $region25: #{forward.1} parent=11 // pred_check
        %p303 = pneg %p127
      $region26: #{forward.1} parent=11 // pred_check_branch
        %305 = sbr.rel (%p303) target = $region28
      $region27: #{forward.1} parent=11 // pred_region
        _
      $region28: #{forward.1} parent=11 // pred_fallthru
        _
      // Predicated region
      $region29: #{forward.1} parent=11 // pred_check
        %p306 = pneg %p148
      $region30: #{forward.1} parent=11 // pred_check_branch
        %308 = sbr.rel (%p306) target = $region32
      $region31: #{forward.1} parent=11 // pred_region
        _
      $region32: #{forward.1} parent=11 // pred_fallthru
        _
      // Predicated region
      $region33: #{forward.1} parent=11 // pred_check
        %p309 = pneg %p169
      $region34: #{forward.1} parent=11 // pred_check_branch
        %311 = sbr.rel (%p309) target = $region36
      $region35: #{forward.1} parent=11 // pred_region
        _
      $region36: #{forward.1} parent=11 // pred_fallthru
        _
      // Predicated region
      $region37: #{forward.1} parent=11 // pred_check
        %p312 = pneg %p190
      $region38: #{forward.1} parent=11 // pred_check_branch
        %314 = sbr.rel (%p312) target = $region40
      $region39: #{forward.1} parent=11 // pred_region
        _
      $region40: #{forward.1} parent=11 // pred_fallthru
        _
      // Predicated region
      $region41: #{forward.1} parent=11 // pred_check
        %p315 = pneg %p211
      $region42: #{forward.1} parent=11 // pred_check_branch
        %317 = sbr.rel (%p315) target = $region44
      $region43: #{forward.1} parent=11 // pred_region
        _
      $region44: #{forward.1} parent=11 // pred_fallthru
        _
      // Predicated region
      $region45: #{forward.1} parent=11 // pred_check
        %p318 = pneg %p232
      $region46: #{forward.1} parent=11 // pred_check_branch
        %320 = sbr.rel (%p318) target = $region48
      $region47: #{forward.1} parent=11 // pred_region
        _
      $region48: #{forward.1} parent=11 // pred_fallthru
        _
      // Predicated region
      $region49: #{forward.1} parent=11 // pred_check
        %p321 = pneg %p253
      $region50: #{forward.1} parent=11 // pred_check_branch
        %323 = sbr.rel (%p321) target = $region52
      $region51: #{forward.1} parent=11 // pred_region
        _
      $region52: #{forward.1} parent=11 // pred_fallthru
        _
    $region12: #{forward.1} parent=5 // pred_fallthru
      _
    %p324 = scmp.lt.s32.totalorder %s17, 2
    // Predicated region
    $region53: #{forward.1} parent=5 // pred_check
      %p325 = pneg %p324
    $region54: #{forward.1} parent=5 // pred_check_branch
      %327 = sbr.rel (%p325) target = $region56
    $region55: #{forward.1} parent=5 // pred_region
      // Predicated region
      $region57: #{forward.1} parent=55 // pred_check
        %p328 = pneg %p37
      $region58: #{forward.1} parent=55 // pred_check_branch
        %330 = sbr.rel (%p328) target = $region60
      $region59: #{forward.1} parent=55 // pred_region
        %p331 = scmp.lt.s32.totalorder %s17, 1
        %s332 = scalar_select %p331, %s17, 1
        %s333 = smul.addr %s332, 36
        %s334 = smul.addr %s333, 4
        %s335 = scalar_lea.vmem %s0, %s334
      $region60: #{forward.1} parent=55 // pred_fallthru
        _
    $region56: #{forward.1} parent=5 // pred_fallthru
      _
    %p336 = scmp.le.s32.totalorder 1, %s17
    %p337 = scmp.lt.s32.totalorder %s17, 3
    %p338 = pnand %p336, %p337
    %p339 = pneg %p338
    // Predicated region
    $region61: #{forward.1} parent=5 // pred_check
      _
    $region62: #{forward.1} parent=5 // pred_check_branch
      %341 = sbr.rel (%p338) target = $region64
    $region63: #{forward.1} parent=5 // pred_region
      %s342 = ssub.s32 %s17, 1
      %p343 = scmp.lt.s32.totalorder %s22, 1
      %s344 = scalar_select %p343, %s22, 1
      %s345 = smul.addr %s344, 36
      %s346 = smul.addr %s345, 4
      %s347 = scalar_lea.vmem %s0, %s346
      %p348 = pneg %p43
      %p349 = pneg %p40
      %p350 = pneg %p64
      %p351 = pneg %p61
      %p352 = pneg %p85
      %p353 = pneg %p82
      %p354 = pneg %p106
      %p355 = pneg %p103
      %p356 = pneg %p127
      %p357 = pneg %p124
      %p358 = pneg %p148
      %p359 = pneg %p145
      %p360 = pneg %p169
      %p361 = pneg %p166
      %p362 = pneg %p190
      %p363 = pneg %p187
      %p364 = pneg %p211
      %p365 = pneg %p208
      %p366 = pneg %p232
      %p367 = pneg %p229
      %p368 = pneg %p253
      %p369 = pneg %p250
      %p370 = pneg %p279
      %p371 = pneg %p276
      %p372 = scmp.lt.s32.totalorder %s22, 1
      %s373 = scalar_select %p372, %s22, 1
      %s374 = smul.addr %s373, 8
      %s375 = scalar_lea.vmem %s11, %s374
      %p376 = scmp.lt.s32.totalorder %s22, 1
      %s377 = scalar_select %p376, %s22, 1
      %s378 = smul.addr %s377, 36
      %s379 = smul.addr %s378, 4
      %s380 = scalar_lea.vmem %s0, %s379
      %p381 = scmp.lt.s32.totalorder %s22, 1
      %s382 = scalar_select %p381, %s22, 1
      %s383 = smul.addr %s382, 8
      %s384 = scalar_lea.vmem %s11, %s383
      %v386 = vld [vmem:[%s380] sm:$0xff]
      %v387 = vld [vmem:[%s380 + $0x8] sm:$0xff]
      %v388 = vld [vmem:[%s380 + $0x10] sm:$0xff]
      %v389 = vld [vmem:[%s380 + $0x18] sm:$0xff]
      %v390 = vld [vmem:[%s380 + $0x20] sm:$0xff]
      %v391 = vld [vmem:[%s380 + $0x28] sm:$0xff]
      %v392 = vld [vmem:[%s380 + $0x30] sm:$0xff]
      %v393 = vld [vmem:[%s380 + $0x38] sm:$0xff]
      %v394 = vld [vmem:[%s380 + $0x40] sm:$0xff]
      %v395 = vld [vmem:[%s380 + $0x48] sm:$0xff]
      %v396 = vld [vmem:[%s380 + $0x50] sm:$0xff]
      %v397 = vld [vmem:[%s380 + $0x58] sm:$0xff]
      %v398 = vld [vmem:[%s380 + $0x60] sm:$0xff]
      %v399 = vld [vmem:[%s380 + $0x68] sm:$0xff]
      %v400 = vld [vmem:[%s380 + $0x70] sm:$0xff]
      %v401 = vld [vmem:[%s380 + $0x78] sm:$0xff]
      %v402 = vld [vmem:[%s380 + $0x80] sm:$0xff]
      %v403 = vld [vmem:[%s380 + $0x88] sm:$0xff]
      %v404 = vld [vmem:[%s1] sm:$0xf]
      %v405 = vld [vmem:[%s1 + $0x4] sm:$0xf]
      %v406 = vld [vmem:[%s1 + $0x8] sm:$0xf]
      %v407 = vld [vmem:[%s1 + $0xc] sm:$0xf]
      %v408 = vld [vmem:[%s1 + $0x10] sm:$0xf]
      %v409 = vld [vmem:[%s1 + $0x14] sm:$0xf]
      %v410 = vld [vmem:[%s1 + $0x18] sm:$0xf]
      %v411 = vld [vmem:[%s1 + $0x1c] sm:$0xf]
      %v412 = vld [vmem:[%s1 + $0x20] sm:$0xf]
      %v413 = vld [vmem:[%s1 + $0x24] sm:$0xf]
      %v414 = vld [vmem:[%s1 + $0x28] sm:$0xf]
      %v415 = vld [vmem:[%s1 + $0x2c] sm:$0xf]
      %v416 = vld [vmem:[%s1 + $0x30] sm:$0xf]
      %v417 = vld [vmem:[%s1 + $0x34] sm:$0xf]
      %v418 = vld [vmem:[%s1 + $0x38] sm:$0xf]
      %v419 = vld [vmem:[%s1 + $0x3c] sm:$0xf]
      %v420 = vld [vmem:[%s1 + $0x40] sm:$0xf]
      %v421 = vld [vmem:[%s1 + $0x44] sm:$0xf]
      %v422 = vld [vmem:[%s1 + $0x48] sm:$0xf]
      %v423 = vld [vmem:[%s1 + $0x4c] sm:$0xf]
      %v424 = vld [vmem:[%s1 + $0x50] sm:$0xf]
      %v425 = vld [vmem:[%s1 + $0x54] sm:$0xf]
      %v426 = vld [vmem:[%s1 + $0x58] sm:$0xf]
      %v427 = vld [vmem:[%s1 + $0x5c] sm:$0xf]
      %v428 = vld [vmem:[%s1 + $0x60] sm:$0xf]
      %v429 = vld [vmem:[%s1 + $0x64] sm:$0xf]
      %v430 = vld [vmem:[%s1 + $0x68] sm:$0xf]
      %v431 = vld [vmem:[%s1 + $0x6c] sm:$0xf]
      %v432 = vld [vmem:[%s1 + $0x70] sm:$0xf]
      %v433 = vld [vmem:[%s1 + $0x74] sm:$0xf]
      %v434 = vld [vmem:[%s1 + $0x78] sm:$0xf]
      %v435 = vld [vmem:[%s1 + $0x7c] sm:$0xf]
      %v436 = vld [vmem:[%s2] sm:$0x1]
      %v438 = vlaneseq
      %v439 = vshrl.u32 %v438, 7
      %v440 = vsub.s32 0, %v439
      %v441 = vrot.slane %v436, %v440
      %v461 = vunpack.c.l.b16 %v386
      %v462 = vunpack.c.h.b16 %v386
      %v463 = vunpack.c.l.b16 %v387
      %v464 = vunpack.c.h.b16 %v387
      %v465 = vunpack.c.l.b16 %v388
      %v466 = vunpack.c.h.b16 %v388
      %v467 = vunpack.c.l.b16 %v389
      %v468 = vunpack.c.h.b16 %v389
      %v469 = vunpack.c.l.b16 %v390
      %v470 = vunpack.c.h.b16 %v390
      %v471 = vunpack.c.l.b16 %v391
      %v472 = vunpack.c.h.b16 %v391
      %v473 = vunpack.c.l.b16 %v392
      %v474 = vunpack.c.h.b16 %v392
      %v475 = vunpack.c.l.b16 %v393
      %v476 = vunpack.c.h.b16 %v393
      %v477 = vunpack.c.l.b16 %v394
      %v478 = vunpack.c.h.b16 %v394
      %v479 = vunpack.c.l.b16 %v395
      %v480 = vunpack.c.h.b16 %v395
      %v481 = vunpack.c.l.b16 %v396
      %v482 = vunpack.c.h.b16 %v396
      %v483 = vunpack.c.l.b16 %v397
      %v484 = vunpack.c.h.b16 %v397
      %v485 = vunpack.c.l.b16 %v398
      %v486 = vunpack.c.h.b16 %v398
      %v487 = vunpack.c.l.b16 %v399
      %v488 = vunpack.c.h.b16 %v399
      %v489 = vunpack.c.l.b16 %v400
      %v490 = vunpack.c.h.b16 %v400
      %v491 = vunpack.c.l.b16 %v401
      %v492 = vunpack.c.h.b16 %v401
      %v493 = vunpack.c.l.b16 %v402
      %v494 = vunpack.c.h.b16 %v402
      %v495 = vunpack.c.l.b16 %v403
      %v496 = vunpack.c.h.b16 %v403
      %v497 = vpack.c.b16 %v463, %v461
      %v498 = vpack.c.b16 %v464, %v462
      %v499 = vpack.c.b16 %v467, %v465
      %v500 = vpack.c.b16 %v468, %v466
      %v501 = vpack.c.b16 %v471, %v469
      %v502 = vpack.c.b16 %v472, %v470
      %v503 = vpack.c.b16 %v475, %v473
      %v504 = vpack.c.b16 %v476, %v474
      %v505 = vpack.c.b16 %v479, %v477
      %v506 = vpack.c.b16 %v480, %v478
      %v507 = vpack.c.b16 %v483, %v481
      %v508 = vpack.c.b16 %v484, %v482
      %v509 = vpack.c.b16 %v487, %v485
      %v510 = vpack.c.b16 %v488, %v486
      %v511 = vpack.c.b16 %v491, %v489
      %v512 = vpack.c.b16 %v492, %v490
      %v513 = vpack.c.b16 %v495, %v493
      %v514 = vpack.c.b16 %v496, %v494
      %v565 = vunpack.c.l.b16 %v404
      %v566 = vunpack.c.l.b16 %v405
      %v567 = vunpack.c.l.b16 %v406
      %v568 = vunpack.c.l.b16 %v407
      %v569 = vunpack.c.l.b16 %v408
      %v570 = vunpack.c.l.b16 %v409
      %v571 = vunpack.c.l.b16 %v410
      %v572 = vunpack.c.l.b16 %v411
      %v573 = vunpack.c.l.b16 %v412
      %v574 = vunpack.c.l.b16 %v413
      %v575 = vunpack.c.l.b16 %v414
      %v576 = vunpack.c.l.b16 %v415
      %v577 = vunpack.c.l.b16 %v416
      %v578 = vunpack.c.l.b16 %v417
      %v579 = vunpack.c.l.b16 %v418
      %v580 = vunpack.c.l.b16 %v419
      %v581 = vunpack.c.l.b16 %v420
      %v582 = vunpack.c.l.b16 %v421
      %v583 = vunpack.c.l.b16 %v422
      %v584 = vunpack.c.l.b16 %v423
      %v585 = vunpack.c.l.b16 %v424
      %v586 = vunpack.c.l.b16 %v425
      %v587 = vunpack.c.l.b16 %v426
      %v588 = vunpack.c.l.b16 %v427
      %v589 = vunpack.c.l.b16 %v428
      %v590 = vunpack.c.l.b16 %v429
      %v591 = vunpack.c.l.b16 %v430
      %v592 = vunpack.c.l.b16 %v431
      %v593 = vunpack.c.l.b16 %v432
      %v594 = vunpack.c.l.b16 %v433
      %v595 = vunpack.c.l.b16 %v434
      %v596 = vunpack.c.l.b16 %v435
      %v597 = vpack.c.b16 %v566, %v565
      %v598 = vpack.c.b16 %v568, %v567
      %v599 = vpack.c.b16 %v570, %v569
      %v600 = vpack.c.b16 %v572, %v571
      %v601 = vpack.c.b16 %v574, %v573
      %v602 = vpack.c.b16 %v576, %v575
      %v603 = vpack.c.b16 %v578, %v577
      %v604 = vpack.c.b16 %v580, %v579
      %v605 = vpack.c.b16 %v582, %v581
      %v606 = vpack.c.b16 %v584, %v583
      %v607 = vpack.c.b16 %v586, %v585
      %v608 = vpack.c.b16 %v588, %v587
      %v609 = vpack.c.b16 %v590, %v589
      %v610 = vpack.c.b16 %v592, %v591
      %v611 = vpack.c.b16 %v594, %v593
      %v612 = vpack.c.b16 %v596, %v595
      %629 = vmatprep.subr.bf16.mxu0 0
      %630 = vmatpush1.bf16.msra.mxu0 %v597
      %631 = vmatprep.subr.bf16.mxu0 0
      %632 = vmatpush1.bf16.msra.mxu0 %v598
      %633 = vmatprep.subr.bf16.mxu0 0
      %634 = vmatpush1.bf16.msra.mxu0 %v599
      %635 = vmatprep.subr.bf16.mxu0 0
      %636 = vmatpush1.bf16.msra.mxu0 %v600
      %637 = vmatprep.subr.bf16.mxu0 0
      %638 = vmatpush1.bf16.msra.mxu0 %v601
      %639 = vmatprep.subr.bf16.mxu0 0
      %640 = vmatpush1.bf16.msra.mxu0 %v602
      %641 = vmatprep.subr.bf16.mxu0 0
      %642 = vmatpush1.bf16.msra.mxu0 %v603
      %643 = vmatprep.subr.bf16.mxu0 0
      %644 = vmatpush1.bf16.msra.mxu0 %v604
      %645 = vmatprep.subr.bf16.mxu0 0
      %646 = vmatpush1.bf16.msra.mxu0 %v605
      %647 = vmatprep.subr.bf16.mxu0 0
      %648 = vmatpush1.bf16.msra.mxu0 %v606
      %649 = vmatprep.subr.bf16.mxu0 0
      %650 = vmatpush1.bf16.msra.mxu0 %v607
      %651 = vmatprep.subr.bf16.mxu0 0
      %652 = vmatpush1.bf16.msra.mxu0 %v608
      %653 = vmatprep.subr.bf16.mxu0 0
      %654 = vmatpush1.bf16.msra.mxu0 %v609
      %655 = vmatprep.subr.bf16.mxu0 0
      %656 = vmatpush1.bf16.msra.mxu0 %v610
      %657 = vmatprep.subr.bf16.mxu0 0
      %658 = vmatpush1.bf16.msra.mxu0 %v611
      %659 = vmatprep.subr.bf16.mxu0 0
      %660 = vmatpush1.bf16.msra.mxu0 %v612
      %661 = vmatprep.mubr.bf16.mxu0 %v498
      %662 = vmatmul.mubr.bf16.gmra.mrb[0].mxu0 %v497
      %v663 = vpop.f32.mrb[0].mxu0
      %v664 = vadd.f32 %v441, %v663
      %v665 = vpop.f32.mrb[0].mxu0
      %v666 = vpop.f32.mrb[0].mxu0
      %v667 = vadd.f32 %v441, %v666
      %v668 = vpop.f32.mrb[0].mxu0
      %669 = vmatprep.mubr.bf16.mxu0 %v500
      %670 = vmatmul.mubr.bf16.gmra.mrb[0].mxu0 %v499
      %v671 = vpop.f32.mrb[0].mxu0
      %v672 = vadd.f32 %v441, %v671
      %v673 = vpop.f32.mrb[0].mxu0
      %v674 = vpop.f32.mrb[0].mxu0
      %v675 = vadd.f32 %v441, %v674
      %v676 = vpop.f32.mrb[0].mxu0
      %677 = vmatprep.mubr.bf16.mxu0 %v502
      %678 = vmatmul.mubr.bf16.gmra.mrb[0].mxu0 %v501
      %v679 = vpop.f32.mrb[0].mxu0
      %v680 = vadd.f32 %v441, %v679
      %v681 = vpop.f32.mrb[0].mxu0
      %v682 = vpop.f32.mrb[0].mxu0
      %v683 = vadd.f32 %v441, %v682
      %v684 = vpop.f32.mrb[0].mxu0
      %685 = vmatprep.mubr.bf16.mxu0 %v504
      %686 = vmatmul.mubr.bf16.gmra.mrb[0].mxu0 %v503
      %v687 = vpop.f32.mrb[0].mxu0
      %v688 = vadd.f32 %v441, %v687
      %v689 = vpop.f32.mrb[0].mxu0
      %v690 = vpop.f32.mrb[0].mxu0
      %v691 = vadd.f32 %v441, %v690
      %v692 = vpop.f32.mrb[0].mxu0
      %693 = vmatprep.mubr.bf16.mxu0 %v506
      %694 = vmatmul.mubr.bf16.gmra.mrb[0].mxu0 %v505
      %v695 = vpop.f32.mrb[0].mxu0
      %v696 = vadd.f32 %v441, %v695
      %v697 = vpop.f32.mrb[0].mxu0
      %v698 = vpop.f32.mrb[0].mxu0
      %v699 = vadd.f32 %v441, %v698
      %v700 = vpop.f32.mrb[0].mxu0
      %701 = vmatprep.mubr.bf16.mxu0 %v508
      %702 = vmatmul.mubr.bf16.gmra.mrb[0].mxu0 %v507
      %v703 = vpop.f32.mrb[0].mxu0
      %v704 = vadd.f32 %v441, %v703
      %v705 = vpop.f32.mrb[0].mxu0
      %v706 = vpop.f32.mrb[0].mxu0
      %v707 = vadd.f32 %v441, %v706
      %v708 = vpop.f32.mrb[0].mxu0
      %709 = vmatprep.mubr.bf16.mxu0 %v510
      %710 = vmatmul.mubr.bf16.gmra.mrb[0].mxu0 %v509
      %v711 = vpop.f32.mrb[0].mxu0
      %v712 = vadd.f32 %v441, %v711
      %v713 = vpop.f32.mrb[0].mxu0
      %v714 = vpop.f32.mrb[0].mxu0
      %v715 = vadd.f32 %v441, %v714
      %v716 = vpop.f32.mrb[0].mxu0
      %717 = vmatprep.mubr.bf16.mxu0 %v512
      %718 = vmatmul.mubr.bf16.gmra.mrb[0].mxu0 %v511
      %v719 = vpop.f32.mrb[0].mxu0
      %v720 = vadd.f32 %v441, %v719
      %v721 = vpop.f32.mrb[0].mxu0
      %v722 = vpop.f32.mrb[0].mxu0
      %v723 = vadd.f32 %v441, %v722
      %v724 = vpop.f32.mrb[0].mxu0
      %725 = vmatprep.mubr.bf16.mxu0 %v514
      %726 = vmatmul.mubr.bf16.gmra.mrb[0].mxu0 %v513
      %v727 = vpop.f32.mrb[0].mxu0
      %v728 = vadd.f32 %v441, %v727
      %v729 = vpop.f32.mrb[0].mxu0
      %v730 = vpop.f32.mrb[0].mxu0
      %v731 = vadd.f32 %v441, %v730
      %v732 = vpop.f32.mrb[0].mxu0
      %733 = vdwg.mxu0
      %v734 = vmax.f32 %v664, 0.0
      %v735 = vmax.f32 %v667, 0.0
      %v736 = vmax.f32 %v672, 0.0
      %v737 = vmax.f32 %v675, 0.0
      %v738 = vmax.f32 %v680, 0.0
      %v739 = vmax.f32 %v683, 0.0
      %v740 = vmax.f32 %v688, 0.0
      %v741 = vmax.f32 %v691, 0.0
      %v742 = vmax.f32 %v696, 0.0
      %v743 = vmax.f32 %v699, 0.0
      %v744 = vmax.f32 %v704, 0.0
      %v745 = vmax.f32 %v707, 0.0
      %v746 = vmax.f32 %v712, 0.0
      %v747 = vmax.f32 %v715, 0.0
      %v748 = vmax.f32 %v720, 0.0
      %v749 = vmax.f32 %v723, 0.0
      %v750 = vmax.f32 %v728, 0.0
      %v751 = vmax.f32 %v731, 0.0
      %v752 = vpack.c.bf16 %v735, %v734
      %v753 = vpack.c.bf16 %v737, %v736
      %v754 = vpack.c.bf16 %v739, %v738
      %v755 = vpack.c.bf16 %v741, %v740
      %v756 = vpack.c.bf16 %v743, %v742
      %v757 = vpack.c.bf16 %v745, %v744
      %v758 = vpack.c.bf16 %v747, %v746
      %v759 = vpack.c.bf16 %v749, %v748
      %v760 = vpack.c.bf16 %v751, %v750
      %v770 = vcombine.high %v752, %v752
      %v772 = vunpack.c.l.s4 1966171168
      %v773 = vunpack.c.0.s8 %v772
      %v774 = vlaneseq
      %v775 = vshrl.u32 %v774, 7
      %v776 = vsub.s32 %v773, %v775
      %v777 = vrot.slane %v752, %v776
      %v779 = vunpack.c.l.s4 1966171168
      %v780 = vunpack.c.0.s8 %v779
      %v781 = vlaneseq
      %v782 = vshrl.u32 %v781, 7
      %v783 = vsub.s32 %v780, %v782
      %v784 = vrot.slane %v770, %v783
      %v785 = vcombine.high %v777, %v777
      %v786 = vcombine.high %v784, %v784
      %v788 = vunpack.c.l.s4 1966171168
      %v789 = vunpack.c.0.s8 %v788
      %v790 = vlaneseq
      %v791 = vshrl.u32 %v790, 7
      %v792 = vsub.s32 %v789, %v791
      %v793 = vrot.slane %v777, %v792
      %v795 = vunpack.c.l.s4 1966171168
      %v796 = vunpack.c.0.s8 %v795
      %v797 = vlaneseq
      %v798 = vshrl.u32 %v797, 7
      %v799 = vsub.s32 %v796, %v798
      %v800 = vrot.slane %v784, %v799
      %v802 = vunpack.c.l.s4 1966171168
      %v803 = vunpack.c.0.s8 %v802
      %v804 = vlaneseq
      %v805 = vshrl.u32 %v804, 7
      %v806 = vsub.s32 %v803, %v805
      %v807 = vrot.slane %v785, %v806
      %v809 = vunpack.c.l.s4 1966171168
      %v810 = vunpack.c.0.s8 %v809
      %v811 = vlaneseq
      %v812 = vshrl.u32 %v811, 7
      %v813 = vsub.s32 %v810, %v812
      %v814 = vrot.slane %v786, %v813
      %v815 = vcombine.high %v793, %v793
      %v816 = vcombine.high %v800, %v800
      %v817 = vcombine.high %v807, %v807
      %v818 = vcombine.high %v814, %v814
      %v819 = vcombine.high %v753, %v753
      %v821 = vunpack.c.l.s4 1966171168
      %v822 = vunpack.c.0.s8 %v821
      %v823 = vlaneseq
      %v824 = vshrl.u32 %v823, 7
      %v825 = vsub.s32 %v822, %v824
      %v826 = vrot.slane %v753, %v825
      %v828 = vunpack.c.l.s4 1966171168
      %v829 = vunpack.c.0.s8 %v828
      %v830 = vlaneseq
      %v831 = vshrl.u32 %v830, 7
      %v832 = vsub.s32 %v829, %v831
      %v833 = vrot.slane %v819, %v832
      %v834 = vcombine.high %v826, %v826
      %v835 = vcombine.high %v833, %v833
      %v837 = vunpack.c.l.s4 1966171168
      %v838 = vunpack.c.0.s8 %v837
      %v839 = vlaneseq
      %v840 = vshrl.u32 %v839, 7
      %v841 = vsub.s32 %v838, %v840
      %v842 = vrot.slane %v826, %v841
      %v844 = vunpack.c.l.s4 1966171168
      %v845 = vunpack.c.0.s8 %v844
      %v846 = vlaneseq
      %v847 = vshrl.u32 %v846, 7
      %v848 = vsub.s32 %v845, %v847
      %v849 = vrot.slane %v833, %v848
      %v851 = vunpack.c.l.s4 1966171168
      %v852 = vunpack.c.0.s8 %v851
      %v853 = vlaneseq
      %v854 = vshrl.u32 %v853, 7
      %v855 = vsub.s32 %v852, %v854
      %v856 = vrot.slane %v834, %v855
      %v858 = vunpack.c.l.s4 1966171168
      %v859 = vunpack.c.0.s8 %v858
      %v860 = vlaneseq
      %v861 = vshrl.u32 %v860, 7
      %v862 = vsub.s32 %v859, %v861
      %v863 = vrot.slane %v835, %v862
      %v864 = vcombine.high %v842, %v842
      %v865 = vcombine.high %v849, %v849
      %v866 = vcombine.high %v856, %v856
      %v867 = vcombine.high %v863, %v863
      %v868 = vcombine.high %v754, %v754
      %v870 = vunpack.c.l.s4 1966171168
      %v871 = vunpack.c.0.s8 %v870
      %v872 = vlaneseq
      %v873 = vshrl.u32 %v872, 7
      %v874 = vsub.s32 %v871, %v873
      %v875 = vrot.slane %v754, %v874
      %v877 = vunpack.c.l.s4 1966171168
      %v878 = vunpack.c.0.s8 %v877
      %v879 = vlaneseq
      %v880 = vshrl.u32 %v879, 7
      %v881 = vsub.s32 %v878, %v880
      %v882 = vrot.slane %v868, %v881
      %v883 = vcombine.high %v875, %v875
      %v884 = vcombine.high %v882, %v882
      %v886 = vunpack.c.l.s4 1966171168
      %v887 = vunpack.c.0.s8 %v886
      %v888 = vlaneseq
      %v889 = vshrl.u32 %v888, 7
      %v890 = vsub.s32 %v887, %v889
      %v891 = vrot.slane %v875, %v890
      %v893 = vunpack.c.l.s4 1966171168
      %v894 = vunpack.c.0.s8 %v893
      %v895 = vlaneseq
      %v896 = vshrl.u32 %v895, 7
      %v897 = vsub.s32 %v894, %v896
      %v898 = vrot.slane %v882, %v897
      %v900 = vunpack.c.l.s4 1966171168
      %v901 = vunpack.c.0.s8 %v900
      %v902 = vlaneseq
      %v903 = vshrl.u32 %v902, 7
      %v904 = vsub.s32 %v901, %v903
      %v905 = vrot.slane %v883, %v904
      %v907 = vunpack.c.l.s4 1966171168
      %v908 = vunpack.c.0.s8 %v907
      %v909 = vlaneseq
      %v910 = vshrl.u32 %v909, 7
      %v911 = vsub.s32 %v908, %v910
      %v912 = vrot.slane %v884, %v911
      %v913 = vcombine.high %v891, %v891
      %v914 = vcombine.high %v898, %v898
      %v915 = vcombine.high %v905, %v905
      %v916 = vcombine.high %v912, %v912
      %v917 = vcombine.high %v755, %v755
      %v919 = vunpack.c.l.s4 1966171168
      %v920 = vunpack.c.0.s8 %v919
      %v921 = vlaneseq
      %v922 = vshrl.u32 %v921, 7
      %v923 = vsub.s32 %v920, %v922
      %v924 = vrot.slane %v755, %v923
      %v926 = vunpack.c.l.s4 1966171168
      %v927 = vunpack.c.0.s8 %v926
      %v928 = vlaneseq
      %v929 = vshrl.u32 %v928, 7
      %v930 = vsub.s32 %v927, %v929
      %v931 = vrot.slane %v917, %v930
      %v932 = vcombine.high %v924, %v924
      %v933 = vcombine.high %v931, %v931
      %v935 = vunpack.c.l.s4 1966171168
      %v936 = vunpack.c.0.s8 %v935
      %v937 = vlaneseq
      %v938 = vshrl.u32 %v937, 7
      %v939 = vsub.s32 %v936, %v938
      %v940 = vrot.slane %v924, %v939
      %v942 = vunpack.c.l.s4 1966171168
      %v943 = vunpack.c.0.s8 %v942
      %v944 = vlaneseq
      %v945 = vshrl.u32 %v944, 7
      %v946 = vsub.s32 %v943, %v945
      %v947 = vrot.slane %v931, %v946
      %v949 = vunpack.c.l.s4 1966171168
      %v950 = vunpack.c.0.s8 %v949
      %v951 = vlaneseq
      %v952 = vshrl.u32 %v951, 7
      %v953 = vsub.s32 %v950, %v952
      %v954 = vrot.slane %v932, %v953
      %v956 = vunpack.c.l.s4 1966171168
      %v957 = vunpack.c.0.s8 %v956
      %v958 = vlaneseq
      %v959 = vshrl.u32 %v958, 7
      %v960 = vsub.s32 %v957, %v959
      %v961 = vrot.slane %v933, %v960
      %v962 = vcombine.high %v940, %v940
      %v963 = vcombine.high %v947, %v947
      %v964 = vcombine.high %v954, %v954
      %v965 = vcombine.high %v961, %v961
      %v966 = vcombine.high %v756, %v756
      %v968 = vunpack.c.l.s4 1966171168
      %v969 = vunpack.c.0.s8 %v968
      %v970 = vlaneseq
      %v971 = vshrl.u32 %v970, 7
      %v972 = vsub.s32 %v969, %v971
      %v973 = vrot.slane %v756, %v972
      %v975 = vunpack.c.l.s4 1966171168
      %v976 = vunpack.c.0.s8 %v975
      %v977 = vlaneseq
      %v978 = vshrl.u32 %v977, 7
      %v979 = vsub.s32 %v976, %v978
      %v980 = vrot.slane %v966, %v979
      %v981 = vcombine.high %v973, %v973
      %v982 = vcombine.high %v980, %v980
      %v984 = vunpack.c.l.s4 1966171168
      %v985 = vunpack.c.0.s8 %v984
      %v986 = vlaneseq
      %v987 = vshrl.u32 %v986, 7
      %v988 = vsub.s32 %v985, %v987
      %v989 = vrot.slane %v973, %v988
      %v991 = vunpack.c.l.s4 1966171168
      %v992 = vunpack.c.0.s8 %v991
      %v993 = vlaneseq
      %v994 = vshrl.u32 %v993, 7
      %v995 = vsub.s32 %v992, %v994
      %v996 = vrot.slane %v980, %v995
      %v998 = vunpack.c.l.s4 1966171168
      %v999 = vunpack.c.0.s8 %v998
      %v1000 = vlaneseq
      %v1001 = vshrl.u32 %v1000, 7
      %v1002 = vsub.s32 %v999, %v1001
      %v1003 = vrot.slane %v981, %v1002
      %v1005 = vunpack.c.l.s4 1966171168
      %v1006 = vunpack.c.0.s8 %v1005
      %v1007 = vlaneseq
      %v1008 = vshrl.u32 %v1007, 7
      %v1009 = vsub.s32 %v1006, %v1008
      %v1010 = vrot.slane %v982, %v1009
      %v1011 = vcombine.high %v989, %v989
      %v1012 = vcombine.high %v996, %v996
      %v1013 = vcombine.high %v1003, %v1003
      %v1014 = vcombine.high %v1010, %v1010
      %v1015 = vcombine.high %v757, %v757
      %v1017 = vunpack.c.l.s4 1966171168
      %v1018 = vunpack.c.0.s8 %v1017
      %v1019 = vlaneseq
      %v1020 = vshrl.u32 %v1019, 7
      %v1021 = vsub.s32 %v1018, %v1020
      %v1022 = vrot.slane %v757, %v1021
      %v1024 = vunpack.c.l.s4 1966171168
      %v1025 = vunpack.c.0.s8 %v1024
      %v1026 = vlaneseq
      %v1027 = vshrl.u32 %v1026, 7
      %v1028 = vsub.s32 %v1025, %v1027
      %v1029 = vrot.slane %v1015, %v1028
      %v1030 = vcombine.high %v1022, %v1022
      %v1031 = vcombine.high %v1029, %v1029
      %v1033 = vunpack.c.l.s4 1966171168
      %v1034 = vunpack.c.0.s8 %v1033
      %v1035 = vlaneseq
      %v1036 = vshrl.u32 %v1035, 7
      %v1037 = vsub.s32 %v1034, %v1036
      %v1038 = vrot.slane %v1022, %v1037
      %v1040 = vunpack.c.l.s4 1966171168
      %v1041 = vunpack.c.0.s8 %v1040
      %v1042 = vlaneseq
      %v1043 = vshrl.u32 %v1042, 7
      %v1044 = vsub.s32 %v1041, %v1043
      %v1045 = vrot.slane %v1029, %v1044
      %v1047 = vunpack.c.l.s4 1966171168
      %v1048 = vunpack.c.0.s8 %v1047
      %v1049 = vlaneseq
      %v1050 = vshrl.u32 %v1049, 7
      %v1051 = vsub.s32 %v1048, %v1050
      %v1052 = vrot.slane %v1030, %v1051
      %v1054 = vunpack.c.l.s4 1966171168
      %v1055 = vunpack.c.0.s8 %v1054
      %v1056 = vlaneseq
      %v1057 = vshrl.u32 %v1056, 7
      %v1058 = vsub.s32 %v1055, %v1057
      %v1059 = vrot.slane %v1031, %v1058
      %v1060 = vcombine.high %v1038, %v1038
      %v1061 = vcombine.high %v1045, %v1045
      %v1062 = vcombine.high %v1052, %v1052
      %v1063 = vcombine.high %v1059, %v1059
      %v1064 = vcombine.high %v758, %v758
      %v1066 = vunpack.c.l.s4 1966171168
      %v1067 = vunpack.c.0.s8 %v1066
      %v1068 = vlaneseq
      %v1069 = vshrl.u32 %v1068, 7
      %v1070 = vsub.s32 %v1067, %v1069
      %v1071 = vrot.slane %v758, %v1070
      %v1073 = vunpack.c.l.s4 1966171168
      %v1074 = vunpack.c.0.s8 %v1073
      %v1075 = vlaneseq
      %v1076 = vshrl.u32 %v1075, 7
      %v1077 = vsub.s32 %v1074, %v1076
      %v1078 = vrot.slane %v1064, %v1077
      %v1079 = vcombine.high %v1071, %v1071
      %v1080 = vcombine.high %v1078, %v1078
      %v1082 = vunpack.c.l.s4 1966171168
      %v1083 = vunpack.c.0.s8 %v1082
      %v1084 = vlaneseq
      %v1085 = vshrl.u32 %v1084, 7
      %v1086 = vsub.s32 %v1083, %v1085
      %v1087 = vrot.slane %v1071, %v1086
      %v1089 = vunpack.c.l.s4 1966171168
      %v1090 = vunpack.c.0.s8 %v1089
      %v1091 = vlaneseq
      %v1092 = vshrl.u32 %v1091, 7
      %v1093 = vsub.s32 %v1090, %v1092
      %v1094 = vrot.slane %v1078, %v1093
      %v1096 = vunpack.c.l.s4 1966171168
      %v1097 = vunpack.c.0.s8 %v1096
      %v1098 = vlaneseq
      %v1099 = vshrl.u32 %v1098, 7
      %v1100 = vsub.s32 %v1097, %v1099
      %v1101 = vrot.slane %v1079, %v1100
      %v1103 = vunpack.c.l.s4 1966171168
      %v1104 = vunpack.c.0.s8 %v1103
      %v1105 = vlaneseq
      %v1106 = vshrl.u32 %v1105, 7
      %v1107 = vsub.s32 %v1104, %v1106
      %v1108 = vrot.slane %v1080, %v1107
      %v1109 = vcombine.high %v1087, %v1087
      %v1110 = vcombine.high %v1094, %v1094
      %v1111 = vcombine.high %v1101, %v1101
      %v1112 = vcombine.high %v1108, %v1108
      %v1113 = vcombine.high %v759, %v759
      %v1115 = vunpack.c.l.s4 1966171168
      %v1116 = vunpack.c.0.s8 %v1115
      %v1117 = vlaneseq
      %v1118 = vshrl.u32 %v1117, 7
      %v1119 = vsub.s32 %v1116, %v1118
      %v1120 = vrot.slane %v759, %v1119
      %v1122 = vunpack.c.l.s4 1966171168
      %v1123 = vunpack.c.0.s8 %v1122
      %v1124 = vlaneseq
      %v1125 = vshrl.u32 %v1124, 7
      %v1126 = vsub.s32 %v1123, %v1125
      %v1127 = vrot.slane %v1113, %v1126
      %v1128 = vcombine.high %v1120, %v1120
      %v1129 = vcombine.high %v1127, %v1127
      %v1131 = vunpack.c.l.s4 1966171168
      %v1132 = vunpack.c.0.s8 %v1131
      %v1133 = vlaneseq
      %v1134 = vshrl.u32 %v1133, 7
      %v1135 = vsub.s32 %v1132, %v1134
      %v1136 = vrot.slane %v1120, %v1135
      %v1138 = vunpack.c.l.s4 1966171168
      %v1139 = vunpack.c.0.s8 %v1138
      %v1140 = vlaneseq
      %v1141 = vshrl.u32 %v1140, 7
      %v1142 = vsub.s32 %v1139, %v1141
      %v1143 = vrot.slane %v1127, %v1142
      %v1145 = vunpack.c.l.s4 1966171168
      %v1146 = vunpack.c.0.s8 %v1145
      %v1147 = vlaneseq
      %v1148 = vshrl.u32 %v1147, 7
      %v1149 = vsub.s32 %v1146, %v1148
      %v1150 = vrot.slane %v1128, %v1149
      %v1152 = vunpack.c.l.s4 1966171168
      %v1153 = vunpack.c.0.s8 %v1152
      %v1154 = vlaneseq
      %v1155 = vshrl.u32 %v1154, 7
      %v1156 = vsub.s32 %v1153, %v1155
      %v1157 = vrot.slane %v1129, %v1156
      %v1158 = vcombine.high %v1136, %v1136
      %v1159 = vcombine.high %v1143, %v1143
      %v1160 = vcombine.high %v1150, %v1150
      %v1161 = vcombine.high %v1157, %v1157
      %v1162 = vcombine.high %v760, %v760
      %v1164 = vunpack.c.l.s4 1966171168
      %v1165 = vunpack.c.0.s8 %v1164
      %v1166 = vlaneseq
      %v1167 = vshrl.u32 %v1166, 7
      %v1168 = vsub.s32 %v1165, %v1167
      %v1169 = vrot.slane %v760, %v1168
      %v1171 = vunpack.c.l.s4 1966171168
      %v1172 = vunpack.c.0.s8 %v1171
      %v1173 = vlaneseq
      %v1174 = vshrl.u32 %v1173, 7
      %v1175 = vsub.s32 %v1172, %v1174
      %v1176 = vrot.slane %v1162, %v1175
      %v1177 = vcombine.high %v1169, %v1169
      %v1178 = vcombine.high %v1176, %v1176
      %v1180 = vunpack.c.l.s4 1966171168
      %v1181 = vunpack.c.0.s8 %v1180
      %v1182 = vlaneseq
      %v1183 = vshrl.u32 %v1182, 7
      %v1184 = vsub.s32 %v1181, %v1183
      %v1185 = vrot.slane %v1169, %v1184
      %v1187 = vunpack.c.l.s4 1966171168
      %v1188 = vunpack.c.0.s8 %v1187
      %v1189 = vlaneseq
      %v1190 = vshrl.u32 %v1189, 7
      %v1191 = vsub.s32 %v1188, %v1190
      %v1192 = vrot.slane %v1176, %v1191
      %v1194 = vunpack.c.l.s4 1966171168
      %v1195 = vunpack.c.0.s8 %v1194
      %v1196 = vlaneseq
      %v1197 = vshrl.u32 %v1196, 7
      %v1198 = vsub.s32 %v1195, %v1197
      %v1199 = vrot.slane %v1177, %v1198
      %v1201 = vunpack.c.l.s4 1966171168
      %v1202 = vunpack.c.0.s8 %v1201
      %v1203 = vlaneseq
      %v1204 = vshrl.u32 %v1203, 7
      %v1205 = vsub.s32 %v1202, %v1204
      %v1206 = vrot.slane %v1178, %v1205
      %v1207 = vcombine.high %v1185, %v1185
      %v1208 = vcombine.high %v1192, %v1192
      %v1209 = vcombine.high %v1199, %v1199
      %v1210 = vcombine.high %v1206, %v1206
      %v1212 = vunpack.c.l.s4 1966171168
      %v1213 = vunpack.c.0.s8 %v1212
      %v1214 = vlaneseq
      %v1215 = vshrl.u32 %v1214, 7
      %v1216 = vsub.s32 %v1213, %v1215
      %v1217 = vrot.slane %v793, %v1216
      %v1219 = vunpack.c.l.s4 1966171168
      %v1220 = vunpack.c.0.s8 %v1219
      %v1221 = vlaneseq
      %v1222 = vshrl.u32 %v1221, 7
      %v1223 = vsub.s32 %v1220, %v1222
      %v1224 = vrot.slane %v1217, %v1223
      %v1226 = vunpack.c.l.s4 1966171168
      %v1227 = vunpack.c.0.s8 %v1226
      %v1228 = vlaneseq
      %v1229 = vshrl.u32 %v1228, 7
      %v1230 = vsub.s32 %v1227, %v1229
      %v1231 = vrot.slane %v807, %v1230
      %v1233 = vunpack.c.l.s4 1966171168
      %v1234 = vunpack.c.0.s8 %v1233
      %v1235 = vlaneseq
      %v1236 = vshrl.u32 %v1235, 7
      %v1237 = vsub.s32 %v1234, %v1236
      %v1238 = vrot.slane %v1231, %v1237
      %v1240 = vunpack.c.l.s4 1966171168
      %v1241 = vunpack.c.0.s8 %v1240
      %v1242 = vlaneseq
      %v1243 = vshrl.u32 %v1242, 7
      %v1244 = vsub.s32 %v1241, %v1243
      %v1245 = vrot.slane %v815, %v1244
      %v1247 = vunpack.c.l.s4 1966171168
      %v1248 = vunpack.c.0.s8 %v1247
      %v1249 = vlaneseq
      %v1250 = vshrl.u32 %v1249, 7
      %v1251 = vsub.s32 %v1248, %v1250
      %v1252 = vrot.slane %v1245, %v1251
      %v1254 = vunpack.c.l.s4 1966171168
      %v1255 = vunpack.c.0.s8 %v1254
      %v1256 = vlaneseq
      %v1257 = vshrl.u32 %v1256, 7
      %v1258 = vsub.s32 %v1255, %v1257
      %v1259 = vrot.slane %v817, %v1258
      %v1261 = vunpack.c.l.s4 1966171168
      %v1262 = vunpack.c.0.s8 %v1261
      %v1263 = vlaneseq
      %v1264 = vshrl.u32 %v1263, 7
      %v1265 = vsub.s32 %v1262, %v1264
      %v1266 = vrot.slane %v1259, %v1265
      %v1268 = vunpack.c.l.s4 1966171168
      %v1269 = vunpack.c.0.s8 %v1268
      %v1270 = vlaneseq
      %v1271 = vshrl.u32 %v1270, 7
      %v1272 = vsub.s32 %v1269, %v1271
      %v1273 = vrot.slane %v800, %v1272
      %v1275 = vunpack.c.l.s4 1966171168
      %v1276 = vunpack.c.0.s8 %v1275
      %v1277 = vlaneseq
      %v1278 = vshrl.u32 %v1277, 7
      %v1279 = vsub.s32 %v1276, %v1278
      %v1280 = vrot.slane %v1273, %v1279
      %v1282 = vunpack.c.l.s4 1966171168
      %v1283 = vunpack.c.0.s8 %v1282
      %v1284 = vlaneseq
      %v1285 = vshrl.u32 %v1284, 7
      %v1286 = vsub.s32 %v1283, %v1285
      %v1287 = vrot.slane %v814, %v1286
      %v1289 = vunpack.c.l.s4 1966171168
      %v1290 = vunpack.c.0.s8 %v1289
      %v1291 = vlaneseq
      %v1292 = vshrl.u32 %v1291, 7
      %v1293 = vsub.s32 %v1290, %v1292
      %v1294 = vrot.slane %v1287, %v1293
      %v1296 = vunpack.c.l.s4 1966171168
      %v1297 = vunpack.c.0.s8 %v1296
      %v1298 = vlaneseq
      %v1299 = vshrl.u32 %v1298, 7
      %v1300 = vsub.s32 %v1297, %v1299
      %v1301 = vrot.slane %v849, %v1300
      %v1303 = vunpack.c.l.s4 1966171168
      %v1304 = vunpack.c.0.s8 %v1303
      %v1305 = vlaneseq
      %v1306 = vshrl.u32 %v1305, 7
      %v1307 = vsub.s32 %v1304, %v1306
      %v1308 = vrot.slane %v1301, %v1307
      %v1310 = vunpack.c.l.s4 1966171168
      %v1311 = vunpack.c.0.s8 %v1310
      %v1312 = vlaneseq
      %v1313 = vshrl.u32 %v1312, 7
      %v1314 = vsub.s32 %v1311, %v1313
      %v1315 = vrot.slane %v863, %v1314
      %v1317 = vunpack.c.l.s4 1966171168
      %v1318 = vunpack.c.0.s8 %v1317
      %v1319 = vlaneseq
      %v1320 = vshrl.u32 %v1319, 7
      %v1321 = vsub.s32 %v1318, %v1320
      %v1322 = vrot.slane %v1315, %v1321
      %v1324 = vunpack.c.l.s4 1966171168
      %v1325 = vunpack.c.0.s8 %v1324
      %v1326 = vlaneseq
      %v1327 = vshrl.u32 %v1326, 7
      %v1328 = vsub.s32 %v1325, %v1327
      %v1329 = vrot.slane %v865, %v1328
      %v1331 = vunpack.c.l.s4 1966171168
      %v1332 = vunpack.c.0.s8 %v1331
      %v1333 = vlaneseq
      %v1334 = vshrl.u32 %v1333, 7
      %v1335 = vsub.s32 %v1332, %v1334
      %v1336 = vrot.slane %v1329, %v1335
      %v1338 = vunpack.c.l.s4 1966171168
      %v1339 = vunpack.c.0.s8 %v1338
      %v1340 = vlaneseq
      %v1341 = vshrl.u32 %v1340, 7
      %v1342 = vsub.s32 %v1339, %v1341
      %v1343 = vrot.slane %v867, %v1342
      %v1345 = vunpack.c.l.s4 1966171168
      %v1346 = vunpack.c.0.s8 %v1345
      %v1347 = vlaneseq
      %v1348 = vshrl.u32 %v1347, 7
      %v1349 = vsub.s32 %v1346, %v1348
      %v1350 = vrot.slane %v1343, %v1349
      %v1352 = vunpack.c.l.s4 1966171168
      %v1353 = vunpack.c.0.s8 %v1352
      %v1354 = vlaneseq
      %v1355 = vshrl.u32 %v1354, 7
      %v1356 = vsub.s32 %v1353, %v1355
      %v1357 = vrot.slane %v891, %v1356
      %v1359 = vunpack.c.l.s4 1966171168
      %v1360 = vunpack.c.0.s8 %v1359
      %v1361 = vlaneseq
      %v1362 = vshrl.u32 %v1361, 7
      %v1363 = vsub.s32 %v1360, %v1362
      %v1364 = vrot.slane %v1357, %v1363
      %v1366 = vunpack.c.l.s4 1966171168
      %v1367 = vunpack.c.0.s8 %v1366
      %v1368 = vlaneseq
      %v1369 = vshrl.u32 %v1368, 7
      %v1370 = vsub.s32 %v1367, %v1369
      %v1371 = vrot.slane %v905, %v1370
      %v1373 = vunpack.c.l.s4 1966171168
      %v1374 = vunpack.c.0.s8 %v1373
      %v1375 = vlaneseq
      %v1376 = vshrl.u32 %v1375, 7
      %v1377 = vsub.s32 %v1374, %v1376
      %v1378 = vrot.slane %v1371, %v1377
      %v1380 = vunpack.c.l.s4 1966171168
      %v1381 = vunpack.c.0.s8 %v1380
      %v1382 = vlaneseq
      %v1383 = vshrl.u32 %v1382, 7
      %v1384 = vsub.s32 %v1381, %v1383
      %v1385 = vrot.slane %v940, %v1384
      %v1387 = vunpack.c.l.s4 1966171168
      %v1388 = vunpack.c.0.s8 %v1387
      %v1389 = vlaneseq
      %v1390 = vshrl.u32 %v1389, 7
      %v1391 = vsub.s32 %v1388, %v1390
      %v1392 = vrot.slane %v1385, %v1391
      %v1394 = vunpack.c.l.s4 1966171168
      %v1395 = vunpack.c.0.s8 %v1394
      %v1396 = vlaneseq
      %v1397 = vshrl.u32 %v1396, 7
      %v1398 = vsub.s32 %v1395, %v1397
      %v1399 = vrot.slane %v954, %v1398
      %v1401 = vunpack.c.l.s4 1966171168
      %v1402 = vunpack.c.0.s8 %v1401
      %v1403 = vlaneseq
      %v1404 = vshrl.u32 %v1403, 7
      %v1405 = vsub.s32 %v1402, %v1404
      %v1406 = vrot.slane %v1399, %v1405
      %v1408 = vunpack.c.l.s4 1966171168
      %v1409 = vunpack.c.0.s8 %v1408
      %v1410 = vlaneseq
      %v1411 = vshrl.u32 %v1410, 7
      %v1412 = vsub.s32 %v1409, %v1411
      %v1413 = vrot.slane %v962, %v1412
      %v1415 = vunpack.c.l.s4 1966171168
      %v1416 = vunpack.c.0.s8 %v1415
      %v1417 = vlaneseq
      %v1418 = vshrl.u32 %v1417, 7
      %v1419 = vsub.s32 %v1416, %v1418
      %v1420 = vrot.slane %v1413, %v1419
      %v1422 = vunpack.c.l.s4 1966171168
      %v1423 = vunpack.c.0.s8 %v1422
      %v1424 = vlaneseq
      %v1425 = vshrl.u32 %v1424, 7
      %v1426 = vsub.s32 %v1423, %v1425
      %v1427 = vrot.slane %v964, %v1426
      %v1429 = vunpack.c.l.s4 1966171168
      %v1430 = vunpack.c.0.s8 %v1429
      %v1431 = vlaneseq
      %v1432 = vshrl.u32 %v1431, 7
      %v1433 = vsub.s32 %v1430, %v1432
      %v1434 = vrot.slane %v1427, %v1433
      %v1436 = vunpack.c.l.s4 1966171168
      %v1437 = vunpack.c.0.s8 %v1436
      %v1438 = vlaneseq
      %v1439 = vshrl.u32 %v1438, 7
      %v1440 = vsub.s32 %v1437, %v1439
      %v1441 = vrot.slane %v947, %v1440
      %v1443 = vunpack.c.l.s4 1966171168
      %v1444 = vunpack.c.0.s8 %v1443
      %v1445 = vlaneseq
      %v1446 = vshrl.u32 %v1445, 7
      %v1447 = vsub.s32 %v1444, %v1446
      %v1448 = vrot.slane %v1441, %v1447
      %v1450 = vunpack.c.l.s4 1966171168
      %v1451 = vunpack.c.0.s8 %v1450
      %v1452 = vlaneseq
      %v1453 = vshrl.u32 %v1452, 7
      %v1454 = vsub.s32 %v1451, %v1453
      %v1455 = vrot.slane %v961, %v1454
      %v1457 = vunpack.c.l.s4 1966171168
      %v1458 = vunpack.c.0.s8 %v1457
      %v1459 = vlaneseq
      %v1460 = vshrl.u32 %v1459, 7
      %v1461 = vsub.s32 %v1458, %v1460
      %v1462 = vrot.slane %v1455, %v1461
      %v1464 = vunpack.c.l.s4 1966171168
      %v1465 = vunpack.c.0.s8 %v1464
      %v1466 = vlaneseq
      %v1467 = vshrl.u32 %v1466, 7
      %v1468 = vsub.s32 %v1465, %v1467
      %v1469 = vrot.slane %v996, %v1468
      %v1471 = vunpack.c.l.s4 1966171168
      %v1472 = vunpack.c.0.s8 %v1471
      %v1473 = vlaneseq
      %v1474 = vshrl.u32 %v1473, 7
      %v1475 = vsub.s32 %v1472, %v1474
      %v1476 = vrot.slane %v1469, %v1475
      %v1478 = vunpack.c.l.s4 1966171168
      %v1479 = vunpack.c.0.s8 %v1478
      %v1480 = vlaneseq
      %v1481 = vshrl.u32 %v1480, 7
      %v1482 = vsub.s32 %v1479, %v1481
      %v1483 = vrot.slane %v1010, %v1482
      %v1485 = vunpack.c.l.s4 1966171168
      %v1486 = vunpack.c.0.s8 %v1485
      %v1487 = vlaneseq
      %v1488 = vshrl.u32 %v1487, 7
      %v1489 = vsub.s32 %v1486, %v1488
      %v1490 = vrot.slane %v1483, %v1489
      %v1492 = vunpack.c.l.s4 1966171168
      %v1493 = vunpack.c.0.s8 %v1492
      %v1494 = vlaneseq
      %v1495 = vshrl.u32 %v1494, 7
      %v1496 = vsub.s32 %v1493, %v1495
      %v1497 = vrot.slane %v1012, %v1496
      %v1499 = vunpack.c.l.s4 1966171168
      %v1500 = vunpack.c.0.s8 %v1499
      %v1501 = vlaneseq
      %v1502 = vshrl.u32 %v1501, 7
      %v1503 = vsub.s32 %v1500, %v1502
      %v1504 = vrot.slane %v1497, %v1503
      %v1506 = vunpack.c.l.s4 1966171168
      %v1507 = vunpack.c.0.s8 %v1506
      %v1508 = vlaneseq
      %v1509 = vshrl.u32 %v1508, 7
      %v1510 = vsub.s32 %v1507, %v1509
      %v1511 = vrot.slane %v1014, %v1510
      %v1513 = vunpack.c.l.s4 1966171168
      %v1514 = vunpack.c.0.s8 %v1513
      %v1515 = vlaneseq
      %v1516 = vshrl.u32 %v1515, 7
      %v1517 = vsub.s32 %v1514, %v1516
      %v1518 = vrot.slane %v1511, %v1517
      %v1520 = vunpack.c.l.s4 1966171168
      %v1521 = vunpack.c.0.s8 %v1520
      %v1522 = vlaneseq
      %v1523 = vshrl.u32 %v1522, 7
      %v1524 = vsub.s32 %v1521, %v1523
      %v1525 = vrot.slane %v1038, %v1524
      %v1527 = vunpack.c.l.s4 1966171168
      %v1528 = vunpack.c.0.s8 %v1527
      %v1529 = vlaneseq
      %v1530 = vshrl.u32 %v1529, 7
      %v1531 = vsub.s32 %v1528, %v1530
      %v1532 = vrot.slane %v1525, %v1531
      %v1534 = vunpack.c.l.s4 1966171168
      %v1535 = vunpack.c.0.s8 %v1534
      %v1536 = vlaneseq
      %v1537 = vshrl.u32 %v1536, 7
      %v1538 = vsub.s32 %v1535, %v1537
      %v1539 = vrot.slane %v1052, %v1538
      %v1541 = vunpack.c.l.s4 1966171168
      %v1542 = vunpack.c.0.s8 %v1541
      %v1543 = vlaneseq
      %v1544 = vshrl.u32 %v1543, 7
      %v1545 = vsub.s32 %v1542, %v1544
      %v1546 = vrot.slane %v1539, %v1545
      %v1548 = vunpack.c.l.s4 1966171168
      %v1549 = vunpack.c.0.s8 %v1548
      %v1550 = vlaneseq
      %v1551 = vshrl.u32 %v1550, 7
      %v1552 = vsub.s32 %v1549, %v1551
      %v1553 = vrot.slane %v1087, %v1552
      %v1555 = vunpack.c.l.s4 1966171168
      %v1556 = vunpack.c.0.s8 %v1555
      %v1557 = vlaneseq
      %v1558 = vshrl.u32 %v1557, 7
      %v1559 = vsub.s32 %v1556, %v1558
      %v1560 = vrot.slane %v1553, %v1559
      %v1562 = vunpack.c.l.s4 1966171168
      %v1563 = vunpack.c.0.s8 %v1562
      %v1564 = vlaneseq
      %v1565 = vshrl.u32 %v1564, 7
      %v1566 = vsub.s32 %v1563, %v1565
      %v1567 = vrot.slane %v1101, %v1566
      %v1569 = vunpack.c.l.s4 1966171168
      %v1570 = vunpack.c.0.s8 %v1569
      %v1571 = vlaneseq
      %v1572 = vshrl.u32 %v1571, 7
      %v1573 = vsub.s32 %v1570, %v1572
      %v1574 = vrot.slane %v1567, %v1573
      %v1576 = vunpack.c.l.s4 1966171168
      %v1577 = vunpack.c.0.s8 %v1576
      %v1578 = vlaneseq
      %v1579 = vshrl.u32 %v1578, 7
      %v1580 = vsub.s32 %v1577, %v1579
      %v1581 = vrot.slane %v1109, %v1580
      %v1583 = vunpack.c.l.s4 1966171168
      %v1584 = vunpack.c.0.s8 %v1583
      %v1585 = vlaneseq
      %v1586 = vshrl.u32 %v1585, 7
      %v1587 = vsub.s32 %v1584, %v1586
      %v1588 = vrot.slane %v1581, %v1587
      %v1590 = vunpack.c.l.s4 1966171168
      %v1591 = vunpack.c.0.s8 %v1590
      %v1592 = vlaneseq
      %v1593 = vshrl.u32 %v1592, 7
      %v1594 = vsub.s32 %v1591, %v1593
      %v1595 = vrot.slane %v1111, %v1594
      %v1597 = vunpack.c.l.s4 1966171168
      %v1598 = vunpack.c.0.s8 %v1597
      %v1599 = vlaneseq
      %v1600 = vshrl.u32 %v1599, 7
      %v1601 = vsub.s32 %v1598, %v1600
      %v1602 = vrot.slane %v1595, %v1601
      %v1604 = vunpack.c.l.s4 1966171168
      %v1605 = vunpack.c.0.s8 %v1604
      %v1606 = vlaneseq
      %v1607 = vshrl.u32 %v1606, 7
      %v1608 = vsub.s32 %v1605, %v1607
      %v1609 = vrot.slane %v1094, %v1608
      %v1611 = vunpack.c.l.s4 1966171168
      %v1612 = vunpack.c.0.s8 %v1611
      %v1613 = vlaneseq
      %v1614 = vshrl.u32 %v1613, 7
      %v1615 = vsub.s32 %v1612, %v1614
      %v1616 = vrot.slane %v1609, %v1615
      %v1618 = vunpack.c.l.s4 1966171168
      %v1619 = vunpack.c.0.s8 %v1618
      %v1620 = vlaneseq
      %v1621 = vshrl.u32 %v1620, 7
      %v1622 = vsub.s32 %v1619, %v1621
      %v1623 = vrot.slane %v1108, %v1622
      %v1625 = vunpack.c.l.s4 1966171168
      %v1626 = vunpack.c.0.s8 %v1625
      %v1627 = vlaneseq
      %v1628 = vshrl.u32 %v1627, 7
      %v1629 = vsub.s32 %v1626, %v1628
      %v1630 = vrot.slane %v1623, %v1629
      %v1632 = vunpack.c.l.s4 1966171168
      %v1633 = vunpack.c.0.s8 %v1632
      %v1634 = vlaneseq
      %v1635 = vshrl.u32 %v1634, 7
      %v1636 = vsub.s32 %v1633, %v1635
      %v1637 = vrot.slane %v1143, %v1636
      %v1639 = vunpack.c.l.s4 1966171168
      %v1640 = vunpack.c.0.s8 %v1639
      %v1641 = vlaneseq
      %v1642 = vshrl.u32 %v1641, 7
      %v1643 = vsub.s32 %v1640, %v1642
      %v1644 = vrot.slane %v1637, %v1643
      %v1646 = vunpack.c.l.s4 1966171168
      %v1647 = vunpack.c.0.s8 %v1646
      %v1648 = vlaneseq
      %v1649 = vshrl.u32 %v1648, 7
      %v1650 = vsub.s32 %v1647, %v1649
      %v1651 = vrot.slane %v1157, %v1650
      %v1653 = vunpack.c.l.s4 1966171168
      %v1654 = vunpack.c.0.s8 %v1653
      %v1655 = vlaneseq
      %v1656 = vshrl.u32 %v1655, 7
      %v1657 = vsub.s32 %v1654, %v1656
      %v1658 = vrot.slane %v1651, %v1657
      %v1660 = vunpack.c.l.s4 1966171168
      %v1661 = vunpack.c.0.s8 %v1660
      %v1662 = vlaneseq
      %v1663 = vshrl.u32 %v1662, 7
      %v1664 = vsub.s32 %v1661, %v1663
      %v1665 = vrot.slane %v1159, %v1664
      %v1667 = vunpack.c.l.s4 1966171168
      %v1668 = vunpack.c.0.s8 %v1667
      %v1669 = vlaneseq
      %v1670 = vshrl.u32 %v1669, 7
      %v1671 = vsub.s32 %v1668, %v1670
      %v1672 = vrot.slane %v1665, %v1671
      %v1674 = vunpack.c.l.s4 1966171168
      %v1675 = vunpack.c.0.s8 %v1674
      %v1676 = vlaneseq
      %v1677 = vshrl.u32 %v1676, 7
      %v1678 = vsub.s32 %v1675, %v1677
      %v1679 = vrot.slane %v1161, %v1678
      %v1681 = vunpack.c.l.s4 1966171168
      %v1682 = vunpack.c.0.s8 %v1681
      %v1683 = vlaneseq
      %v1684 = vshrl.u32 %v1683, 7
      %v1685 = vsub.s32 %v1682, %v1684
      %v1686 = vrot.slane %v1679, %v1685
      %v1688 = vunpack.c.l.s4 1966171168
      %v1689 = vunpack.c.0.s8 %v1688
      %v1690 = vlaneseq
      %v1691 = vshrl.u32 %v1690, 7
      %v1692 = vsub.s32 %v1689, %v1691
      %v1693 = vrot.slane %v1185, %v1692
      %v1695 = vunpack.c.l.s4 1966171168
      %v1696 = vunpack.c.0.s8 %v1695
      %v1697 = vlaneseq
      %v1698 = vshrl.u32 %v1697, 7
      %v1699 = vsub.s32 %v1696, %v1698
      %v1700 = vrot.slane %v1693, %v1699
      %v1702 = vunpack.c.l.s4 1966171168
      %v1703 = vunpack.c.0.s8 %v1702
      %v1704 = vlaneseq
      %v1705 = vshrl.u32 %v1704, 7
      %v1706 = vsub.s32 %v1703, %v1705
      %v1707 = vrot.slane %v1199, %v1706
      %v1709 = vunpack.c.l.s4 1966171168
      %v1710 = vunpack.c.0.s8 %v1709
      %v1711 = vlaneseq
      %v1712 = vshrl.u32 %v1711, 7
      %v1713 = vsub.s32 %v1710, %v1712
      %v1714 = vrot.slane %v1707, %v1713
      %v1715 = vunpack.c.l.b16 %v1224
      %v1716 = vunpack.c.l.b16 %v1238
      %v1717 = vunpack.c.l.b16 %v1252
      %v1718 = vunpack.c.l.b16 %v1266
      %v1719 = vunpack.c.l.b16 %v1280
      %v1720 = vunpack.c.l.b16 %v1294
      %v1721 = vunpack.c.l.b16 %v1308
      %v1722 = vunpack.c.l.b16 %v1322
      %v1723 = vunpack.c.l.b16 %v1336
      %v1724 = vunpack.c.l.b16 %v1350
      %v1725 = vunpack.c.l.b16 %v1364
      %v1726 = vunpack.c.l.b16 %v1378
      %v1727 = vunpack.c.l.b16 %v1392
      %v1728 = vunpack.c.l.b16 %v1406
      %v1729 = vunpack.c.l.b16 %v1420
      %v1730 = vunpack.c.l.b16 %v1434
      %v1731 = vunpack.c.l.b16 %v1448
      %v1732 = vunpack.c.l.b16 %v1462
      %v1733 = vunpack.c.l.b16 %v1476
      %v1734 = vunpack.c.l.b16 %v1490
      %v1735 = vunpack.c.l.b16 %v1504
      %v1736 = vunpack.c.l.b16 %v1518
      %v1737 = vunpack.c.l.b16 %v1532
      %v1738 = vunpack.c.l.b16 %v1546
      %v1739 = vunpack.c.l.b16 %v1560
      %v1740 = vunpack.c.l.b16 %v1574
      %v1741 = vunpack.c.l.b16 %v1588
      %v1742 = vunpack.c.l.b16 %v1602
      %v1743 = vunpack.c.l.b16 %v1616
      %v1744 = vunpack.c.l.b16 %v1630
      %v1745 = vunpack.c.l.b16 %v1644
      %v1746 = vunpack.c.l.b16 %v1658
      %v1747 = vunpack.c.l.b16 %v1672
      %v1748 = vunpack.c.l.b16 %v1686
      %v1749 = vunpack.c.l.b16 %v1700
      %v1750 = vunpack.c.l.b16 %v1714
      %v1751 = vrot.slane %v1716, 7
      %vm1752 = vcmask 1041409
      %v1753 = vsel %vm1752, %v1751, %v1715
      %v1754 = vrot.slane %v1717, 6
      %vm1755 = vcmask 1042434
      %v1756 = vsel %vm1755, %v1754, %v1753
      %v1757 = vrot.slane %v1718, 5
      %vm1758 = vcmask 1043459
      %v1759 = vsel %vm1758, %v1757, %v1756
      %v1760 = vrot.slane %v1719, 4
      %vm1761 = vcmask 1044484
      %v1762 = vsel %vm1761, %v1760, %v1759
      %v1763 = vrot.slane %v1720, 3
      %vm1764 = vcmask 1045509
      %v1765 = vsel %vm1764, %v1763, %v1762
      %v1766 = vrot.slane %v1722, 7
      %v1767 = vsel %vm1752, %v1766, %v1721
      %v1768 = vrot.slane %v1723, 6
      %v1769 = vsel %vm1755, %v1768, %v1767
      %v1770 = vrot.slane %v1724, 5
      %v1771 = vsel %vm1758, %v1770, %v1769
      %v1772 = vrot.slane %v1725, 4
      %v1773 = vsel %vm1761, %v1772, %v1771
      %v1774 = vrot.slane %v1726, 3
      %v1775 = vsel %vm1764, %v1774, %v1773
      %v1776 = vrot.slane %v1728, 7
      %v1777 = vsel %vm1752, %v1776, %v1727
      %v1778 = vrot.slane %v1729, 6
      %v1779 = vsel %vm1755, %v1778, %v1777
      %v1780 = vrot.slane %v1730, 5
      %v1781 = vsel %vm1758, %v1780, %v1779
      %v1782 = vrot.slane %v1731, 4
      %v1783 = vsel %vm1761, %v1782, %v1781
      %v1784 = vrot.slane %v1732, 3
      %v1785 = vsel %vm1764, %v1784, %v1783
      %v1786 = vrot.slane %v1734, 7
      %v1787 = vsel %vm1752, %v1786, %v1733
      %v1788 = vrot.slane %v1735, 6
      %v1789 = vsel %vm1755, %v1788, %v1787
      %v1790 = vrot.slane %v1736, 5
      %v1791 = vsel %vm1758, %v1790, %v1789
      %v1792 = vrot.slane %v1737, 4
      %v1793 = vsel %vm1761, %v1792, %v1791
      %v1794 = vrot.slane %v1738, 3
      %v1795 = vsel %vm1764, %v1794, %v1793
      %v1796 = vrot.slane %v1740, 7
      %v1797 = vsel %vm1752, %v1796, %v1739
      %v1798 = vrot.slane %v1741, 6
      %v1799 = vsel %vm1755, %v1798, %v1797
      %v1800 = vrot.slane %v1742, 5
      %v1801 = vsel %vm1758, %v1800, %v1799
      %v1802 = vrot.slane %v1743, 4
      %v1803 = vsel %vm1761, %v1802, %v1801
      %v1804 = vrot.slane %v1744, 3
      %v1805 = vsel %vm1764, %v1804, %v1803
      %v1806 = vrot.slane %v1746, 7
      %v1807 = vsel %vm1752, %v1806, %v1745
      %v1808 = vrot.slane %v1747, 6
      %v1809 = vsel %vm1755, %v1808, %v1807
      %v1810 = vrot.slane %v1748, 5
      %v1811 = vsel %vm1758, %v1810, %v1809
      %v1812 = vrot.slane %v1749, 4
      %v1813 = vsel %vm1761, %v1812, %v1811
      %v1814 = vrot.slane %v1750, 3
      %v1815 = vsel %vm1764, %v1814, %v1813
      %v1816 = vpack.c.b16 %v1765, %v1765
      %v1817 = vpack.c.b16 %v1775, %v1775
      %v1818 = vpack.c.b16 %v1785, %v1785
      %v1819 = vpack.c.b16 %v1795, %v1795
      %v1820 = vpack.c.b16 %v1805, %v1805
      %v1821 = vpack.c.b16 %v1815, %v1815
      %v1822 = vrot.slane %v1715, 1
      %v1823 = vsel %vm1752, %v1716, %v1822
      %v1824 = vrot.slane %v1717, 7
      %v1825 = vsel %vm1755, %v1824, %v1823
      %v1826 = vrot.slane %v1718, 6
      %v1827 = vsel %vm1758, %v1826, %v1825
      %v1828 = vrot.slane %v1719, 5
      %v1829 = vsel %vm1761, %v1828, %v1827
      %v1830 = vrot.slane %v1720, 4
      %v1831 = vsel %vm1764, %v1830, %v1829
      %v1832 = vrot.slane %v1721, 1
      %v1833 = vsel %vm1752, %v1722, %v1832
      %v1834 = vrot.slane %v1723, 7
      %v1835 = vsel %vm1755, %v1834, %v1833
      %v1836 = vrot.slane %v1724, 6
      %v1837 = vsel %vm1758, %v1836, %v1835
      %v1838 = vrot.slane %v1725, 5
      %v1839 = vsel %vm1761, %v1838, %v1837
      %v1840 = vrot.slane %v1726, 4
      %v1841 = vsel %vm1764, %v1840, %v1839
      %v1842 = vrot.slane %v1727, 1
      %v1843 = vsel %vm1752, %v1728, %v1842
      %v1844 = vrot.slane %v1729, 7
      %v1845 = vsel %vm1755, %v1844, %v1843
      %v1846 = vrot.slane %v1730, 6
      %v1847 = vsel %vm1758, %v1846, %v1845
      %v1848 = vrot.slane %v1731, 5
      %v1849 = vsel %vm1761, %v1848, %v1847
      %v1850 = vrot.slane %v1732, 4
      %v1851 = vsel %vm1764, %v1850, %v1849
      %v1852 = vrot.slane %v1733, 1
      %v1853 = vsel %vm1752, %v1734, %v1852
      %v1854 = vrot.slane %v1735, 7
      %v1855 = vsel %vm1755, %v1854, %v1853
      %v1856 = vrot.slane %v1736, 6
      %v1857 = vsel %vm1758, %v1856, %v1855
      %v1858 = vrot.slane %v1737, 5
      %v1859 = vsel %vm1761, %v1858, %v1857
      %v1860 = vrot.slane %v1738, 4
      %v1861 = vsel %vm1764, %v1860, %v1859
      %v1862 = vrot.slane %v1739, 1
      %v1863 = vsel %vm1752, %v1740, %v1862
      %v1864 = vrot.slane %v1741, 7
      %v1865 = vsel %vm1755, %v1864, %v1863
      %v1866 = vrot.slane %v1742, 6
      %v1867 = vsel %vm1758, %v1866, %v1865
      %v1868 = vrot.slane %v1743, 5
      %v1869 = vsel %vm1761, %v1868, %v1867
      %v1870 = vrot.slane %v1744, 4
      %v1871 = vsel %vm1764, %v1870, %v1869
      %v1872 = vrot.slane %v1745, 1
      %v1873 = vsel %vm1752, %v1746, %v1872
      %v1874 = vrot.slane %v1747, 7
      %v1875 = vsel %vm1755, %v1874, %v1873
      %v1876 = vrot.slane %v1748, 6
      %v1877 = vsel %vm1758, %v1876, %v1875
      %v1878 = vrot.slane %v1749, 5
      %v1879 = vsel %vm1761, %v1878, %v1877
      %v1880 = vrot.slane %v1750, 4
      %v1881 = vsel %vm1764, %v1880, %v1879
      %v1882 = vpack.c.b16 %v1831, %v1831
      %v1883 = vpack.c.b16 %v1841, %v1841
      %v1884 = vpack.c.b16 %v1851, %v1851
      %v1885 = vpack.c.b16 %v1861, %v1861
      %v1886 = vpack.c.b16 %v1871, %v1871
      %v1887 = vpack.c.b16 %v1881, %v1881
      %v1889 = vunpack.c.l.s4 1966171168
      %v1890 = vunpack.c.0.s8 %v1889
      %v1891 = vlaneseq
      %v1892 = vshrl.u32 %v1891, 7
      %v1893 = vsub.s32 %v1890, %v1892
      %v1894 = vrot.slane %v816, %v1893
      %v1896 = vunpack.c.l.s4 1966171168
      %v1897 = vunpack.c.0.s8 %v1896
      %v1898 = vlaneseq
      %v1899 = vshrl.u32 %v1898, 7
      %v1900 = vsub.s32 %v1897, %v1899
      %v1901 = vrot.slane %v1894, %v1900
      %v1903 = vunpack.c.l.s4 1966171168
      %v1904 = vunpack.c.0.s8 %v1903
      %v1905 = vlaneseq
      %v1906 = vshrl.u32 %v1905, 7
      %v1907 = vsub.s32 %v1904, %v1906
      %v1908 = vrot.slane %v818, %v1907
      %v1910 = vunpack.c.l.s4 1966171168
      %v1911 = vunpack.c.0.s8 %v1910
      %v1912 = vlaneseq
      %v1913 = vshrl.u32 %v1912, 7
      %v1914 = vsub.s32 %v1911, %v1913
      %v1915 = vrot.slane %v1908, %v1914
      %v1917 = vunpack.c.l.s4 1966171168
      %v1918 = vunpack.c.0.s8 %v1917
      %v1919 = vlaneseq
      %v1920 = vshrl.u32 %v1919, 7
      %v1921 = vsub.s32 %v1918, %v1920
      %v1922 = vrot.slane %v842, %v1921
      %v1924 = vunpack.c.l.s4 1966171168
      %v1925 = vunpack.c.0.s8 %v1924
      %v1926 = vlaneseq
      %v1927 = vshrl.u32 %v1926, 7
      %v1928 = vsub.s32 %v1925, %v1927
      %v1929 = vrot.slane %v1922, %v1928
      %v1931 = vunpack.c.l.s4 1966171168
      %v1932 = vunpack.c.0.s8 %v1931
      %v1933 = vlaneseq
      %v1934 = vshrl.u32 %v1933, 7
      %v1935 = vsub.s32 %v1932, %v1934
      %v1936 = vrot.slane %v856, %v1935
      %v1938 = vunpack.c.l.s4 1966171168
      %v1939 = vunpack.c.0.s8 %v1938
      %v1940 = vlaneseq
      %v1941 = vshrl.u32 %v1940, 7
      %v1942 = vsub.s32 %v1939, %v1941
      %v1943 = vrot.slane %v1936, %v1942
      %v1945 = vunpack.c.l.s4 1966171168
      %v1946 = vunpack.c.0.s8 %v1945
      %v1947 = vlaneseq
      %v1948 = vshrl.u32 %v1947, 7
      %v1949 = vsub.s32 %v1946, %v1948
      %v1950 = vrot.slane %v864, %v1949
      %v1952 = vunpack.c.l.s4 1966171168
      %v1953 = vunpack.c.0.s8 %v1952
      %v1954 = vlaneseq
      %v1955 = vshrl.u32 %v1954, 7
      %v1956 = vsub.s32 %v1953, %v1955
      %v1957 = vrot.slane %v1950, %v1956
      %v1959 = vunpack.c.l.s4 1966171168
      %v1960 = vunpack.c.0.s8 %v1959
      %v1961 = vlaneseq
      %v1962 = vshrl.u32 %v1961, 7
      %v1963 = vsub.s32 %v1960, %v1962
      %v1964 = vrot.slane %v866, %v1963
      %v1966 = vunpack.c.l.s4 1966171168
      %v1967 = vunpack.c.0.s8 %v1966
      %v1968 = vlaneseq
      %v1969 = vshrl.u32 %v1968, 7
      %v1970 = vsub.s32 %v1967, %v1969
      %v1971 = vrot.slane %v1964, %v1970
      %v1973 = vunpack.c.l.s4 1966171168
      %v1974 = vunpack.c.0.s8 %v1973
      %v1975 = vlaneseq
      %v1976 = vshrl.u32 %v1975, 7
      %v1977 = vsub.s32 %v1974, %v1976
      %v1978 = vrot.slane %v913, %v1977
      %v1980 = vunpack.c.l.s4 1966171168
      %v1981 = vunpack.c.0.s8 %v1980
      %v1982 = vlaneseq
      %v1983 = vshrl.u32 %v1982, 7
      %v1984 = vsub.s32 %v1981, %v1983
      %v1985 = vrot.slane %v1978, %v1984
      %v1987 = vunpack.c.l.s4 1966171168
      %v1988 = vunpack.c.0.s8 %v1987
      %v1989 = vlaneseq
      %v1990 = vshrl.u32 %v1989, 7
      %v1991 = vsub.s32 %v1988, %v1990
      %v1992 = vrot.slane %v915, %v1991
      %v1994 = vunpack.c.l.s4 1966171168
      %v1995 = vunpack.c.0.s8 %v1994
      %v1996 = vlaneseq
      %v1997 = vshrl.u32 %v1996, 7
      %v1998 = vsub.s32 %v1995, %v1997
      %v1999 = vrot.slane %v1992, %v1998
      %v2001 = vunpack.c.l.s4 1966171168
      %v2002 = vunpack.c.0.s8 %v2001
      %v2003 = vlaneseq
      %v2004 = vshrl.u32 %v2003, 7
      %v2005 = vsub.s32 %v2002, %v2004
      %v2006 = vrot.slane %v898, %v2005
      %v2008 = vunpack.c.l.s4 1966171168
      %v2009 = vunpack.c.0.s8 %v2008
      %v2010 = vlaneseq
      %v2011 = vshrl.u32 %v2010, 7
      %v2012 = vsub.s32 %v2009, %v2011
      %v2013 = vrot.slane %v2006, %v2012
      %v2015 = vunpack.c.l.s4 1966171168
      %v2016 = vunpack.c.0.s8 %v2015
      %v2017 = vlaneseq
      %v2018 = vshrl.u32 %v2017, 7
      %v2019 = vsub.s32 %v2016, %v2018
      %v2020 = vrot.slane %v912, %v2019
      %v2022 = vunpack.c.l.s4 1966171168
      %v2023 = vunpack.c.0.s8 %v2022
      %v2024 = vlaneseq
      %v2025 = vshrl.u32 %v2024, 7
      %v2026 = vsub.s32 %v2023, %v2025
      %v2027 = vrot.slane %v2020, %v2026
      %v2029 = vunpack.c.l.s4 1966171168
      %v2030 = vunpack.c.0.s8 %v2029
      %v2031 = vlaneseq
      %v2032 = vshrl.u32 %v2031, 7
      %v2033 = vsub.s32 %v2030, %v2032
      %v2034 = vrot.slane %v914, %v2033
      %v2036 = vunpack.c.l.s4 1966171168
      %v2037 = vunpack.c.0.s8 %v2036
      %v2038 = vlaneseq
      %v2039 = vshrl.u32 %v2038, 7
      %v2040 = vsub.s32 %v2037, %v2039
      %v2041 = vrot.slane %v2034, %v2040
      %v2043 = vunpack.c.l.s4 1966171168
      %v2044 = vunpack.c.0.s8 %v2043
      %v2045 = vlaneseq
      %v2046 = vshrl.u32 %v2045, 7
      %v2047 = vsub.s32 %v2044, %v2046
      %v2048 = vrot.slane %v916, %v2047
      %v2050 = vunpack.c.l.s4 1966171168
      %v2051 = vunpack.c.0.s8 %v2050
      %v2052 = vlaneseq
      %v2053 = vshrl.u32 %v2052, 7
      %v2054 = vsub.s32 %v2051, %v2053
      %v2055 = vrot.slane %v2048, %v2054
      %v2057 = vunpack.c.l.s4 1966171168
      %v2058 = vunpack.c.0.s8 %v2057
      %v2059 = vlaneseq
      %v2060 = vshrl.u32 %v2059, 7
      %v2061 = vsub.s32 %v2058, %v2060
      %v2062 = vrot.slane %v963, %v2061
      %v2064 = vunpack.c.l.s4 1966171168
      %v2065 = vunpack.c.0.s8 %v2064
      %v2066 = vlaneseq
      %v2067 = vshrl.u32 %v2066, 7
      %v2068 = vsub.s32 %v2065, %v2067
      %v2069 = vrot.slane %v2062, %v2068
      %v2071 = vunpack.c.l.s4 1966171168
      %v2072 = vunpack.c.0.s8 %v2071
      %v2073 = vlaneseq
      %v2074 = vshrl.u32 %v2073, 7
      %v2075 = vsub.s32 %v2072, %v2074
      %v2076 = vrot.slane %v965, %v2075
      %v2078 = vunpack.c.l.s4 1966171168
      %v2079 = vunpack.c.0.s8 %v2078
      %v2080 = vlaneseq
      %v2081 = vshrl.u32 %v2080, 7
      %v2082 = vsub.s32 %v2079, %v2081
      %v2083 = vrot.slane %v2076, %v2082
      %v2085 = vunpack.c.l.s4 1966171168
      %v2086 = vunpack.c.0.s8 %v2085
      %v2087 = vlaneseq
      %v2088 = vshrl.u32 %v2087, 7
      %v2089 = vsub.s32 %v2086, %v2088
      %v2090 = vrot.slane %v989, %v2089
      %v2092 = vunpack.c.l.s4 1966171168
      %v2093 = vunpack.c.0.s8 %v2092
      %v2094 = vlaneseq
      %v2095 = vshrl.u32 %v2094, 7
      %v2096 = vsub.s32 %v2093, %v2095
      %v2097 = vrot.slane %v2090, %v2096
      %v2099 = vunpack.c.l.s4 1966171168
      %v2100 = vunpack.c.0.s8 %v2099
      %v2101 = vlaneseq
      %v2102 = vshrl.u32 %v2101, 7
      %v2103 = vsub.s32 %v2100, %v2102
      %v2104 = vrot.slane %v1003, %v2103
      %v2106 = vunpack.c.l.s4 1966171168
      %v2107 = vunpack.c.0.s8 %v2106
      %v2108 = vlaneseq
      %v2109 = vshrl.u32 %v2108, 7
      %v2110 = vsub.s32 %v2107, %v2109
      %v2111 = vrot.slane %v2104, %v2110
      %v2113 = vunpack.c.l.s4 1966171168
      %v2114 = vunpack.c.0.s8 %v2113
      %v2115 = vlaneseq
      %v2116 = vshrl.u32 %v2115, 7
      %v2117 = vsub.s32 %v2114, %v2116
      %v2118 = vrot.slane %v1011, %v2117
      %v2120 = vunpack.c.l.s4 1966171168
      %v2121 = vunpack.c.0.s8 %v2120
      %v2122 = vlaneseq
      %v2123 = vshrl.u32 %v2122, 7
      %v2124 = vsub.s32 %v2121, %v2123
      %v2125 = vrot.slane %v2118, %v2124
      %v2127 = vunpack.c.l.s4 1966171168
      %v2128 = vunpack.c.0.s8 %v2127
      %v2129 = vlaneseq
      %v2130 = vshrl.u32 %v2129, 7
      %v2131 = vsub.s32 %v2128, %v2130
      %v2132 = vrot.slane %v1013, %v2131
      %v2134 = vunpack.c.l.s4 1966171168
      %v2135 = vunpack.c.0.s8 %v2134
      %v2136 = vlaneseq
      %v2137 = vshrl.u32 %v2136, 7
      %v2138 = vsub.s32 %v2135, %v2137
      %v2139 = vrot.slane %v2132, %v2138
      %v2141 = vunpack.c.l.s4 1966171168
      %v2142 = vunpack.c.0.s8 %v2141
      %v2143 = vlaneseq
      %v2144 = vshrl.u32 %v2143, 7
      %v2145 = vsub.s32 %v2142, %v2144
      %v2146 = vrot.slane %v1060, %v2145
      %v2148 = vunpack.c.l.s4 1966171168
      %v2149 = vunpack.c.0.s8 %v2148
      %v2150 = vlaneseq
      %v2151 = vshrl.u32 %v2150, 7
      %v2152 = vsub.s32 %v2149, %v2151
      %v2153 = vrot.slane %v2146, %v2152
      %v2155 = vunpack.c.l.s4 1966171168
      %v2156 = vunpack.c.0.s8 %v2155
      %v2157 = vlaneseq
      %v2158 = vshrl.u32 %v2157, 7
      %v2159 = vsub.s32 %v2156, %v2158
      %v2160 = vrot.slane %v1062, %v2159
      %v2162 = vunpack.c.l.s4 1966171168
      %v2163 = vunpack.c.0.s8 %v2162
      %v2164 = vlaneseq
      %v2165 = vshrl.u32 %v2164, 7
      %v2166 = vsub.s32 %v2163, %v2165
      %v2167 = vrot.slane %v2160, %v2166
      %v2169 = vunpack.c.l.s4 1966171168
      %v2170 = vunpack.c.0.s8 %v2169
      %v2171 = vlaneseq
      %v2172 = vshrl.u32 %v2171, 7
      %v2173 = vsub.s32 %v2170, %v2172
      %v2174 = vrot.slane %v1045, %v2173
      %v2176 = vunpack.c.l.s4 1966171168
      %v2177 = vunpack.c.0.s8 %v2176
      %v2178 = vlaneseq
      %v2179 = vshrl.u32 %v2178, 7
      %v2180 = vsub.s32 %v2177, %v2179
      %v2181 = vrot.slane %v2174, %v2180
      %v2183 = vunpack.c.l.s4 1966171168
      %v2184 = vunpack.c.0.s8 %v2183
      %v2185 = vlaneseq
      %v2186 = vshrl.u32 %v2185, 7
      %v2187 = vsub.s32 %v2184, %v2186
      %v2188 = vrot.slane %v1059, %v2187
      %v2190 = vunpack.c.l.s4 1966171168
      %v2191 = vunpack.c.0.s8 %v2190
      %v2192 = vlaneseq
      %v2193 = vshrl.u32 %v2192, 7
      %v2194 = vsub.s32 %v2191, %v2193
      %v2195 = vrot.slane %v2188, %v2194
      %v2197 = vunpack.c.l.s4 1966171168
      %v2198 = vunpack.c.0.s8 %v2197
      %v2199 = vlaneseq
      %v2200 = vshrl.u32 %v2199, 7
      %v2201 = vsub.s32 %v2198, %v2200
      %v2202 = vrot.slane %v1061, %v2201
      %v2204 = vunpack.c.l.s4 1966171168
      %v2205 = vunpack.c.0.s8 %v2204
      %v2206 = vlaneseq
      %v2207 = vshrl.u32 %v2206, 7
      %v2208 = vsub.s32 %v2205, %v2207
      %v2209 = vrot.slane %v2202, %v2208
      %v2211 = vunpack.c.l.s4 1966171168
      %v2212 = vunpack.c.0.s8 %v2211
      %v2213 = vlaneseq
      %v2214 = vshrl.u32 %v2213, 7
      %v2215 = vsub.s32 %v2212, %v2214
      %v2216 = vrot.slane %v1063, %v2215
      %v2218 = vunpack.c.l.s4 1966171168
      %v2219 = vunpack.c.0.s8 %v2218
      %v2220 = vlaneseq
      %v2221 = vshrl.u32 %v2220, 7
      %v2222 = vsub.s32 %v2219, %v2221
      %v2223 = vrot.slane %v2216, %v2222
      %v2225 = vunpack.c.l.s4 1966171168
      %v2226 = vunpack.c.0.s8 %v2225
      %v2227 = vlaneseq
      %v2228 = vshrl.u32 %v2227, 7
      %v2229 = vsub.s32 %v2226, %v2228
      %v2230 = vrot.slane %v1110, %v2229
      %v2232 = vunpack.c.l.s4 1966171168
      %v2233 = vunpack.c.0.s8 %v2232
      %v2234 = vlaneseq
      %v2235 = vshrl.u32 %v2234, 7
      %v2236 = vsub.s32 %v2233, %v2235
      %v2237 = vrot.slane %v2230, %v2236
      %v2239 = vunpack.c.l.s4 1966171168
      %v2240 = vunpack.c.0.s8 %v2239
      %v2241 = vlaneseq
      %v2242 = vshrl.u32 %v2241, 7
      %v2243 = vsub.s32 %v2240, %v2242
      %v2244 = vrot.slane %v1112, %v2243
      %v2246 = vunpack.c.l.s4 1966171168
      %v2247 = vunpack.c.0.s8 %v2246
      %v2248 = vlaneseq
      %v2249 = vshrl.u32 %v2248, 7
      %v2250 = vsub.s32 %v2247, %v2249
      %v2251 = vrot.slane %v2244, %v2250
      %v2253 = vunpack.c.l.s4 1966171168
      %v2254 = vunpack.c.0.s8 %v2253
      %v2255 = vlaneseq
      %v2256 = vshrl.u32 %v2255, 7
      %v2257 = vsub.s32 %v2254, %v2256
      %v2258 = vrot.slane %v1136, %v2257
      %v2260 = vunpack.c.l.s4 1966171168
      %v2261 = vunpack.c.0.s8 %v2260
      %v2262 = vlaneseq
      %v2263 = vshrl.u32 %v2262, 7
      %v2264 = vsub.s32 %v2261, %v2263
      %v2265 = vrot.slane %v2258, %v2264
      %v2267 = vunpack.c.l.s4 1966171168
      %v2268 = vunpack.c.0.s8 %v2267
      %v2269 = vlaneseq
      %v2270 = vshrl.u32 %v2269, 7
      %v2271 = vsub.s32 %v2268, %v2270
      %v2272 = vrot.slane %v1150, %v2271
      %v2274 = vunpack.c.l.s4 1966171168
      %v2275 = vunpack.c.0.s8 %v2274
      %v2276 = vlaneseq
      %v2277 = vshrl.u32 %v2276, 7
      %v2278 = vsub.s32 %v2275, %v2277
      %v2279 = vrot.slane %v2272, %v2278
      %v2281 = vunpack.c.l.s4 1966171168
      %v2282 = vunpack.c.0.s8 %v2281
      %v2283 = vlaneseq
      %v2284 = vshrl.u32 %v2283, 7
      %v2285 = vsub.s32 %v2282, %v2284
      %v2286 = vrot.slane %v1158, %v2285
      %v2288 = vunpack.c.l.s4 1966171168
      %v2289 = vunpack.c.0.s8 %v2288
      %v2290 = vlaneseq
      %v2291 = vshrl.u32 %v2290, 7
      %v2292 = vsub.s32 %v2289, %v2291
      %v2293 = vrot.slane %v2286, %v2292
      %v2295 = vunpack.c.l.s4 1966171168
      %v2296 = vunpack.c.0.s8 %v2295
      %v2297 = vlaneseq
      %v2298 = vshrl.u32 %v2297, 7
      %v2299 = vsub.s32 %v2296, %v2298
      %v2300 = vrot.slane %v1160, %v2299
      %v2302 = vunpack.c.l.s4 1966171168
      %v2303 = vunpack.c.0.s8 %v2302
      %v2304 = vlaneseq
      %v2305 = vshrl.u32 %v2304, 7
      %v2306 = vsub.s32 %v2303, %v2305
      %v2307 = vrot.slane %v2300, %v2306
      %v2309 = vunpack.c.l.s4 1966171168
      %v2310 = vunpack.c.0.s8 %v2309
      %v2311 = vlaneseq
      %v2312 = vshrl.u32 %v2311, 7
      %v2313 = vsub.s32 %v2310, %v2312
      %v2314 = vrot.slane %v1207, %v2313
      %v2316 = vunpack.c.l.s4 1966171168
      %v2317 = vunpack.c.0.s8 %v2316
      %v2318 = vlaneseq
      %v2319 = vshrl.u32 %v2318, 7
      %v2320 = vsub.s32 %v2317, %v2319
      %v2321 = vrot.slane %v2314, %v2320
      %v2323 = vunpack.c.l.s4 1966171168
      %v2324 = vunpack.c.0.s8 %v2323
      %v2325 = vlaneseq
      %v2326 = vshrl.u32 %v2325, 7
      %v2327 = vsub.s32 %v2324, %v2326
      %v2328 = vrot.slane %v1209, %v2327
      %v2330 = vunpack.c.l.s4 1966171168
      %v2331 = vunpack.c.0.s8 %v2330
      %v2332 = vlaneseq
      %v2333 = vshrl.u32 %v2332, 7
      %v2334 = vsub.s32 %v2331, %v2333
      %v2335 = vrot.slane %v2328, %v2334
      %v2337 = vunpack.c.l.s4 1966171168
      %v2338 = vunpack.c.0.s8 %v2337
      %v2339 = vlaneseq
      %v2340 = vshrl.u32 %v2339, 7
      %v2341 = vsub.s32 %v2338, %v2340
      %v2342 = vrot.slane %v1192, %v2341
      %v2344 = vunpack.c.l.s4 1966171168
      %v2345 = vunpack.c.0.s8 %v2344
      %v2346 = vlaneseq
      %v2347 = vshrl.u32 %v2346, 7
      %v2348 = vsub.s32 %v2345, %v2347
      %v2349 = vrot.slane %v2342, %v2348
      %v2351 = vunpack.c.l.s4 1966171168
      %v2352 = vunpack.c.0.s8 %v2351
      %v2353 = vlaneseq
      %v2354 = vshrl.u32 %v2353, 7
      %v2355 = vsub.s32 %v2352, %v2354
      %v2356 = vrot.slane %v1206, %v2355
      %v2358 = vunpack.c.l.s4 1966171168
      %v2359 = vunpack.c.0.s8 %v2358
      %v2360 = vlaneseq
      %v2361 = vshrl.u32 %v2360, 7
      %v2362 = vsub.s32 %v2359, %v2361
      %v2363 = vrot.slane %v2356, %v2362
      %v2365 = vunpack.c.l.s4 1966171168
      %v2366 = vunpack.c.0.s8 %v2365
      %v2367 = vlaneseq
      %v2368 = vshrl.u32 %v2367, 7
      %v2369 = vsub.s32 %v2366, %v2368
      %v2370 = vrot.slane %v1208, %v2369
      %v2372 = vunpack.c.l.s4 1966171168
      %v2373 = vunpack.c.0.s8 %v2372
      %v2374 = vlaneseq
      %v2375 = vshrl.u32 %v2374, 7
      %v2376 = vsub.s32 %v2373, %v2375
      %v2377 = vrot.slane %v2370, %v2376
      %v2379 = vunpack.c.l.s4 1966171168
      %v2380 = vunpack.c.0.s8 %v2379
      %v2381 = vlaneseq
      %v2382 = vshrl.u32 %v2381, 7
      %v2383 = vsub.s32 %v2380, %v2382
      %v2384 = vrot.slane %v1210, %v2383
      %v2386 = vunpack.c.l.s4 1966171168
      %v2387 = vunpack.c.0.s8 %v2386
      %v2388 = vlaneseq
      %v2389 = vshrl.u32 %v2388, 7
      %v2390 = vsub.s32 %v2387, %v2389
      %v2391 = vrot.slane %v2384, %v2390
      %v2392 = vunpack.c.l.b16 %v1901
      %v2393 = vunpack.c.l.b16 %v1915
      %v2394 = vunpack.c.l.b16 %v1929
      %v2395 = vunpack.c.l.b16 %v1943
      %v2396 = vunpack.c.l.b16 %v1957
      %v2397 = vunpack.c.l.b16 %v1971
      %v2398 = vunpack.c.l.b16 %v1985
      %v2399 = vunpack.c.l.b16 %v1999
      %v2400 = vunpack.c.l.b16 %v2013
      %v2401 = vunpack.c.l.b16 %v2027
      %v2402 = vunpack.c.l.b16 %v2041
      %v2403 = vunpack.c.l.b16 %v2055
      %v2404 = vunpack.c.l.b16 %v2069
      %v2405 = vunpack.c.l.b16 %v2083
      %v2406 = vunpack.c.l.b16 %v2097
      %v2407 = vunpack.c.l.b16 %v2111
      %v2408 = vunpack.c.l.b16 %v2125
      %v2409 = vunpack.c.l.b16 %v2139
      %v2410 = vunpack.c.l.b16 %v2153
      %v2411 = vunpack.c.l.b16 %v2167
      %v2412 = vunpack.c.l.b16 %v2181
      %v2413 = vunpack.c.l.b16 %v2195
      %v2414 = vunpack.c.l.b16 %v2209
      %v2415 = vunpack.c.l.b16 %v2223
      %v2416 = vunpack.c.l.b16 %v2237
      %v2417 = vunpack.c.l.b16 %v2251
      %v2418 = vunpack.c.l.b16 %v2265
      %v2419 = vunpack.c.l.b16 %v2279
      %v2420 = vunpack.c.l.b16 %v2293
      %v2421 = vunpack.c.l.b16 %v2307
      %v2422 = vunpack.c.l.b16 %v2321
      %v2423 = vunpack.c.l.b16 %v2335
      %v2424 = vunpack.c.l.b16 %v2349
      %v2425 = vunpack.c.l.b16 %v2363
      %v2426 = vunpack.c.l.b16 %v2377
      %v2427 = vunpack.c.l.b16 %v2391
      %v2428 = vrot.slane %v2393, 7
      %v2429 = vsel %vm1752, %v2428, %v2392
      %v2430 = vrot.slane %v2394, 6
      %v2431 = vsel %vm1755, %v2430, %v2429
      %v2432 = vrot.slane %v2395, 5
      %v2433 = vsel %vm1758, %v2432, %v2431
      %v2434 = vrot.slane %v2396, 4
      %v2435 = vsel %vm1761, %v2434, %v2433
      %v2436 = vrot.slane %v2397, 3
      %v2437 = vsel %vm1764, %v2436, %v2435
      %v2438 = vrot.slane %v2399, 7
      %v2439 = vsel %vm1752, %v2438, %v2398
      %v2440 = vrot.slane %v2400, 6
      %v2441 = vsel %vm1755, %v2440, %v2439
      %v2442 = vrot.slane %v2401, 5
      %v2443 = vsel %vm1758, %v2442, %v2441
      %v2444 = vrot.slane %v2402, 4
      %v2445 = vsel %vm1761, %v2444, %v2443
      %v2446 = vrot.slane %v2403, 3
      %v2447 = vsel %vm1764, %v2446, %v2445
      %v2448 = vrot.slane %v2405, 7
      %v2449 = vsel %vm1752, %v2448, %v2404
      %v2450 = vrot.slane %v2406, 6
      %v2451 = vsel %vm1755, %v2450, %v2449
      %v2452 = vrot.slane %v2407, 5
      %v2453 = vsel %vm1758, %v2452, %v2451
      %v2454 = vrot.slane %v2408, 4
      %v2455 = vsel %vm1761, %v2454, %v2453
      %v2456 = vrot.slane %v2409, 3
      %v2457 = vsel %vm1764, %v2456, %v2455
      %v2458 = vrot.slane %v2411, 7
      %v2459 = vsel %vm1752, %v2458, %v2410
      %v2460 = vrot.slane %v2412, 6
      %v2461 = vsel %vm1755, %v2460, %v2459
      %v2462 = vrot.slane %v2413, 5
      %v2463 = vsel %vm1758, %v2462, %v2461
      %v2464 = vrot.slane %v2414, 4
      %v2465 = vsel %vm1761, %v2464, %v2463
      %v2466 = vrot.slane %v2415, 3
      %v2467 = vsel %vm1764, %v2466, %v2465
      %v2468 = vrot.slane %v2417, 7
      %v2469 = vsel %vm1752, %v2468, %v2416
      %v2470 = vrot.slane %v2418, 6
      %v2471 = vsel %vm1755, %v2470, %v2469
      %v2472 = vrot.slane %v2419, 5
      %v2473 = vsel %vm1758, %v2472, %v2471
      %v2474 = vrot.slane %v2420, 4
      %v2475 = vsel %vm1761, %v2474, %v2473
      %v2476 = vrot.slane %v2421, 3
      %v2477 = vsel %vm1764, %v2476, %v2475
      %v2478 = vrot.slane %v2423, 7
      %v2479 = vsel %vm1752, %v2478, %v2422
      %v2480 = vrot.slane %v2424, 6
      %v2481 = vsel %vm1755, %v2480, %v2479
      %v2482 = vrot.slane %v2425, 5
      %v2483 = vsel %vm1758, %v2482, %v2481
      %v2484 = vrot.slane %v2426, 4
      %v2485 = vsel %vm1761, %v2484, %v2483
      %v2486 = vrot.slane %v2427, 3
      %v2487 = vsel %vm1764, %v2486, %v2485
      %v2488 = vpack.c.b16 %v2437, %v2437
      %v2489 = vpack.c.b16 %v2447, %v2447
      %v2490 = vpack.c.b16 %v2457, %v2457
      %v2491 = vpack.c.b16 %v2467, %v2467
      %v2492 = vpack.c.b16 %v2477, %v2477
      %v2493 = vpack.c.b16 %v2487, %v2487
      %v2494 = vrot.slane %v2392, 1
      %v2495 = vsel %vm1752, %v2393, %v2494
      %v2496 = vrot.slane %v2394, 7
      %v2497 = vsel %vm1755, %v2496, %v2495
      %v2498 = vrot.slane %v2395, 6
      %v2499 = vsel %vm1758, %v2498, %v2497
      %v2500 = vrot.slane %v2396, 5
      %v2501 = vsel %vm1761, %v2500, %v2499
      %v2502 = vrot.slane %v2397, 4
      %v2503 = vsel %vm1764, %v2502, %v2501
      %v2504 = vrot.slane %v2398, 1
      %v2505 = vsel %vm1752, %v2399, %v2504
      %v2506 = vrot.slane %v2400, 7
      %v2507 = vsel %vm1755, %v2506, %v2505
      %v2508 = vrot.slane %v2401, 6
      %v2509 = vsel %vm1758, %v2508, %v2507
      %v2510 = vrot.slane %v2402, 5
      %v2511 = vsel %vm1761, %v2510, %v2509
      %v2512 = vrot.slane %v2403, 4
      %v2513 = vsel %vm1764, %v2512, %v2511
      %v2514 = vrot.slane %v2404, 1
      %v2515 = vsel %vm1752, %v2405, %v2514
      %v2516 = vrot.slane %v2406, 7
      %v2517 = vsel %vm1755, %v2516, %v2515
      %v2518 = vrot.slane %v2407, 6
      %v2519 = vsel %vm1758, %v2518, %v2517
      %v2520 = vrot.slane %v2408, 5
      %v2521 = vsel %vm1761, %v2520, %v2519
      %v2522 = vrot.slane %v2409, 4
      %v2523 = vsel %vm1764, %v2522, %v2521
      %v2524 = vrot.slane %v2410, 1
      %v2525 = vsel %vm1752, %v2411, %v2524
      %v2526 = vrot.slane %v2412, 7
      %v2527 = vsel %vm1755, %v2526, %v2525
      %v2528 = vrot.slane %v2413, 6
      %v2529 = vsel %vm1758, %v2528, %v2527
      %v2530 = vrot.slane %v2414, 5
      %v2531 = vsel %vm1761, %v2530, %v2529
      %v2532 = vrot.slane %v2415, 4
      %v2533 = vsel %vm1764, %v2532, %v2531
      %v2534 = vrot.slane %v2416, 1
      %v2535 = vsel %vm1752, %v2417, %v2534
      %v2536 = vrot.slane %v2418, 7
      %v2537 = vsel %vm1755, %v2536, %v2535
      %v2538 = vrot.slane %v2419, 6
      %v2539 = vsel %vm1758, %v2538, %v2537
      %v2540 = vrot.slane %v2420, 5
      %v2541 = vsel %vm1761, %v2540, %v2539
      %v2542 = vrot.slane %v2421, 4
      %v2543 = vsel %vm1764, %v2542, %v2541
      %v2544 = vrot.slane %v2422, 1
      %v2545 = vsel %vm1752, %v2423, %v2544
      %v2546 = vrot.slane %v2424, 7
      %v2547 = vsel %vm1755, %v2546, %v2545
      %v2548 = vrot.slane %v2425, 6
      %v2549 = vsel %vm1758, %v2548, %v2547
      %v2550 = vrot.slane %v2426, 5
      %v2551 = vsel %vm1761, %v2550, %v2549
      %v2552 = vrot.slane %v2427, 4
      %v2553 = vsel %vm1764, %v2552, %v2551
      %v2554 = vpack.c.b16 %v2503, %v2503
      %v2555 = vpack.c.b16 %v2513, %v2513
      %v2556 = vpack.c.b16 %v2523, %v2523
      %v2557 = vpack.c.b16 %v2533, %v2533
      %v2558 = vpack.c.b16 %v2543, %v2543
      %v2559 = vpack.c.b16 %v2553, %v2553
      %v2560 = vcombine.low %v1816, %v1882
      %v2561 = vcombine.low %v2488, %v2554
      %v2563 = vunpack.c.l.s4 1966171168
      %v2564 = vunpack.c.0.s8 %v2563
      %v2565 = vlaneseq
      %v2566 = vshrl.u32 %v2565, 7
      %v2567 = vsub.s32 %v2564, %v2566
      %v2568 = vrot.slane %v2560, %v2567
      %v2570 = vunpack.c.l.s4 1966171168
      %v2571 = vunpack.c.0.s8 %v2570
      %v2572 = vlaneseq
      %v2573 = vshrl.u32 %v2572, 7
      %v2574 = vsub.s32 %v2571, %v2573
      %v2575 = vrot.slane %v2561, %v2574
      %v2576 = vcombine.low %v2568, %v2575
      %v2577 = vcombine.high %v2568, %v2575
      %v2579 = vunpack.c.l.s4 1966171168
      %v2580 = vunpack.c.0.s8 %v2579
      %v2581 = vlaneseq
      %v2582 = vshrl.u32 %v2581, 7
      %v2583 = vsub.s32 %v2580, %v2582
      %v2584 = vrot.slane %v2576, %v2583
      %v2586 = vunpack.c.l.s4 1966171168
      %v2587 = vunpack.c.0.s8 %v2586
      %v2588 = vlaneseq
      %v2589 = vshrl.u32 %v2588, 7
      %v2590 = vsub.s32 %v2587, %v2589
      %v2591 = vrot.slane %v2577, %v2590
      %v2592 = vcombine.high %v2584, %v2584
      %v2593 = vcombine.low %v1817, %v1883
      %v2594 = vcombine.low %v2489, %v2555
      %v2596 = vunpack.c.l.s4 1966171168
      %v2597 = vunpack.c.0.s8 %v2596
      %v2598 = vlaneseq
      %v2599 = vshrl.u32 %v2598, 7
      %v2600 = vsub.s32 %v2597, %v2599
      %v2601 = vrot.slane %v2593, %v2600
      %v2603 = vunpack.c.l.s4 1966171168
      %v2604 = vunpack.c.0.s8 %v2603
      %v2605 = vlaneseq
      %v2606 = vshrl.u32 %v2605, 7
      %v2607 = vsub.s32 %v2604, %v2606
      %v2608 = vrot.slane %v2594, %v2607
      %v2609 = vcombine.low %v2601, %v2608
      %v2610 = vcombine.high %v2601, %v2608
      %v2612 = vunpack.c.l.s4 1966171168
      %v2613 = vunpack.c.0.s8 %v2612
      %v2614 = vlaneseq
      %v2615 = vshrl.u32 %v2614, 7
      %v2616 = vsub.s32 %v2613, %v2615
      %v2617 = vrot.slane %v2609, %v2616
      %v2619 = vunpack.c.l.s4 1966171168
      %v2620 = vunpack.c.0.s8 %v2619
      %v2621 = vlaneseq
      %v2622 = vshrl.u32 %v2621, 7
      %v2623 = vsub.s32 %v2620, %v2622
      %v2624 = vrot.slane %v2610, %v2623
      %v2625 = vcombine.high %v2617, %v2617
      %v2626 = vcombine.low %v1818, %v1884
      %v2627 = vcombine.low %v2490, %v2556
      %v2629 = vunpack.c.l.s4 1966171168
      %v2630 = vunpack.c.0.s8 %v2629
      %v2631 = vlaneseq
      %v2632 = vshrl.u32 %v2631, 7
      %v2633 = vsub.s32 %v2630, %v2632
      %v2634 = vrot.slane %v2626, %v2633
      %v2636 = vunpack.c.l.s4 1966171168
      %v2637 = vunpack.c.0.s8 %v2636
      %v2638 = vlaneseq
      %v2639 = vshrl.u32 %v2638, 7
      %v2640 = vsub.s32 %v2637, %v2639
      %v2641 = vrot.slane %v2627, %v2640
      %v2642 = vcombine.low %v2634, %v2641
      %v2643 = vcombine.high %v2634, %v2641
      %v2645 = vunpack.c.l.s4 1966171168
      %v2646 = vunpack.c.0.s8 %v2645
      %v2647 = vlaneseq
      %v2648 = vshrl.u32 %v2647, 7
      %v2649 = vsub.s32 %v2646, %v2648
      %v2650 = vrot.slane %v2642, %v2649
      %v2652 = vunpack.c.l.s4 1966171168
      %v2653 = vunpack.c.0.s8 %v2652
      %v2654 = vlaneseq
      %v2655 = vshrl.u32 %v2654, 7
      %v2656 = vsub.s32 %v2653, %v2655
      %v2657 = vrot.slane %v2643, %v2656
      %v2658 = vcombine.high %v2650, %v2650
      %v2659 = vcombine.low %v1819, %v1885
      %v2660 = vcombine.low %v2491, %v2557
      %v2662 = vunpack.c.l.s4 1966171168
      %v2663 = vunpack.c.0.s8 %v2662
      %v2664 = vlaneseq
      %v2665 = vshrl.u32 %v2664, 7
      %v2666 = vsub.s32 %v2663, %v2665
      %v2667 = vrot.slane %v2659, %v2666
      %v2669 = vunpack.c.l.s4 1966171168
      %v2670 = vunpack.c.0.s8 %v2669
      %v2671 = vlaneseq
      %v2672 = vshrl.u32 %v2671, 7
      %v2673 = vsub.s32 %v2670, %v2672
      %v2674 = vrot.slane %v2660, %v2673
      %v2675 = vcombine.low %v2667, %v2674
      %v2676 = vcombine.high %v2667, %v2674
      %v2678 = vunpack.c.l.s4 1966171168
      %v2679 = vunpack.c.0.s8 %v2678
      %v2680 = vlaneseq
      %v2681 = vshrl.u32 %v2680, 7
      %v2682 = vsub.s32 %v2679, %v2681
      %v2683 = vrot.slane %v2675, %v2682
      %v2685 = vunpack.c.l.s4 1966171168
      %v2686 = vunpack.c.0.s8 %v2685
      %v2687 = vlaneseq
      %v2688 = vshrl.u32 %v2687, 7
      %v2689 = vsub.s32 %v2686, %v2688
      %v2690 = vrot.slane %v2676, %v2689
      %v2691 = vcombine.high %v2683, %v2683
      %v2692 = vcombine.low %v1820, %v1886
      %v2693 = vcombine.low %v2492, %v2558
      %v2695 = vunpack.c.l.s4 1966171168
      %v2696 = vunpack.c.0.s8 %v2695
      %v2697 = vlaneseq
      %v2698 = vshrl.u32 %v2697, 7
      %v2699 = vsub.s32 %v2696, %v2698
      %v2700 = vrot.slane %v2692, %v2699
      %v2702 = vunpack.c.l.s4 1966171168
      %v2703 = vunpack.c.0.s8 %v2702
      %v2704 = vlaneseq
      %v2705 = vshrl.u32 %v2704, 7
      %v2706 = vsub.s32 %v2703, %v2705
      %v2707 = vrot.slane %v2693, %v2706
      %v2708 = vcombine.low %v2700, %v2707
      %v2709 = vcombine.high %v2700, %v2707
      %v2711 = vunpack.c.l.s4 1966171168
      %v2712 = vunpack.c.0.s8 %v2711
      %v2713 = vlaneseq
      %v2714 = vshrl.u32 %v2713, 7
      %v2715 = vsub.s32 %v2712, %v2714
      %v2716 = vrot.slane %v2708, %v2715
      %v2718 = vunpack.c.l.s4 1966171168
      %v2719 = vunpack.c.0.s8 %v2718
      %v2720 = vlaneseq
      %v2721 = vshrl.u32 %v2720, 7
      %v2722 = vsub.s32 %v2719, %v2721
      %v2723 = vrot.slane %v2709, %v2722
      %v2724 = vcombine.high %v2716, %v2716
      %v2725 = vunpack.i.l.s16 %v2584
      %v2726 = vunpack.i.h.s16 %v2584
      %v2727 = vunpack.i.l.s16 %v2591
      %v2728 = vunpack.i.h.s16 %v2591
      %v2729 = vunpack.i.l.s16 %v2592
      %v2730 = vunpack.i.l.s16 %v2617
      %v2731 = vunpack.i.h.s16 %v2617
      %v2732 = vunpack.i.l.s16 %v2624
      %v2733 = vunpack.i.h.s16 %v2624
      %v2734 = vunpack.i.l.s16 %v2625
      %v2735 = vunpack.i.l.s16 %v2650
      %v2736 = vunpack.i.h.s16 %v2650
      %v2737 = vunpack.i.l.s16 %v2657
      %v2738 = vunpack.i.h.s16 %v2657
      %v2739 = vunpack.i.l.s16 %v2658
      %v2740 = vunpack.i.l.s16 %v2683
      %v2741 = vunpack.i.h.s16 %v2683
      %v2742 = vunpack.i.l.s16 %v2690
      %v2743 = vunpack.i.h.s16 %v2690
      %v2744 = vunpack.i.l.s16 %v2691
      %v2745 = vunpack.i.l.s16 %v2716
      %v2746 = vunpack.i.h.s16 %v2716
      %v2747 = vunpack.i.l.s16 %v2723
      %v2748 = vunpack.i.h.s16 %v2723
      %v2749 = vunpack.i.l.s16 %v2724
      %v2750 = vld [vmem:[%s3] sm:$0xf]
      %v2751 = vld [vmem:[%s3 + $0x4] sm:$0xf]
      %v2752 = vld [vmem:[%s3 + $0x8] sm:$0xf]
      %v2753 = vld [vmem:[%s3 + $0xc] sm:$0xf]
      %v2754 = vld [vmem:[%s3 + $0x10] sm:$0xf]
      %v2755 = vld [vmem:[%s3 + $0x14] sm:$0xf]
      %v2756 = vld [vmem:[%s3 + $0x18] sm:$0xf]
      %v2757 = vld [vmem:[%s3 + $0x1c] sm:$0xf]
      %v2758 = vld [vmem:[%s3 + $0x20] sm:$0xf]
      %v2759 = vld [vmem:[%s3 + $0x24] sm:$0xf]
      %v2760 = vld [vmem:[%s3 + $0x28] sm:$0xf]
      %v2761 = vld [vmem:[%s3 + $0x2c] sm:$0xf]
      %v2762 = vld [vmem:[%s3 + $0x30] sm:$0xf]
      %v2763 = vld [vmem:[%s3 + $0x34] sm:$0xf]
      %v2764 = vld [vmem:[%s3 + $0x38] sm:$0xf]
      %v2765 = vld [vmem:[%s3 + $0x3c] sm:$0xf]
      %v2766 = vld [vmem:[%s3 + $0x40] sm:$0xf]
      %v2767 = vld [vmem:[%s3 + $0x44] sm:$0xf]
      %v2768 = vld [vmem:[%s3 + $0x48] sm:$0xf]
      %v2769 = vld [vmem:[%s3 + $0x4c] sm:$0xf]
      %v2770 = vld [vmem:[%s3 + $0x50] sm:$0xf]
      %v2771 = vld [vmem:[%s3 + $0x54] sm:$0xf]
      %v2772 = vld [vmem:[%s3 + $0x58] sm:$0xf]
      %v2773 = vld [vmem:[%s3 + $0x5c] sm:$0xf]
      %v2774 = vld [vmem:[%s3 + $0x60] sm:$0xf]
      %v2775 = vld [vmem:[%s3 + $0x64] sm:$0xf]
      %v2776 = vld [vmem:[%s3 + $0x68] sm:$0xf]
      %v2777 = vld [vmem:[%s3 + $0x6c] sm:$0xf]
      %v2778 = vld [vmem:[%s3 + $0x70] sm:$0xf]
      %v2779 = vld [vmem:[%s3 + $0x74] sm:$0xf]
      %v2780 = vld [vmem:[%s3 + $0x78] sm:$0xf]
      %v2781 = vld [vmem:[%s3 + $0x7c] sm:$0xf]
      %v2782 = vld [vmem:[%s3 + $0x80] sm:$0xf]
      %v2783 = vld [vmem:[%s3 + $0x84] sm:$0xf]
      %v2784 = vld [vmem:[%s3 + $0x88] sm:$0xf]
      %v2785 = vld [vmem:[%s3 + $0x8c] sm:$0xf]
      %v2786 = vld [vmem:[%s3 + $0x90] sm:$0xf]
      %v2787 = vld [vmem:[%s3 + $0x94] sm:$0xf]
      %v2788 = vld [vmem:[%s3 + $0x98] sm:$0xf]
      %v2789 = vld [vmem:[%s3 + $0x9c] sm:$0xf]
      %v2790 = vld [vmem:[%s3 + $0xa0] sm:$0xf]
      %v2791 = vld [vmem:[%s3 + $0xa4] sm:$0xf]
      %v2792 = vld [vmem:[%s3 + $0xa8] sm:$0xf]
      %v2793 = vld [vmem:[%s3 + $0xac] sm:$0xf]
      %v2794 = vld [vmem:[%s3 + $0xb0] sm:$0xf]
      %v2795 = vld [vmem:[%s3 + $0xb4] sm:$0xf]
      %v2796 = vld [vmem:[%s3 + $0xb8] sm:$0xf]
      %v2797 = vld [vmem:[%s3 + $0xbc] sm:$0xf]
      %v2798 = vld [vmem:[%s3 + $0xc0] sm:$0xf]
      %v2799 = vld [vmem:[%s3 + $0xc4] sm:$0xf]
      %v2800 = vld [vmem:[%s3 + $0xc8] sm:$0xf]
      %v2801 = vld [vmem:[%s3 + $0xcc] sm:$0xf]
      %v2802 = vld [vmem:[%s3 + $0xd0] sm:$0xf]
      %v2803 = vld [vmem:[%s3 + $0xd4] sm:$0xf]
      %v2804 = vld [vmem:[%s3 + $0xd8] sm:$0xf]
      %v2805 = vld [vmem:[%s3 + $0xdc] sm:$0xf]
      %v2806 = vld [vmem:[%s3 + $0xe0] sm:$0xf]
      %v2807 = vld [vmem:[%s3 + $0xe4] sm:$0xf]
      %v2808 = vld [vmem:[%s3 + $0xe8] sm:$0xf]
      %v2809 = vld [vmem:[%s3 + $0xec] sm:$0xf]
      %v2810 = vld [vmem:[%s3 + $0xf0] sm:$0xf]
      %v2811 = vld [vmem:[%s3 + $0xf4] sm:$0xf]
      %v2812 = vld [vmem:[%s3 + $0xf8] sm:$0xf]
      %v2813 = vld [vmem:[%s3 + $0xfc] sm:$0xf]
      %v2814 = vunpack.i.h.s16 %v2592
      %v2815 = vunpack.i.h.s16 %v2625
      %v2816 = vunpack.i.h.s16 %v2658
      %v2817 = vunpack.i.h.s16 %v2691
      %v2818 = vunpack.i.h.s16 %v2724
      %s2819 = scalar_lea.vmem %s3, 256
      %v2820 = vld [vmem:[%s2819] sm:$0xf]
      %v2821 = vld [vmem:[%s2819 + $0x4] sm:$0xf]
      %v2822 = vld [vmem:[%s2819 + $0x8] sm:$0xf]
      %v2823 = vld [vmem:[%s2819 + $0xc] sm:$0xf]
      %v2824 = vld [vmem:[%s2819 + $0x10] sm:$0xf]
      %v2825 = vld [vmem:[%s2819 + $0x14] sm:$0xf]
      %v2826 = vld [vmem:[%s2819 + $0x18] sm:$0xf]
      %v2827 = vld [vmem:[%s2819 + $0x1c] sm:$0xf]
      %v2828 = vld [vmem:[%s2819 + $0x20] sm:$0xf]
      %v2829 = vld [vmem:[%s2819 + $0x24] sm:$0xf]
      %v2830 = vld [vmem:[%s2819 + $0x28] sm:$0xf]
      %v2831 = vld [vmem:[%s2819 + $0x2c] sm:$0xf]
      %v2832 = vld [vmem:[%s2819 + $0x30] sm:$0xf]
      %v2833 = vld [vmem:[%s2819 + $0x34] sm:$0xf]
      %v2834 = vld [vmem:[%s2819 + $0x38] sm:$0xf]
      %v2835 = vld [vmem:[%s2819 + $0x3c] sm:$0xf]
      %v2836 = vld [vmem:[%s2819 + $0x40] sm:$0xf]
      %v2837 = vld [vmem:[%s2819 + $0x44] sm:$0xf]
      %v2838 = vld [vmem:[%s2819 + $0x48] sm:$0xf]
      %v2839 = vld [vmem:[%s2819 + $0x4c] sm:$0xf]
      %v2840 = vld [vmem:[%s2819 + $0x50] sm:$0xf]
      %v2841 = vld [vmem:[%s2819 + $0x54] sm:$0xf]
      %v2842 = vld [vmem:[%s2819 + $0x58] sm:$0xf]
      %v2843 = vld [vmem:[%s2819 + $0x5c] sm:$0xf]
      %v2844 = vld [vmem:[%s2819 + $0x60] sm:$0xf]
      %v2845 = vld [vmem:[%s2819 + $0x64] sm:$0xf]
      %v2846 = vld [vmem:[%s2819 + $0x68] sm:$0xf]
      %v2847 = vld [vmem:[%s2819 + $0x6c] sm:$0xf]
      %v2848 = vld [vmem:[%s2819 + $0x70] sm:$0xf]
      %v2849 = vld [vmem:[%s2819 + $0x74] sm:$0xf]
      %v2850 = vld [vmem:[%s2819 + $0x78] sm:$0xf]
      %v2851 = vld [vmem:[%s2819 + $0x7c] sm:$0xf]
      %v2852 = vld [vmem:[%s2819 + $0x80] sm:$0xf]
      %v2853 = vld [vmem:[%s2819 + $0x84] sm:$0xf]
      %v2854 = vld [vmem:[%s2819 + $0x88] sm:$0xf]
      %v2855 = vld [vmem:[%s2819 + $0x8c] sm:$0xf]
      %v2856 = vld [vmem:[%s2819 + $0x90] sm:$0xf]
      %v2857 = vld [vmem:[%s2819 + $0x94] sm:$0xf]
      %v2858 = vld [vmem:[%s2819 + $0x98] sm:$0xf]
      %v2859 = vld [vmem:[%s2819 + $0x9c] sm:$0xf]
      %v2860 = vld [vmem:[%s2819 + $0xa0] sm:$0xf]
      %v2861 = vld [vmem:[%s2819 + $0xa4] sm:$0xf]
      %v2862 = vld [vmem:[%s2819 + $0xa8] sm:$0xf]
      %v2863 = vld [vmem:[%s2819 + $0xac] sm:$0xf]
      %v2864 = vld [vmem:[%s2819 + $0xb0] sm:$0xf]
      %v2865 = vld [vmem:[%s2819 + $0xb4] sm:$0xf]
      %v2866 = vld [vmem:[%s2819 + $0xb8] sm:$0xf]
      %v2867 = vld [vmem:[%s2819 + $0xbc] sm:$0xf]
      %v2868 = vld [vmem:[%s2819 + $0xc0] sm:$0xf]
      %v2869 = vld [vmem:[%s2819 + $0xc4] sm:$0xf]
      %v2870 = vld [vmem:[%s2819 + $0xc8] sm:$0xf]
      %v2871 = vld [vmem:[%s2819 + $0xcc] sm:$0xf]
      %v2872 = vld [vmem:[%s2819 + $0xd0] sm:$0xf]
      %v2873 = vld [vmem:[%s2819 + $0xd4] sm:$0xf]
      %v2874 = vld [vmem:[%s2819 + $0xd8] sm:$0xf]
      %v2875 = vld [vmem:[%s2819 + $0xdc] sm:$0xf]
      %v2876 = vld [vmem:[%s2819 + $0xe0] sm:$0xf]
      %v2877 = vld [vmem:[%s2819 + $0xe4] sm:$0xf]
      %v2878 = vld [vmem:[%s2819 + $0xe8] sm:$0xf]
      %v2879 = vld [vmem:[%s2819 + $0xec] sm:$0xf]
      %v2880 = vld [vmem:[%s2819 + $0xf0] sm:$0xf]
      %v2881 = vld [vmem:[%s2819 + $0xf4] sm:$0xf]
      %v2882 = vld [vmem:[%s2819 + $0xf8] sm:$0xf]
      %v2883 = vld [vmem:[%s2819 + $0xfc] sm:$0xf]
      %v2884 = vpack.i.b16 %v2727, %v2726
      %v2885 = vpack.i.b16 %v2729, %v2728
      %v2886 = vpack.i.b16 %v2731, %v2814
      %v2887 = vpack.i.b16 %v2733, %v2732
      %v2888 = vpack.i.b16 %v2815, %v2734
      %v2889 = vpack.i.b16 %v2737, %v2736
      %v2890 = vpack.i.b16 %v2739, %v2738
      %v2891 = vpack.i.b16 %v2741, %v2816
      %v2892 = vpack.i.b16 %v2743, %v2742
      %v2893 = vpack.i.b16 %v2817, %v2744
      %v2894 = vpack.i.b16 %v2747, %v2746
      %v2895 = vpack.i.b16 %v2749, %v2748
      %v2897 = vcombine.low %v2884, %v2885
      %v2898 = vcombine.low %v2886, %v2887
      %v2899 = vcombine.low %v2888, %v2889
      %v2900 = vcombine.low %v2890, %v2891
      %v2902 = vunpack.c.l.s4 1966171168
      %v2903 = vunpack.c.0.s8 %v2902
      %v2904 = vlaneseq
      %v2905 = vshrl.u32 %v2904, 7
      %v2906 = vsub.s32 %v2903, %v2905
      %v2907 = vrot.slane %v2897, %v2906
      %v2909 = vunpack.c.l.s4 1966171168
      %v2910 = vunpack.c.0.s8 %v2909
      %v2911 = vlaneseq
      %v2912 = vshrl.u32 %v2911, 7
      %v2913 = vsub.s32 %v2910, %v2912
      %v2914 = vrot.slane %v2898, %v2913
      %v2916 = vunpack.c.l.s4 1966171168
      %v2917 = vunpack.c.0.s8 %v2916
      %v2918 = vlaneseq
      %v2919 = vshrl.u32 %v2918, 7
      %v2920 = vsub.s32 %v2917, %v2919
      %v2921 = vrot.slane %v2899, %v2920
      %v2923 = vunpack.c.l.s4 1966171168
      %v2924 = vunpack.c.0.s8 %v2923
      %v2925 = vlaneseq
      %v2926 = vshrl.u32 %v2925, 7
      %v2927 = vsub.s32 %v2924, %v2926
      %v2928 = vrot.slane %v2900, %v2927
      %v2929 = vcombine.low %v2907, %v2914
      %v2930 = vcombine.high %v2907, %v2914
      %v2931 = vcombine.low %v2921, %v2928
      %v2932 = vcombine.high %v2921, %v2928
      %v2934 = vunpack.c.l.s4 1966171168
      %v2935 = vunpack.c.0.s8 %v2934
      %v2936 = vlaneseq
      %v2937 = vshrl.u32 %v2936, 7
      %v2938 = vsub.s32 %v2935, %v2937
      %v2939 = vrot.slane %v2929, %v2938
      %v2941 = vunpack.c.l.s4 1966171168
      %v2942 = vunpack.c.0.s8 %v2941
      %v2943 = vlaneseq
      %v2944 = vshrl.u32 %v2943, 7
      %v2945 = vsub.s32 %v2942, %v2944
      %v2946 = vrot.slane %v2930, %v2945
      %v2948 = vunpack.c.l.s4 1966171168
      %v2949 = vunpack.c.0.s8 %v2948
      %v2950 = vlaneseq
      %v2951 = vshrl.u32 %v2950, 7
      %v2952 = vsub.s32 %v2949, %v2951
      %v2953 = vrot.slane %v2931, %v2952
      %v2955 = vunpack.c.l.s4 1966171168
      %v2956 = vunpack.c.0.s8 %v2955
      %v2957 = vlaneseq
      %v2958 = vshrl.u32 %v2957, 7
      %v2959 = vsub.s32 %v2956, %v2958
      %v2960 = vrot.slane %v2932, %v2959
      %v2961 = vcombine.low %v2939, %v2953
      %v2962 = vcombine.high %v2939, %v2953
      %v2963 = vcombine.low %v2946, %v2960
      %v2964 = vcombine.high %v2946, %v2960
      %v2965 = vcombine.low %v2892, %v2893
      %v2966 = vcombine.low %v2894, %v2895
      %v2968 = vunpack.c.l.s4 1966171168
      %v2969 = vunpack.c.0.s8 %v2968
      %v2970 = vlaneseq
      %v2971 = vshrl.u32 %v2970, 7
      %v2972 = vsub.s32 %v2969, %v2971
      %v2973 = vrot.slane %v2965, %v2972
      %v2975 = vunpack.c.l.s4 1966171168
      %v2976 = vunpack.c.0.s8 %v2975
      %v2977 = vlaneseq
      %v2978 = vshrl.u32 %v2977, 7
      %v2979 = vsub.s32 %v2976, %v2978
      %v2980 = vrot.slane %v2966, %v2979
      %v2982 = vunpack.c.l.s4 1966171168
      %v2983 = vunpack.c.0.s8 %v2982
      %v2984 = vlaneseq
      %v2985 = vshrl.u32 %v2984, 7
      %v2986 = vsub.s32 %v2983, %v2985
      %v2987 = vrot.slane %v2818, %v2986
      %v2988 = vcombine.low %v2973, %v2980
      %v2989 = vcombine.high %v2973, %v2980
      %v2990 = vcombine.high %v2987, %v2987
      %v2992 = vunpack.c.l.s4 1966171168
      %v2993 = vunpack.c.0.s8 %v2992
      %v2994 = vlaneseq
      %v2995 = vshrl.u32 %v2994, 7
      %v2996 = vsub.s32 %v2993, %v2995
      %v2997 = vrot.slane %v2988, %v2996
      %v2999 = vunpack.c.l.s4 1966171168
      %v3000 = vunpack.c.0.s8 %v2999
      %v3001 = vlaneseq
      %v3002 = vshrl.u32 %v3001, 7
      %v3003 = vsub.s32 %v3000, %v3002
      %v3004 = vrot.slane %v2989, %v3003
      %v3006 = vunpack.c.l.s4 1966171168
      %v3007 = vunpack.c.0.s8 %v3006
      %v3008 = vlaneseq
      %v3009 = vshrl.u32 %v3008, 7
      %v3010 = vsub.s32 %v3007, %v3009
      %v3011 = vrot.slane %v2987, %v3010
      %v3013 = vunpack.c.l.s4 1966171168
      %v3014 = vunpack.c.0.s8 %v3013
      %v3015 = vlaneseq
      %v3016 = vshrl.u32 %v3015, 7
      %v3017 = vsub.s32 %v3014, %v3016
      %v3018 = vrot.slane %v2990, %v3017
      %v3019 = vcombine.low %v2997, %v3011
      %v3020 = vcombine.high %v2997, %v3011
      %v3021 = vcombine.low %v3004, %v3018
      %v3022 = vcombine.high %v3004, %v3018
      %v3095 = vunpack.c.l.b16 %v2820
      %v3096 = vunpack.c.l.b16 %v2821
      %v3097 = vunpack.c.l.b16 %v2822
      %v3098 = vunpack.c.l.b16 %v2823
      %v3099 = vunpack.c.l.b16 %v2824
      %v3100 = vunpack.c.l.b16 %v2825
      %v3101 = vunpack.c.l.b16 %v2826
      %v3102 = vunpack.c.l.b16 %v2827
      %v3103 = vunpack.c.l.b16 %v2828
      %v3104 = vunpack.c.l.b16 %v2829
      %v3105 = vunpack.c.l.b16 %v2830
      %v3106 = vunpack.c.l.b16 %v2831
      %v3107 = vunpack.c.l.b16 %v2832
      %v3108 = vunpack.c.l.b16 %v2833
      %v3109 = vunpack.c.l.b16 %v2834
      %v3110 = vunpack.c.l.b16 %v2835
      %v3111 = vunpack.c.l.b16 %v2836
      %v3112 = vunpack.c.l.b16 %v2837
      %v3113 = vunpack.c.l.b16 %v2838
      %v3114 = vunpack.c.l.b16 %v2839
      %v3115 = vunpack.c.l.b16 %v2840
      %v3116 = vunpack.c.l.b16 %v2841
      %v3117 = vunpack.c.l.b16 %v2842
      %v3118 = vunpack.c.l.b16 %v2843
      %v3119 = vunpack.c.l.b16 %v2844
      %v3120 = vunpack.c.l.b16 %v2845
      %v3121 = vunpack.c.l.b16 %v2846
      %v3122 = vunpack.c.l.b16 %v2847
      %v3123 = vunpack.c.l.b16 %v2848
      %v3124 = vunpack.c.l.b16 %v2849
      %v3125 = vunpack.c.l.b16 %v2850
      %v3126 = vunpack.c.l.b16 %v2851
      %v3127 = vunpack.c.l.b16 %v2852
      %v3128 = vunpack.c.l.b16 %v2853
      %v3129 = vunpack.c.l.b16 %v2854
      %v3130 = vunpack.c.l.b16 %v2855
      %v3131 = vunpack.c.l.b16 %v2856
      %v3132 = vunpack.c.l.b16 %v2857
      %v3133 = vunpack.c.l.b16 %v2858
      %v3134 = vunpack.c.l.b16 %v2859
      %v3135 = vunpack.c.l.b16 %v2860
      %v3136 = vunpack.c.l.b16 %v2861
      %v3137 = vunpack.c.l.b16 %v2862
      %v3138 = vunpack.c.l.b16 %v2863
      %v3139 = vunpack.c.l.b16 %v2864
      %v3140 = vunpack.c.l.b16 %v2865
      %v3141 = vunpack.c.l.b16 %v2866
      %v3142 = vunpack.c.l.b16 %v2867
      %v3143 = vunpack.c.l.b16 %v2868
      %v3144 = vunpack.c.l.b16 %v2869
      %v3145 = vunpack.c.l.b16 %v2870
      %v3146 = vunpack.c.l.b16 %v2871
      %v3147 = vunpack.c.l.b16 %v2872
      %v3148 = vunpack.c.l.b16 %v2873
      %v3149 = vunpack.c.l.b16 %v2874
      %v3150 = vunpack.c.l.b16 %v2875
      %v3151 = vunpack.c.l.b16 %v2876
      %v3152 = vunpack.c.l.b16 %v2877
      %v3153 = vunpack.c.l.b16 %v2878
      %v3154 = vunpack.c.l.b16 %v2879
      %v3155 = vunpack.c.l.b16 %v2880
      %v3156 = vunpack.c.l.b16 %v2881
      %v3157 = vunpack.c.l.b16 %v2882
      %v3158 = vunpack.c.l.b16 %v2883
      %v3159 = vpack.c.b16 %v3096, %v3095
      %v3160 = vpack.c.b16 %v3098, %v3097
      %v3161 = vpack.c.b16 %v3100, %v3099
      %v3162 = vpack.c.b16 %v3102, %v3101
      %v3163 = vpack.c.b16 %v3104, %v3103
      %v3164 = vpack.c.b16 %v3106, %v3105
      %v3165 = vpack.c.b16 %v3108, %v3107
      %v3166 = vpack.c.b16 %v3110, %v3109
      %v3167 = vpack.c.b16 %v3112, %v3111
      %v3168 = vpack.c.b16 %v3114, %v3113
      %v3169 = vpack.c.b16 %v3116, %v3115
      %v3170 = vpack.c.b16 %v3118, %v3117
      %v3171 = vpack.c.b16 %v3120, %v3119
      %v3172 = vpack.c.b16 %v3122, %v3121
      %v3173 = vpack.c.b16 %v3124, %v3123
      %v3174 = vpack.c.b16 %v3126, %v3125
      %v3175 = vpack.c.b16 %v3128, %v3127
      %v3176 = vpack.c.b16 %v3130, %v3129
      %v3177 = vpack.c.b16 %v3132, %v3131
      %v3178 = vpack.c.b16 %v3134, %v3133
      %v3179 = vpack.c.b16 %v3136, %v3135
      %v3180 = vpack.c.b16 %v3138, %v3137
      %v3181 = vpack.c.b16 %v3140, %v3139
      %v3182 = vpack.c.b16 %v3142, %v3141
      %v3183 = vpack.c.b16 %v3144, %v3143
      %v3184 = vpack.c.b16 %v3146, %v3145
      %v3185 = vpack.c.b16 %v3148, %v3147
      %v3186 = vpack.c.b16 %v3150, %v3149
      %v3187 = vpack.c.b16 %v3152, %v3151
      %v3188 = vpack.c.b16 %v3154, %v3153
      %v3189 = vpack.c.b16 %v3156, %v3155
      %v3190 = vpack.c.b16 %v3158, %v3157
      %3223 = vmatprep.subr.bf16.mxu0 0
      %3224 = vmatpush1.bf16.msra.mxu0 %v3159
      %3225 = vmatprep.subr.bf16.mxu0 0
      %3226 = vmatpush1.bf16.msra.mxu0 %v3160
      %3227 = vmatprep.subr.bf16.mxu0 0
      %3228 = vmatpush1.bf16.msra.mxu0 %v3161
      %3229 = vmatprep.subr.bf16.mxu0 0
      %3230 = vmatpush1.bf16.msra.mxu0 %v3162
      %3231 = vmatprep.subr.bf16.mxu0 0
      %3232 = vmatpush1.bf16.msra.mxu0 %v3163
      %3233 = vmatprep.subr.bf16.mxu0 0
      %3234 = vmatpush1.bf16.msra.mxu0 %v3164
      %3235 = vmatprep.subr.bf16.mxu0 0
      %3236 = vmatpush1.bf16.msra.mxu0 %v3165
      %3237 = vmatprep.subr.bf16.mxu0 0
      %3238 = vmatpush1.bf16.msra.mxu0 %v3166
      %3239 = vmatprep.subr.bf16.mxu0 0
      %3240 = vmatpush1.bf16.msra.mxu0 %v3167
      %3241 = vmatprep.subr.bf16.mxu0 0
      %3242 = vmatpush1.bf16.msra.mxu0 %v3168
      %3243 = vmatprep.subr.bf16.mxu0 0
      %3244 = vmatpush1.bf16.msra.mxu0 %v3169
      %3245 = vmatprep.subr.bf16.mxu0 0
      %3246 = vmatpush1.bf16.msra.mxu0 %v3170
      %3247 = vmatprep.subr.bf16.mxu0 0
      %3248 = vmatpush1.bf16.msra.mxu0 %v3171
      %3249 = vmatprep.subr.bf16.mxu0 0
      %3250 = vmatpush1.bf16.msra.mxu0 %v3172
      %3251 = vmatprep.subr.bf16.mxu0 0
      %3252 = vmatpush1.bf16.msra.mxu0 %v3173
      %3253 = vmatprep.subr.bf16.mxu0 0
      %3254 = vmatpush1.bf16.msra.mxu0 %v3174
      %3255 = vmatprep.mubr.bf16.mxu0 %v2963
      %3256 = vmatmul.mubr.bf16.gmra.mrb[0].mxu0 %v2961
      %v3257 = vpop.f32.mrb[0].mxu0
      %v3258 = vadd.f32 0.0, %v3257
      %v3259 = vpop.f32.mrb[0].mxu0
      %v3260 = vpop.f32.mrb[0].mxu0
      %v3261 = vadd.f32 0.0, %v3260
      %v3262 = vpop.f32.mrb[0].mxu0
      %3263 = vmatprep.mubr.bf16.mxu0 %v3021
      %3264 = vmatmul.mubr.bf16.gmra.mrb[0].mxu0 %v3019
      %v3265 = vpop.f32.mrb[0].mxu0
      %v3266 = vadd.f32 0.0, %v3265
      %v3267 = vpop.f32.mrb[0].mxu0
      %v3268 = vpop.f32.mrb[0].mxu0
      %v3269 = vadd.f32 0.0, %v3268
      %v3270 = vpop.f32.mrb[0].mxu0
      %3271 = vdwg.mxu0
      %3272 = vmatprep.subr.bf16.mxu0 0
      %3273 = vmatpush1.bf16.msra.mxu0 %v3175
      %3274 = vmatprep.subr.bf16.mxu0 0
      %3275 = vmatpush1.bf16.msra.mxu0 %v3176
      %3276 = vmatprep.subr.bf16.mxu0 0
      %3277 = vmatpush1.bf16.msra.mxu0 %v3177
      %3278 = vmatprep.subr.bf16.mxu0 0
      %3279 = vmatpush1.bf16.msra.mxu0 %v3178
      %3280 = vmatprep.subr.bf16.mxu0 0
      %3281 = vmatpush1.bf16.msra.mxu0 %v3179
      %3282 = vmatprep.subr.bf16.mxu0 0
      %3283 = vmatpush1.bf16.msra.mxu0 %v3180
      %3284 = vmatprep.subr.bf16.mxu0 0
      %3285 = vmatpush1.bf16.msra.mxu0 %v3181
      %3286 = vmatprep.subr.bf16.mxu0 0
      %3287 = vmatpush1.bf16.msra.mxu0 %v3182
      %3288 = vmatprep.subr.bf16.mxu0 0
      %3289 = vmatpush1.bf16.msra.mxu0 %v3183
      %3290 = vmatprep.subr.bf16.mxu0 0
      %3291 = vmatpush1.bf16.msra.mxu0 %v3184
      %3292 = vmatprep.subr.bf16.mxu0 0
      %3293 = vmatpush1.bf16.msra.mxu0 %v3185
      %3294 = vmatprep.subr.bf16.mxu0 0
      %3295 = vmatpush1.bf16.msra.mxu0 %v3186
      %3296 = vmatprep.subr.bf16.mxu0 0
      %3297 = vmatpush1.bf16.msra.mxu0 %v3187
      %3298 = vmatprep.subr.bf16.mxu0 0
      %3299 = vmatpush1.bf16.msra.mxu0 %v3188
      %3300 = vmatprep.subr.bf16.mxu0 0
      %3301 = vmatpush1.bf16.msra.mxu0 %v3189
      %3302 = vmatprep.subr.bf16.mxu0 0
      %3303 = vmatpush1.bf16.msra.mxu0 %v3190
      %3304 = vmatprep.mubr.bf16.mxu0 %v2964
      %3305 = vmatmul.mubr.bf16.gmra.mrb[0].mxu0 %v2962
      %v3306 = vpop.f32.mrb[0].mxu0
      %v3307 = vadd.f32 %v3258, %v3306
      %v3308 = vpop.f32.mrb[0].mxu0
      %v3309 = vpop.f32.mrb[0].mxu0
      %v3310 = vadd.f32 %v3261, %v3309
      %v3311 = vpop.f32.mrb[0].mxu0
      %3312 = vmatprep.mubr.bf16.mxu0 %v3022
      %3313 = vmatmul.mubr.bf16.gmra.mrb[0].mxu0 %v3020
      %v3314 = vpop.f32.mrb[0].mxu0
      %v3315 = vadd.f32 %v3266, %v3314
      %v3316 = vpop.f32.mrb[0].mxu0
      %v3317 = vpop.f32.mrb[0].mxu0
      %v3318 = vadd.f32 %v3269, %v3317
      %v3319 = vpop.f32.mrb[0].mxu0
      %3320 = vdwg.mxu0
      %v3321 = vpack.i.b16 %v2726, %v2725
      %v3322 = vpack.i.b16 %v2728, %v2727
      %v3323 = vpack.i.b16 %v2730, %v2729
      %v3324 = vpack.i.b16 %v2732, %v2731
      %v3325 = vpack.i.b16 %v2734, %v2733
      %v3326 = vpack.i.b16 %v2736, %v2735
      %v3327 = vpack.i.b16 %v2738, %v2737
      %v3328 = vpack.i.b16 %v2740, %v2739
      %v3329 = vpack.i.b16 %v2742, %v2741
      %v3330 = vpack.i.b16 %v2744, %v2743
      %v3331 = vpack.i.b16 %v2746, %v2745
      %v3332 = vpack.i.b16 %v2748, %v2747
      %v3334 = vcombine.low %v3321, %v3322
      %v3335 = vcombine.low %v3323, %v3324
      %v3336 = vcombine.low %v3325, %v3326
      %v3337 = vcombine.low %v3327, %v3328
      %v3339 = vunpack.c.l.s4 1966171168
      %v3340 = vunpack.c.0.s8 %v3339
      %v3341 = vlaneseq
      %v3342 = vshrl.u32 %v3341, 7
      %v3343 = vsub.s32 %v3340, %v3342
      %v3344 = vrot.slane %v3334, %v3343
      %v3346 = vunpack.c.l.s4 1966171168
      %v3347 = vunpack.c.0.s8 %v3346
      %v3348 = vlaneseq
      %v3349 = vshrl.u32 %v3348, 7
      %v3350 = vsub.s32 %v3347, %v3349
      %v3351 = vrot.slane %v3335, %v3350
      %v3353 = vunpack.c.l.s4 1966171168
      %v3354 = vunpack.c.0.s8 %v3353
      %v3355 = vlaneseq
      %v3356 = vshrl.u32 %v3355, 7
      %v3357 = vsub.s32 %v3354, %v3356
      %v3358 = vrot.slane %v3336, %v3357
      %v3360 = vunpack.c.l.s4 1966171168
      %v3361 = vunpack.c.0.s8 %v3360
      %v3362 = vlaneseq
      %v3363 = vshrl.u32 %v3362, 7
      %v3364 = vsub.s32 %v3361, %v3363
      %v3365 = vrot.slane %v3337, %v3364
      %v3366 = vcombine.low %v3344, %v3351
      %v3367 = vcombine.high %v3344, %v3351
      %v3368 = vcombine.low %v3358, %v3365
      %v3369 = vcombine.high %v3358, %v3365
      %v3371 = vunpack.c.l.s4 1966171168
      %v3372 = vunpack.c.0.s8 %v3371
      %v3373 = vlaneseq
      %v3374 = vshrl.u32 %v3373, 7
      %v3375 = vsub.s32 %v3372, %v3374
      %v3376 = vrot.slane %v3366, %v3375
      %v3378 = vunpack.c.l.s4 1966171168
      %v3379 = vunpack.c.0.s8 %v3378
      %v3380 = vlaneseq
      %v3381 = vshrl.u32 %v3380, 7
      %v3382 = vsub.s32 %v3379, %v3381
      %v3383 = vrot.slane %v3367, %v3382
      %v3385 = vunpack.c.l.s4 1966171168
      %v3386 = vunpack.c.0.s8 %v3385
      %v3387 = vlaneseq
      %v3388 = vshrl.u32 %v3387, 7
      %v3389 = vsub.s32 %v3386, %v3388
      %v3390 = vrot.slane %v3368, %v3389
      %v3392 = vunpack.c.l.s4 1966171168
      %v3393 = vunpack.c.0.s8 %v3392
      %v3394 = vlaneseq
      %v3395 = vshrl.u32 %v3394, 7
      %v3396 = vsub.s32 %v3393, %v3395
      %v3397 = vrot.slane %v3369, %v3396
      %v3398 = vcombine.low %v3376, %v3390
      %v3399 = vcombine.high %v3376, %v3390
      %v3400 = vcombine.low %v3383, %v3397
      %v3401 = vcombine.high %v3383, %v3397
      %v3402 = vcombine.low %v3329, %v3330
      %v3403 = vcombine.low %v3331, %v3332
      %v3405 = vunpack.c.l.s4 1966171168
      %v3406 = vunpack.c.0.s8 %v3405
      %v3407 = vlaneseq
      %v3408 = vshrl.u32 %v3407, 7
      %v3409 = vsub.s32 %v3406, %v3408
      %v3410 = vrot.slane %v3402, %v3409
      %v3412 = vunpack.c.l.s4 1966171168
      %v3413 = vunpack.c.0.s8 %v3412
      %v3414 = vlaneseq
      %v3415 = vshrl.u32 %v3414, 7
      %v3416 = vsub.s32 %v3413, %v3415
      %v3417 = vrot.slane %v3403, %v3416
      %v3419 = vunpack.c.l.s4 1966171168
      %v3420 = vunpack.c.0.s8 %v3419
      %v3421 = vlaneseq
      %v3422 = vshrl.u32 %v3421, 7
      %v3423 = vsub.s32 %v3420, %v3422
      %v3424 = vrot.slane %v2749, %v3423
      %v3425 = vcombine.low %v3410, %v3417
      %v3426 = vcombine.high %v3410, %v3417
      %v3427 = vcombine.high %v3424, %v3424
      %v3429 = vunpack.c.l.s4 1966171168
      %v3430 = vunpack.c.0.s8 %v3429
      %v3431 = vlaneseq
      %v3432 = vshrl.u32 %v3431, 7
      %v3433 = vsub.s32 %v3430, %v3432
      %v3434 = vrot.slane %v3425, %v3433
      %v3436 = vunpack.c.l.s4 1966171168
      %v3437 = vunpack.c.0.s8 %v3436
      %v3438 = vlaneseq
      %v3439 = vshrl.u32 %v3438, 7
      %v3440 = vsub.s32 %v3437, %v3439
      %v3441 = vrot.slane %v3426, %v3440
      %v3443 = vunpack.c.l.s4 1966171168
      %v3444 = vunpack.c.0.s8 %v3443
      %v3445 = vlaneseq
      %v3446 = vshrl.u32 %v3445, 7
      %v3447 = vsub.s32 %v3444, %v3446
      %v3448 = vrot.slane %v3424, %v3447
      %v3450 = vunpack.c.l.s4 1966171168
      %v3451 = vunpack.c.0.s8 %v3450
      %v3452 = vlaneseq
      %v3453 = vshrl.u32 %v3452, 7
      %v3454 = vsub.s32 %v3451, %v3453
      %v3455 = vrot.slane %v3427, %v3454
      %v3456 = vcombine.low %v3434, %v3448
      %v3457 = vcombine.high %v3434, %v3448
      %v3458 = vcombine.low %v3441, %v3455
      %v3459 = vcombine.high %v3441, %v3455
      %v3532 = vunpack.c.l.b16 %v2750
      %v3533 = vunpack.c.l.b16 %v2751
      %v3534 = vunpack.c.l.b16 %v2752
      %v3535 = vunpack.c.l.b16 %v2753
      %v3536 = vunpack.c.l.b16 %v2754
      %v3537 = vunpack.c.l.b16 %v2755
      %v3538 = vunpack.c.l.b16 %v2756
      %v3539 = vunpack.c.l.b16 %v2757
      %v3540 = vunpack.c.l.b16 %v2758
      %v3541 = vunpack.c.l.b16 %v2759
      %v3542 = vunpack.c.l.b16 %v2760
      %v3543 = vunpack.c.l.b16 %v2761
      %v3544 = vunpack.c.l.b16 %v2762
      %v3545 = vunpack.c.l.b16 %v2763
      %v3546 = vunpack.c.l.b16 %v2764
      %v3547 = vunpack.c.l.b16 %v2765
      %v3548 = vunpack.c.l.b16 %v2766
      %v3549 = vunpack.c.l.b16 %v2767
      %v3550 = vunpack.c.l.b16 %v2768
      %v3551 = vunpack.c.l.b16 %v2769
      %v3552 = vunpack.c.l.b16 %v2770
      %v3553 = vunpack.c.l.b16 %v2771
      %v3554 = vunpack.c.l.b16 %v2772
      %v3555 = vunpack.c.l.b16 %v2773
      %v3556 = vunpack.c.l.b16 %v2774
      %v3557 = vunpack.c.l.b16 %v2775
      %v3558 = vunpack.c.l.b16 %v2776
      %v3559 = vunpack.c.l.b16 %v2777
      %v3560 = vunpack.c.l.b16 %v2778
      %v3561 = vunpack.c.l.b16 %v2779
      %v3562 = vunpack.c.l.b16 %v2780
      %v3563 = vunpack.c.l.b16 %v2781
      %v3564 = vunpack.c.l.b16 %v2782
      %v3565 = vunpack.c.l.b16 %v2783
      %v3566 = vunpack.c.l.b16 %v2784
      %v3567 = vunpack.c.l.b16 %v2785
      %v3568 = vunpack.c.l.b16 %v2786
      %v3569 = vunpack.c.l.b16 %v2787
      %v3570 = vunpack.c.l.b16 %v2788
      %v3571 = vunpack.c.l.b16 %v2789
      %v3572 = vunpack.c.l.b16 %v2790
      %v3573 = vunpack.c.l.b16 %v2791
      %v3574 = vunpack.c.l.b16 %v2792
      %v3575 = vunpack.c.l.b16 %v2793
      %v3576 = vunpack.c.l.b16 %v2794
      %v3577 = vunpack.c.l.b16 %v2795
      %v3578 = vunpack.c.l.b16 %v2796
      %v3579 = vunpack.c.l.b16 %v2797
      %v3580 = vunpack.c.l.b16 %v2798
      %v3581 = vunpack.c.l.b16 %v2799
      %v3582 = vunpack.c.l.b16 %v2800
      %v3583 = vunpack.c.l.b16 %v2801
      %v3584 = vunpack.c.l.b16 %v2802
      %v3585 = vunpack.c.l.b16 %v2803
      %v3586 = vunpack.c.l.b16 %v2804
      %v3587 = vunpack.c.l.b16 %v2805
      %v3588 = vunpack.c.l.b16 %v2806
      %v3589 = vunpack.c.l.b16 %v2807
      %v3590 = vunpack.c.l.b16 %v2808
      %v3591 = vunpack.c.l.b16 %v2809
      %v3592 = vunpack.c.l.b16 %v2810
      %v3593 = vunpack.c.l.b16 %v2811
      %v3594 = vunpack.c.l.b16 %v2812
      %v3595 = vunpack.c.l.b16 %v2813
      %v3596 = vpack.c.b16 %v3533, %v3532
      %v3597 = vpack.c.b16 %v3535, %v3534
      %v3598 = vpack.c.b16 %v3537, %v3536
      %v3599 = vpack.c.b16 %v3539, %v3538
      %v3600 = vpack.c.b16 %v3541, %v3540
      %v3601 = vpack.c.b16 %v3543, %v3542
      %v3602 = vpack.c.b16 %v3545, %v3544
      %v3603 = vpack.c.b16 %v3547, %v3546
      %v3604 = vpack.c.b16 %v3549, %v3548
      %v3605 = vpack.c.b16 %v3551, %v3550
      %v3606 = vpack.c.b16 %v3553, %v3552
      %v3607 = vpack.c.b16 %v3555, %v3554
      %v3608 = vpack.c.b16 %v3557, %v3556
      %v3609 = vpack.c.b16 %v3559, %v3558
      %v3610 = vpack.c.b16 %v3561, %v3560
      %v3611 = vpack.c.b16 %v3563, %v3562
      %v3612 = vpack.c.b16 %v3565, %v3564
      %v3613 = vpack.c.b16 %v3567, %v3566
      %v3614 = vpack.c.b16 %v3569, %v3568
      %v3615 = vpack.c.b16 %v3571, %v3570
      %v3616 = vpack.c.b16 %v3573, %v3572
      %v3617 = vpack.c.b16 %v3575, %v3574
      %v3618 = vpack.c.b16 %v3577, %v3576
      %v3619 = vpack.c.b16 %v3579, %v3578
      %v3620 = vpack.c.b16 %v3581, %v3580
      %v3621 = vpack.c.b16 %v3583, %v3582
      %v3622 = vpack.c.b16 %v3585, %v3584
      %v3623 = vpack.c.b16 %v3587, %v3586
      %v3624 = vpack.c.b16 %v3589, %v3588
      %v3625 = vpack.c.b16 %v3591, %v3590
      %v3626 = vpack.c.b16 %v3593, %v3592
      %v3627 = vpack.c.b16 %v3595, %v3594
      %3660 = vmatprep.subr.bf16.mxu0 0
      %3661 = vmatpush1.bf16.msra.mxu0 %v3596
      %3662 = vmatprep.subr.bf16.mxu0 0
      %3663 = vmatpush1.bf16.msra.mxu0 %v3597
      %3664 = vmatprep.subr.bf16.mxu0 0
      %3665 = vmatpush1.bf16.msra.mxu0 %v3598
      %3666 = vmatprep.subr.bf16.mxu0 0
      %3667 = vmatpush1.bf16.msra.mxu0 %v3599
      %3668 = vmatprep.subr.bf16.mxu0 0
      %3669 = vmatpush1.bf16.msra.mxu0 %v3600
      %3670 = vmatprep.subr.bf16.mxu0 0
      %3671 = vmatpush1.bf16.msra.mxu0 %v3601
      %3672 = vmatprep.subr.bf16.mxu0 0
      %3673 = vmatpush1.bf16.msra.mxu0 %v3602
      %3674 = vmatprep.subr.bf16.mxu0 0
      %3675 = vmatpush1.bf16.msra.mxu0 %v3603
      %3676 = vmatprep.subr.bf16.mxu0 0
      %3677 = vmatpush1.bf16.msra.mxu0 %v3604
      %3678 = vmatprep.subr.bf16.mxu0 0
      %3679 = vmatpush1.bf16.msra.mxu0 %v3605
      %3680 = vmatprep.subr.bf16.mxu0 0
      %3681 = vmatpush1.bf16.msra.mxu0 %v3606
      %3682 = vmatprep.subr.bf16.mxu0 0
      %3683 = vmatpush1.bf16.msra.mxu0 %v3607
      %3684 = vmatprep.subr.bf16.mxu0 0
      %3685 = vmatpush1.bf16.msra.mxu0 %v3608
      %3686 = vmatprep.subr.bf16.mxu0 0
      %3687 = vmatpush1.bf16.msra.mxu0 %v3609
      %3688 = vmatprep.subr.bf16.mxu0 0
      %3689 = vmatpush1.bf16.msra.mxu0 %v3610
      %3690 = vmatprep.subr.bf16.mxu0 0
      %3691 = vmatpush1.bf16.msra.mxu0 %v3611
      %3692 = vmatprep.mubr.bf16.mxu0 %v3400
      %3693 = vmatmul.mubr.bf16.gmra.mrb[0].mxu0 %v3398
      %v3694 = vpop.f32.mrb[0].mxu0
      %v3695 = vadd.f32 %v3307, %v3694
      %v3696 = vpop.f32.mrb[0].mxu0
      %v3697 = vpop.f32.mrb[0].mxu0
      %v3698 = vadd.f32 %v3310, %v3697
      %v3699 = vpop.f32.mrb[0].mxu0
      %3700 = vmatprep.mubr.bf16.mxu0 %v3458
      %3701 = vmatmul.mubr.bf16.gmra.mrb[0].mxu0 %v3456
      %v3702 = vpop.f32.mrb[0].mxu0
      %v3703 = vadd.f32 %v3315, %v3702
      %v3704 = vpop.f32.mrb[0].mxu0
      %v3705 = vpop.f32.mrb[0].mxu0
      %v3706 = vadd.f32 %v3318, %v3705
      %v3707 = vpop.f32.mrb[0].mxu0
      %3708 = vdwg.mxu0
      %3709 = vmatprep.subr.bf16.mxu0 0
      %3710 = vmatpush1.bf16.msra.mxu0 %v3612
      %3711 = vmatprep.subr.bf16.mxu0 0
      %3712 = vmatpush1.bf16.msra.mxu0 %v3613
      %3713 = vmatprep.subr.bf16.mxu0 0
      %3714 = vmatpush1.bf16.msra.mxu0 %v3614
      %3715 = vmatprep.subr.bf16.mxu0 0
      %3716 = vmatpush1.bf16.msra.mxu0 %v3615
      %3717 = vmatprep.subr.bf16.mxu0 0
      %3718 = vmatpush1.bf16.msra.mxu0 %v3616
      %3719 = vmatprep.subr.bf16.mxu0 0
      %3720 = vmatpush1.bf16.msra.mxu0 %v3617
      %3721 = vmatprep.subr.bf16.mxu0 0
      %3722 = vmatpush1.bf16.msra.mxu0 %v3618
      %3723 = vmatprep.subr.bf16.mxu0 0
      %3724 = vmatpush1.bf16.msra.mxu0 %v3619
      %3725 = vmatprep.subr.bf16.mxu0 0
      %3726 = vmatpush1.bf16.msra.mxu0 %v3620
      %3727 = vmatprep.subr.bf16.mxu0 0
      %3728 = vmatpush1.bf16.msra.mxu0 %v3621
      %3729 = vmatprep.subr.bf16.mxu0 0
      %3730 = vmatpush1.bf16.msra.mxu0 %v3622
      %3731 = vmatprep.subr.bf16.mxu0 0
      %3732 = vmatpush1.bf16.msra.mxu0 %v3623
      %3733 = vmatprep.subr.bf16.mxu0 0
      %3734 = vmatpush1.bf16.msra.mxu0 %v3624
      %3735 = vmatprep.subr.bf16.mxu0 0
      %3736 = vmatpush1.bf16.msra.mxu0 %v3625
      %3737 = vmatprep.subr.bf16.mxu0 0
      %3738 = vmatpush1.bf16.msra.mxu0 %v3626
      %3739 = vmatprep.subr.bf16.mxu0 0
      %3740 = vmatpush1.bf16.msra.mxu0 %v3627
      %3741 = vmatprep.mubr.bf16.mxu0 %v3401
      %3742 = vmatmul.mubr.bf16.gmra.mrb[0].mxu0 %v3399
      %v3743 = vpop.f32.mrb[0].mxu0
      %v3744 = vadd.f32 %v3695, %v3743
      %v3745 = vpop.f32.mrb[0].mxu0
      %v3746 = vpop.f32.mrb[0].mxu0
      %v3747 = vadd.f32 %v3698, %v3746
      %v3748 = vpop.f32.mrb[0].mxu0
      %3749 = vmatprep.mubr.bf16.mxu0 %v3459
      %3750 = vmatmul.mubr.bf16.gmra.mrb[0].mxu0 %v3457
      %v3751 = vpop.f32.mrb[0].mxu0
      %v3752 = vadd.f32 %v3703, %v3751
      %v3753 = vpop.f32.mrb[0].mxu0
      %v3754 = vpop.f32.mrb[0].mxu0
      %v3755 = vadd.f32 %v3706, %v3754
      %v3756 = vpop.f32.mrb[0].mxu0
      %3757 = vdwg.mxu0
      %v3758 = vcombine.low %v1821, %v1887
      %v3759 = vcombine.low %v2493, %v2559
      %v3761 = vunpack.c.l.s4 1966171168
      %v3762 = vunpack.c.0.s8 %v3761
      %v3763 = vlaneseq
      %v3764 = vshrl.u32 %v3763, 7
      %v3765 = vsub.s32 %v3762, %v3764
      %v3766 = vrot.slane %v3758, %v3765
      %v3768 = vunpack.c.l.s4 1966171168
      %v3769 = vunpack.c.0.s8 %v3768
      %v3770 = vlaneseq
      %v3771 = vshrl.u32 %v3770, 7
      %v3772 = vsub.s32 %v3769, %v3771
      %v3773 = vrot.slane %v3759, %v3772
      %v3774 = vcombine.low %v3766, %v3773
      %v3775 = vcombine.high %v3766, %v3773
      %v3777 = vunpack.c.l.s4 1966171168
      %v3778 = vunpack.c.0.s8 %v3777
      %v3779 = vlaneseq
      %v3780 = vshrl.u32 %v3779, 7
      %v3781 = vsub.s32 %v3778, %v3780
      %v3782 = vrot.slane %v3774, %v3781
      %v3784 = vunpack.c.l.s4 1966171168
      %v3785 = vunpack.c.0.s8 %v3784
      %v3786 = vlaneseq
      %v3787 = vshrl.u32 %v3786, 7
      %v3788 = vsub.s32 %v3785, %v3787
      %v3789 = vrot.slane %v3775, %v3788
      %v3790 = vcombine.high %v3782, %v3782
      %v3791 = vunpack.i.l.s16 %v3782
      %v3792 = vunpack.i.h.s16 %v3782
      %v3793 = vunpack.i.l.s16 %v3789
      %v3794 = vunpack.i.h.s16 %v3789
      %v3795 = vunpack.i.l.s16 %v3790
      %s3796 = scalar_lea.vmem %s3, 512
      %v3797 = vld [vmem:[%s3796] sm:$0xf]
      %v3798 = vld [vmem:[%s3796 + $0x4] sm:$0xf]
      %v3799 = vld [vmem:[%s3796 + $0x8] sm:$0xf]
      %v3800 = vld [vmem:[%s3796 + $0xc] sm:$0xf]
      %v3801 = vld [vmem:[%s3796 + $0x10] sm:$0xf]
      %v3802 = vld [vmem:[%s3796 + $0x14] sm:$0xf]
      %v3803 = vld [vmem:[%s3796 + $0x18] sm:$0xf]
      %v3804 = vld [vmem:[%s3796 + $0x1c] sm:$0xf]
      %v3805 = vld [vmem:[%s3796 + $0x20] sm:$0xf]
      %v3806 = vld [vmem:[%s3796 + $0x24] sm:$0xf]
      %v3807 = vld [vmem:[%s3796 + $0x28] sm:$0xf]
      %v3808 = vld [vmem:[%s3796 + $0x2c] sm:$0xf]
      %v3809 = vld [vmem:[%s3796 + $0x30] sm:$0xf]
      %v3810 = vld [vmem:[%s3796 + $0x34] sm:$0xf]
      %v3811 = vld [vmem:[%s3796 + $0x38] sm:$0xf]
      %v3812 = vld [vmem:[%s3796 + $0x3c] sm:$0xf]
      %v3813 = vld [vmem:[%s3796 + $0x40] sm:$0xf]
      %v3814 = vld [vmem:[%s3796 + $0x44] sm:$0xf]
      %v3815 = vld [vmem:[%s3796 + $0x48] sm:$0xf]
      %v3816 = vld [vmem:[%s3796 + $0x4c] sm:$0xf]
      %v3817 = vld [vmem:[%s3796 + $0x50] sm:$0xf]
      %v3818 = vld [vmem:[%s3796 + $0x54] sm:$0xf]
      %v3819 = vld [vmem:[%s3796 + $0x58] sm:$0xf]
      %v3820 = vld [vmem:[%s3796 + $0x5c] sm:$0xf]
      %v3821 = vld [vmem:[%s3796 + $0x60] sm:$0xf]
      %v3822 = vld [vmem:[%s3796 + $0x64] sm:$0xf]
      %v3823 = vld [vmem:[%s3796 + $0x68] sm:$0xf]
      %v3824 = vld [vmem:[%s3796 + $0x6c] sm:$0xf]
      %v3825 = vld [vmem:[%s3796 + $0x70] sm:$0xf]
      %v3826 = vld [vmem:[%s3796 + $0x74] sm:$0xf]
      %v3827 = vld [vmem:[%s3796 + $0x78] sm:$0xf]
      %v3828 = vld [vmem:[%s3796 + $0x7c] sm:$0xf]
      %v3829 = vld [vmem:[%s3796 + $0x80] sm:$0xf]
      %v3830 = vld [vmem:[%s3796 + $0x84] sm:$0xf]
      %v3831 = vld [vmem:[%s3796 + $0x88] sm:$0xf]
      %v3832 = vld [vmem:[%s3796 + $0x8c] sm:$0xf]
      %v3833 = vld [vmem:[%s3796 + $0x90] sm:$0xf]
      %v3834 = vld [vmem:[%s3796 + $0x94] sm:$0xf]
      %v3835 = vld [vmem:[%s3796 + $0x98] sm:$0xf]
      %v3836 = vld [vmem:[%s3796 + $0x9c] sm:$0xf]
      %v3837 = vld [vmem:[%s3796 + $0xa0] sm:$0xf]
      %v3838 = vld [vmem:[%s3796 + $0xa4] sm:$0xf]
      %v3839 = vld [vmem:[%s3796 + $0xa8] sm:$0xf]
      %v3840 = vld [vmem:[%s3796 + $0xac] sm:$0xf]
      %v3841 = vld [vmem:[%s3796 + $0xb0] sm:$0xf]
      %v3842 = vld [vmem:[%s3796 + $0xb4] sm:$0xf]
      %v3843 = vld [vmem:[%s3796 + $0xb8] sm:$0xf]
      %v3844 = vld [vmem:[%s3796 + $0xbc] sm:$0xf]
      %v3845 = vld [vmem:[%s3796 + $0xc0] sm:$0xf]
      %v3846 = vld [vmem:[%s3796 + $0xc4] sm:$0xf]
      %v3847 = vld [vmem:[%s3796 + $0xc8] sm:$0xf]
      %v3848 = vld [vmem:[%s3796 + $0xcc] sm:$0xf]
      %v3849 = vld [vmem:[%s3796 + $0xd0] sm:$0xf]
      %v3850 = vld [vmem:[%s3796 + $0xd4] sm:$0xf]
      %v3851 = vld [vmem:[%s3796 + $0xd8] sm:$0xf]
      %v3852 = vld [vmem:[%s3796 + $0xdc] sm:$0xf]
      %v3853 = vld [vmem:[%s3796 + $0xe0] sm:$0xf]
      %v3854 = vld [vmem:[%s3796 + $0xe4] sm:$0xf]
      %v3855 = vld [vmem:[%s3796 + $0xe8] sm:$0xf]
      %v3856 = vld [vmem:[%s3796 + $0xec] sm:$0xf]
      %v3857 = vld [vmem:[%s3796 + $0xf0] sm:$0xf]
      %v3858 = vld [vmem:[%s3796 + $0xf4] sm:$0xf]
      %v3859 = vld [vmem:[%s3796 + $0xf8] sm:$0xf]
      %v3860 = vld [vmem:[%s3796 + $0xfc] sm:$0xf]
      %v3861 = vpack.i.b16 %v2731, %v2730
      %v3862 = vpack.i.b16 %v2735, %v2734
      %v3863 = vpack.i.b16 %v2741, %v2740
      %v3864 = vpack.i.b16 %v2745, %v2744
      %v3865 = vpack.i.b16 %v3792, %v3791
      %v3866 = vpack.i.b16 %v3794, %v3793
      %v3868 = vcombine.low %v3861, %v2887
      %v3869 = vcombine.low %v3862, %v2889
      %v3870 = vcombine.low %v2890, %v3863
      %v3871 = vcombine.low %v2892, %v3864
      %v3873 = vunpack.c.l.s4 1966171168
      %v3874 = vunpack.c.0.s8 %v3873
      %v3875 = vlaneseq
      %v3876 = vshrl.u32 %v3875, 7
      %v3877 = vsub.s32 %v3874, %v3876
      %v3878 = vrot.slane %v3868, %v3877
      %v3880 = vunpack.c.l.s4 1966171168
      %v3881 = vunpack.c.0.s8 %v3880
      %v3882 = vlaneseq
      %v3883 = vshrl.u32 %v3882, 7
      %v3884 = vsub.s32 %v3881, %v3883
      %v3885 = vrot.slane %v3869, %v3884
      %v3887 = vunpack.c.l.s4 1966171168
      %v3888 = vunpack.c.0.s8 %v3887
      %v3889 = vlaneseq
      %v3890 = vshrl.u32 %v3889, 7
      %v3891 = vsub.s32 %v3888, %v3890
      %v3892 = vrot.slane %v3870, %v3891
      %v3894 = vunpack.c.l.s4 1966171168
      %v3895 = vunpack.c.0.s8 %v3894
      %v3896 = vlaneseq
      %v3897 = vshrl.u32 %v3896, 7
      %v3898 = vsub.s32 %v3895, %v3897
      %v3899 = vrot.slane %v3871, %v3898
      %v3900 = vcombine.low %v3878, %v3885
      %v3901 = vcombine.high %v3878, %v3885
      %v3902 = vcombine.low %v3892, %v3899
      %v3903 = vcombine.high %v3892, %v3899
      %v3905 = vunpack.c.l.s4 1966171168
      %v3906 = vunpack.c.0.s8 %v3905
      %v3907 = vlaneseq
      %v3908 = vshrl.u32 %v3907, 7
      %v3909 = vsub.s32 %v3906, %v3908
      %v3910 = vrot.slane %v3900, %v3909
      %v3912 = vunpack.c.l.s4 1966171168
      %v3913 = vunpack.c.0.s8 %v3912
      %v3914 = vlaneseq
      %v3915 = vshrl.u32 %v3914, 7
      %v3916 = vsub.s32 %v3913, %v3915
      %v3917 = vrot.slane %v3901, %v3916
      %v3919 = vunpack.c.l.s4 1966171168
      %v3920 = vunpack.c.0.s8 %v3919
      %v3921 = vlaneseq
      %v3922 = vshrl.u32 %v3921, 7
      %v3923 = vsub.s32 %v3920, %v3922
      %v3924 = vrot.slane %v3902, %v3923
      %v3926 = vunpack.c.l.s4 1966171168
      %v3927 = vunpack.c.0.s8 %v3926
      %v3928 = vlaneseq
      %v3929 = vshrl.u32 %v3928, 7
      %v3930 = vsub.s32 %v3927, %v3929
      %v3931 = vrot.slane %v3903, %v3930
      %v3932 = vcombine.low %v3910, %v3924
      %v3933 = vcombine.high %v3910, %v3924
      %v3934 = vcombine.low %v3917, %v3931
      %v3935 = vcombine.high %v3917, %v3931
      %v3936 = vcombine.low %v3865, %v3866
      %v3938 = vunpack.c.l.s4 1966171168
      %v3939 = vunpack.c.0.s8 %v3938
      %v3940 = vlaneseq
      %v3941 = vshrl.u32 %v3940, 7
      %v3942 = vsub.s32 %v3939, %v3941
      %v3943 = vrot.slane %v3936, %v3942
      %v3945 = vunpack.c.l.s4 1966171168
      %v3946 = vunpack.c.0.s8 %v3945
      %v3947 = vlaneseq
      %v3948 = vshrl.u32 %v3947, 7
      %v3949 = vsub.s32 %v3946, %v3948
      %v3950 = vrot.slane %v3795, %v3949
      %v3951 = vcombine.low %v2980, %v3943
      %v3952 = vcombine.high %v2980, %v3943
      %v3953 = vcombine.high %v3950, %v3950
      %v3955 = vunpack.c.l.s4 1966171168
      %v3956 = vunpack.c.0.s8 %v3955
      %v3957 = vlaneseq
      %v3958 = vshrl.u32 %v3957, 7
      %v3959 = vsub.s32 %v3956, %v3958
      %v3960 = vrot.slane %v3951, %v3959
      %v3962 = vunpack.c.l.s4 1966171168
      %v3963 = vunpack.c.0.s8 %v3962
      %v3964 = vlaneseq
      %v3965 = vshrl.u32 %v3964, 7
      %v3966 = vsub.s32 %v3963, %v3965
      %v3967 = vrot.slane %v3952, %v3966
      %v3969 = vunpack.c.l.s4 1966171168
      %v3970 = vunpack.c.0.s8 %v3969
      %v3971 = vlaneseq
      %v3972 = vshrl.u32 %v3971, 7
      %v3973 = vsub.s32 %v3970, %v3972
      %v3974 = vrot.slane %v3950, %v3973
      %v3976 = vunpack.c.l.s4 1966171168
      %v3977 = vunpack.c.0.s8 %v3976
      %v3978 = vlaneseq
      %v3979 = vshrl.u32 %v3978, 7
      %v3980 = vsub.s32 %v3977, %v3979
      %v3981 = vrot.slane %v3953, %v3980
      %v3982 = vcombine.low %v3960, %v3974
      %v3983 = vcombine.high %v3960, %v3974
      %v3984 = vcombine.low %v3967, %v3981
      %v3985 = vcombine.high %v3967, %v3981
      %v4058 = vunpack.c.l.b16 %v3797
      %v4059 = vunpack.c.l.b16 %v3798
      %v4060 = vunpack.c.l.b16 %v3799
      %v4061 = vunpack.c.l.b16 %v3800
      %v4062 = vunpack.c.l.b16 %v3801
      %v4063 = vunpack.c.l.b16 %v3802
      %v4064 = vunpack.c.l.b16 %v3803
      %v4065 = vunpack.c.l.b16 %v3804
      %v4066 = vunpack.c.l.b16 %v3805
      %v4067 = vunpack.c.l.b16 %v3806
      %v4068 = vunpack.c.l.b16 %v3807
      %v4069 = vunpack.c.l.b16 %v3808
      %v4070 = vunpack.c.l.b16 %v3809
      %v4071 = vunpack.c.l.b16 %v3810
      %v4072 = vunpack.c.l.b16 %v3811
      %v4073 = vunpack.c.l.b16 %v3812
      %v4074 = vunpack.c.l.b16 %v3813
      %v4075 = vunpack.c.l.b16 %v3814
      %v4076 = vunpack.c.l.b16 %v3815
      %v4077 = vunpack.c.l.b16 %v3816
      %v4078 = vunpack.c.l.b16 %v3817
      %v4079 = vunpack.c.l.b16 %v3818
      %v4080 = vunpack.c.l.b16 %v3819
      %v4081 = vunpack.c.l.b16 %v3820
      %v4082 = vunpack.c.l.b16 %v3821
      %v4083 = vunpack.c.l.b16 %v3822
      %v4084 = vunpack.c.l.b16 %v3823
      %v4085 = vunpack.c.l.b16 %v3824
      %v4086 = vunpack.c.l.b16 %v3825
      %v4087 = vunpack.c.l.b16 %v3826
      %v4088 = vunpack.c.l.b16 %v3827
      %v4089 = vunpack.c.l.b16 %v3828
      %v4090 = vunpack.c.l.b16 %v3829
      %v4091 = vunpack.c.l.b16 %v3830
      %v4092 = vunpack.c.l.b16 %v3831
      %v4093 = vunpack.c.l.b16 %v3832
      %v4094 = vunpack.c.l.b16 %v3833
      %v4095 = vunpack.c.l.b16 %v3834
      %v4096 = vunpack.c.l.b16 %v3835
      %v4097 = vunpack.c.l.b16 %v3836
      %v4098 = vunpack.c.l.b16 %v3837
      %v4099 = vunpack.c.l.b16 %v3838
      %v4100 = vunpack.c.l.b16 %v3839
      %v4101 = vunpack.c.l.b16 %v3840
      %v4102 = vunpack.c.l.b16 %v3841
      %v4103 = vunpack.c.l.b16 %v3842
      %v4104 = vunpack.c.l.b16 %v3843
      %v4105 = vunpack.c.l.b16 %v3844
      %v4106 = vunpack.c.l.b16 %v3845
      %v4107 = vunpack.c.l.b16 %v3846
      %v4108 = vunpack.c.l.b16 %v3847
      %v4109 = vunpack.c.l.b16 %v3848
      %v4110 = vunpack.c.l.b16 %v3849
      %v4111 = vunpack.c.l.b16 %v3850
      %v4112 = vunpack.c.l.b16 %v3851
      %v4113 = vunpack.c.l.b16 %v3852
      %v4114 = vunpack.c.l.b16 %v3853
      %v4115 = vunpack.c.l.b16 %v3854
      %v4116 = vunpack.c.l.b16 %v3855
      %v4117 = vunpack.c.l.b16 %v3856
      %v4118 = vunpack.c.l.b16 %v3857
      %v4119 = vunpack.c.l.b16 %v3858
      %v4120 = vunpack.c.l.b16 %v3859
      %v4121 = vunpack.c.l.b16 %v3860
      %v4122 = vpack.c.b16 %v4059, %v4058
      %v4123 = vpack.c.b16 %v4061, %v4060
      %v4124 = vpack.c.b16 %v4063, %v4062
      %v4125 = vpack.c.b16 %v4065, %v4064
      %v4126 = vpack.c.b16 %v4067, %v4066
      %v4127 = vpack.c.b16 %v4069, %v4068
      %v4128 = vpack.c.b16 %v4071, %v4070
      %v4129 = vpack.c.b16 %v4073, %v4072
      %v4130 = vpack.c.b16 %v4075, %v4074
      %v4131 = vpack.c.b16 %v4077, %v4076
      %v4132 = vpack.c.b16 %v4079, %v4078
      %v4133 = vpack.c.b16 %v4081, %v4080
      %v4134 = vpack.c.b16 %v4083, %v4082
      %v4135 = vpack.c.b16 %v4085, %v4084
      %v4136 = vpack.c.b16 %v4087, %v4086
      %v4137 = vpack.c.b16 %v4089, %v4088
      %v4138 = vpack.c.b16 %v4091, %v4090
      %v4139 = vpack.c.b16 %v4093, %v4092
      %v4140 = vpack.c.b16 %v4095, %v4094
      %v4141 = vpack.c.b16 %v4097, %v4096
      %v4142 = vpack.c.b16 %v4099, %v4098
      %v4143 = vpack.c.b16 %v4101, %v4100
      %v4144 = vpack.c.b16 %v4103, %v4102
      %v4145 = vpack.c.b16 %v4105, %v4104
      %v4146 = vpack.c.b16 %v4107, %v4106
      %v4147 = vpack.c.b16 %v4109, %v4108
      %v4148 = vpack.c.b16 %v4111, %v4110
      %v4149 = vpack.c.b16 %v4113, %v4112
      %v4150 = vpack.c.b16 %v4115, %v4114
      %v4151 = vpack.c.b16 %v4117, %v4116
      %v4152 = vpack.c.b16 %v4119, %v4118
      %v4153 = vpack.c.b16 %v4121, %v4120
      %4186 = vmatprep.subr.bf16.mxu0 0
      %4187 = vmatpush1.bf16.msra.mxu0 %v4122
      %4188 = vmatprep.subr.bf16.mxu0 0
      %4189 = vmatpush1.bf16.msra.mxu0 %v4123
      %4190 = vmatprep.subr.bf16.mxu0 0
      %4191 = vmatpush1.bf16.msra.mxu0 %v4124
      %4192 = vmatprep.subr.bf16.mxu0 0
      %4193 = vmatpush1.bf16.msra.mxu0 %v4125
      %4194 = vmatprep.subr.bf16.mxu0 0
      %4195 = vmatpush1.bf16.msra.mxu0 %v4126
      %4196 = vmatprep.subr.bf16.mxu0 0
      %4197 = vmatpush1.bf16.msra.mxu0 %v4127
      %4198 = vmatprep.subr.bf16.mxu0 0
      %4199 = vmatpush1.bf16.msra.mxu0 %v4128
      %4200 = vmatprep.subr.bf16.mxu0 0
      %4201 = vmatpush1.bf16.msra.mxu0 %v4129
      %4202 = vmatprep.subr.bf16.mxu0 0
      %4203 = vmatpush1.bf16.msra.mxu0 %v4130
      %4204 = vmatprep.subr.bf16.mxu0 0
      %4205 = vmatpush1.bf16.msra.mxu0 %v4131
      %4206 = vmatprep.subr.bf16.mxu0 0
      %4207 = vmatpush1.bf16.msra.mxu0 %v4132
      %4208 = vmatprep.subr.bf16.mxu0 0
      %4209 = vmatpush1.bf16.msra.mxu0 %v4133
      %4210 = vmatprep.subr.bf16.mxu0 0
      %4211 = vmatpush1.bf16.msra.mxu0 %v4134
      %4212 = vmatprep.subr.bf16.mxu0 0
      %4213 = vmatpush1.bf16.msra.mxu0 %v4135
      %4214 = vmatprep.subr.bf16.mxu0 0
      %4215 = vmatpush1.bf16.msra.mxu0 %v4136
      %4216 = vmatprep.subr.bf16.mxu0 0
      %4217 = vmatpush1.bf16.msra.mxu0 %v4137
      %4218 = vmatprep.mubr.bf16.mxu0 %v3934
      %4219 = vmatmul.mubr.bf16.gmra.mrb[0].mxu0 %v3932
      %v4220 = vpop.f32.mrb[0].mxu0
      %v4221 = vadd.f32 0.0, %v4220
      %v4222 = vpop.f32.mrb[0].mxu0
      %v4223 = vpop.f32.mrb[0].mxu0
      %v4224 = vadd.f32 0.0, %v4223
      %v4225 = vpop.f32.mrb[0].mxu0
      %4226 = vmatprep.mubr.bf16.mxu0 %v3984
      %4227 = vmatmul.mubr.bf16.gmra.mrb[0].mxu0 %v3982
      %v4228 = vpop.f32.mrb[0].mxu0
      %v4229 = vadd.f32 0.0, %v4228
      %v4230 = vpop.f32.mrb[0].mxu0
      %v4231 = vpop.f32.mrb[0].mxu0
      %v4232 = vadd.f32 0.0, %v4231
      %v4233 = vpop.f32.mrb[0].mxu0
      %4234 = vdwg.mxu0
      %4235 = vmatprep.subr.bf16.mxu0 0
      %4236 = vmatpush1.bf16.msra.mxu0 %v4138
      %4237 = vmatprep.subr.bf16.mxu0 0
      %4238 = vmatpush1.bf16.msra.mxu0 %v4139
      %4239 = vmatprep.subr.bf16.mxu0 0
      %4240 = vmatpush1.bf16.msra.mxu0 %v4140
      %4241 = vmatprep.subr.bf16.mxu0 0
      %4242 = vmatpush1.bf16.msra.mxu0 %v4141
      %4243 = vmatprep.subr.bf16.mxu0 0
      %4244 = vmatpush1.bf16.msra.mxu0 %v4142
      %4245 = vmatprep.subr.bf16.mxu0 0
      %4246 = vmatpush1.bf16.msra.mxu0 %v4143
      %4247 = vmatprep.subr.bf16.mxu0 0
      %4248 = vmatpush1.bf16.msra.mxu0 %v4144
      %4249 = vmatprep.subr.bf16.mxu0 0
      %4250 = vmatpush1.bf16.msra.mxu0 %v4145
      %4251 = vmatprep.subr.bf16.mxu0 0
      %4252 = vmatpush1.bf16.msra.mxu0 %v4146
      %4253 = vmatprep.subr.bf16.mxu0 0
      %4254 = vmatpush1.bf16.msra.mxu0 %v4147
      %4255 = vmatprep.subr.bf16.mxu0 0
      %4256 = vmatpush1.bf16.msra.mxu0 %v4148
      %4257 = vmatprep.subr.bf16.mxu0 0
      %4258 = vmatpush1.bf16.msra.mxu0 %v4149
      %4259 = vmatprep.subr.bf16.mxu0 0
      %4260 = vmatpush1.bf16.msra.mxu0 %v4150
      %4261 = vmatprep.subr.bf16.mxu0 0
      %4262 = vmatpush1.bf16.msra.mxu0 %v4151
      %4263 = vmatprep.subr.bf16.mxu0 0
      %4264 = vmatpush1.bf16.msra.mxu0 %v4152
      %4265 = vmatprep.subr.bf16.mxu0 0
      %4266 = vmatpush1.bf16.msra.mxu0 %v4153
      %4267 = vmatprep.mubr.bf16.mxu0 %v3935
      %4268 = vmatmul.mubr.bf16.gmra.mrb[0].mxu0 %v3933
      %v4269 = vpop.f32.mrb[0].mxu0
      %v4270 = vadd.f32 %v4221, %v4269
      %v4271 = vpop.f32.mrb[0].mxu0
      %v4272 = vpop.f32.mrb[0].mxu0
      %v4273 = vadd.f32 %v4224, %v4272
      %v4274 = vpop.f32.mrb[0].mxu0
      %4275 = vmatprep.mubr.bf16.mxu0 %v3985
      %4276 = vmatmul.mubr.bf16.gmra.mrb[0].mxu0 %v3983
      %v4277 = vpop.f32.mrb[0].mxu0
      %v4278 = vadd.f32 %v4229, %v4277
      %v4279 = vpop.f32.mrb[0].mxu0
      %v4280 = vpop.f32.mrb[0].mxu0
      %v4281 = vadd.f32 %v4232, %v4280
      %v4282 = vpop.f32.mrb[0].mxu0
      %4283 = vdwg.mxu0
      %v4284 = vadd.f32 %v3744, %v4270
      %v4285 = vadd.f32 %v3747, %v4273
      %v4286 = vadd.f32 %v3752, %v4278
      %v4287 = vadd.f32 %v3755, %v4281
      %v4288 = vunpack.i.h.s16 %v3790
      %s4289 = scalar_lea.vmem %s3, 768
      %v4290 = vld [vmem:[%s4289] sm:$0xf]
      %v4291 = vld [vmem:[%s4289 + $0x4] sm:$0xf]
      %v4292 = vld [vmem:[%s4289 + $0x8] sm:$0xf]
      %v4293 = vld [vmem:[%s4289 + $0xc] sm:$0xf]
      %v4294 = vld [vmem:[%s4289 + $0x10] sm:$0xf]
      %v4295 = vld [vmem:[%s4289 + $0x14] sm:$0xf]
      %v4296 = vld [vmem:[%s4289 + $0x18] sm:$0xf]
      %v4297 = vld [vmem:[%s4289 + $0x1c] sm:$0xf]
      %v4298 = vld [vmem:[%s4289 + $0x20] sm:$0xf]
      %v4299 = vld [vmem:[%s4289 + $0x24] sm:$0xf]
      %v4300 = vld [vmem:[%s4289 + $0x28] sm:$0xf]
      %v4301 = vld [vmem:[%s4289 + $0x2c] sm:$0xf]
      %v4302 = vld [vmem:[%s4289 + $0x30] sm:$0xf]
      %v4303 = vld [vmem:[%s4289 + $0x34] sm:$0xf]
      %v4304 = vld [vmem:[%s4289 + $0x38] sm:$0xf]
      %v4305 = vld [vmem:[%s4289 + $0x3c] sm:$0xf]
      %v4306 = vld [vmem:[%s4289 + $0x40] sm:$0xf]
      %v4307 = vld [vmem:[%s4289 + $0x44] sm:$0xf]
      %v4308 = vld [vmem:[%s4289 + $0x48] sm:$0xf]
      %v4309 = vld [vmem:[%s4289 + $0x4c] sm:$0xf]
      %v4310 = vld [vmem:[%s4289 + $0x50] sm:$0xf]
      %v4311 = vld [vmem:[%s4289 + $0x54] sm:$0xf]
      %v4312 = vld [vmem:[%s4289 + $0x58] sm:$0xf]
      %v4313 = vld [vmem:[%s4289 + $0x5c] sm:$0xf]
      %v4314 = vld [vmem:[%s4289 + $0x60] sm:$0xf]
      %v4315 = vld [vmem:[%s4289 + $0x64] sm:$0xf]
      %v4316 = vld [vmem:[%s4289 + $0x68] sm:$0xf]
      %v4317 = vld [vmem:[%s4289 + $0x6c] sm:$0xf]
      %v4318 = vld [vmem:[%s4289 + $0x70] sm:$0xf]
      %v4319 = vld [vmem:[%s4289 + $0x74] sm:$0xf]
      %v4320 = vld [vmem:[%s4289 + $0x78] sm:$0xf]
      %v4321 = vld [vmem:[%s4289 + $0x7c] sm:$0xf]
      %v4322 = vld [vmem:[%s4289 + $0x80] sm:$0xf]
      %v4323 = vld [vmem:[%s4289 + $0x84] sm:$0xf]
      %v4324 = vld [vmem:[%s4289 + $0x88] sm:$0xf]
      %v4325 = vld [vmem:[%s4289 + $0x8c] sm:$0xf]
      %v4326 = vld [vmem:[%s4289 + $0x90] sm:$0xf]
      %v4327 = vld [vmem:[%s4289 + $0x94] sm:$0xf]
      %v4328 = vld [vmem:[%s4289 + $0x98] sm:$0xf]
      %v4329 = vld [vmem:[%s4289 + $0x9c] sm:$0xf]
      %v4330 = vld [vmem:[%s4289 + $0xa0] sm:$0xf]
      %v4331 = vld [vmem:[%s4289 + $0xa4] sm:$0xf]
      %v4332 = vld [vmem:[%s4289 + $0xa8] sm:$0xf]
      %v4333 = vld [vmem:[%s4289 + $0xac] sm:$0xf]
      %v4334 = vld [vmem:[%s4289 + $0xb0] sm:$0xf]
      %v4335 = vld [vmem:[%s4289 + $0xb4] sm:$0xf]
      %v4336 = vld [vmem:[%s4289 + $0xb8] sm:$0xf]
      %v4337 = vld [vmem:[%s4289 + $0xbc] sm:$0xf]
      %v4338 = vld [vmem:[%s4289 + $0xc0] sm:$0xf]
      %v4339 = vld [vmem:[%s4289 + $0xc4] sm:$0xf]
      %v4340 = vld [vmem:[%s4289 + $0xc8] sm:$0xf]
      %v4341 = vld [vmem:[%s4289 + $0xcc] sm:$0xf]
      %v4342 = vld [vmem:[%s4289 + $0xd0] sm:$0xf]
      %v4343 = vld [vmem:[%s4289 + $0xd4] sm:$0xf]
      %v4344 = vld [vmem:[%s4289 + $0xd8] sm:$0xf]
      %v4345 = vld [vmem:[%s4289 + $0xdc] sm:$0xf]
      %v4346 = vld [vmem:[%s4289 + $0xe0] sm:$0xf]
      %v4347 = vld [vmem:[%s4289 + $0xe4] sm:$0xf]
      %v4348 = vld [vmem:[%s4289 + $0xe8] sm:$0xf]
      %v4349 = vld [vmem:[%s4289 + $0xec] sm:$0xf]
      %v4350 = vld [vmem:[%s4289 + $0xf0] sm:$0xf]
      %v4351 = vld [vmem:[%s4289 + $0xf4] sm:$0xf]
      %v4352 = vld [vmem:[%s4289 + $0xf8] sm:$0xf]
      %v4353 = vld [vmem:[%s4289 + $0xfc] sm:$0xf]
      %v4354 = vpack.i.b16 %v2736, %v2815
      %v4355 = vpack.i.b16 %v2816, %v2739
      %v4356 = vpack.i.b16 %v2746, %v2817
      %v4357 = vpack.i.b16 %v2818, %v2749
      %v4358 = vpack.i.b16 %v3793, %v3792
      %v4359 = vpack.i.b16 %v3795, %v3794
      %v4361 = vcombine.low %v3324, %v3325
      %v4362 = vcombine.low %v4354, %v3327
      %v4363 = vcombine.low %v4355, %v3329
      %v4364 = vcombine.low %v3330, %v4356
      %v4366 = vunpack.c.l.s4 1966171168
      %v4367 = vunpack.c.0.s8 %v4366
      %v4368 = vlaneseq
      %v4369 = vshrl.u32 %v4368, 7
      %v4370 = vsub.s32 %v4367, %v4369
      %v4371 = vrot.slane %v4361, %v4370
      %v4373 = vunpack.c.l.s4 1966171168
      %v4374 = vunpack.c.0.s8 %v4373
      %v4375 = vlaneseq
      %v4376 = vshrl.u32 %v4375, 7
      %v4377 = vsub.s32 %v4374, %v4376
      %v4378 = vrot.slane %v4362, %v4377
      %v4380 = vunpack.c.l.s4 1966171168
      %v4381 = vunpack.c.0.s8 %v4380
      %v4382 = vlaneseq
      %v4383 = vshrl.u32 %v4382, 7
      %v4384 = vsub.s32 %v4381, %v4383
      %v4385 = vrot.slane %v4363, %v4384
      %v4387 = vunpack.c.l.s4 1966171168
      %v4388 = vunpack.c.0.s8 %v4387
      %v4389 = vlaneseq
      %v4390 = vshrl.u32 %v4389, 7
      %v4391 = vsub.s32 %v4388, %v4390
      %v4392 = vrot.slane %v4364, %v4391
      %v4393 = vcombine.low %v4371, %v4378
      %v4394 = vcombine.high %v4371, %v4378
      %v4395 = vcombine.low %v4385, %v4392
      %v4396 = vcombine.high %v4385, %v4392
      %v4398 = vunpack.c.l.s4 1966171168
      %v4399 = vunpack.c.0.s8 %v4398
      %v4400 = vlaneseq
      %v4401 = vshrl.u32 %v4400, 7
      %v4402 = vsub.s32 %v4399, %v4401
      %v4403 = vrot.slane %v4393, %v4402
      %v4405 = vunpack.c.l.s4 1966171168
      %v4406 = vunpack.c.0.s8 %v4405
      %v4407 = vlaneseq
      %v4408 = vshrl.u32 %v4407, 7
      %v4409 = vsub.s32 %v4406, %v4408
      %v4410 = vrot.slane %v4394, %v4409
      %v4412 = vunpack.c.l.s4 1966171168
      %v4413 = vunpack.c.0.s8 %v4412
      %v4414 = vlaneseq
      %v4415 = vshrl.u32 %v4414, 7
      %v4416 = vsub.s32 %v4413, %v4415
      %v4417 = vrot.slane %v4395, %v4416
      %v4419 = vunpack.c.l.s4 1966171168
      %v4420 = vunpack.c.0.s8 %v4419
      %v4421 = vlaneseq
      %v4422 = vshrl.u32 %v4421, 7
      %v4423 = vsub.s32 %v4420, %v4422
      %v4424 = vrot.slane %v4396, %v4423
      %v4425 = vcombine.low %v4403, %v4417
      %v4426 = vcombine.high %v4403, %v4417
      %v4427 = vcombine.low %v4410, %v4424
      %v4428 = vcombine.high %v4410, %v4424
      %v4429 = vcombine.low %v3332, %v4357
      %v4430 = vcombine.low %v4358, %v4359
      %v4432 = vunpack.c.l.s4 1966171168
      %v4433 = vunpack.c.0.s8 %v4432
      %v4434 = vlaneseq
      %v4435 = vshrl.u32 %v4434, 7
      %v4436 = vsub.s32 %v4433, %v4435
      %v4437 = vrot.slane %v4429, %v4436
      %v4439 = vunpack.c.l.s4 1966171168
      %v4440 = vunpack.c.0.s8 %v4439
      %v4441 = vlaneseq
      %v4442 = vshrl.u32 %v4441, 7
      %v4443 = vsub.s32 %v4440, %v4442
      %v4444 = vrot.slane %v4430, %v4443
      %v4446 = vunpack.c.l.s4 1966171168
      %v4447 = vunpack.c.0.s8 %v4446
      %v4448 = vlaneseq
      %v4449 = vshrl.u32 %v4448, 7
      %v4450 = vsub.s32 %v4447, %v4449
      %v4451 = vrot.slane %v4288, %v4450
      %v4452 = vcombine.low %v4437, %v4444
      %v4453 = vcombine.high %v4437, %v4444
      %v4454 = vcombine.high %v4451, %v4451
      %v4456 = vunpack.c.l.s4 1966171168
      %v4457 = vunpack.c.0.s8 %v4456
      %v4458 = vlaneseq
      %v4459 = vshrl.u32 %v4458, 7
      %v4460 = vsub.s32 %v4457, %v4459
      %v4461 = vrot.slane %v4452, %v4460
      %v4463 = vunpack.c.l.s4 1966171168
      %v4464 = vunpack.c.0.s8 %v4463
      %v4465 = vlaneseq
      %v4466 = vshrl.u32 %v4465, 7
      %v4467 = vsub.s32 %v4464, %v4466
      %v4468 = vrot.slane %v4453, %v4467
      %v4470 = vunpack.c.l.s4 1966171168
      %v4471 = vunpack.c.0.s8 %v4470
      %v4472 = vlaneseq
      %v4473 = vshrl.u32 %v4472, 7
      %v4474 = vsub.s32 %v4471, %v4473
      %v4475 = vrot.slane %v4451, %v4474
      %v4477 = vunpack.c.l.s4 1966171168
      %v4478 = vunpack.c.0.s8 %v4477
      %v4479 = vlaneseq
      %v4480 = vshrl.u32 %v4479, 7
      %v4481 = vsub.s32 %v4478, %v4480
      %v4482 = vrot.slane %v4454, %v4481
      %v4483 = vcombine.low %v4461, %v4475
      %v4484 = vcombine.high %v4461, %v4475
      %v4485 = vcombine.low %v4468, %v4482
      %v4486 = vcombine.high %v4468, %v4482
      %v4559 = vunpack.c.l.b16 %v4290
      %v4560 = vunpack.c.l.b16 %v4291
      %v4561 = vunpack.c.l.b16 %v4292
      %v4562 = vunpack.c.l.b16 %v4293
      %v4563 = vunpack.c.l.b16 %v4294
      %v4564 = vunpack.c.l.b16 %v4295
      %v4565 = vunpack.c.l.b16 %v4296
      %v4566 = vunpack.c.l.b16 %v4297
      %v4567 = vunpack.c.l.b16 %v4298
      %v4568 = vunpack.c.l.b16 %v4299
      %v4569 = vunpack.c.l.b16 %v4300
      %v4570 = vunpack.c.l.b16 %v4301
      %v4571 = vunpack.c.l.b16 %v4302
      %v4572 = vunpack.c.l.b16 %v4303
      %v4573 = vunpack.c.l.b16 %v4304
      %v4574 = vunpack.c.l.b16 %v4305
      %v4575 = vunpack.c.l.b16 %v4306
      %v4576 = vunpack.c.l.b16 %v4307
      %v4577 = vunpack.c.l.b16 %v4308
      %v4578 = vunpack.c.l.b16 %v4309
      %v4579 = vunpack.c.l.b16 %v4310
      %v4580 = vunpack.c.l.b16 %v4311
      %v4581 = vunpack.c.l.b16 %v4312
      %v4582 = vunpack.c.l.b16 %v4313
      %v4583 = vunpack.c.l.b16 %v4314
      %v4584 = vunpack.c.l.b16 %v4315
      %v4585 = vunpack.c.l.b16 %v4316
      %v4586 = vunpack.c.l.b16 %v4317
      %v4587 = vunpack.c.l.b16 %v4318
      %v4588 = vunpack.c.l.b16 %v4319
      %v4589 = vunpack.c.l.b16 %v4320
      %v4590 = vunpack.c.l.b16 %v4321
      %v4591 = vunpack.c.l.b16 %v4322
      %v4592 = vunpack.c.l.b16 %v4323
      %v4593 = vunpack.c.l.b16 %v4324
      %v4594 = vunpack.c.l.b16 %v4325
      %v4595 = vunpack.c.l.b16 %v4326
      %v4596 = vunpack.c.l.b16 %v4327
      %v4597 = vunpack.c.l.b16 %v4328
      %v4598 = vunpack.c.l.b16 %v4329
      %v4599 = vunpack.c.l.b16 %v4330
      %v4600 = vunpack.c.l.b16 %v4331
      %v4601 = vunpack.c.l.b16 %v4332
      %v4602 = vunpack.c.l.b16 %v4333
      %v4603 = vunpack.c.l.b16 %v4334
      %v4604 = vunpack.c.l.b16 %v4335
      %v4605 = vunpack.c.l.b16 %v4336
      %v4606 = vunpack.c.l.b16 %v4337
      %v4607 = vunpack.c.l.b16 %v4338
      %v4608 = vunpack.c.l.b16 %v4339
      %v4609 = vunpack.c.l.b16 %v4340
      %v4610 = vunpack.c.l.b16 %v4341
      %v4611 = vunpack.c.l.b16 %v4342
      %v4612 = vunpack.c.l.b16 %v4343
      %v4613 = vunpack.c.l.b16 %v4344
      %v4614 = vunpack.c.l.b16 %v4345
      %v4615 = vunpack.c.l.b16 %v4346
      %v4616 = vunpack.c.l.b16 %v4347
      %v4617 = vunpack.c.l.b16 %v4348
      %v4618 = vunpack.c.l.b16 %v4349
      %v4619 = vunpack.c.l.b16 %v4350
      %v4620 = vunpack.c.l.b16 %v4351
      %v4621 = vunpack.c.l.b16 %v4352
      %v4622 = vunpack.c.l.b16 %v4353
      %v4623 = vpack.c.b16 %v4560, %v4559
      %v4624 = vpack.c.b16 %v4562, %v4561
      %v4625 = vpack.c.b16 %v4564, %v4563
      %v4626 = vpack.c.b16 %v4566, %v4565
      %v4627 = vpack.c.b16 %v4568, %v4567
      %v4628 = vpack.c.b16 %v4570, %v4569
      %v4629 = vpack.c.b16 %v4572, %v4571
      %v4630 = vpack.c.b16 %v4574, %v4573
      %v4631 = vpack.c.b16 %v4576, %v4575
      %v4632 = vpack.c.b16 %v4578, %v4577
      %v4633 = vpack.c.b16 %v4580, %v4579
      %v4634 = vpack.c.b16 %v4582, %v4581
      %v4635 = vpack.c.b16 %v4584, %v4583
      %v4636 = vpack.c.b16 %v4586, %v4585
      %v4637 = vpack.c.b16 %v4588, %v4587
      %v4638 = vpack.c.b16 %v4590, %v4589
      %v4639 = vpack.c.b16 %v4592, %v4591
      %v4640 = vpack.c.b16 %v4594, %v4593
      %v4641 = vpack.c.b16 %v4596, %v4595
      %v4642 = vpack.c.b16 %v4598, %v4597
      %v4643 = vpack.c.b16 %v4600, %v4599
      %v4644 = vpack.c.b16 %v4602, %v4601
      %v4645 = vpack.c.b16 %v4604, %v4603
      %v4646 = vpack.c.b16 %v4606, %v4605
      %v4647 = vpack.c.b16 %v4608, %v4607
      %v4648 = vpack.c.b16 %v4610, %v4609
      %v4649 = vpack.c.b16 %v4612, %v4611
      %v4650 = vpack.c.b16 %v4614, %v4613
      %v4651 = vpack.c.b16 %v4616, %v4615
      %v4652 = vpack.c.b16 %v4618, %v4617
      %v4653 = vpack.c.b16 %v4620, %v4619
      %v4654 = vpack.c.b16 %v4622, %v4621
      %4687 = vmatprep.subr.bf16.mxu0 0
      %4688 = vmatpush1.bf16.msra.mxu0 %v4623
      %4689 = vmatprep.subr.bf16.mxu0 0
      %4690 = vmatpush1.bf16.msra.mxu0 %v4624
      %4691 = vmatprep.subr.bf16.mxu0 0
      %4692 = vmatpush1.bf16.msra.mxu0 %v4625
      %4693 = vmatprep.subr.bf16.mxu0 0
      %4694 = vmatpush1.bf16.msra.mxu0 %v4626
      %4695 = vmatprep.subr.bf16.mxu0 0
      %4696 = vmatpush1.bf16.msra.mxu0 %v4627
      %4697 = vmatprep.subr.bf16.mxu0 0
      %4698 = vmatpush1.bf16.msra.mxu0 %v4628
      %4699 = vmatprep.subr.bf16.mxu0 0
      %4700 = vmatpush1.bf16.msra.mxu0 %v4629
      %4701 = vmatprep.subr.bf16.mxu0 0
      %4702 = vmatpush1.bf16.msra.mxu0 %v4630
      %4703 = vmatprep.subr.bf16.mxu0 0
      %4704 = vmatpush1.bf16.msra.mxu0 %v4631
      %4705 = vmatprep.subr.bf16.mxu0 0
      %4706 = vmatpush1.bf16.msra.mxu0 %v4632
      %4707 = vmatprep.subr.bf16.mxu0 0
      %4708 = vmatpush1.bf16.msra.mxu0 %v4633
      %4709 = vmatprep.subr.bf16.mxu0 0
      %4710 = vmatpush1.bf16.msra.mxu0 %v4634
      %4711 = vmatprep.subr.bf16.mxu0 0
      %4712 = vmatpush1.bf16.msra.mxu0 %v4635
      %4713 = vmatprep.subr.bf16.mxu0 0
      %4714 = vmatpush1.bf16.msra.mxu0 %v4636
      %4715 = vmatprep.subr.bf16.mxu0 0
      %4716 = vmatpush1.bf16.msra.mxu0 %v4637
      %4717 = vmatprep.subr.bf16.mxu0 0
      %4718 = vmatpush1.bf16.msra.mxu0 %v4638
      %4719 = vmatprep.mubr.bf16.mxu0 %v4427
      %4720 = vmatmul.mubr.bf16.gmra.mrb[0].mxu0 %v4425
      %v4721 = vpop.f32.mrb[0].mxu0
      %v4722 = vadd.f32 0.0, %v4721
      %v4723 = vpop.f32.mrb[0].mxu0
      %v4724 = vpop.f32.mrb[0].mxu0
      %v4725 = vadd.f32 0.0, %v4724
      %v4726 = vpop.f32.mrb[0].mxu0
      %4727 = vmatprep.mubr.bf16.mxu0 %v4485
      %4728 = vmatmul.mubr.bf16.gmra.mrb[0].mxu0 %v4483
      %v4729 = vpop.f32.mrb[0].mxu0
      %v4730 = vadd.f32 0.0, %v4729
      %v4731 = vpop.f32.mrb[0].mxu0
      %v4732 = vpop.f32.mrb[0].mxu0
      %v4733 = vadd.f32 0.0, %v4732
      %v4734 = vpop.f32.mrb[0].mxu0
      %4735 = vdwg.mxu0
      %4736 = vmatprep.subr.bf16.mxu0 0
      %4737 = vmatpush1.bf16.msra.mxu0 %v4639
      %4738 = vmatprep.subr.bf16.mxu0 0
      %4739 = vmatpush1.bf16.msra.mxu0 %v4640
      %4740 = vmatprep.subr.bf16.mxu0 0
      %4741 = vmatpush1.bf16.msra.mxu0 %v4641
      %4742 = vmatprep.subr.bf16.mxu0 0
      %4743 = vmatpush1.bf16.msra.mxu0 %v4642
      %4744 = vmatprep.subr.bf16.mxu0 0
      %4745 = vmatpush1.bf16.msra.mxu0 %v4643
      %4746 = vmatprep.subr.bf16.mxu0 0
      %4747 = vmatpush1.bf16.msra.mxu0 %v4644
      %4748 = vmatprep.subr.bf16.mxu0 0
      %4749 = vmatpush1.bf16.msra.mxu0 %v4645
      %4750 = vmatprep.subr.bf16.mxu0 0
      %4751 = vmatpush1.bf16.msra.mxu0 %v4646
      %4752 = vmatprep.subr.bf16.mxu0 0
      %4753 = vmatpush1.bf16.msra.mxu0 %v4647
      %4754 = vmatprep.subr.bf16.mxu0 0
      %4755 = vmatpush1.bf16.msra.mxu0 %v4648
      %4756 = vmatprep.subr.bf16.mxu0 0
      %4757 = vmatpush1.bf16.msra.mxu0 %v4649
      %4758 = vmatprep.subr.bf16.mxu0 0
      %4759 = vmatpush1.bf16.msra.mxu0 %v4650
      %4760 = vmatprep.subr.bf16.mxu0 0
      %4761 = vmatpush1.bf16.msra.mxu0 %v4651
      %4762 = vmatprep.subr.bf16.mxu0 0
      %4763 = vmatpush1.bf16.msra.mxu0 %v4652
      %4764 = vmatprep.subr.bf16.mxu0 0
      %4765 = vmatpush1.bf16.msra.mxu0 %v4653
      %4766 = vmatprep.subr.bf16.mxu0 0
      %4767 = vmatpush1.bf16.msra.mxu0 %v4654
      %4768 = vmatprep.mubr.bf16.mxu0 %v4428
      %4769 = vmatmul.mubr.bf16.gmra.mrb[0].mxu0 %v4426
      %v4770 = vpop.f32.mrb[0].mxu0
      %v4771 = vadd.f32 %v4722, %v4770
      %v4772 = vpop.f32.mrb[0].mxu0
      %v4773 = vpop.f32.mrb[0].mxu0
      %v4774 = vadd.f32 %v4725, %v4773
      %v4775 = vpop.f32.mrb[0].mxu0
      %4776 = vmatprep.mubr.bf16.mxu0 %v4486
      %4777 = vmatmul.mubr.bf16.gmra.mrb[0].mxu0 %v4484
      %v4778 = vpop.f32.mrb[0].mxu0
      %v4779 = vadd.f32 %v4730, %v4778
      %v4780 = vpop.f32.mrb[0].mxu0
      %v4781 = vpop.f32.mrb[0].mxu0
      %v4782 = vadd.f32 %v4733, %v4781
      %v4783 = vpop.f32.mrb[0].mxu0
      %4784 = vdwg.mxu0
      %v4785 = vadd.f32 %v4284, %v4771
      %v4786 = vadd.f32 %v4285, %v4774
      %v4787 = vadd.f32 %v4286, %v4779
      %v4788 = vadd.f32 %v4287, %v4782
      %v4789 = vld [vmem:[%s4] sm:$0x1]
      %v4791 = vlaneseq
      %v4792 = vshrl.u32 %v4791, 7
      %v4793 = vsub.s32 0, %v4792
      %v4794 = vrot.slane %v4789, %v4793
      %v4796 = vadd.f32 %v4785, %v4794
      %v4797 = vadd.f32 %v4786, %v4794
      %v4798 = vadd.f32 %v4787, %v4794
      %v4799 = vadd.f32 %v4788, %v4794
      %v4800 = vmax.f32 %v4796, 0.0
      %v4801 = vmax.f32 %v4797, 0.0
      %v4802 = vmax.f32 %v4798, 0.0
      %v4803 = vmax.f32 %v4799, 0.0
      %v4804 = vpack.c.bf16 %v4801, %v4800
      %v4805 = vpack.c.bf16 %v4803, %v4802
      %v4808 = vcombine.high %v4804, %v4804
      %v4810 = vunpack.c.l.s4 1966171168
      %v4811 = vunpack.c.0.s8 %v4810
      %v4812 = vlaneseq
      %v4813 = vshrl.u32 %v4812, 7
      %v4814 = vsub.s32 %v4811, %v4813
      %v4815 = vrot.slane %v4804, %v4814
      %v4817 = vunpack.c.l.s4 1966171168
      %v4818 = vunpack.c.0.s8 %v4817
      %v4819 = vlaneseq
      %v4820 = vshrl.u32 %v4819, 7
      %v4821 = vsub.s32 %v4818, %v4820
      %v4822 = vrot.slane %v4808, %v4821
      %v4823 = vcombine.high %v4815, %v4815
      %v4824 = vcombine.high %v4822, %v4822
      %v4826 = vunpack.c.l.s4 1966171168
      %v4827 = vunpack.c.0.s8 %v4826
      %v4828 = vlaneseq
      %v4829 = vshrl.u32 %v4828, 7
      %v4830 = vsub.s32 %v4827, %v4829
      %v4831 = vrot.slane %v4815, %v4830
      %v4833 = vunpack.c.l.s4 1966171168
      %v4834 = vunpack.c.0.s8 %v4833
      %v4835 = vlaneseq
      %v4836 = vshrl.u32 %v4835, 7
      %v4837 = vsub.s32 %v4834, %v4836
      %v4838 = vrot.slane %v4822, %v4837
      %v4840 = vunpack.c.l.s4 1966171168
      %v4841 = vunpack.c.0.s8 %v4840
      %v4842 = vlaneseq
      %v4843 = vshrl.u32 %v4842, 7
      %v4844 = vsub.s32 %v4841, %v4843
      %v4845 = vrot.slane %v4823, %v4844
      %v4847 = vunpack.c.l.s4 1966171168
      %v4848 = vunpack.c.0.s8 %v4847
      %v4849 = vlaneseq
      %v4850 = vshrl.u32 %v4849, 7
      %v4851 = vsub.s32 %v4848, %v4850
      %v4852 = vrot.slane %v4824, %v4851
      %v4853 = vcombine.high %v4831, %v4831
      %v4854 = vcombine.high %v4838, %v4838
      %v4855 = vcombine.high %v4845, %v4845
      %v4856 = vcombine.high %v4852, %v4852
      %v4857 = vcombine.high %v4805, %v4805
      %v4859 = vunpack.c.l.s4 1966171168
      %v4860 = vunpack.c.0.s8 %v4859
      %v4861 = vlaneseq
      %v4862 = vshrl.u32 %v4861, 7
      %v4863 = vsub.s32 %v4860, %v4862
      %v4864 = vrot.slane %v4805, %v4863
      %v4866 = vunpack.c.l.s4 1966171168
      %v4867 = vunpack.c.0.s8 %v4866
      %v4868 = vlaneseq
      %v4869 = vshrl.u32 %v4868, 7
      %v4870 = vsub.s32 %v4867, %v4869
      %v4871 = vrot.slane %v4857, %v4870
      %v4872 = vcombine.high %v4864, %v4864
      %v4874 = vunpack.c.l.s4 1966171168
      %v4875 = vunpack.c.0.s8 %v4874
      %v4876 = vlaneseq
      %v4877 = vshrl.u32 %v4876, 7
      %v4878 = vsub.s32 %v4875, %v4877
      %v4879 = vrot.slane %v4864, %v4878
      %v4881 = vunpack.c.l.s4 1966171168
      %v4882 = vunpack.c.0.s8 %v4881
      %v4883 = vlaneseq
      %v4884 = vshrl.u32 %v4883, 7
      %v4885 = vsub.s32 %v4882, %v4884
      %v4886 = vrot.slane %v4871, %v4885
      %v4888 = vunpack.c.l.s4 1966171168
      %v4889 = vunpack.c.0.s8 %v4888
      %v4890 = vlaneseq
      %v4891 = vshrl.u32 %v4890, 7
      %v4892 = vsub.s32 %v4889, %v4891
      %v4893 = vrot.slane %v4872, %v4892
      %v4894 = vcombine.high %v4879, %v4879
      %v4895 = vcombine.high %v4893, %v4893
      %v4896 = vunpack.i.l.s16 %v4831
      %v4897 = vunpack.i.h.s16 %v4831
      %v4898 = vunpack.i.l.s16 %v4845
      %v4899 = vunpack.i.h.s16 %v4845
      %v4900 = vunpack.i.l.s16 %v4853
      %v4901 = vunpack.i.h.s16 %v4853
      %v4902 = vunpack.i.l.s16 %v4855
      %v4903 = vunpack.i.h.s16 %v4855
      %v4904 = vunpack.i.l.s16 %v4838
      %v4905 = vunpack.i.h.s16 %v4838
      %v4906 = vunpack.i.l.s16 %v4852
      %v4907 = vunpack.i.h.s16 %v4852
      %v4908 = vunpack.i.l.s16 %v4854
      %v4909 = vunpack.i.h.s16 %v4854
      %v4910 = vunpack.i.l.s16 %v4856
      %v4911 = vunpack.i.h.s16 %v4856
      %v4912 = vunpack.i.l.s16 %v4879
      %v4913 = vunpack.i.h.s16 %v4879
      %v4914 = vunpack.i.l.s16 %v4893
      %v4915 = vunpack.i.h.s16 %v4893
      %v4916 = vunpack.i.l.s16 %v4894
      %v4917 = vunpack.i.h.s16 %v4894
      %v4918 = vunpack.i.l.s16 %v4895
      %v4919 = vunpack.i.h.s16 %v4895
      %v4920 = vunpack.i.l.s16 %v4886
      %v4921 = vpack.i.b16 %v4897, %v4896
      %v4922 = vpack.i.b16 %v4901, %v4898
      %v4923 = vpack.i.b16 %v4903, %v4902
      %v4924 = vpack.i.b16 %v4907, %v4906
      %v4926 = vcombine.low %v4921, %v4922
      %v4927 = vcombine.low %v4923, %v4924
      %v4929 = vunpack.c.l.s4 1966171168
      %v4930 = vunpack.c.0.s8 %v4929
      %v4931 = vlaneseq
      %v4932 = vshrl.u32 %v4931, 7
      %v4933 = vsub.s32 %v4930, %v4932
      %v4934 = vrot.slane %v4926, %v4933
      %v4936 = vunpack.c.l.s4 1966171168
      %v4937 = vunpack.c.0.s8 %v4936
      %v4938 = vlaneseq
      %v4939 = vshrl.u32 %v4938, 7
      %v4940 = vsub.s32 %v4937, %v4939
      %v4941 = vrot.slane %v4927, %v4940
      %v4943 = vunpack.c.l.s4 1966171168
      %v4944 = vunpack.c.0.s8 %v4943
      %v4945 = vlaneseq
      %v4946 = vshrl.u32 %v4945, 7
      %v4947 = vsub.s32 %v4944, %v4946
      %v4948 = vrot.slane %v4908, %v4947
      %v4949 = vcombine.low %v4934, %v4941
      %v4951 = vunpack.c.l.s4 1966171168
      %v4952 = vunpack.c.0.s8 %v4951
      %v4953 = vlaneseq
      %v4954 = vshrl.u32 %v4953, 7
      %v4955 = vsub.s32 %v4952, %v4954
      %v4956 = vrot.slane %v4949, %v4955
      %v4958 = vunpack.c.l.s4 1966171168
      %v4959 = vunpack.c.0.s8 %v4958
      %v4960 = vlaneseq
      %v4961 = vshrl.u32 %v4960, 7
      %v4962 = vsub.s32 %v4959, %v4961
      %v4963 = vrot.slane %v4948, %v4962
      %v4964 = vcombine.low %v4956, %v4963
      %v4966 = vpack.i.b16 %v4898, %v4897
      %v4967 = vpack.i.b16 %v4902, %v4899
      %v4968 = vpack.i.b16 %v4904, %v4903
      %v4969 = vpack.i.b16 %v4908, %v4907
      %v4971 = vcombine.low %v4966, %v4967
      %v4972 = vcombine.low %v4968, %v4969
      %v4974 = vunpack.c.l.s4 1966171168
      %v4975 = vunpack.c.0.s8 %v4974
      %v4976 = vlaneseq
      %v4977 = vshrl.u32 %v4976, 7
      %v4978 = vsub.s32 %v4975, %v4977
      %v4979 = vrot.slane %v4971, %v4978
      %v4981 = vunpack.c.l.s4 1966171168
      %v4982 = vunpack.c.0.s8 %v4981
      %v4983 = vlaneseq
      %v4984 = vshrl.u32 %v4983, 7
      %v4985 = vsub.s32 %v4982, %v4984
      %v4986 = vrot.slane %v4972, %v4985
      %v4988 = vunpack.c.l.s4 1966171168
      %v4989 = vunpack.c.0.s8 %v4988
      %v4990 = vlaneseq
      %v4991 = vshrl.u32 %v4990, 7
      %v4992 = vsub.s32 %v4989, %v4991
      %v4993 = vrot.slane %v4909, %v4992
      %v4994 = vcombine.low %v4979, %v4986
      %v4996 = vunpack.c.l.s4 1966171168
      %v4997 = vunpack.c.0.s8 %v4996
      %v4998 = vlaneseq
      %v4999 = vshrl.u32 %v4998, 7
      %v5000 = vsub.s32 %v4997, %v4999
      %v5001 = vrot.slane %v4994, %v5000
      %v5003 = vunpack.c.l.s4 1966171168
      %v5004 = vunpack.c.0.s8 %v5003
      %v5005 = vlaneseq
      %v5006 = vshrl.u32 %v5005, 7
      %v5007 = vsub.s32 %v5004, %v5006
      %v5008 = vrot.slane %v4993, %v5007
      %v5009 = vcombine.low %v5001, %v5008
      %v5011 = vpack.i.b16 %v4899, %v4898
      %v5012 = vpack.i.b16 %v4903, %v4900
      %v5013 = vpack.i.b16 %v4905, %v4904
      %v5014 = vpack.i.b16 %v4909, %v4908
      %v5016 = vcombine.low %v5011, %v5012
      %v5017 = vcombine.low %v5013, %v5014
      %v5019 = vunpack.c.l.s4 1966171168
      %v5020 = vunpack.c.0.s8 %v5019
      %v5021 = vlaneseq
      %v5022 = vshrl.u32 %v5021, 7
      %v5023 = vsub.s32 %v5020, %v5022
      %v5024 = vrot.slane %v5016, %v5023
      %v5026 = vunpack.c.l.s4 1966171168
      %v5027 = vunpack.c.0.s8 %v5026
      %v5028 = vlaneseq
      %v5029 = vshrl.u32 %v5028, 7
      %v5030 = vsub.s32 %v5027, %v5029
      %v5031 = vrot.slane %v5017, %v5030
      %v5033 = vunpack.c.l.s4 1966171168
      %v5034 = vunpack.c.0.s8 %v5033
      %v5035 = vlaneseq
      %v5036 = vshrl.u32 %v5035, 7
      %v5037 = vsub.s32 %v5034, %v5036
      %v5038 = vrot.slane %v4910, %v5037
      %v5039 = vcombine.low %v5024, %v5031
      %v5041 = vunpack.c.l.s4 1966171168
      %v5042 = vunpack.c.0.s8 %v5041
      %v5043 = vlaneseq
      %v5044 = vshrl.u32 %v5043, 7
      %v5045 = vsub.s32 %v5042, %v5044
      %v5046 = vrot.slane %v5039, %v5045
      %v5048 = vunpack.c.l.s4 1966171168
      %v5049 = vunpack.c.0.s8 %v5048
      %v5050 = vlaneseq
      %v5051 = vshrl.u32 %v5050, 7
      %v5052 = vsub.s32 %v5049, %v5051
      %v5053 = vrot.slane %v5038, %v5052
      %v5054 = vcombine.low %v5046, %v5053
      %v5056 = vpack.i.b16 %v4902, %v4901
      %v5057 = vpack.i.b16 %v4906, %v4903
      %v5058 = vpack.i.b16 %v4912, %v4911
      %v5060 = vcombine.low %v5056, %v5057
      %v5061 = vcombine.low %v4969, %v5058
      %v5063 = vunpack.c.l.s4 1966171168
      %v5064 = vunpack.c.0.s8 %v5063
      %v5065 = vlaneseq
      %v5066 = vshrl.u32 %v5065, 7
      %v5067 = vsub.s32 %v5064, %v5066
      %v5068 = vrot.slane %v5060, %v5067
      %v5070 = vunpack.c.l.s4 1966171168
      %v5071 = vunpack.c.0.s8 %v5070
      %v5072 = vlaneseq
      %v5073 = vshrl.u32 %v5072, 7
      %v5074 = vsub.s32 %v5071, %v5073
      %v5075 = vrot.slane %v5061, %v5074
      %v5077 = vunpack.c.l.s4 1966171168
      %v5078 = vunpack.c.0.s8 %v5077
      %v5079 = vlaneseq
      %v5080 = vshrl.u32 %v5079, 7
      %v5081 = vsub.s32 %v5078, %v5080
      %v5082 = vrot.slane %v4913, %v5081
      %v5083 = vcombine.low %v5068, %v5075
      %v5085 = vunpack.c.l.s4 1966171168
      %v5086 = vunpack.c.0.s8 %v5085
      %v5087 = vlaneseq
      %v5088 = vshrl.u32 %v5087, 7
      %v5089 = vsub.s32 %v5086, %v5088
      %v5090 = vrot.slane %v5083, %v5089
      %v5092 = vunpack.c.l.s4 1966171168
      %v5093 = vunpack.c.0.s8 %v5092
      %v5094 = vlaneseq
      %v5095 = vshrl.u32 %v5094, 7
      %v5096 = vsub.s32 %v5093, %v5095
      %v5097 = vrot.slane %v5082, %v5096
      %v5098 = vcombine.low %v5090, %v5097
      %v5100 = vpack.i.b16 %v4907, %v4904
      %v5101 = vpack.i.b16 %v4913, %v4912
      %v5103 = vcombine.low %v4923, %v5100
      %v5104 = vcombine.low %v5014, %v5101
      %v5106 = vunpack.c.l.s4 1966171168
      %v5107 = vunpack.c.0.s8 %v5106
      %v5108 = vlaneseq
      %v5109 = vshrl.u32 %v5108, 7
      %v5110 = vsub.s32 %v5107, %v5109
      %v5111 = vrot.slane %v5103, %v5110
      %v5113 = vunpack.c.l.s4 1966171168
      %v5114 = vunpack.c.0.s8 %v5113
      %v5115 = vlaneseq
      %v5116 = vshrl.u32 %v5115, 7
      %v5117 = vsub.s32 %v5114, %v5116
      %v5118 = vrot.slane %v5104, %v5117
      %v5120 = vunpack.c.l.s4 1966171168
      %v5121 = vunpack.c.0.s8 %v5120
      %v5122 = vlaneseq
      %v5123 = vshrl.u32 %v5122, 7
      %v5124 = vsub.s32 %v5121, %v5123
      %v5125 = vrot.slane %v4914, %v5124
      %v5126 = vcombine.low %v5111, %v5118
      %v5128 = vunpack.c.l.s4 1966171168
      %v5129 = vunpack.c.0.s8 %v5128
      %v5130 = vlaneseq
      %v5131 = vshrl.u32 %v5130, 7
      %v5132 = vsub.s32 %v5129, %v5131
      %v5133 = vrot.slane %v5126, %v5132
      %v5135 = vunpack.c.l.s4 1966171168
      %v5136 = vunpack.c.0.s8 %v5135
      %v5137 = vlaneseq
      %v5138 = vshrl.u32 %v5137, 7
      %v5139 = vsub.s32 %v5136, %v5138
      %v5140 = vrot.slane %v5125, %v5139
      %v5141 = vcombine.low %v5133, %v5140
      %v5143 = vpack.i.b16 %v4908, %v4905
      %v5144 = vpack.i.b16 %v4910, %v4909
      %v5145 = vpack.i.b16 %v4914, %v4913
      %v5147 = vcombine.low %v4968, %v5143
      %v5148 = vcombine.low %v5144, %v5145
      %v5150 = vunpack.c.l.s4 1966171168
      %v5151 = vunpack.c.0.s8 %v5150
      %v5152 = vlaneseq
      %v5153 = vshrl.u32 %v5152, 7
      %v5154 = vsub.s32 %v5151, %v5153
      %v5155 = vrot.slane %v5147, %v5154
      %v5157 = vunpack.c.l.s4 1966171168
      %v5158 = vunpack.c.0.s8 %v5157
      %v5159 = vlaneseq
      %v5160 = vshrl.u32 %v5159, 7
      %v5161 = vsub.s32 %v5158, %v5160
      %v5162 = vrot.slane %v5148, %v5161
      %v5164 = vunpack.c.l.s4 1966171168
      %v5165 = vunpack.c.0.s8 %v5164
      %v5166 = vlaneseq
      %v5167 = vshrl.u32 %v5166, 7
      %v5168 = vsub.s32 %v5165, %v5167
      %v5169 = vrot.slane %v4915, %v5168
      %v5170 = vcombine.low %v5155, %v5162
      %v5172 = vunpack.c.l.s4 1966171168
      %v5173 = vunpack.c.0.s8 %v5172
      %v5174 = vlaneseq
      %v5175 = vshrl.u32 %v5174, 7
      %v5176 = vsub.s32 %v5173, %v5175
      %v5177 = vrot.slane %v5170, %v5176
      %v5179 = vunpack.c.l.s4 1966171168
      %v5180 = vunpack.c.0.s8 %v5179
      %v5181 = vlaneseq
      %v5182 = vshrl.u32 %v5181, 7
      %v5183 = vsub.s32 %v5180, %v5182
      %v5184 = vrot.slane %v5169, %v5183
      %v5185 = vcombine.low %v5177, %v5184
      %v5187 = vpack.i.b16 %v4911, %v4908
      %v5188 = vpack.i.b16 %v4917, %v4916
      %v5190 = vcombine.low %v4924, %v5187
      %v5191 = vcombine.low %v5101, %v5188
      %v5193 = vunpack.c.l.s4 1966171168
      %v5194 = vunpack.c.0.s8 %v5193
      %v5195 = vlaneseq
      %v5196 = vshrl.u32 %v5195, 7
      %v5197 = vsub.s32 %v5194, %v5196
      %v5198 = vrot.slane %v5190, %v5197
      %v5200 = vunpack.c.l.s4 1966171168
      %v5201 = vunpack.c.0.s8 %v5200
      %v5202 = vlaneseq
      %v5203 = vshrl.u32 %v5202, 7
      %v5204 = vsub.s32 %v5201, %v5203
      %v5205 = vrot.slane %v5191, %v5204
      %v5207 = vunpack.c.l.s4 1966171168
      %v5208 = vunpack.c.0.s8 %v5207
      %v5209 = vlaneseq
      %v5210 = vshrl.u32 %v5209, 7
      %v5211 = vsub.s32 %v5208, %v5210
      %v5212 = vrot.slane %v4918, %v5211
      %v5213 = vcombine.low %v5198, %v5205
      %v5215 = vunpack.c.l.s4 1966171168
      %v5216 = vunpack.c.0.s8 %v5215
      %v5217 = vlaneseq
      %v5218 = vshrl.u32 %v5217, 7
      %v5219 = vsub.s32 %v5216, %v5218
      %v5220 = vrot.slane %v5213, %v5219
      %v5222 = vunpack.c.l.s4 1966171168
      %v5223 = vunpack.c.0.s8 %v5222
      %v5224 = vlaneseq
      %v5225 = vshrl.u32 %v5224, 7
      %v5226 = vsub.s32 %v5223, %v5225
      %v5227 = vrot.slane %v5212, %v5226
      %v5228 = vcombine.low %v5220, %v5227
      %v5230 = vpack.i.b16 %v4912, %v4909
      %v5231 = vpack.i.b16 %v4918, %v4917
      %v5233 = vcombine.low %v4969, %v5230
      %v5234 = vcombine.low %v5145, %v5231
      %v5236 = vunpack.c.l.s4 1966171168
      %v5237 = vunpack.c.0.s8 %v5236
      %v5238 = vlaneseq
      %v5239 = vshrl.u32 %v5238, 7
      %v5240 = vsub.s32 %v5237, %v5239
      %v5241 = vrot.slane %v5233, %v5240
      %v5243 = vunpack.c.l.s4 1966171168
      %v5244 = vunpack.c.0.s8 %v5243
      %v5245 = vlaneseq
      %v5246 = vshrl.u32 %v5245, 7
      %v5247 = vsub.s32 %v5244, %v5246
      %v5248 = vrot.slane %v5234, %v5247
      %v5250 = vunpack.c.l.s4 1966171168
      %v5251 = vunpack.c.0.s8 %v5250
      %v5252 = vlaneseq
      %v5253 = vshrl.u32 %v5252, 7
      %v5254 = vsub.s32 %v5251, %v5253
      %v5255 = vrot.slane %v4919, %v5254
      %v5256 = vcombine.low %v5241, %v5248
      %v5258 = vunpack.c.l.s4 1966171168
      %v5259 = vunpack.c.0.s8 %v5258
      %v5260 = vlaneseq
      %v5261 = vshrl.u32 %v5260, 7
      %v5262 = vsub.s32 %v5259, %v5261
      %v5263 = vrot.slane %v5256, %v5262
      %v5265 = vunpack.c.l.s4 1966171168
      %v5266 = vunpack.c.0.s8 %v5265
      %v5267 = vlaneseq
      %v5268 = vshrl.u32 %v5267, 7
      %v5269 = vsub.s32 %v5266, %v5268
      %v5270 = vrot.slane %v5255, %v5269
      %v5271 = vcombine.low %v5263, %v5270
      %v5273 = vpack.i.b16 %v4913, %v4910
      %v5274 = vpack.i.b16 %v4915, %v4914
      %v5275 = vpack.i.b16 %v4919, %v4918
      %v5277 = vcombine.low %v5014, %v5273
      %v5278 = vcombine.low %v5274, %v5275
      %v5280 = vunpack.c.l.s4 1966171168
      %v5281 = vunpack.c.0.s8 %v5280
      %v5282 = vlaneseq
      %v5283 = vshrl.u32 %v5282, 7
      %v5284 = vsub.s32 %v5281, %v5283
      %v5285 = vrot.slane %v5277, %v5284
      %v5287 = vunpack.c.l.s4 1966171168
      %v5288 = vunpack.c.0.s8 %v5287
      %v5289 = vlaneseq
      %v5290 = vshrl.u32 %v5289, 7
      %v5291 = vsub.s32 %v5288, %v5290
      %v5292 = vrot.slane %v5278, %v5291
      %v5294 = vunpack.c.l.s4 1966171168
      %v5295 = vunpack.c.0.s8 %v5294
      %v5296 = vlaneseq
      %v5297 = vshrl.u32 %v5296, 7
      %v5298 = vsub.s32 %v5295, %v5297
      %v5299 = vrot.slane %v4920, %v5298
      %v5300 = vcombine.low %v5285, %v5292
      %v5302 = vunpack.c.l.s4 1966171168
      %v5303 = vunpack.c.0.s8 %v5302
      %v5304 = vlaneseq
      %v5305 = vshrl.u32 %v5304, 7
      %v5306 = vsub.s32 %v5303, %v5305
      %v5307 = vrot.slane %v5300, %v5306
      %v5309 = vunpack.c.l.s4 1966171168
      %v5310 = vunpack.c.0.s8 %v5309
      %v5311 = vlaneseq
      %v5312 = vshrl.u32 %v5311, 7
      %v5313 = vsub.s32 %v5310, %v5312
      %v5314 = vrot.slane %v5299, %v5313
      %v5315 = vcombine.low %v5307, %v5314
      %v5317 = vld [vmem:[%s5] sm:$0xf]
      %v5318 = vld [vmem:[%s5 + $0x4] sm:$0xf]
      %v5319 = vld [vmem:[%s5 + $0x8] sm:$0xf]
      %v5320 = vld [vmem:[%s5 + $0xc] sm:$0xf]
      %v5321 = vld [vmem:[%s5 + $0x10] sm:$0xf]
      %v5322 = vld [vmem:[%s5 + $0x14] sm:$0xf]
      %v5323 = vld [vmem:[%s5 + $0x18] sm:$0xf]
      %v5324 = vld [vmem:[%s5 + $0x1c] sm:$0xf]
      %v5325 = vld [vmem:[%s5 + $0x20] sm:$0xf]
      %v5326 = vld [vmem:[%s5 + $0x24] sm:$0xf]
      %v5327 = vld [vmem:[%s5 + $0x28] sm:$0xf]
      %v5328 = vld [vmem:[%s5 + $0x2c] sm:$0xf]
      %v5329 = vld [vmem:[%s5 + $0x30] sm:$0xf]
      %v5330 = vld [vmem:[%s5 + $0x34] sm:$0xf]
      %v5331 = vld [vmem:[%s5 + $0x38] sm:$0xf]
      %v5332 = vld [vmem:[%s5 + $0x3c] sm:$0xf]
      %v5333 = vld [vmem:[%s5 + $0x40] sm:$0xf]
      %v5334 = vld [vmem:[%s5 + $0x44] sm:$0xf]
      %v5335 = vld [vmem:[%s5 + $0x48] sm:$0xf]
      %v5336 = vld [vmem:[%s5 + $0x4c] sm:$0xf]
      %v5337 = vld [vmem:[%s5 + $0x50] sm:$0xf]
      %v5338 = vld [vmem:[%s5 + $0x54] sm:$0xf]
      %v5339 = vld [vmem:[%s5 + $0x58] sm:$0xf]
      %v5340 = vld [vmem:[%s5 + $0x5c] sm:$0xf]
      %v5341 = vld [vmem:[%s5 + $0x60] sm:$0xf]
      %v5342 = vld [vmem:[%s5 + $0x64] sm:$0xf]
      %v5343 = vld [vmem:[%s5 + $0x68] sm:$0xf]
      %v5344 = vld [vmem:[%s5 + $0x6c] sm:$0xf]
      %v5345 = vld [vmem:[%s5 + $0x70] sm:$0xf]
      %v5346 = vld [vmem:[%s5 + $0x74] sm:$0xf]
      %v5347 = vld [vmem:[%s5 + $0x78] sm:$0xf]
      %v5348 = vld [vmem:[%s5 + $0x7c] sm:$0xf]
      %v5349 = vld [vmem:[%s5 + $0x80] sm:$0xf]
      %v5350 = vld [vmem:[%s5 + $0x84] sm:$0xf]
      %v5351 = vld [vmem:[%s5 + $0x88] sm:$0xf]
      %v5352 = vld [vmem:[%s5 + $0x8c] sm:$0xf]
      %v5353 = vld [vmem:[%s5 + $0x90] sm:$0xf]
      %v5354 = vld [vmem:[%s5 + $0x94] sm:$0xf]
      %v5355 = vld [vmem:[%s5 + $0x98] sm:$0xf]
      %v5356 = vld [vmem:[%s5 + $0x9c] sm:$0xf]
      %v5357 = vld [vmem:[%s5 + $0xa0] sm:$0xf]
      %v5358 = vld [vmem:[%s5 + $0xa4] sm:$0xf]
      %v5359 = vld [vmem:[%s5 + $0xa8] sm:$0xf]
      %v5360 = vld [vmem:[%s5 + $0xac] sm:$0xf]
      %v5361 = vld [vmem:[%s5 + $0xb0] sm:$0xf]
      %v5362 = vld [vmem:[%s5 + $0xb4] sm:$0xf]
      %v5363 = vld [vmem:[%s5 + $0xb8] sm:$0xf]
      %v5364 = vld [vmem:[%s5 + $0xbc] sm:$0xf]
      %v5365 = vld [vmem:[%s5 + $0xc0] sm:$0xf]
      %v5366 = vld [vmem:[%s5 + $0xc4] sm:$0xf]
      %v5367 = vld [vmem:[%s5 + $0xc8] sm:$0xf]
      %v5368 = vld [vmem:[%s5 + $0xcc] sm:$0xf]
      %v5369 = vld [vmem:[%s5 + $0xd0] sm:$0xf]
      %v5370 = vld [vmem:[%s5 + $0xd4] sm:$0xf]
      %v5371 = vld [vmem:[%s5 + $0xd8] sm:$0xf]
      %v5372 = vld [vmem:[%s5 + $0xdc] sm:$0xf]
      %v5373 = vld [vmem:[%s5 + $0xe0] sm:$0xf]
      %v5374 = vld [vmem:[%s5 + $0xe4] sm:$0xf]
      %v5375 = vld [vmem:[%s5 + $0xe8] sm:$0xf]
      %v5376 = vld [vmem:[%s5 + $0xec] sm:$0xf]
      %v5377 = vld [vmem:[%s5 + $0xf0] sm:$0xf]
      %v5378 = vld [vmem:[%s5 + $0xf4] sm:$0xf]
      %v5379 = vld [vmem:[%s5 + $0xf8] sm:$0xf]
      %v5380 = vld [vmem:[%s5 + $0xfc] sm:$0xf]
      %v5381 = vld [vmem:[%s5 + $0x100] sm:$0xf]
      %v5382 = vld [vmem:[%s5 + $0x104] sm:$0xf]
      %v5383 = vld [vmem:[%s5 + $0x108] sm:$0xf]
      %v5384 = vld [vmem:[%s5 + $0x10c] sm:$0xf]
      %v5385 = vld [vmem:[%s5 + $0x110] sm:$0xf]
      %v5386 = vld [vmem:[%s5 + $0x114] sm:$0xf]
      %v5387 = vld [vmem:[%s5 + $0x118] sm:$0xf]
      %v5388 = vld [vmem:[%s5 + $0x11c] sm:$0xf]
      %v5389 = vld [vmem:[%s5 + $0x120] sm:$0xf]
      %v5390 = vld [vmem:[%s5 + $0x124] sm:$0xf]
      %v5391 = vld [vmem:[%s5 + $0x128] sm:$0xf]
      %v5392 = vld [vmem:[%s5 + $0x12c] sm:$0xf]
      %v5393 = vld [vmem:[%s5 + $0x130] sm:$0xf]
      %v5394 = vld [vmem:[%s5 + $0x134] sm:$0xf]
      %v5395 = vld [vmem:[%s5 + $0x138] sm:$0xf]
      %v5396 = vld [vmem:[%s5 + $0x13c] sm:$0xf]
      %v5397 = vld [vmem:[%s5 + $0x140] sm:$0xf]
      %v5398 = vld [vmem:[%s5 + $0x144] sm:$0xf]
      %v5399 = vld [vmem:[%s5 + $0x148] sm:$0xf]
      %v5400 = vld [vmem:[%s5 + $0x14c] sm:$0xf]
      %v5401 = vld [vmem:[%s5 + $0x150] sm:$0xf]
      %v5402 = vld [vmem:[%s5 + $0x154] sm:$0xf]
      %v5403 = vld [vmem:[%s5 + $0x158] sm:$0xf]
      %v5404 = vld [vmem:[%s5 + $0x15c] sm:$0xf]
      %v5405 = vld [vmem:[%s5 + $0x160] sm:$0xf]
      %v5406 = vld [vmem:[%s5 + $0x164] sm:$0xf]
      %v5407 = vld [vmem:[%s5 + $0x168] sm:$0xf]
      %v5408 = vld [vmem:[%s5 + $0x16c] sm:$0xf]
      %v5409 = vld [vmem:[%s5 + $0x170] sm:$0xf]
      %v5410 = vld [vmem:[%s5 + $0x174] sm:$0xf]
      %v5411 = vld [vmem:[%s5 + $0x178] sm:$0xf]
      %v5412 = vld [vmem:[%s5 + $0x17c] sm:$0xf]
      %v5413 = vld [vmem:[%s5 + $0x180] sm:$0xf]
      %v5414 = vld [vmem:[%s5 + $0x184] sm:$0xf]
      %v5415 = vld [vmem:[%s5 + $0x188] sm:$0xf]
      %v5416 = vld [vmem:[%s5 + $0x18c] sm:$0xf]
      %v5417 = vld [vmem:[%s5 + $0x190] sm:$0xf]
      %v5418 = vld [vmem:[%s5 + $0x194] sm:$0xf]
      %v5419 = vld [vmem:[%s5 + $0x198] sm:$0xf]
      %v5420 = vld [vmem:[%s5 + $0x19c] sm:$0xf]
      %v5421 = vld [vmem:[%s5 + $0x1a0] sm:$0xf]
      %v5422 = vld [vmem:[%s5 + $0x1a4] sm:$0xf]
      %v5423 = vld [vmem:[%s5 + $0x1a8] sm:$0xf]
      %v5424 = vld [vmem:[%s5 + $0x1ac] sm:$0xf]
      %v5425 = vld [vmem:[%s5 + $0x1b0] sm:$0xf]
      %v5426 = vld [vmem:[%s5 + $0x1b4] sm:$0xf]
      %v5427 = vld [vmem:[%s5 + $0x1b8] sm:$0xf]
      %v5428 = vld [vmem:[%s5 + $0x1bc] sm:$0xf]
      %v5429 = vld [vmem:[%s5 + $0x1c0] sm:$0xf]
      %v5430 = vld [vmem:[%s5 + $0x1c4] sm:$0xf]
      %v5431 = vld [vmem:[%s5 + $0x1c8] sm:$0xf]
      %v5432 = vld [vmem:[%s5 + $0x1cc] sm:$0xf]
      %v5433 = vld [vmem:[%s5 + $0x1d0] sm:$0xf]
      %v5434 = vld [vmem:[%s5 + $0x1d4] sm:$0xf]
      %v5435 = vld [vmem:[%s5 + $0x1d8] sm:$0xf]
      %v5436 = vld [vmem:[%s5 + $0x1dc] sm:$0xf]
      %v5437 = vld [vmem:[%s5 + $0x1e0] sm:$0xf]
      %v5438 = vld [vmem:[%s5 + $0x1e4] sm:$0xf]
      %v5439 = vld [vmem:[%s5 + $0x1e8] sm:$0xf]
      %v5440 = vld [vmem:[%s5 + $0x1ec] sm:$0xf]
      %v5441 = vld [vmem:[%s5 + $0x1f0] sm:$0xf]
      %v5442 = vld [vmem:[%s5 + $0x1f4] sm:$0xf]
      %v5443 = vld [vmem:[%s5 + $0x1f8] sm:$0xf]
      %v5444 = vld [vmem:[%s5 + $0x1fc] sm:$0xf]
      %v5445 = vld [vmem:[%s5 + $0x200] sm:$0xf]
      %v5446 = vld [vmem:[%s5 + $0x204] sm:$0xf]
      %v5447 = vld [vmem:[%s5 + $0x208] sm:$0xf]
      %v5448 = vld [vmem:[%s5 + $0x20c] sm:$0xf]
      %v5449 = vld [vmem:[%s5 + $0x210] sm:$0xf]
      %v5450 = vld [vmem:[%s5 + $0x214] sm:$0xf]
      %v5451 = vld [vmem:[%s5 + $0x218] sm:$0xf]
      %v5452 = vld [vmem:[%s5 + $0x21c] sm:$0xf]
      %v5453 = vld [vmem:[%s5 + $0x220] sm:$0xf]
      %v5454 = vld [vmem:[%s5 + $0x224] sm:$0xf]
      %v5455 = vld [vmem:[%s5 + $0x228] sm:$0xf]
      %v5456 = vld [vmem:[%s5 + $0x22c] sm:$0xf]
      %v5457 = vld [vmem:[%s5 + $0x230] sm:$0xf]
      %v5458 = vld [vmem:[%s5 + $0x234] sm:$0xf]
      %v5459 = vld [vmem:[%s5 + $0x238] sm:$0xf]
      %v5460 = vld [vmem:[%s5 + $0x23c] sm:$0xf]
      %v5461 = vld [vmem:[%s6] sm:$0x1]
      %v5463 = vlaneseq
      %v5464 = vshrl.u32 %v5463, 7
      %v5465 = vsub.s32 0, %v5464
      %v5466 = vrot.slane %v5461, %v5465
      %v5612 = vunpack.c.l.b16 %v5317
      %v5613 = vunpack.c.l.b16 %v5318
      %v5614 = vunpack.c.l.b16 %v5319
      %v5615 = vunpack.c.l.b16 %v5320
      %v5616 = vunpack.c.l.b16 %v5321
      %v5617 = vunpack.c.l.b16 %v5322
      %v5618 = vunpack.c.l.b16 %v5323
      %v5619 = vunpack.c.l.b16 %v5324
      %v5620 = vunpack.c.l.b16 %v5325
      %v5621 = vunpack.c.l.b16 %v5326
      %v5622 = vunpack.c.l.b16 %v5327
      %v5623 = vunpack.c.l.b16 %v5328
      %v5624 = vunpack.c.l.b16 %v5329
      %v5625 = vunpack.c.l.b16 %v5330
      %v5626 = vunpack.c.l.b16 %v5331
      %v5627 = vunpack.c.l.b16 %v5332
      %v5628 = vunpack.c.l.b16 %v5333
      %v5629 = vunpack.c.l.b16 %v5334
      %v5630 = vunpack.c.l.b16 %v5335
      %v5631 = vunpack.c.l.b16 %v5336
      %v5632 = vunpack.c.l.b16 %v5337
      %v5633 = vunpack.c.l.b16 %v5338
      %v5634 = vunpack.c.l.b16 %v5339
      %v5635 = vunpack.c.l.b16 %v5340
      %v5636 = vunpack.c.l.b16 %v5341
      %v5637 = vunpack.c.l.b16 %v5342
      %v5638 = vunpack.c.l.b16 %v5343
      %v5639 = vunpack.c.l.b16 %v5344
      %v5640 = vunpack.c.l.b16 %v5345
      %v5641 = vunpack.c.l.b16 %v5346
      %v5642 = vunpack.c.l.b16 %v5347
      %v5643 = vunpack.c.l.b16 %v5348
      %v5644 = vunpack.c.l.b16 %v5349
      %v5645 = vunpack.c.l.b16 %v5350
      %v5646 = vunpack.c.l.b16 %v5351
      %v5647 = vunpack.c.l.b16 %v5352
      %v5648 = vunpack.c.l.b16 %v5353
      %v5649 = vunpack.c.l.b16 %v5354
      %v5650 = vunpack.c.l.b16 %v5355
      %v5651 = vunpack.c.l.b16 %v5356
      %v5652 = vunpack.c.l.b16 %v5357
      %v5653 = vunpack.c.l.b16 %v5358
      %v5654 = vunpack.c.l.b16 %v5359
      %v5655 = vunpack.c.l.b16 %v5360
      %v5656 = vunpack.c.l.b16 %v5361
      %v5657 = vunpack.c.l.b16 %v5362
      %v5658 = vunpack.c.l.b16 %v5363
      %v5659 = vunpack.c.l.b16 %v5364
      %v5660 = vunpack.c.l.b16 %v5365
      %v5661 = vunpack.c.l.b16 %v5366
      %v5662 = vunpack.c.l.b16 %v5367
      %v5663 = vunpack.c.l.b16 %v5368
      %v5664 = vunpack.c.l.b16 %v5369
      %v5665 = vunpack.c.l.b16 %v5370
      %v5666 = vunpack.c.l.b16 %v5371
      %v5667 = vunpack.c.l.b16 %v5372
      %v5668 = vunpack.c.l.b16 %v5373
      %v5669 = vunpack.c.l.b16 %v5374
      %v5670 = vunpack.c.l.b16 %v5375
      %v5671 = vunpack.c.l.b16 %v5376
      %v5672 = vunpack.c.l.b16 %v5377
      %v5673 = vunpack.c.l.b16 %v5378
      %v5674 = vunpack.c.l.b16 %v5379
      %v5675 = vunpack.c.l.b16 %v5380
      %v5676 = vunpack.c.l.b16 %v5381
      %v5677 = vunpack.c.l.b16 %v5382
      %v5678 = vunpack.c.l.b16 %v5383
      %v5679 = vunpack.c.l.b16 %v5384
      %v5680 = vunpack.c.l.b16 %v5385
      %v5681 = vunpack.c.l.b16 %v5386
      %v5682 = vunpack.c.l.b16 %v5387
      %v5683 = vunpack.c.l.b16 %v5388
      %v5684 = vunpack.c.l.b16 %v5389
      %v5685 = vunpack.c.l.b16 %v5390
      %v5686 = vunpack.c.l.b16 %v5391
      %v5687 = vunpack.c.l.b16 %v5392
      %v5688 = vunpack.c.l.b16 %v5393
      %v5689 = vunpack.c.l.b16 %v5394
      %v5690 = vunpack.c.l.b16 %v5395
      %v5691 = vunpack.c.l.b16 %v5396
      %v5692 = vunpack.c.l.b16 %v5397
      %v5693 = vunpack.c.l.b16 %v5398
      %v5694 = vunpack.c.l.b16 %v5399
      %v5695 = vunpack.c.l.b16 %v5400
      %v5696 = vunpack.c.l.b16 %v5401
      %v5697 = vunpack.c.l.b16 %v5402
      %v5698 = vunpack.c.l.b16 %v5403
      %v5699 = vunpack.c.l.b16 %v5404
      %v5700 = vunpack.c.l.b16 %v5405
      %v5701 = vunpack.c.l.b16 %v5406
      %v5702 = vunpack.c.l.b16 %v5407
      %v5703 = vunpack.c.l.b16 %v5408
      %v5704 = vunpack.c.l.b16 %v5409
      %v5705 = vunpack.c.l.b16 %v5410
      %v5706 = vunpack.c.l.b16 %v5411
      %v5707 = vunpack.c.l.b16 %v5412
      %v5708 = vunpack.c.l.b16 %v5413
      %v5709 = vunpack.c.l.b16 %v5414
      %v5710 = vunpack.c.l.b16 %v5415
      %v5711 = vunpack.c.l.b16 %v5416
      %v5712 = vunpack.c.l.b16 %v5417
      %v5713 = vunpack.c.l.b16 %v5418
      %v5714 = vunpack.c.l.b16 %v5419
      %v5715 = vunpack.c.l.b16 %v5420
      %v5716 = vunpack.c.l.b16 %v5421
      %v5717 = vunpack.c.l.b16 %v5422
      %v5718 = vunpack.c.l.b16 %v5423
      %v5719 = vunpack.c.l.b16 %v5424
      %v5720 = vunpack.c.l.b16 %v5425
      %v5721 = vunpack.c.l.b16 %v5426
      %v5722 = vunpack.c.l.b16 %v5427
      %v5723 = vunpack.c.l.b16 %v5428
      %v5724 = vunpack.c.l.b16 %v5429
      %v5725 = vunpack.c.l.b16 %v5430
      %v5726 = vunpack.c.l.b16 %v5431
      %v5727 = vunpack.c.l.b16 %v5432
      %v5728 = vunpack.c.l.b16 %v5433
      %v5729 = vunpack.c.l.b16 %v5434
      %v5730 = vunpack.c.l.b16 %v5435
      %v5731 = vunpack.c.l.b16 %v5436
      %v5732 = vunpack.c.l.b16 %v5437
      %v5733 = vunpack.c.l.b16 %v5438
      %v5734 = vunpack.c.l.b16 %v5439
      %v5735 = vunpack.c.l.b16 %v5440
      %v5736 = vunpack.c.l.b16 %v5441
      %v5737 = vunpack.c.l.b16 %v5442
      %v5738 = vunpack.c.l.b16 %v5443
      %v5739 = vunpack.c.l.b16 %v5444
      %v5740 = vunpack.c.l.b16 %v5445
      %v5741 = vunpack.c.l.b16 %v5446
      %v5742 = vunpack.c.l.b16 %v5447
      %v5743 = vunpack.c.l.b16 %v5448
      %v5744 = vunpack.c.l.b16 %v5449
      %v5745 = vunpack.c.l.b16 %v5450
      %v5746 = vunpack.c.l.b16 %v5451
      %v5747 = vunpack.c.l.b16 %v5452
      %v5748 = vunpack.c.l.b16 %v5453
      %v5749 = vunpack.c.l.b16 %v5454
      %v5750 = vunpack.c.l.b16 %v5455
      %v5751 = vunpack.c.l.b16 %v5456
      %v5752 = vunpack.c.l.b16 %v5457
      %v5753 = vunpack.c.l.b16 %v5458
      %v5754 = vunpack.c.l.b16 %v5459
      %v5755 = vunpack.c.l.b16 %v5460
      %v5756 = vpack.c.b16 %v5613, %v5612
      %v5757 = vpack.c.b16 %v5615, %v5614
      %v5758 = vpack.c.b16 %v5617, %v5616
      %v5759 = vpack.c.b16 %v5619, %v5618
      %v5760 = vpack.c.b16 %v5621, %v5620
      %v5761 = vpack.c.b16 %v5623, %v5622
      %v5762 = vpack.c.b16 %v5625, %v5624
      %v5763 = vpack.c.b16 %v5627, %v5626
      %v5764 = vpack.c.b16 %v5629, %v5628
      %v5765 = vpack.c.b16 %v5631, %v5630
      %v5766 = vpack.c.b16 %v5633, %v5632
      %v5767 = vpack.c.b16 %v5635, %v5634
      %v5768 = vpack.c.b16 %v5637, %v5636
      %v5769 = vpack.c.b16 %v5639, %v5638
      %v5770 = vpack.c.b16 %v5641, %v5640
      %v5771 = vpack.c.b16 %v5643, %v5642
      %v5772 = vpack.c.b16 %v5645, %v5644
      %v5773 = vpack.c.b16 %v5647, %v5646
      %v5774 = vpack.c.b16 %v5649, %v5648
      %v5775 = vpack.c.b16 %v5651, %v5650
      %v5776 = vpack.c.b16 %v5653, %v5652
      %v5777 = vpack.c.b16 %v5655, %v5654
      %v5778 = vpack.c.b16 %v5657, %v5656
      %v5779 = vpack.c.b16 %v5659, %v5658
      %v5780 = vpack.c.b16 %v5661, %v5660
      %v5781 = vpack.c.b16 %v5663, %v5662
      %v5782 = vpack.c.b16 %v5665, %v5664
      %v5783 = vpack.c.b16 %v5667, %v5666
      %v5784 = vpack.c.b16 %v5669, %v5668
      %v5785 = vpack.c.b16 %v5671, %v5670
      %v5786 = vpack.c.b16 %v5673, %v5672
      %v5787 = vpack.c.b16 %v5675, %v5674
      %v5788 = vpack.c.b16 %v5677, %v5676
      %v5789 = vpack.c.b16 %v5679, %v5678
      %v5790 = vpack.c.b16 %v5681, %v5680
      %v5791 = vpack.c.b16 %v5683, %v5682
      %v5792 = vpack.c.b16 %v5685, %v5684
      %v5793 = vpack.c.b16 %v5687, %v5686
      %v5794 = vpack.c.b16 %v5689, %v5688
      %v5795 = vpack.c.b16 %v5691, %v5690
      %v5796 = vpack.c.b16 %v5693, %v5692
      %v5797 = vpack.c.b16 %v5695, %v5694
      %v5798 = vpack.c.b16 %v5697, %v5696
      %v5799 = vpack.c.b16 %v5699, %v5698
      %v5800 = vpack.c.b16 %v5701, %v5700
      %v5801 = vpack.c.b16 %v5703, %v5702
      %v5802 = vpack.c.b16 %v5705, %v5704
      %v5803 = vpack.c.b16 %v5707, %v5706
      %v5804 = vpack.c.b16 %v5709, %v5708
      %v5805 = vpack.c.b16 %v5711, %v5710
      %v5806 = vpack.c.b16 %v5713, %v5712
      %v5807 = vpack.c.b16 %v5715, %v5714
      %v5808 = vpack.c.b16 %v5717, %v5716
      %v5809 = vpack.c.b16 %v5719, %v5718
      %v5810 = vpack.c.b16 %v5721, %v5720
      %v5811 = vpack.c.b16 %v5723, %v5722
      %v5812 = vpack.c.b16 %v5725, %v5724
      %v5813 = vpack.c.b16 %v5727, %v5726
      %v5814 = vpack.c.b16 %v5729, %v5728
      %v5815 = vpack.c.b16 %v5731, %v5730
      %v5816 = vpack.c.b16 %v5733, %v5732
      %v5817 = vpack.c.b16 %v5735, %v5734
      %v5818 = vpack.c.b16 %v5737, %v5736
      %v5819 = vpack.c.b16 %v5739, %v5738
      %v5820 = vpack.c.b16 %v5741, %v5740
      %v5821 = vpack.c.b16 %v5743, %v5742
      %v5822 = vpack.c.b16 %v5745, %v5744
      %v5823 = vpack.c.b16 %v5747, %v5746
      %v5824 = vpack.c.b16 %v5749, %v5748
      %v5825 = vpack.c.b16 %v5751, %v5750
      %v5826 = vpack.c.b16 %v5753, %v5752
      %v5827 = vpack.c.b16 %v5755, %v5754
      %5900 = vmatprep.subr.bf16.mxu0 0
      %5901 = vmatpush1.bf16.msra.mxu0 %v5756
      %5902 = vmatprep.subr.bf16.mxu0 0
      %5903 = vmatpush1.bf16.msra.mxu0 %v5757
      %5904 = vmatprep.subr.bf16.mxu0 0
      %5905 = vmatpush1.bf16.msra.mxu0 %v5758
      %5906 = vmatprep.subr.bf16.mxu0 0
      %5907 = vmatpush1.bf16.msra.mxu0 %v5759
      %5908 = vmatprep.subr.bf16.mxu0 0
      %5909 = vmatpush1.bf16.msra.mxu0 %v5760
      %5910 = vmatprep.subr.bf16.mxu0 0
      %5911 = vmatpush1.bf16.msra.mxu0 %v5761
      %5912 = vmatprep.subr.bf16.mxu0 0
      %5913 = vmatpush1.bf16.msra.mxu0 %v5762
      %5914 = vmatprep.subr.bf16.mxu0 0
      %5915 = vmatpush1.bf16.msra.mxu0 %v5763
      %5916 = vmatprep.subr.bf16.mxu0 0
      %5917 = vmatpush1.bf16.msra.mxu0 %v5764
      %5918 = vmatprep.subr.bf16.mxu0 0
      %5919 = vmatpush1.bf16.msra.mxu0 %v5765
      %5920 = vmatprep.subr.bf16.mxu0 0
      %5921 = vmatpush1.bf16.msra.mxu0 %v5766
      %5922 = vmatprep.subr.bf16.mxu0 0
      %5923 = vmatpush1.bf16.msra.mxu0 %v5767
      %5924 = vmatprep.subr.bf16.mxu0 0
      %5925 = vmatpush1.bf16.msra.mxu0 %v5768
      %5926 = vmatprep.subr.bf16.mxu0 0
      %5927 = vmatpush1.bf16.msra.mxu0 %v5769
      %5928 = vmatprep.subr.bf16.mxu0 0
      %5929 = vmatpush1.bf16.msra.mxu0 %v5770
      %5930 = vmatprep.subr.bf16.mxu0 0
      %5931 = vmatpush1.bf16.msra.mxu0 %v5771
      %5932 = vmatprep.mubr.bf16.mxu0 %v5009
      %5933 = vmatmul.mubr.bf16.gmra.mrb[0].mxu0 %v4964
      %v5934 = vpop.f32.mrb[0].mxu0
      %v5935 = vadd.f32 %v5466, %v5934
      %v5936 = vpop.f32.mrb[0].mxu0
      %v5937 = vpop.f32.mrb[0].mxu0
      %v5938 = vadd.f32 %v5466, %v5937
      %v5939 = vpop.f32.mrb[0].mxu0
      %5940 = vdwg.mxu0
      %5941 = vmatprep.subr.bf16.mxu0 0
      %5942 = vmatpush1.bf16.msra.mxu0 %v5772
      %5943 = vmatprep.subr.bf16.mxu0 0
      %5944 = vmatpush1.bf16.msra.mxu0 %v5773
      %5945 = vmatprep.subr.bf16.mxu0 0
      %5946 = vmatpush1.bf16.msra.mxu0 %v5774
      %5947 = vmatprep.subr.bf16.mxu0 0
      %5948 = vmatpush1.bf16.msra.mxu0 %v5775
      %5949 = vmatprep.subr.bf16.mxu0 0
      %5950 = vmatpush1.bf16.msra.mxu0 %v5776
      %5951 = vmatprep.subr.bf16.mxu0 0
      %5952 = vmatpush1.bf16.msra.mxu0 %v5777
      %5953 = vmatprep.subr.bf16.mxu0 0
      %5954 = vmatpush1.bf16.msra.mxu0 %v5778
      %5955 = vmatprep.subr.bf16.mxu0 0
      %5956 = vmatpush1.bf16.msra.mxu0 %v5779
      %5957 = vmatprep.subr.bf16.mxu0 0
      %5958 = vmatpush1.bf16.msra.mxu0 %v5780
      %5959 = vmatprep.subr.bf16.mxu0 0
      %5960 = vmatpush1.bf16.msra.mxu0 %v5781
      %5961 = vmatprep.subr.bf16.mxu0 0
      %5962 = vmatpush1.bf16.msra.mxu0 %v5782
      %5963 = vmatprep.subr.bf16.mxu0 0
      %5964 = vmatpush1.bf16.msra.mxu0 %v5783
      %5965 = vmatprep.subr.bf16.mxu0 0
      %5966 = vmatpush1.bf16.msra.mxu0 %v5784
      %5967 = vmatprep.subr.bf16.mxu0 0
      %5968 = vmatpush1.bf16.msra.mxu0 %v5785
      %5969 = vmatprep.subr.bf16.mxu0 0
      %5970 = vmatpush1.bf16.msra.mxu0 %v5786
      %5971 = vmatprep.subr.bf16.mxu0 0
      %5972 = vmatpush1.bf16.msra.mxu0 %v5787
      %5973 = vmatprep.mubr.bf16.mxu0 %v5098
      %5974 = vmatmul.mubr.bf16.gmra.mrb[0].mxu0 %v5054
      %v5975 = vpop.f32.mrb[0].mxu0
      %v5976 = vadd.f32 %v5935, %v5975
      %v5977 = vpop.f32.mrb[0].mxu0
      %v5978 = vpop.f32.mrb[0].mxu0
      %v5979 = vadd.f32 %v5938, %v5978
      %v5980 = vpop.f32.mrb[0].mxu0
      %5981 = vdwg.mxu0
      %5982 = vmatprep.subr.bf16.mxu0 0
      %5983 = vmatpush1.bf16.msra.mxu0 %v5788
      %5984 = vmatprep.subr.bf16.mxu0 0
      %5985 = vmatpush1.bf16.msra.mxu0 %v5789
      %5986 = vmatprep.subr.bf16.mxu0 0
      %5987 = vmatpush1.bf16.msra.mxu0 %v5790
      %5988 = vmatprep.subr.bf16.mxu0 0
      %5989 = vmatpush1.bf16.msra.mxu0 %v5791
      %5990 = vmatprep.subr.bf16.mxu0 0
      %5991 = vmatpush1.bf16.msra.mxu0 %v5792
      %5992 = vmatprep.subr.bf16.mxu0 0
      %5993 = vmatpush1.bf16.msra.mxu0 %v5793
      %5994 = vmatprep.subr.bf16.mxu0 0
      %5995 = vmatpush1.bf16.msra.mxu0 %v5794
      %5996 = vmatprep.subr.bf16.mxu0 0
      %5997 = vmatpush1.bf16.msra.mxu0 %v5795
      %5998 = vmatprep.subr.bf16.mxu0 0
      %5999 = vmatpush1.bf16.msra.mxu0 %v5796
      %6000 = vmatprep.subr.bf16.mxu0 0
      %6001 = vmatpush1.bf16.msra.mxu0 %v5797
      %6002 = vmatprep.subr.bf16.mxu0 0
      %6003 = vmatpush1.bf16.msra.mxu0 %v5798
      %6004 = vmatprep.subr.bf16.mxu0 0
      %6005 = vmatpush1.bf16.msra.mxu0 %v5799
      %6006 = vmatprep.subr.bf16.mxu0 0
      %6007 = vmatpush1.bf16.msra.mxu0 %v5800
      %6008 = vmatprep.subr.bf16.mxu0 0
      %6009 = vmatpush1.bf16.msra.mxu0 %v5801
      %6010 = vmatprep.subr.bf16.mxu0 0
      %6011 = vmatpush1.bf16.msra.mxu0 %v5802
      %6012 = vmatprep.subr.bf16.mxu0 0
      %6013 = vmatpush1.bf16.msra.mxu0 %v5803
      %6014 = vmatprep.mubr.bf16.mxu0 %v5185
      %6015 = vmatmul.mubr.bf16.gmra.mrb[0].mxu0 %v5141
      %v6016 = vpop.f32.mrb[0].mxu0
      %v6017 = vadd.f32 %v5976, %v6016
      %v6018 = vpop.f32.mrb[0].mxu0
      %v6019 = vpop.f32.mrb[0].mxu0
      %v6020 = vadd.f32 %v5979, %v6019
      %v6021 = vpop.f32.mrb[0].mxu0
      %6022 = vdwg.mxu0
      %6023 = vmatprep.subr.bf16.mxu0 0
      %6024 = vmatpush1.bf16.msra.mxu0 %v5804
      %6025 = vmatprep.subr.bf16.mxu0 0
      %6026 = vmatpush1.bf16.msra.mxu0 %v5805
      %6027 = vmatprep.subr.bf16.mxu0 0
      %6028 = vmatpush1.bf16.msra.mxu0 %v5806
      %6029 = vmatprep.subr.bf16.mxu0 0
      %6030 = vmatpush1.bf16.msra.mxu0 %v5807
      %6031 = vmatprep.subr.bf16.mxu0 0
      %6032 = vmatpush1.bf16.msra.mxu0 %v5808
      %6033 = vmatprep.subr.bf16.mxu0 0
      %6034 = vmatpush1.bf16.msra.mxu0 %v5809
      %6035 = vmatprep.subr.bf16.mxu0 0
      %6036 = vmatpush1.bf16.msra.mxu0 %v5810
      %6037 = vmatprep.subr.bf16.mxu0 0
      %6038 = vmatpush1.bf16.msra.mxu0 %v5811
      %6039 = vmatprep.subr.bf16.mxu0 0
      %6040 = vmatpush1.bf16.msra.mxu0 %v5812
      %6041 = vmatprep.subr.bf16.mxu0 0
      %6042 = vmatpush1.bf16.msra.mxu0 %v5813
      %6043 = vmatprep.subr.bf16.mxu0 0
      %6044 = vmatpush1.bf16.msra.mxu0 %v5814
      %6045 = vmatprep.subr.bf16.mxu0 0
      %6046 = vmatpush1.bf16.msra.mxu0 %v5815
      %6047 = vmatprep.subr.bf16.mxu0 0
      %6048 = vmatpush1.bf16.msra.mxu0 %v5816
      %6049 = vmatprep.subr.bf16.mxu0 0
      %6050 = vmatpush1.bf16.msra.mxu0 %v5817
      %6051 = vmatprep.subr.bf16.mxu0 0
      %6052 = vmatpush1.bf16.msra.mxu0 %v5818
      %6053 = vmatprep.subr.bf16.mxu0 0
      %6054 = vmatpush1.bf16.msra.mxu0 %v5819
      %6055 = vmatprep.mubr.bf16.mxu0 %v5271
      %6056 = vmatmul.mubr.bf16.gmra.mrb[0].mxu0 %v5228
      %v6057 = vpop.f32.mrb[0].mxu0
      %v6058 = vadd.f32 %v6017, %v6057
      %v6059 = vpop.f32.mrb[0].mxu0
      %v6060 = vpop.f32.mrb[0].mxu0
      %v6061 = vadd.f32 %v6020, %v6060
      %v6062 = vpop.f32.mrb[0].mxu0
      %6063 = vdwg.mxu0
      %6064 = vmatprep.subr.bf16.mxu0 0
      %6065 = vmatpush1.bf16.msra.mxu0 %v5820
      %6066 = vmatprep.subr.bf16.mxu0 0
      %6067 = vmatpush1.bf16.msra.mxu0 %v5821
      %6068 = vmatprep.subr.bf16.mxu0 0
      %6069 = vmatpush1.bf16.msra.mxu0 %v5822
      %6070 = vmatprep.subr.bf16.mxu0 0
      %6071 = vmatpush1.bf16.msra.mxu0 %v5823
      %6072 = vmatprep.subr.bf16.mxu0 0
      %6073 = vmatpush1.bf16.msra.mxu0 %v5824
      %6074 = vmatprep.subr.bf16.mxu0 0
      %6075 = vmatpush1.bf16.msra.mxu0 %v5825
      %6076 = vmatprep.subr.bf16.mxu0 0
      %6077 = vmatpush1.bf16.msra.mxu0 %v5826
      %6078 = vmatprep.subr.bf16.mxu0 0
      %6079 = vmatpush1.bf16.msra.mxu0 %v5827
      %6080 = vmatprep.subr.bf16.mxu0 0
      %6081 = vmatpush1.bf16.msra.mxu0 0
      %6082 = vmatprep.subr.bf16.mxu0 0
      %6083 = vmatpush1.bf16.msra.mxu0 0
      %6084 = vmatprep.subr.bf16.mxu0 0
      %6085 = vmatpush1.bf16.msra.mxu0 0
      %6086 = vmatprep.subr.bf16.mxu0 0
      %6087 = vmatpush1.bf16.msra.mxu0 0
      %6088 = vmatprep.subr.bf16.mxu0 0
      %6089 = vmatpush1.bf16.msra.mxu0 0
      %6090 = vmatprep.subr.bf16.mxu0 0
      %6091 = vmatpush1.bf16.msra.mxu0 0
      %6092 = vmatprep.subr.bf16.mxu0 0
      %6093 = vmatpush1.bf16.msra.mxu0 0
      %6094 = vmatprep.subr.bf16.mxu0 0
      %6095 = vmatpush1.bf16.msra.mxu0 0
      %6096 = vmatprep.mubr.bf16.mxu0 0
      %6097 = vmatmul.mubr.bf16.gmra.mrb[0].mxu0 %v5315
      %v6098 = vpop.f32.mrb[0].mxu0
      %v6099 = vadd.f32 %v6058, %v6098
      %v6100 = vpop.f32.mrb[0].mxu0
      %v6101 = vpop.f32.mrb[0].mxu0
      %v6102 = vadd.f32 %v6061, %v6101
      %v6103 = vpop.f32.mrb[0].mxu0
      %6104 = vdwg.mxu0
      %v6105 = vmax.f32 %v6099, 0.0
      %v6106 = vmax.f32 %v6102, 0.0
      %v6107 = vpack.c.bf16 %v6106, %v6105
      %v6109 = vshrl.u32 %v6107, 16
      %v6113 = vrot.slane %v6107, 1
      %v6115 = vrot.slane %v6109, 1
      %v6117 = vrot.slane %v6107, 2
      %v6119 = vrot.slane %v6109, 2
      %v6121 = vrot.slane %v6107, 3
      %v6123 = vrot.slane %v6109, 3
      %v6125 = vrot.slane %v6107, 4
      %v6127 = vld [vmem:[%s7] sm:$0xff]
      %v6128 = vld [vmem:[%s7 + $0x8] sm:$0xff]
      %v6129 = vld [vmem:[%s7 + $0x10] sm:$0xff]
      %v6130 = vld [vmem:[%s7 + $0x18] sm:$0xff]
      %v6131 = vld [vmem:[%s7 + $0x20] sm:$0xff]
      %v6132 = vld [vmem:[%s7 + $0x28] sm:$0xff]
      %v6133 = vld [vmem:[%s7 + $0x30] sm:$0xff]
      %v6134 = vld [vmem:[%s7 + $0x38] sm:$0xff]
      %v6135 = vld [vmem:[%s7 + $0x40] sm:$0xff]
      %v6136 = vld [vmem:[%s7 + $0x48] sm:$0xff]
      %v6137 = vld [vmem:[%s7 + $0x50] sm:$0xff]
      %v6138 = vld [vmem:[%s7 + $0x58] sm:$0xff]
      %v6139 = vld [vmem:[%s7 + $0x60] sm:$0xff]
      %v6140 = vld [vmem:[%s7 + $0x68] sm:$0xff]
      %v6141 = vld [vmem:[%s7 + $0x70] sm:$0xff]
      %v6142 = vld [vmem:[%s7 + $0x78] sm:$0xff]
      %v6143 = vld [vmem:[%s7 + $0x80] sm:$0xff]
      %v6144 = vld [vmem:[%s7 + $0x88] sm:$0xff]
      %v6145 = vld [vmem:[%s7 + $0x90] sm:$0xff]
      %v6146 = vld [vmem:[%s7 + $0x98] sm:$0xff]
      %v6147 = vld [vmem:[%s7 + $0xa0] sm:$0xff]
      %v6148 = vld [vmem:[%s7 + $0xa8] sm:$0xff]
      %v6149 = vld [vmem:[%s7 + $0xb0] sm:$0xff]
      %v6150 = vld [vmem:[%s7 + $0xb8] sm:$0xff]
      %v6151 = vld [vmem:[%s7 + $0xc0] sm:$0xff]
      %v6152 = vld [vmem:[%s7 + $0xc8] sm:$0xff]
      %v6153 = vld [vmem:[%s7 + $0xd0] sm:$0xff]
      %v6154 = vld [vmem:[%s7 + $0xd8] sm:$0xff]
      %v6155 = vld [vmem:[%s7 + $0xe0] sm:$0xff]
      %v6156 = vld [vmem:[%s7 + $0xe8] sm:$0xff]
      %v6157 = vld [vmem:[%s7 + $0xf0] sm:$0xff]
      %v6158 = vld [vmem:[%s7 + $0xf8] sm:$0xff]
      %v6159 = vld [vmem:[%s7 + $0x100] sm:$0xff]
      %v6160 = vld [vmem:[%s7 + $0x108] sm:$0xff]
      %v6161 = vld [vmem:[%s7 + $0x110] sm:$0xff]
      %v6162 = vld [vmem:[%s7 + $0x118] sm:$0xff]
      %v6163 = vld [vmem:[%s7 + $0x120] sm:$0xff]
      %v6164 = vld [vmem:[%s7 + $0x128] sm:$0xff]
      %v6165 = vld [vmem:[%s7 + $0x130] sm:$0xff]
      %v6166 = vld [vmem:[%s7 + $0x138] sm:$0xff]
      %v6167 = vld [vmem:[%s7 + $0x140] sm:$0xff]
      %v6168 = vld [vmem:[%s7 + $0x148] sm:$0xff]
      %v6169 = vld [vmem:[%s7 + $0x150] sm:$0xff]
      %v6170 = vld [vmem:[%s7 + $0x158] sm:$0xff]
      %v6171 = vld [vmem:[%s7 + $0x160] sm:$0xff]
      %v6172 = vld [vmem:[%s7 + $0x168] sm:$0xff]
      %v6173 = vld [vmem:[%s7 + $0x170] sm:$0xff]
      %v6174 = vld [vmem:[%s7 + $0x178] sm:$0xff]
      %v6175 = vld [vmem:[%s7 + $0x180] sm:$0xff]
      %v6176 = vld [vmem:[%s7 + $0x188] sm:$0xff]
      %v6177 = vld [vmem:[%s7 + $0x190] sm:$0xff]
      %v6178 = vld [vmem:[%s7 + $0x198] sm:$0xff]
      %v6179 = vld [vmem:[%s7 + $0x1a0] sm:$0xff]
      %v6180 = vld [vmem:[%s7 + $0x1a8] sm:$0xff]
      %v6181 = vld [vmem:[%s7 + $0x1b0] sm:$0xff]
      %v6182 = vld [vmem:[%s7 + $0x1b8] sm:$0xff]
      %v6183 = vld [vmem:[%s7 + $0x1c0] sm:$0xff]
      %v6184 = vld [vmem:[%s7 + $0x1c8] sm:$0xff]
      %v6185 = vld [vmem:[%s7 + $0x1d0] sm:$0xff]
      %v6186 = vld [vmem:[%s7 + $0x1d8] sm:$0xff]
      %v6187 = vld [vmem:[%s7 + $0x1e0] sm:$0xff]
      %v6188 = vld [vmem:[%s7 + $0x1e8] sm:$0xff]
      %v6189 = vld [vmem:[%s7 + $0x1f0] sm:$0xff]
      %v6190 = vld [vmem:[%s7 + $0x1f8] sm:$0xff]
      %v6191 = vld [vmem:[%s7 + $0x200] sm:$0xff]
      %v6192 = vld [vmem:[%s7 + $0x208] sm:$0xff]
      %v6193 = vld [vmem:[%s7 + $0x210] sm:$0xff]
      %v6194 = vld [vmem:[%s7 + $0x218] sm:$0xff]
      %v6195 = vld [vmem:[%s7 + $0x220] sm:$0xff]
      %v6196 = vld [vmem:[%s7 + $0x228] sm:$0xff]
      %v6197 = vld [vmem:[%s7 + $0x230] sm:$0xff]
      %v6198 = vld [vmem:[%s7 + $0x238] sm:$0xff]
      %v6199 = vld [vmem:[%s7 + $0x240] sm:$0xff]
      %v6200 = vld [vmem:[%s7 + $0x248] sm:$0xff]
      %v6201 = vld [vmem:[%s7 + $0x250] sm:$0xff]
      %v6202 = vld [vmem:[%s7 + $0x258] sm:$0xff]
      %v6203 = vld [vmem:[%s7 + $0x260] sm:$0xff]
      %v6204 = vld [vmem:[%s7 + $0x268] sm:$0xff]
      %v6205 = vld [vmem:[%s7 + $0x270] sm:$0xff]
      %v6206 = vld [vmem:[%s7 + $0x278] sm:$0xff]
      %v6207 = vld [vmem:[%s7 + $0x280] sm:$0xff]
      %v6208 = vld [vmem:[%s7 + $0x288] sm:$0xff]
      %v6209 = vld [vmem:[%s7 + $0x290] sm:$0xff]
      %v6210 = vld [vmem:[%s7 + $0x298] sm:$0xff]
      %v6211 = vld [vmem:[%s7 + $0x2a0] sm:$0xff]
      %v6212 = vld [vmem:[%s7 + $0x2a8] sm:$0xff]
      %v6213 = vld [vmem:[%s7 + $0x2b0] sm:$0xff]
      %v6214 = vld [vmem:[%s7 + $0x2b8] sm:$0xff]
      %v6215 = vld [vmem:[%s7 + $0x2c0] sm:$0xff]
      %v6216 = vld [vmem:[%s7 + $0x2c8] sm:$0xff]
      %v6217 = vld [vmem:[%s7 + $0x2d0] sm:$0xff]
      %v6218 = vld [vmem:[%s7 + $0x2d8] sm:$0xff]
      %v6219 = vld [vmem:[%s7 + $0x2e0] sm:$0xff]
      %v6220 = vld [vmem:[%s7 + $0x2e8] sm:$0xff]
      %v6221 = vld [vmem:[%s7 + $0x2f0] sm:$0xff]
      %v6222 = vld [vmem:[%s7 + $0x2f8] sm:$0xff]
      %v6223 = vld [vmem:[%s7 + $0x300] sm:$0xff]
      %v6224 = vld [vmem:[%s7 + $0x308] sm:$0xff]
      %v6225 = vld [vmem:[%s7 + $0x310] sm:$0xff]
      %v6226 = vld [vmem:[%s7 + $0x318] sm:$0xff]
      %v6227 = vld [vmem:[%s7 + $0x320] sm:$0xff]
      %v6228 = vld [vmem:[%s7 + $0x328] sm:$0xff]
      %v6229 = vld [vmem:[%s7 + $0x330] sm:$0xff]
      %v6230 = vld [vmem:[%s7 + $0x338] sm:$0xff]
      %v6231 = vld [vmem:[%s7 + $0x340] sm:$0xff]
      %v6232 = vld [vmem:[%s7 + $0x348] sm:$0xff]
      %v6233 = vld [vmem:[%s7 + $0x350] sm:$0xff]
      %v6234 = vld [vmem:[%s7 + $0x358] sm:$0xff]
      %v6235 = vld [vmem:[%s7 + $0x360] sm:$0xff]
      %v6236 = vld [vmem:[%s7 + $0x368] sm:$0xff]
      %v6237 = vld [vmem:[%s7 + $0x370] sm:$0xff]
      %v6238 = vld [vmem:[%s7 + $0x378] sm:$0xff]
      %v6239 = vld [vmem:[%s7 + $0x380] sm:$0xff]
      %v6240 = vld [vmem:[%s7 + $0x388] sm:$0xff]
      %v6241 = vld [vmem:[%s7 + $0x390] sm:$0xff]
      %v6242 = vld [vmem:[%s7 + $0x398] sm:$0xff]
      %v6243 = vld [vmem:[%s7 + $0x3a0] sm:$0xff]
      %v6244 = vld [vmem:[%s7 + $0x3a8] sm:$0xff]
      %v6245 = vld [vmem:[%s7 + $0x3b0] sm:$0xff]
      %v6246 = vld [vmem:[%s7 + $0x3b8] sm:$0xff]
      %v6247 = vld [vmem:[%s7 + $0x3c0] sm:$0xff]
      %v6248 = vld [vmem:[%s7 + $0x3c8] sm:$0xff]
      %v6249 = vld [vmem:[%s7 + $0x3d0] sm:$0xff]
      %v6250 = vld [vmem:[%s7 + $0x3d8] sm:$0xff]
      %v6251 = vld [vmem:[%s7 + $0x3e0] sm:$0xff]
      %v6252 = vld [vmem:[%s7 + $0x3e8] sm:$0xff]
      %v6253 = vld [vmem:[%s7 + $0x3f0] sm:$0xff]
      %v6254 = vld [vmem:[%s7 + $0x3f8] sm:$0xff]
      %v6255 = vld [vmem:[%s7 + $0x400] sm:$0xff]
      %v6256 = vld [vmem:[%s7 + $0x408] sm:$0xff]
      %v6257 = vld [vmem:[%s7 + $0x410] sm:$0xff]
      %v6258 = vld [vmem:[%s7 + $0x418] sm:$0xff]
      %v6259 = vld [vmem:[%s7 + $0x420] sm:$0xff]
      %v6260 = vld [vmem:[%s7 + $0x428] sm:$0xff]
      %v6261 = vld [vmem:[%s7 + $0x430] sm:$0xff]
      %v6262 = vld [vmem:[%s7 + $0x438] sm:$0xff]
      %v6263 = vld [vmem:[%s7 + $0x440] sm:$0xff]
      %v6264 = vld [vmem:[%s7 + $0x448] sm:$0xff]
      %v6265 = vld [vmem:[%s7 + $0x450] sm:$0xff]
      %v6266 = vld [vmem:[%s7 + $0x458] sm:$0xff]
      %v6267 = vld [vmem:[%s7 + $0x460] sm:$0xff]
      %v6268 = vld [vmem:[%s7 + $0x468] sm:$0xff]
      %v6269 = vld [vmem:[%s7 + $0x470] sm:$0xff]
      %v6270 = vld [vmem:[%s7 + $0x478] sm:$0xff]
      %v6271 = vld [vmem:[%s7 + $0x480] sm:$0xff]
      %v6272 = vld [vmem:[%s7 + $0x488] sm:$0xff]
      %v6273 = vld [vmem:[%s7 + $0x490] sm:$0xff]
      %v6274 = vld [vmem:[%s7 + $0x498] sm:$0xff]
      %v6275 = vld [vmem:[%s7 + $0x4a0] sm:$0xff]
      %v6276 = vld [vmem:[%s7 + $0x4a8] sm:$0xff]
      %v6277 = vld [vmem:[%s7 + $0x4b0] sm:$0xff]
      %v6278 = vld [vmem:[%s7 + $0x4b8] sm:$0xff]
      %v6279 = vld [vmem:[%s7 + $0x4c0] sm:$0xff]
      %v6280 = vld [vmem:[%s7 + $0x4c8] sm:$0xff]
      %v6281 = vld [vmem:[%s7 + $0x4d0] sm:$0xff]
      %v6282 = vld [vmem:[%s7 + $0x4d8] sm:$0xff]
      %v6283 = vld [vmem:[%s7 + $0x4e0] sm:$0xff]
      %v6284 = vld [vmem:[%s7 + $0x4e8] sm:$0xff]
      %v6285 = vld [vmem:[%s7 + $0x4f0] sm:$0xff]
      %v6286 = vld [vmem:[%s7 + $0x4f8] sm:$0xff]
      %v6287 = vld [vmem:[%s7 + $0x500] sm:$0xff]
      %v6288 = vld [vmem:[%s7 + $0x508] sm:$0xff]
      %v6289 = vld [vmem:[%s7 + $0x510] sm:$0xff]
      %v6290 = vld [vmem:[%s7 + $0x518] sm:$0xff]
      %v6291 = vld [vmem:[%s7 + $0x520] sm:$0xff]
      %v6292 = vld [vmem:[%s7 + $0x528] sm:$0xff]
      %v6293 = vld [vmem:[%s7 + $0x530] sm:$0xff]
      %v6294 = vld [vmem:[%s7 + $0x538] sm:$0xff]
      %v6295 = vld [vmem:[%s7 + $0x540] sm:$0xff]
      %v6296 = vld [vmem:[%s7 + $0x548] sm:$0xff]
      %v6297 = vld [vmem:[%s7 + $0x550] sm:$0xff]
      %v6298 = vld [vmem:[%s7 + $0x558] sm:$0xff]
      %v6299 = vld [vmem:[%s7 + $0x560] sm:$0xff]
      %v6300 = vld [vmem:[%s7 + $0x568] sm:$0xff]
      %v6301 = vld [vmem:[%s7 + $0x570] sm:$0xff]
      %v6302 = vld [vmem:[%s7 + $0x578] sm:$0xff]
      %v6303 = vld [vmem:[%s7 + $0x580] sm:$0xff]
      %v6304 = vld [vmem:[%s7 + $0x588] sm:$0xff]
      %v6305 = vld [vmem:[%s7 + $0x590] sm:$0xff]
      %v6306 = vld [vmem:[%s7 + $0x598] sm:$0xff]
      %v6307 = vld [vmem:[%s7 + $0x5a0] sm:$0xff]
      %v6308 = vld [vmem:[%s7 + $0x5a8] sm:$0xff]
      %v6309 = vld [vmem:[%s7 + $0x5b0] sm:$0xff]
      %v6310 = vld [vmem:[%s7 + $0x5b8] sm:$0xff]
      %v6311 = vld [vmem:[%s7 + $0x5c0] sm:$0xff]
      %v6312 = vld [vmem:[%s7 + $0x5c8] sm:$0xff]
      %v6313 = vld [vmem:[%s7 + $0x5d0] sm:$0xff]
      %v6314 = vld [vmem:[%s7 + $0x5d8] sm:$0xff]
      %v6315 = vld [vmem:[%s7 + $0x5e0] sm:$0xff]
      %v6316 = vld [vmem:[%s7 + $0x5e8] sm:$0xff]
      %v6317 = vld [vmem:[%s7 + $0x5f0] sm:$0xff]
      %v6318 = vld [vmem:[%s7 + $0x5f8] sm:$0xff]
      %v6319 = vld [vmem:[%s7 + $0x600] sm:$0xff]
      %v6320 = vld [vmem:[%s7 + $0x608] sm:$0xff]
      %v6321 = vld [vmem:[%s7 + $0x610] sm:$0xff]
      %v6322 = vld [vmem:[%s7 + $0x618] sm:$0xff]
      %v6323 = vld [vmem:[%s7 + $0x620] sm:$0xff]
      %v6324 = vld [vmem:[%s7 + $0x628] sm:$0xff]
      %v6325 = vld [vmem:[%s7 + $0x630] sm:$0xff]
      %v6326 = vld [vmem:[%s7 + $0x638] sm:$0xff]
      %v6327 = vld [vmem:[%s7 + $0x640] sm:$0xff]
      %v6328 = vld [vmem:[%s7 + $0x648] sm:$0xff]
      %v6329 = vld [vmem:[%s7 + $0x650] sm:$0xff]
      %v6330 = vld [vmem:[%s7 + $0x658] sm:$0xff]
      %v6331 = vld [vmem:[%s7 + $0x660] sm:$0xff]
      %v6332 = vld [vmem:[%s7 + $0x668] sm:$0xff]
      %v6333 = vld [vmem:[%s7 + $0x670] sm:$0xff]
      %v6334 = vld [vmem:[%s7 + $0x678] sm:$0xff]
      %v6335 = vld [vmem:[%s7 + $0x680] sm:$0xff]
      %v6336 = vld [vmem:[%s7 + $0x688] sm:$0xff]
      %v6337 = vld [vmem:[%s7 + $0x690] sm:$0xff]
      %v6338 = vld [vmem:[%s7 + $0x698] sm:$0xff]
      %v6339 = vld [vmem:[%s7 + $0x6a0] sm:$0xff]
      %v6340 = vld [vmem:[%s7 + $0x6a8] sm:$0xff]
      %v6341 = vld [vmem:[%s7 + $0x6b0] sm:$0xff]
      %v6342 = vld [vmem:[%s7 + $0x6b8] sm:$0xff]
      %v6343 = vld [vmem:[%s7 + $0x6c0] sm:$0xff]
      %v6344 = vld [vmem:[%s7 + $0x6c8] sm:$0xff]
      %v6345 = vld [vmem:[%s7 + $0x6d0] sm:$0xff]
      %v6346 = vld [vmem:[%s7 + $0x6d8] sm:$0xff]
      %v6347 = vld [vmem:[%s7 + $0x6e0] sm:$0xff]
      %v6348 = vld [vmem:[%s7 + $0x6e8] sm:$0xff]
      %v6349 = vld [vmem:[%s7 + $0x6f0] sm:$0xff]
      %v6350 = vld [vmem:[%s7 + $0x6f8] sm:$0xff]
      %v6351 = vld [vmem:[%s7 + $0x700] sm:$0xff]
      %v6352 = vld [vmem:[%s7 + $0x708] sm:$0xff]
      %v6353 = vld [vmem:[%s7 + $0x710] sm:$0xff]
      %v6354 = vld [vmem:[%s7 + $0x718] sm:$0xff]
      %v6355 = vld [vmem:[%s7 + $0x720] sm:$0xff]
      %v6356 = vld [vmem:[%s7 + $0x728] sm:$0xff]
      %v6357 = vld [vmem:[%s7 + $0x730] sm:$0xff]
      %v6358 = vld [vmem:[%s7 + $0x738] sm:$0xff]
      %v6359 = vld [vmem:[%s7 + $0x740] sm:$0xff]
      %v6360 = vld [vmem:[%s7 + $0x748] sm:$0xff]
      %v6361 = vld [vmem:[%s7 + $0x750] sm:$0xff]
      %v6362 = vld [vmem:[%s7 + $0x758] sm:$0xff]
      %v6363 = vld [vmem:[%s7 + $0x760] sm:$0xff]
      %v6364 = vld [vmem:[%s7 + $0x768] sm:$0xff]
      %v6365 = vld [vmem:[%s7 + $0x770] sm:$0xff]
      %v6366 = vld [vmem:[%s7 + $0x778] sm:$0xff]
      %v6367 = vld [vmem:[%s7 + $0x780] sm:$0xff]
      %v6368 = vld [vmem:[%s7 + $0x788] sm:$0xff]
      %v6369 = vld [vmem:[%s7 + $0x790] sm:$0xff]
      %v6370 = vld [vmem:[%s7 + $0x798] sm:$0xff]
      %v6371 = vld [vmem:[%s7 + $0x7a0] sm:$0xff]
      %v6372 = vld [vmem:[%s7 + $0x7a8] sm:$0xff]
      %v6373 = vld [vmem:[%s7 + $0x7b0] sm:$0xff]
      %v6374 = vld [vmem:[%s7 + $0x7b8] sm:$0xff]
      %v6375 = vld [vmem:[%s7 + $0x7c0] sm:$0xff]
      %v6376 = vld [vmem:[%s7 + $0x7c8] sm:$0xff]
      %v6377 = vld [vmem:[%s7 + $0x7d0] sm:$0xff]
      %v6378 = vld [vmem:[%s7 + $0x7d8] sm:$0xff]
      %v6379 = vld [vmem:[%s7 + $0x7e0] sm:$0xff]
      %v6380 = vld [vmem:[%s7 + $0x7e8] sm:$0xff]
      %v6381 = vld [vmem:[%s7 + $0x7f0] sm:$0xff]
      %v6382 = vld [vmem:[%s7 + $0x7f8] sm:$0xff]
      %v6383 = vld [vmem:[%s7 + $0x800] sm:$0xff]
      %v6384 = vld [vmem:[%s7 + $0x808] sm:$0xff]
      %v6385 = vld [vmem:[%s7 + $0x810] sm:$0xff]
      %v6386 = vld [vmem:[%s7 + $0x818] sm:$0xff]
      %v6387 = vld [vmem:[%s7 + $0x820] sm:$0xff]
      %v6388 = vld [vmem:[%s7 + $0x828] sm:$0xff]
      %v6389 = vld [vmem:[%s7 + $0x830] sm:$0xff]
      %v6390 = vld [vmem:[%s7 + $0x838] sm:$0xff]
      %v6391 = vld [vmem:[%s7 + $0x840] sm:$0xff]
      %v6392 = vld [vmem:[%s7 + $0x848] sm:$0xff]
      %v6393 = vld [vmem:[%s7 + $0x850] sm:$0xff]
      %v6394 = vld [vmem:[%s7 + $0x858] sm:$0xff]
      %v6395 = vld [vmem:[%s7 + $0x860] sm:$0xff]
      %v6396 = vld [vmem:[%s7 + $0x868] sm:$0xff]
      %v6397 = vld [vmem:[%s7 + $0x870] sm:$0xff]
      %v6398 = vld [vmem:[%s7 + $0x878] sm:$0xff]
      %v6399 = vld [vmem:[%s7 + $0x880] sm:$0xff]
      %v6400 = vld [vmem:[%s7 + $0x888] sm:$0xff]
      %v6401 = vld [vmem:[%s7 + $0x890] sm:$0xff]
      %v6402 = vld [vmem:[%s7 + $0x898] sm:$0xff]
      %v6403 = vld [vmem:[%s7 + $0x8a0] sm:$0xff]
      %v6404 = vld [vmem:[%s7 + $0x8a8] sm:$0xff]
      %v6405 = vld [vmem:[%s7 + $0x8b0] sm:$0xff]
      %v6406 = vld [vmem:[%s7 + $0x8b8] sm:$0xff]
      %v6407 = vld [vmem:[%s7 + $0x8c0] sm:$0xff]
      %v6408 = vld [vmem:[%s7 + $0x8c8] sm:$0xff]
      %v6409 = vld [vmem:[%s7 + $0x8d0] sm:$0xff]
      %v6410 = vld [vmem:[%s7 + $0x8d8] sm:$0xff]
      %v6411 = vld [vmem:[%s7 + $0x8e0] sm:$0xff]
      %v6412 = vld [vmem:[%s7 + $0x8e8] sm:$0xff]
      %v6413 = vld [vmem:[%s7 + $0x8f0] sm:$0xff]
      %v6414 = vld [vmem:[%s7 + $0x8f8] sm:$0xff]
      %v6415 = vld [vmem:[%s8] sm:$0xf]
      %v6704 = vunpack.c.l.b16 %v6127
      %v6705 = vunpack.c.h.b16 %v6127
      %v6706 = vunpack.c.l.b16 %v6128
      %v6707 = vunpack.c.h.b16 %v6128
      %v6708 = vunpack.c.l.b16 %v6129
      %v6709 = vunpack.c.h.b16 %v6129
      %v6710 = vunpack.c.l.b16 %v6130
      %v6711 = vunpack.c.h.b16 %v6130
      %v6712 = vunpack.c.l.b16 %v6131
      %v6713 = vunpack.c.h.b16 %v6131
      %v6714 = vunpack.c.l.b16 %v6132
      %v6715 = vunpack.c.h.b16 %v6132
      %v6716 = vunpack.c.l.b16 %v6133
      %v6717 = vunpack.c.h.b16 %v6133
      %v6718 = vunpack.c.l.b16 %v6134
      %v6719 = vunpack.c.h.b16 %v6134
      %v6720 = vunpack.c.l.b16 %v6135
      %v6721 = vunpack.c.h.b16 %v6135
      %v6722 = vunpack.c.l.b16 %v6136
      %v6723 = vunpack.c.h.b16 %v6136
      %v6724 = vunpack.c.l.b16 %v6137
      %v6725 = vunpack.c.h.b16 %v6137
      %v6726 = vunpack.c.l.b16 %v6138
      %v6727 = vunpack.c.h.b16 %v6138
      %v6728 = vunpack.c.l.b16 %v6139
      %v6729 = vunpack.c.h.b16 %v6139
      %v6730 = vunpack.c.l.b16 %v6140
      %v6731 = vunpack.c.h.b16 %v6140
      %v6732 = vunpack.c.l.b16 %v6141
      %v6733 = vunpack.c.h.b16 %v6141
      %v6734 = vunpack.c.l.b16 %v6142
      %v6735 = vunpack.c.h.b16 %v6142
      %v6736 = vunpack.c.l.b16 %v6143
      %v6737 = vunpack.c.h.b16 %v6143
      %v6738 = vunpack.c.l.b16 %v6144
      %v6739 = vunpack.c.h.b16 %v6144
      %v6740 = vunpack.c.l.b16 %v6145
      %v6741 = vunpack.c.h.b16 %v6145
      %v6742 = vunpack.c.l.b16 %v6146
      %v6743 = vunpack.c.h.b16 %v6146
      %v6744 = vunpack.c.l.b16 %v6147
      %v6745 = vunpack.c.h.b16 %v6147
      %v6746 = vunpack.c.l.b16 %v6148
      %v6747 = vunpack.c.h.b16 %v6148
      %v6748 = vunpack.c.l.b16 %v6149
      %v6749 = vunpack.c.h.b16 %v6149
      %v6750 = vunpack.c.l.b16 %v6150
      %v6751 = vunpack.c.h.b16 %v6150
      %v6752 = vunpack.c.l.b16 %v6151
      %v6753 = vunpack.c.h.b16 %v6151
      %v6754 = vunpack.c.l.b16 %v6152
      %v6755 = vunpack.c.h.b16 %v6152
      %v6756 = vunpack.c.l.b16 %v6153
      %v6757 = vunpack.c.h.b16 %v6153
      %v6758 = vunpack.c.l.b16 %v6154
      %v6759 = vunpack.c.h.b16 %v6154
      %v6760 = vunpack.c.l.b16 %v6155
      %v6761 = vunpack.c.h.b16 %v6155
      %v6762 = vunpack.c.l.b16 %v6156
      %v6763 = vunpack.c.h.b16 %v6156
      %v6764 = vunpack.c.l.b16 %v6157
      %v6765 = vunpack.c.h.b16 %v6157
      %v6766 = vunpack.c.l.b16 %v6158
      %v6767 = vunpack.c.h.b16 %v6158
      %v6768 = vunpack.c.l.b16 %v6159
      %v6769 = vunpack.c.h.b16 %v6159
      %v6770 = vunpack.c.l.b16 %v6160
      %v6771 = vunpack.c.h.b16 %v6160
      %v6772 = vunpack.c.l.b16 %v6161
      %v6773 = vunpack.c.h.b16 %v6161
      %v6774 = vunpack.c.l.b16 %v6162
      %v6775 = vunpack.c.h.b16 %v6162
      %v6776 = vunpack.c.l.b16 %v6163
      %v6777 = vunpack.c.h.b16 %v6163
      %v6778 = vunpack.c.l.b16 %v6164
      %v6779 = vunpack.c.h.b16 %v6164
      %v6780 = vunpack.c.l.b16 %v6165
      %v6781 = vunpack.c.h.b16 %v6165
      %v6782 = vunpack.c.l.b16 %v6166
      %v6783 = vunpack.c.h.b16 %v6166
      %v6784 = vunpack.c.l.b16 %v6167
      %v6785 = vunpack.c.h.b16 %v6167
      %v6786 = vunpack.c.l.b16 %v6168
      %v6787 = vunpack.c.h.b16 %v6168
      %v6788 = vunpack.c.l.b16 %v6169
      %v6789 = vunpack.c.h.b16 %v6169
      %v6790 = vunpack.c.l.b16 %v6170
      %v6791 = vunpack.c.h.b16 %v6170
      %v6792 = vunpack.c.l.b16 %v6171
      %v6793 = vunpack.c.h.b16 %v6171
      %v6794 = vunpack.c.l.b16 %v6172
      %v6795 = vunpack.c.h.b16 %v6172
      %v6796 = vunpack.c.l.b16 %v6173
      %v6797 = vunpack.c.h.b16 %v6173
      %v6798 = vunpack.c.l.b16 %v6174
      %v6799 = vunpack.c.h.b16 %v6174
      %v6800 = vunpack.c.l.b16 %v6175
      %v6801 = vunpack.c.h.b16 %v6175
      %v6802 = vunpack.c.l.b16 %v6176
      %v6803 = vunpack.c.h.b16 %v6176
      %v6804 = vunpack.c.l.b16 %v6177
      %v6805 = vunpack.c.h.b16 %v6177
      %v6806 = vunpack.c.l.b16 %v6178
      %v6807 = vunpack.c.h.b16 %v6178
      %v6808 = vunpack.c.l.b16 %v6179
      %v6809 = vunpack.c.h.b16 %v6179
      %v6810 = vunpack.c.l.b16 %v6180
      %v6811 = vunpack.c.h.b16 %v6180
      %v6812 = vunpack.c.l.b16 %v6181
      %v6813 = vunpack.c.h.b16 %v6181
      %v6814 = vunpack.c.l.b16 %v6182
      %v6815 = vunpack.c.h.b16 %v6182
      %v6816 = vunpack.c.l.b16 %v6183
      %v6817 = vunpack.c.h.b16 %v6183
      %v6818 = vunpack.c.l.b16 %v6184
      %v6819 = vunpack.c.h.b16 %v6184
      %v6820 = vunpack.c.l.b16 %v6185
      %v6821 = vunpack.c.h.b16 %v6185
      %v6822 = vunpack.c.l.b16 %v6186
      %v6823 = vunpack.c.h.b16 %v6186
      %v6824 = vunpack.c.l.b16 %v6187
      %v6825 = vunpack.c.h.b16 %v6187
      %v6826 = vunpack.c.l.b16 %v6188
      %v6827 = vunpack.c.h.b16 %v6188
      %v6828 = vunpack.c.l.b16 %v6189
      %v6829 = vunpack.c.h.b16 %v6189
      %v6830 = vunpack.c.l.b16 %v6190
      %v6831 = vunpack.c.h.b16 %v6190
      %v6832 = vunpack.c.l.b16 %v6191
      %v6833 = vunpack.c.h.b16 %v6191
      %v6834 = vunpack.c.l.b16 %v6192
      %v6835 = vunpack.c.h.b16 %v6192
      %v6836 = vunpack.c.l.b16 %v6193
      %v6837 = vunpack.c.h.b16 %v6193
      %v6838 = vunpack.c.l.b16 %v6194
      %v6839 = vunpack.c.h.b16 %v6194
      %v6840 = vunpack.c.l.b16 %v6195
      %v6841 = vunpack.c.h.b16 %v6195
      %v6842 = vunpack.c.l.b16 %v6196
      %v6843 = vunpack.c.h.b16 %v6196
      %v6844 = vunpack.c.l.b16 %v6197
      %v6845 = vunpack.c.h.b16 %v6197
      %v6846 = vunpack.c.l.b16 %v6198
      %v6847 = vunpack.c.h.b16 %v6198
      %v6848 = vunpack.c.l.b16 %v6199
      %v6849 = vunpack.c.h.b16 %v6199
      %v6850 = vunpack.c.l.b16 %v6200
      %v6851 = vunpack.c.h.b16 %v6200
      %v6852 = vunpack.c.l.b16 %v6201
      %v6853 = vunpack.c.h.b16 %v6201
      %v6854 = vunpack.c.l.b16 %v6202
      %v6855 = vunpack.c.h.b16 %v6202
      %v6856 = vunpack.c.l.b16 %v6203
      %v6857 = vunpack.c.h.b16 %v6203
      %v6858 = vunpack.c.l.b16 %v6204
      %v6859 = vunpack.c.h.b16 %v6204
      %v6860 = vunpack.c.l.b16 %v6205
      %v6861 = vunpack.c.h.b16 %v6205
      %v6862 = vunpack.c.l.b16 %v6206
      %v6863 = vunpack.c.h.b16 %v6206
      %v6864 = vunpack.c.l.b16 %v6207
      %v6865 = vunpack.c.h.b16 %v6207
      %v6866 = vunpack.c.l.b16 %v6208
      %v6867 = vunpack.c.h.b16 %v6208
      %v6868 = vunpack.c.l.b16 %v6209
      %v6869 = vunpack.c.h.b16 %v6209
      %v6870 = vunpack.c.l.b16 %v6210
      %v6871 = vunpack.c.h.b16 %v6210
      %v6872 = vunpack.c.l.b16 %v6211
      %v6873 = vunpack.c.h.b16 %v6211
      %v6874 = vunpack.c.l.b16 %v6212
      %v6875 = vunpack.c.h.b16 %v6212
      %v6876 = vunpack.c.l.b16 %v6213
      %v6877 = vunpack.c.h.b16 %v6213
      %v6878 = vunpack.c.l.b16 %v6214
      %v6879 = vunpack.c.h.b16 %v6214
      %v6880 = vunpack.c.l.b16 %v6215
      %v6881 = vunpack.c.h.b16 %v6215
      %v6882 = vunpack.c.l.b16 %v6216
      %v6883 = vunpack.c.h.b16 %v6216
      %v6884 = vunpack.c.l.b16 %v6217
      %v6885 = vunpack.c.h.b16 %v6217
      %v6886 = vunpack.c.l.b16 %v6218
      %v6887 = vunpack.c.h.b16 %v6218
      %v6888 = vunpack.c.l.b16 %v6219
      %v6889 = vunpack.c.h.b16 %v6219
      %v6890 = vunpack.c.l.b16 %v6220
      %v6891 = vunpack.c.h.b16 %v6220
      %v6892 = vunpack.c.l.b16 %v6221
      %v6893 = vunpack.c.h.b16 %v6221
      %v6894 = vunpack.c.l.b16 %v6222
      %v6895 = vunpack.c.h.b16 %v6222
      %v6896 = vunpack.c.l.b16 %v6223
      %v6897 = vunpack.c.h.b16 %v6223
      %v6898 = vunpack.c.l.b16 %v6224
      %v6899 = vunpack.c.h.b16 %v6224
      %v6900 = vunpack.c.l.b16 %v6225
      %v6901 = vunpack.c.h.b16 %v6225
      %v6902 = vunpack.c.l.b16 %v6226
      %v6903 = vunpack.c.h.b16 %v6226
      %v6904 = vunpack.c.l.b16 %v6227
      %v6905 = vunpack.c.h.b16 %v6227
      %v6906 = vunpack.c.l.b16 %v6228
      %v6907 = vunpack.c.h.b16 %v6228
      %v6908 = vunpack.c.l.b16 %v6229
      %v6909 = vunpack.c.h.b16 %v6229
      %v6910 = vunpack.c.l.b16 %v6230
      %v6911 = vunpack.c.h.b16 %v6230
      %v6912 = vunpack.c.l.b16 %v6231
      %v6913 = vunpack.c.h.b16 %v6231
      %v6914 = vunpack.c.l.b16 %v6232
      %v6915 = vunpack.c.h.b16 %v6232
      %v6916 = vunpack.c.l.b16 %v6233
      %v6917 = vunpack.c.h.b16 %v6233
      %v6918 = vunpack.c.l.b16 %v6234
      %v6919 = vunpack.c.h.b16 %v6234
      %v6920 = vunpack.c.l.b16 %v6235
      %v6921 = vunpack.c.h.b16 %v6235
      %v6922 = vunpack.c.l.b16 %v6236
      %v6923 = vunpack.c.h.b16 %v6236
      %v6924 = vunpack.c.l.b16 %v6237
      %v6925 = vunpack.c.h.b16 %v6237
      %v6926 = vunpack.c.l.b16 %v6238
      %v6927 = vunpack.c.h.b16 %v6238
      %v6928 = vunpack.c.l.b16 %v6239
      %v6929 = vunpack.c.h.b16 %v6239
      %v6930 = vunpack.c.l.b16 %v6240
      %v6931 = vunpack.c.h.b16 %v6240
      %v6932 = vunpack.c.l.b16 %v6241
      %v6933 = vunpack.c.h.b16 %v6241
      %v6934 = vunpack.c.l.b16 %v6242
      %v6935 = vunpack.c.h.b16 %v6242
      %v6936 = vunpack.c.l.b16 %v6243
      %v6937 = vunpack.c.h.b16 %v6243
      %v6938 = vunpack.c.l.b16 %v6244
      %v6939 = vunpack.c.h.b16 %v6244
      %v6940 = vunpack.c.l.b16 %v6245
      %v6941 = vunpack.c.h.b16 %v6245
      %v6942 = vunpack.c.l.b16 %v6246
      %v6943 = vunpack.c.h.b16 %v6246
      %v6944 = vunpack.c.l.b16 %v6247
      %v6945 = vunpack.c.h.b16 %v6247
      %v6946 = vunpack.c.l.b16 %v6248
      %v6947 = vunpack.c.h.b16 %v6248
      %v6948 = vunpack.c.l.b16 %v6249
      %v6949 = vunpack.c.h.b16 %v6249
      %v6950 = vunpack.c.l.b16 %v6250
      %v6951 = vunpack.c.h.b16 %v6250
      %v6952 = vunpack.c.l.b16 %v6251
      %v6953 = vunpack.c.h.b16 %v6251
      %v6954 = vunpack.c.l.b16 %v6252
      %v6955 = vunpack.c.h.b16 %v6252
      %v6956 = vunpack.c.l.b16 %v6253
      %v6957 = vunpack.c.h.b16 %v6253
      %v6958 = vunpack.c.l.b16 %v6254
      %v6959 = vunpack.c.h.b16 %v6254
      %v6960 = vunpack.c.l.b16 %v6255
      %v6961 = vunpack.c.h.b16 %v6255
      %v6962 = vunpack.c.l.b16 %v6256
      %v6963 = vunpack.c.h.b16 %v6256
      %v6964 = vunpack.c.l.b16 %v6257
      %v6965 = vunpack.c.h.b16 %v6257
      %v6966 = vunpack.c.l.b16 %v6258
      %v6967 = vunpack.c.h.b16 %v6258
      %v6968 = vunpack.c.l.b16 %v6259
      %v6969 = vunpack.c.h.b16 %v6259
      %v6970 = vunpack.c.l.b16 %v6260
      %v6971 = vunpack.c.h.b16 %v6260
      %v6972 = vunpack.c.l.b16 %v6261
      %v6973 = vunpack.c.h.b16 %v6261
      %v6974 = vunpack.c.l.b16 %v6262
      %v6975 = vunpack.c.h.b16 %v6262
      %v6976 = vunpack.c.l.b16 %v6263
      %v6977 = vunpack.c.h.b16 %v6263
      %v6978 = vunpack.c.l.b16 %v6264
      %v6979 = vunpack.c.h.b16 %v6264
      %v6980 = vunpack.c.l.b16 %v6265
      %v6981 = vunpack.c.h.b16 %v6265
      %v6982 = vunpack.c.l.b16 %v6266
      %v6983 = vunpack.c.h.b16 %v6266
      %v6984 = vunpack.c.l.b16 %v6267
      %v6985 = vunpack.c.h.b16 %v6267
      %v6986 = vunpack.c.l.b16 %v6268
      %v6987 = vunpack.c.h.b16 %v6268
      %v6988 = vunpack.c.l.b16 %v6269
      %v6989 = vunpack.c.h.b16 %v6269
      %v6990 = vunpack.c.l.b16 %v6270
      %v6991 = vunpack.c.h.b16 %v6270
      %v6992 = vunpack.c.l.b16 %v6271
      %v6993 = vunpack.c.h.b16 %v6271
      %v6994 = vunpack.c.l.b16 %v6272
      %v6995 = vunpack.c.h.b16 %v6272
      %v6996 = vunpack.c.l.b16 %v6273
      %v6997 = vunpack.c.h.b16 %v6273
      %v6998 = vunpack.c.l.b16 %v6274
      %v6999 = vunpack.c.h.b16 %v6274
      %v7000 = vunpack.c.l.b16 %v6275
      %v7001 = vunpack.c.h.b16 %v6275
      %v7002 = vunpack.c.l.b16 %v6276
      %v7003 = vunpack.c.h.b16 %v6276
      %v7004 = vunpack.c.l.b16 %v6277
      %v7005 = vunpack.c.h.b16 %v6277
      %v7006 = vunpack.c.l.b16 %v6278
      %v7007 = vunpack.c.h.b16 %v6278
      %v7008 = vunpack.c.l.b16 %v6279
      %v7009 = vunpack.c.h.b16 %v6279
      %v7010 = vunpack.c.l.b16 %v6280
      %v7011 = vunpack.c.h.b16 %v6280
      %v7012 = vunpack.c.l.b16 %v6281
      %v7013 = vunpack.c.h.b16 %v6281
      %v7014 = vunpack.c.l.b16 %v6282
      %v7015 = vunpack.c.h.b16 %v6282
      %v7016 = vunpack.c.l.b16 %v6283
      %v7017 = vunpack.c.h.b16 %v6283
      %v7018 = vunpack.c.l.b16 %v6284
      %v7019 = vunpack.c.h.b16 %v6284
      %v7020 = vunpack.c.l.b16 %v6285
      %v7021 = vunpack.c.h.b16 %v6285
      %v7022 = vunpack.c.l.b16 %v6286
      %v7023 = vunpack.c.h.b16 %v6286
      %v7024 = vunpack.c.l.b16 %v6287
      %v7025 = vunpack.c.h.b16 %v6287
      %v7026 = vunpack.c.l.b16 %v6288
      %v7027 = vunpack.c.h.b16 %v6288
      %v7028 = vunpack.c.l.b16 %v6289
      %v7029 = vunpack.c.h.b16 %v6289
      %v7030 = vunpack.c.l.b16 %v6290
      %v7031 = vunpack.c.h.b16 %v6290
      %v7032 = vunpack.c.l.b16 %v6291
      %v7033 = vunpack.c.h.b16 %v6291
      %v7034 = vunpack.c.l.b16 %v6292
      %v7035 = vunpack.c.h.b16 %v6292
      %v7036 = vunpack.c.l.b16 %v6293
      %v7037 = vunpack.c.h.b16 %v6293
      %v7038 = vunpack.c.l.b16 %v6294
      %v7039 = vunpack.c.h.b16 %v6294
      %v7040 = vunpack.c.l.b16 %v6295
      %v7041 = vunpack.c.h.b16 %v6295
      %v7042 = vunpack.c.l.b16 %v6296
      %v7043 = vunpack.c.h.b16 %v6296
      %v7044 = vunpack.c.l.b16 %v6297
      %v7045 = vunpack.c.h.b16 %v6297
      %v7046 = vunpack.c.l.b16 %v6298
      %v7047 = vunpack.c.h.b16 %v6298
      %v7048 = vunpack.c.l.b16 %v6299
      %v7049 = vunpack.c.h.b16 %v6299
      %v7050 = vunpack.c.l.b16 %v6300
      %v7051 = vunpack.c.h.b16 %v6300
      %v7052 = vunpack.c.l.b16 %v6301
      %v7053 = vunpack.c.h.b16 %v6301
      %v7054 = vunpack.c.l.b16 %v6302
      %v7055 = vunpack.c.h.b16 %v6302
      %v7056 = vunpack.c.l.b16 %v6303
      %v7057 = vunpack.c.h.b16 %v6303
      %v7058 = vunpack.c.l.b16 %v6304
      %v7059 = vunpack.c.h.b16 %v6304
      %v7060 = vunpack.c.l.b16 %v6305
      %v7061 = vunpack.c.h.b16 %v6305
      %v7062 = vunpack.c.l.b16 %v6306
      %v7063 = vunpack.c.h.b16 %v6306
      %v7064 = vunpack.c.l.b16 %v6307
      %v7065 = vunpack.c.h.b16 %v6307
      %v7066 = vunpack.c.l.b16 %v6308
      %v7067 = vunpack.c.h.b16 %v6308
      %v7068 = vunpack.c.l.b16 %v6309
      %v7069 = vunpack.c.h.b16 %v6309
      %v7070 = vunpack.c.l.b16 %v6310
      %v7071 = vunpack.c.h.b16 %v6310
      %v7072 = vunpack.c.l.b16 %v6311
      %v7073 = vunpack.c.h.b16 %v6311
      %v7074 = vunpack.c.l.b16 %v6312
      %v7075 = vunpack.c.h.b16 %v6312
      %v7076 = vunpack.c.l.b16 %v6313
      %v7077 = vunpack.c.h.b16 %v6313
      %v7078 = vunpack.c.l.b16 %v6314
      %v7079 = vunpack.c.h.b16 %v6314
      %v7080 = vunpack.c.l.b16 %v6315
      %v7081 = vunpack.c.h.b16 %v6315
      %v7082 = vunpack.c.l.b16 %v6316
      %v7083 = vunpack.c.h.b16 %v6316
      %v7084 = vunpack.c.l.b16 %v6317
      %v7085 = vunpack.c.h.b16 %v6317
      %v7086 = vunpack.c.l.b16 %v6318
      %v7087 = vunpack.c.h.b16 %v6318
      %v7088 = vunpack.c.l.b16 %v6319
      %v7089 = vunpack.c.h.b16 %v6319
      %v7090 = vunpack.c.l.b16 %v6320
      %v7091 = vunpack.c.h.b16 %v6320
      %v7092 = vunpack.c.l.b16 %v6321
      %v7093 = vunpack.c.h.b16 %v6321
      %v7094 = vunpack.c.l.b16 %v6322
      %v7095 = vunpack.c.h.b16 %v6322
      %v7096 = vunpack.c.l.b16 %v6323
      %v7097 = vunpack.c.h.b16 %v6323
      %v7098 = vunpack.c.l.b16 %v6324
      %v7099 = vunpack.c.h.b16 %v6324
      %v7100 = vunpack.c.l.b16 %v6325
      %v7101 = vunpack.c.h.b16 %v6325
      %v7102 = vunpack.c.l.b16 %v6326
      %v7103 = vunpack.c.h.b16 %v6326
      %v7104 = vunpack.c.l.b16 %v6327
      %v7105 = vunpack.c.h.b16 %v6327
      %v7106 = vunpack.c.l.b16 %v6328
      %v7107 = vunpack.c.h.b16 %v6328
      %v7108 = vunpack.c.l.b16 %v6329
      %v7109 = vunpack.c.h.b16 %v6329
      %v7110 = vunpack.c.l.b16 %v6330
      %v7111 = vunpack.c.h.b16 %v6330
      %v7112 = vunpack.c.l.b16 %v6331
      %v7113 = vunpack.c.h.b16 %v6331
      %v7114 = vunpack.c.l.b16 %v6332
      %v7115 = vunpack.c.h.b16 %v6332
      %v7116 = vunpack.c.l.b16 %v6333
      %v7117 = vunpack.c.h.b16 %v6333
      %v7118 = vunpack.c.l.b16 %v6334
      %v7119 = vunpack.c.h.b16 %v6334
      %v7120 = vunpack.c.l.b16 %v6335
      %v7121 = vunpack.c.h.b16 %v6335
      %v7122 = vunpack.c.l.b16 %v6336
      %v7123 = vunpack.c.h.b16 %v6336
      %v7124 = vunpack.c.l.b16 %v6337
      %v7125 = vunpack.c.h.b16 %v6337
      %v7126 = vunpack.c.l.b16 %v6338
      %v7127 = vunpack.c.h.b16 %v6338
      %v7128 = vunpack.c.l.b16 %v6339
      %v7129 = vunpack.c.h.b16 %v6339
      %v7130 = vunpack.c.l.b16 %v6340
      %v7131 = vunpack.c.h.b16 %v6340
      %v7132 = vunpack.c.l.b16 %v6341
      %v7133 = vunpack.c.h.b16 %v6341
      %v7134 = vunpack.c.l.b16 %v6342
      %v7135 = vunpack.c.h.b16 %v6342
      %v7136 = vunpack.c.l.b16 %v6343
      %v7137 = vunpack.c.h.b16 %v6343
      %v7138 = vunpack.c.l.b16 %v6344
      %v7139 = vunpack.c.h.b16 %v6344
      %v7140 = vunpack.c.l.b16 %v6345
      %v7141 = vunpack.c.h.b16 %v6345
      %v7142 = vunpack.c.l.b16 %v6346
      %v7143 = vunpack.c.h.b16 %v6346
      %v7144 = vunpack.c.l.b16 %v6347
      %v7145 = vunpack.c.h.b16 %v6347
      %v7146 = vunpack.c.l.b16 %v6348
      %v7147 = vunpack.c.h.b16 %v6348
      %v7148 = vunpack.c.l.b16 %v6349
      %v7149 = vunpack.c.h.b16 %v6349
      %v7150 = vunpack.c.l.b16 %v6350
      %v7151 = vunpack.c.h.b16 %v6350
      %v7152 = vunpack.c.l.b16 %v6351
      %v7153 = vunpack.c.h.b16 %v6351
      %v7154 = vunpack.c.l.b16 %v6352
      %v7155 = vunpack.c.h.b16 %v6352
      %v7156 = vunpack.c.l.b16 %v6353
      %v7157 = vunpack.c.h.b16 %v6353
      %v7158 = vunpack.c.l.b16 %v6354
      %v7159 = vunpack.c.h.b16 %v6354
      %v7160 = vunpack.c.l.b16 %v6355
      %v7161 = vunpack.c.h.b16 %v6355
      %v7162 = vunpack.c.l.b16 %v6356
      %v7163 = vunpack.c.h.b16 %v6356
      %v7164 = vunpack.c.l.b16 %v6357
      %v7165 = vunpack.c.h.b16 %v6357
      %v7166 = vunpack.c.l.b16 %v6358
      %v7167 = vunpack.c.h.b16 %v6358
      %v7168 = vunpack.c.l.b16 %v6359
      %v7169 = vunpack.c.h.b16 %v6359
      %v7170 = vunpack.c.l.b16 %v6360
      %v7171 = vunpack.c.h.b16 %v6360
      %v7172 = vunpack.c.l.b16 %v6361
      %v7173 = vunpack.c.h.b16 %v6361
      %v7174 = vunpack.c.l.b16 %v6362
      %v7175 = vunpack.c.h.b16 %v6362
      %v7176 = vunpack.c.l.b16 %v6363
      %v7177 = vunpack.c.h.b16 %v6363
      %v7178 = vunpack.c.l.b16 %v6364
      %v7179 = vunpack.c.h.b16 %v6364
      %v7180 = vunpack.c.l.b16 %v6365
      %v7181 = vunpack.c.h.b16 %v6365
      %v7182 = vunpack.c.l.b16 %v6366
      %v7183 = vunpack.c.h.b16 %v6366
      %v7184 = vunpack.c.l.b16 %v6367
      %v7185 = vunpack.c.h.b16 %v6367
      %v7186 = vunpack.c.l.b16 %v6368
      %v7187 = vunpack.c.h.b16 %v6368
      %v7188 = vunpack.c.l.b16 %v6369
      %v7189 = vunpack.c.h.b16 %v6369
      %v7190 = vunpack.c.l.b16 %v6370
      %v7191 = vunpack.c.h.b16 %v6370
      %v7192 = vunpack.c.l.b16 %v6371
      %v7193 = vunpack.c.h.b16 %v6371
      %v7194 = vunpack.c.l.b16 %v6372
      %v7195 = vunpack.c.h.b16 %v6372
      %v7196 = vunpack.c.l.b16 %v6373
      %v7197 = vunpack.c.h.b16 %v6373
      %v7198 = vunpack.c.l.b16 %v6374
      %v7199 = vunpack.c.h.b16 %v6374
      %v7200 = vunpack.c.l.b16 %v6375
      %v7201 = vunpack.c.h.b16 %v6375
      %v7202 = vunpack.c.l.b16 %v6376
      %v7203 = vunpack.c.h.b16 %v6376
      %v7204 = vunpack.c.l.b16 %v6377
      %v7205 = vunpack.c.h.b16 %v6377
      %v7206 = vunpack.c.l.b16 %v6378
      %v7207 = vunpack.c.h.b16 %v6378
      %v7208 = vunpack.c.l.b16 %v6379
      %v7209 = vunpack.c.h.b16 %v6379
      %v7210 = vunpack.c.l.b16 %v6380
      %v7211 = vunpack.c.h.b16 %v6380
      %v7212 = vunpack.c.l.b16 %v6381
      %v7213 = vunpack.c.h.b16 %v6381
      %v7214 = vunpack.c.l.b16 %v6382
      %v7215 = vunpack.c.h.b16 %v6382
      %v7216 = vunpack.c.l.b16 %v6383
      %v7217 = vunpack.c.h.b16 %v6383
      %v7218 = vunpack.c.l.b16 %v6384
      %v7219 = vunpack.c.h.b16 %v6384
      %v7220 = vunpack.c.l.b16 %v6385
      %v7221 = vunpack.c.h.b16 %v6385
      %v7222 = vunpack.c.l.b16 %v6386
      %v7223 = vunpack.c.h.b16 %v6386
      %v7224 = vunpack.c.l.b16 %v6387
      %v7225 = vunpack.c.h.b16 %v6387
      %v7226 = vunpack.c.l.b16 %v6388
      %v7227 = vunpack.c.h.b16 %v6388
      %v7228 = vunpack.c.l.b16 %v6389
      %v7229 = vunpack.c.h.b16 %v6389
      %v7230 = vunpack.c.l.b16 %v6390
      %v7231 = vunpack.c.h.b16 %v6390
      %v7232 = vunpack.c.l.b16 %v6391
      %v7233 = vunpack.c.h.b16 %v6391
      %v7234 = vunpack.c.l.b16 %v6392
      %v7235 = vunpack.c.h.b16 %v6392
      %v7236 = vunpack.c.l.b16 %v6393
      %v7237 = vunpack.c.h.b16 %v6393
      %v7238 = vunpack.c.l.b16 %v6394
      %v7239 = vunpack.c.h.b16 %v6394
      %v7240 = vunpack.c.l.b16 %v6395
      %v7241 = vunpack.c.h.b16 %v6395
      %v7242 = vunpack.c.l.b16 %v6396
      %v7243 = vunpack.c.h.b16 %v6396
      %v7244 = vunpack.c.l.b16 %v6397
      %v7245 = vunpack.c.h.b16 %v6397
      %v7246 = vunpack.c.l.b16 %v6398
      %v7247 = vunpack.c.h.b16 %v6398
      %v7248 = vunpack.c.l.b16 %v6399
      %v7249 = vunpack.c.h.b16 %v6399
      %v7250 = vunpack.c.l.b16 %v6400
      %v7251 = vunpack.c.h.b16 %v6400
      %v7252 = vunpack.c.l.b16 %v6401
      %v7253 = vunpack.c.h.b16 %v6401
      %v7254 = vunpack.c.l.b16 %v6402
      %v7255 = vunpack.c.h.b16 %v6402
      %v7256 = vunpack.c.l.b16 %v6403
      %v7257 = vunpack.c.h.b16 %v6403
      %v7258 = vunpack.c.l.b16 %v6404
      %v7259 = vunpack.c.h.b16 %v6404
      %v7260 = vunpack.c.l.b16 %v6405
      %v7261 = vunpack.c.h.b16 %v6405
      %v7262 = vunpack.c.l.b16 %v6406
      %v7263 = vunpack.c.h.b16 %v6406
      %v7264 = vunpack.c.l.b16 %v6407
      %v7265 = vunpack.c.h.b16 %v6407
      %v7266 = vunpack.c.l.b16 %v6408
      %v7267 = vunpack.c.h.b16 %v6408
      %v7268 = vunpack.c.l.b16 %v6409
      %v7269 = vunpack.c.h.b16 %v6409
      %v7270 = vunpack.c.l.b16 %v6410
      %v7271 = vunpack.c.h.b16 %v6410
      %v7272 = vunpack.c.l.b16 %v6411
      %v7273 = vunpack.c.h.b16 %v6411
      %v7274 = vunpack.c.l.b16 %v6412
      %v7275 = vunpack.c.h.b16 %v6412
      %v7276 = vunpack.c.l.b16 %v6413
      %v7277 = vunpack.c.h.b16 %v6413
      %v7278 = vunpack.c.l.b16 %v6414
      %v7279 = vunpack.c.h.b16 %v6414
      %v7280 = vpack.c.b16 %v6708, %v6704
      %v7281 = vpack.c.b16 %v6709, %v6705
      %v7282 = vpack.c.b16 %v6710, %v6706
      %v7283 = vpack.c.b16 %v6711, %v6707
      %v7284 = vpack.c.b16 %v6716, %v6712
      %v7285 = vpack.c.b16 %v6717, %v6713
      %v7286 = vpack.c.b16 %v6718, %v6714
      %v7287 = vpack.c.b16 %v6719, %v6715
      %v7288 = vpack.c.b16 %v6724, %v6720
      %v7289 = vpack.c.b16 %v6725, %v6721
      %v7290 = vpack.c.b16 %v6726, %v6722
      %v7291 = vpack.c.b16 %v6727, %v6723
      %v7292 = vpack.c.b16 %v6732, %v6728
      %v7293 = vpack.c.b16 %v6733, %v6729
      %v7294 = vpack.c.b16 %v6734, %v6730
      %v7295 = vpack.c.b16 %v6735, %v6731
      %v7296 = vpack.c.b16 %v6740, %v6736
      %v7297 = vpack.c.b16 %v6741, %v6737
      %v7298 = vpack.c.b16 %v6742, %v6738
      %v7299 = vpack.c.b16 %v6743, %v6739
      %v7300 = vpack.c.b16 %v6748, %v6744
      %v7301 = vpack.c.b16 %v6749, %v6745
      %v7302 = vpack.c.b16 %v6750, %v6746
      %v7303 = vpack.c.b16 %v6751, %v6747
      %v7304 = vpack.c.b16 %v6756, %v6752
      %v7305 = vpack.c.b16 %v6757, %v6753
      %v7306 = vpack.c.b16 %v6758, %v6754
      %v7307 = vpack.c.b16 %v6759, %v6755
      %v7308 = vpack.c.b16 %v6764, %v6760
      %v7309 = vpack.c.b16 %v6765, %v6761
      %v7310 = vpack.c.b16 %v6766, %v6762
      %v7311 = vpack.c.b16 %v6767, %v6763
      %v7312 = vpack.c.b16 %v6772, %v6768
      %v7313 = vpack.c.b16 %v6773, %v6769
      %v7314 = vpack.c.b16 %v6774, %v6770
      %v7315 = vpack.c.b16 %v6775, %v6771
      %v7316 = vpack.c.b16 %v6780, %v6776
      %v7317 = vpack.c.b16 %v6781, %v6777
      %v7318 = vpack.c.b16 %v6782, %v6778
      %v7319 = vpack.c.b16 %v6783, %v6779
      %v7320 = vpack.c.b16 %v6788, %v6784
      %v7321 = vpack.c.b16 %v6789, %v6785
      %v7322 = vpack.c.b16 %v6790, %v6786
      %v7323 = vpack.c.b16 %v6791, %v6787
      %v7324 = vpack.c.b16 %v6796, %v6792
      %v7325 = vpack.c.b16 %v6797, %v6793
      %v7326 = vpack.c.b16 %v6798, %v6794
      %v7327 = vpack.c.b16 %v6799, %v6795
      %v7328 = vpack.c.b16 %v6804, %v6800
      %v7329 = vpack.c.b16 %v6805, %v6801
      %v7330 = vpack.c.b16 %v6806, %v6802
      %v7331 = vpack.c.b16 %v6807, %v6803
      %v7332 = vpack.c.b16 %v6812, %v6808
      %v7333 = vpack.c.b16 %v6813, %v6809
      %v7334 = vpack.c.b16 %v6814, %v6810
      %v7335 = vpack.c.b16 %v6815, %v6811
      %v7336 = vpack.c.b16 %v6820, %v6816
      %v7337 = vpack.c.b16 %v6821, %v6817
      %v7338 = vpack.c.b16 %v6822, %v6818
      %v7339 = vpack.c.b16 %v6823, %v6819
      %v7340 = vpack.c.b16 %v6828, %v6824
      %v7341 = vpack.c.b16 %v6829, %v6825
      %v7342 = vpack.c.b16 %v6830, %v6826
      %v7343 = vpack.c.b16 %v6831, %v6827
      %v7344 = vpack.c.b16 %v6836, %v6832
      %v7345 = vpack.c.b16 %v6837, %v6833
      %v7346 = vpack.c.b16 %v6838, %v6834
      %v7347 = vpack.c.b16 %v6839, %v6835
      %v7348 = vpack.c.b16 %v6844, %v6840
      %v7349 = vpack.c.b16 %v6845, %v6841
      %v7350 = vpack.c.b16 %v6846, %v6842
      %v7351 = vpack.c.b16 %v6847, %v6843
      %v7352 = vpack.c.b16 %v6852, %v6848
      %v7353 = vpack.c.b16 %v6853, %v6849
      %v7354 = vpack.c.b16 %v6854, %v6850
      %v7355 = vpack.c.b16 %v6855, %v6851
      %v7356 = vpack.c.b16 %v6860, %v6856
      %v7357 = vpack.c.b16 %v6861, %v6857
      %v7358 = vpack.c.b16 %v6862, %v6858
      %v7359 = vpack.c.b16 %v6863, %v6859
      %v7360 = vpack.c.b16 %v6868, %v6864
      %v7361 = vpack.c.b16 %v6869, %v6865
      %v7362 = vpack.c.b16 %v6870, %v6866
      %v7363 = vpack.c.b16 %v6871, %v6867
      %v7364 = vpack.c.b16 %v6876, %v6872
      %v7365 = vpack.c.b16 %v6877, %v6873
      %v7366 = vpack.c.b16 %v6878, %v6874
      %v7367 = vpack.c.b16 %v6879, %v6875
      %v7368 = vpack.c.b16 %v6884, %v6880
      %v7369 = vpack.c.b16 %v6885, %v6881
      %v7370 = vpack.c.b16 %v6886, %v6882
      %v7371 = vpack.c.b16 %v6887, %v6883
      %v7372 = vpack.c.b16 %v6892, %v6888
      %v7373 = vpack.c.b16 %v6893, %v6889
      %v7374 = vpack.c.b16 %v6894, %v6890
      %v7375 = vpack.c.b16 %v6895, %v6891
      %v7376 = vpack.c.b16 %v6900, %v6896
      %v7377 = vpack.c.b16 %v6901, %v6897
      %v7378 = vpack.c.b16 %v6902, %v6898
      %v7379 = vpack.c.b16 %v6903, %v6899
      %v7380 = vpack.c.b16 %v6908, %v6904
      %v7381 = vpack.c.b16 %v6909, %v6905
      %v7382 = vpack.c.b16 %v6910, %v6906
      %v7383 = vpack.c.b16 %v6911, %v6907
      %v7384 = vpack.c.b16 %v6916, %v6912
      %v7385 = vpack.c.b16 %v6917, %v6913
      %v7386 = vpack.c.b16 %v6918, %v6914
      %v7387 = vpack.c.b16 %v6919, %v6915
      %v7388 = vpack.c.b16 %v6924, %v6920
      %v7389 = vpack.c.b16 %v6925, %v6921
      %v7390 = vpack.c.b16 %v6926, %v6922
      %v7391 = vpack.c.b16 %v6927, %v6923
      %v7392 = vpack.c.b16 %v6932, %v6928
      %v7393 = vpack.c.b16 %v6933, %v6929
      %v7394 = vpack.c.b16 %v6934, %v6930
      %v7395 = vpack.c.b16 %v6935, %v6931
      %v7396 = vpack.c.b16 %v6940, %v6936
      %v7397 = vpack.c.b16 %v6941, %v6937
      %v7398 = vpack.c.b16 %v6942, %v6938
      %v7399 = vpack.c.b16 %v6943, %v6939
      %v7400 = vpack.c.b16 %v6948, %v6944
      %v7401 = vpack.c.b16 %v6949, %v6945
      %v7402 = vpack.c.b16 %v6950, %v6946
      %v7403 = vpack.c.b16 %v6951, %v6947
      %v7404 = vpack.c.b16 %v6956, %v6952
      %v7405 = vpack.c.b16 %v6957, %v6953
      %v7406 = vpack.c.b16 %v6958, %v6954
      %v7407 = vpack.c.b16 %v6959, %v6955
      %v7408 = vpack.c.b16 %v6964, %v6960
      %v7409 = vpack.c.b16 %v6965, %v6961
      %v7410 = vpack.c.b16 %v6966, %v6962
      %v7411 = vpack.c.b16 %v6967, %v6963
      %v7412 = vpack.c.b16 %v6972, %v6968
      %v7413 = vpack.c.b16 %v6973, %v6969
      %v7414 = vpack.c.b16 %v6974, %v6970
      %v7415 = vpack.c.b16 %v6975, %v6971
      %v7416 = vpack.c.b16 %v6980, %v6976
      %v7417 = vpack.c.b16 %v6981, %v6977
      %v7418 = vpack.c.b16 %v6982, %v6978
      %v7419 = vpack.c.b16 %v6983, %v6979
      %v7420 = vpack.c.b16 %v6988, %v6984
      %v7421 = vpack.c.b16 %v6989, %v6985
      %v7422 = vpack.c.b16 %v6990, %v6986
      %v7423 = vpack.c.b16 %v6991, %v6987
      %v7424 = vpack.c.b16 %v6996, %v6992
      %v7425 = vpack.c.b16 %v6997, %v6993
      %v7426 = vpack.c.b16 %v6998, %v6994
      %v7427 = vpack.c.b16 %v6999, %v6995
      %v7428 = vpack.c.b16 %v7004, %v7000
      %v7429 = vpack.c.b16 %v7005, %v7001
      %v7430 = vpack.c.b16 %v7006, %v7002
      %v7431 = vpack.c.b16 %v7007, %v7003
      %v7432 = vpack.c.b16 %v7012, %v7008
      %v7433 = vpack.c.b16 %v7013, %v7009
      %v7434 = vpack.c.b16 %v7014, %v7010
      %v7435 = vpack.c.b16 %v7015, %v7011
      %v7436 = vpack.c.b16 %v7020, %v7016
      %v7437 = vpack.c.b16 %v7021, %v7017
      %v7438 = vpack.c.b16 %v7022, %v7018
      %v7439 = vpack.c.b16 %v7023, %v7019
      %v7440 = vpack.c.b16 %v7028, %v7024
      %v7441 = vpack.c.b16 %v7029, %v7025
      %v7442 = vpack.c.b16 %v7030, %v7026
      %v7443 = vpack.c.b16 %v7031, %v7027
      %v7444 = vpack.c.b16 %v7036, %v7032
      %v7445 = vpack.c.b16 %v7037, %v7033
      %v7446 = vpack.c.b16 %v7038, %v7034
      %v7447 = vpack.c.b16 %v7039, %v7035
      %v7448 = vpack.c.b16 %v7044, %v7040
      %v7449 = vpack.c.b16 %v7045, %v7041
      %v7450 = vpack.c.b16 %v7046, %v7042
      %v7451 = vpack.c.b16 %v7047, %v7043
      %v7452 = vpack.c.b16 %v7052, %v7048
      %v7453 = vpack.c.b16 %v7053, %v7049
      %v7454 = vpack.c.b16 %v7054, %v7050
      %v7455 = vpack.c.b16 %v7055, %v7051
      %v7456 = vpack.c.b16 %v7060, %v7056
      %v7457 = vpack.c.b16 %v7061, %v7057
      %v7458 = vpack.c.b16 %v7062, %v7058
      %v7459 = vpack.c.b16 %v7063, %v7059
      %v7460 = vpack.c.b16 %v7068, %v7064
      %v7461 = vpack.c.b16 %v7069, %v7065
      %v7462 = vpack.c.b16 %v7070, %v7066
      %v7463 = vpack.c.b16 %v7071, %v7067
      %v7464 = vpack.c.b16 %v7076, %v7072
      %v7465 = vpack.c.b16 %v7077, %v7073
      %v7466 = vpack.c.b16 %v7078, %v7074
      %v7467 = vpack.c.b16 %v7079, %v7075
      %v7468 = vpack.c.b16 %v7084, %v7080
      %v7469 = vpack.c.b16 %v7085, %v7081
      %v7470 = vpack.c.b16 %v7086, %v7082
      %v7471 = vpack.c.b16 %v7087, %v7083
      %v7472 = vpack.c.b16 %v7092, %v7088
      %v7473 = vpack.c.b16 %v7093, %v7089
      %v7474 = vpack.c.b16 %v7094, %v7090
      %v7475 = vpack.c.b16 %v7095, %v7091
      %v7476 = vpack.c.b16 %v7100, %v7096
      %v7477 = vpack.c.b16 %v7101, %v7097
      %v7478 = vpack.c.b16 %v7102, %v7098
      %v7479 = vpack.c.b16 %v7103, %v7099
      %v7480 = vpack.c.b16 %v7108, %v7104
      %v7481 = vpack.c.b16 %v7109, %v7105
      %v7482 = vpack.c.b16 %v7110, %v7106
      %v7483 = vpack.c.b16 %v7111, %v7107
      %v7484 = vpack.c.b16 %v7116, %v7112
      %v7485 = vpack.c.b16 %v7117, %v7113
      %v7486 = vpack.c.b16 %v7118, %v7114
      %v7487 = vpack.c.b16 %v7119, %v7115
      %v7488 = vpack.c.b16 %v7124, %v7120
      %v7489 = vpack.c.b16 %v7125, %v7121
      %v7490 = vpack.c.b16 %v7126, %v7122
      %v7491 = vpack.c.b16 %v7127, %v7123
      %v7492 = vpack.c.b16 %v7132, %v7128
      %v7493 = vpack.c.b16 %v7133, %v7129
      %v7494 = vpack.c.b16 %v7134, %v7130
      %v7495 = vpack.c.b16 %v7135, %v7131
      %v7496 = vpack.c.b16 %v7140, %v7136
      %v7497 = vpack.c.b16 %v7141, %v7137
      %v7498 = vpack.c.b16 %v7142, %v7138
      %v7499 = vpack.c.b16 %v7143, %v7139
      %v7500 = vpack.c.b16 %v7148, %v7144
      %v7501 = vpack.c.b16 %v7149, %v7145
      %v7502 = vpack.c.b16 %v7150, %v7146
      %v7503 = vpack.c.b16 %v7151, %v7147
      %v7504 = vpack.c.b16 %v7156, %v7152
      %v7505 = vpack.c.b16 %v7157, %v7153
      %v7506 = vpack.c.b16 %v7158, %v7154
      %v7507 = vpack.c.b16 %v7159, %v7155
      %v7508 = vpack.c.b16 %v7164, %v7160
      %v7509 = vpack.c.b16 %v7165, %v7161
      %v7510 = vpack.c.b16 %v7166, %v7162
      %v7511 = vpack.c.b16 %v7167, %v7163
      %v7512 = vpack.c.b16 %v7172, %v7168
      %v7513 = vpack.c.b16 %v7173, %v7169
      %v7514 = vpack.c.b16 %v7174, %v7170
      %v7515 = vpack.c.b16 %v7175, %v7171
      %v7516 = vpack.c.b16 %v7180, %v7176
      %v7517 = vpack.c.b16 %v7181, %v7177
      %v7518 = vpack.c.b16 %v7182, %v7178
      %v7519 = vpack.c.b16 %v7183, %v7179
      %v7520 = vpack.c.b16 %v7188, %v7184
      %v7521 = vpack.c.b16 %v7189, %v7185
      %v7522 = vpack.c.b16 %v7190, %v7186
      %v7523 = vpack.c.b16 %v7191, %v7187
      %v7524 = vpack.c.b16 %v7196, %v7192
      %v7525 = vpack.c.b16 %v7197, %v7193
      %v7526 = vpack.c.b16 %v7198, %v7194
      %v7527 = vpack.c.b16 %v7199, %v7195
      %v7528 = vpack.c.b16 %v7204, %v7200
      %v7529 = vpack.c.b16 %v7205, %v7201
      %v7530 = vpack.c.b16 %v7206, %v7202
      %v7531 = vpack.c.b16 %v7207, %v7203
      %v7532 = vpack.c.b16 %v7212, %v7208
      %v7533 = vpack.c.b16 %v7213, %v7209
      %v7534 = vpack.c.b16 %v7214, %v7210
      %v7535 = vpack.c.b16 %v7215, %v7211
      %v7536 = vpack.c.b16 %v7220, %v7216
      %v7537 = vpack.c.b16 %v7221, %v7217
      %v7538 = vpack.c.b16 %v7222, %v7218
      %v7539 = vpack.c.b16 %v7223, %v7219
      %v7540 = vpack.c.b16 %v7228, %v7224
      %v7541 = vpack.c.b16 %v7229, %v7225
      %v7542 = vpack.c.b16 %v7230, %v7226
      %v7543 = vpack.c.b16 %v7231, %v7227
      %v7544 = vpack.c.b16 %v7236, %v7232
      %v7545 = vpack.c.b16 %v7237, %v7233
      %v7546 = vpack.c.b16 %v7238, %v7234
      %v7547 = vpack.c.b16 %v7239, %v7235
      %v7548 = vpack.c.b16 %v7244, %v7240
      %v7549 = vpack.c.b16 %v7245, %v7241
      %v7550 = vpack.c.b16 %v7246, %v7242
      %v7551 = vpack.c.b16 %v7247, %v7243
      %v7552 = vpack.c.b16 %v7252, %v7248
      %v7553 = vpack.c.b16 %v7253, %v7249
      %v7554 = vpack.c.b16 %v7254, %v7250
      %v7555 = vpack.c.b16 %v7255, %v7251
      %v7556 = vpack.c.b16 %v7260, %v7256
      %v7557 = vpack.c.b16 %v7261, %v7257
      %v7558 = vpack.c.b16 %v7262, %v7258
      %v7559 = vpack.c.b16 %v7263, %v7259
      %v7560 = vpack.c.b16 %v7268, %v7264
      %v7561 = vpack.c.b16 %v7269, %v7265
      %v7562 = vpack.c.b16 %v7270, %v7266
      %v7563 = vpack.c.b16 %v7271, %v7267
      %v7564 = vpack.c.b16 %v7276, %v7272
      %v7565 = vpack.c.b16 %v7277, %v7273
      %v7566 = vpack.c.b16 %v7278, %v7274
      %v7567 = vpack.c.b16 %v7279, %v7275
      %v7857 = vlaneseq
      %v7858 = vshrl.u32 %v7857, 7
      %v7859 = vsub.s32 0, %v7858
      %v7860 = vrot.slane %v6415, %v7859
      %v7861 = vlaneseq
      %v7862 = vshrl.u32 %v7861, 7
      %v7863 = vsub.s32 1, %v7862
      %v7864 = vrot.slane %v6415, %v7863
      %v7865 = vlaneseq
      %v7866 = vshrl.u32 %v7865, 7
      %v7867 = vsub.s32 2, %v7866
      %v7868 = vrot.slane %v6415, %v7867
      %v7869 = vlaneseq
      %v7870 = vshrl.u32 %v7869, 7
      %v7871 = vsub.s32 3, %v7870
      %v7872 = vrot.slane %v6415, %v7871
      %7877 = vmatprep.subr.bf16.mxu0 %v7281
      %7878 = vmatpush1.bf16.msra.mxu0 %v7280
      %7879 = vmatprep.subr.bf16.mxu0 %v7285
      %7880 = vmatpush1.bf16.msra.mxu0 %v7284
      %7881 = vmatprep.subr.bf16.mxu0 %v7289
      %7882 = vmatpush1.bf16.msra.mxu0 %v7288
      %7883 = vmatprep.subr.bf16.mxu0 %v7293
      %7884 = vmatpush1.bf16.msra.mxu0 %v7292
      %7885 = vmatprep.subr.bf16.mxu0 %v7297
      %7886 = vmatpush1.bf16.msra.mxu0 %v7296
      %7887 = vmatprep.subr.bf16.mxu0 %v7301
      %7888 = vmatpush1.bf16.msra.mxu0 %v7300
      %7889 = vmatprep.subr.bf16.mxu0 %v7305
      %7890 = vmatpush1.bf16.msra.mxu0 %v7304
      %7891 = vmatprep.subr.bf16.mxu0 %v7309
      %7892 = vmatpush1.bf16.msra.mxu0 %v7308
      %7893 = vmatprep.subr.bf16.mxu0 %v7313
      %7894 = vmatpush1.bf16.msra.mxu0 %v7312
      %7895 = vmatprep.subr.bf16.mxu0 %v7317
      %7896 = vmatpush1.bf16.msra.mxu0 %v7316
      %7897 = vmatprep.subr.bf16.mxu0 %v7321
      %7898 = vmatpush1.bf16.msra.mxu0 %v7320
      %7899 = vmatprep.subr.bf16.mxu0 %v7325
      %7900 = vmatpush1.bf16.msra.mxu0 %v7324
      %7901 = vmatprep.subr.bf16.mxu0 %v7329
      %7902 = vmatpush1.bf16.msra.mxu0 %v7328
      %7903 = vmatprep.subr.bf16.mxu0 %v7333
      %7904 = vmatpush1.bf16.msra.mxu0 %v7332
      %7905 = vmatprep.subr.bf16.mxu0 %v7337
      %7906 = vmatpush1.bf16.msra.mxu0 %v7336
      %7907 = vmatprep.subr.bf16.mxu0 %v7341
      %7908 = vmatpush1.bf16.msra.mxu0 %v7340
      %7909 = vmatprep.mubr.bf16.mxu0 %v6109
      %7910 = vmatmul.mubr.bf16.gmra.mrb[0].mxu0 %v6107
      %v7911 = vpop.f32.mrb[0].mxu0
      %v7912 = vadd.f32 %v7860, %v7911
      %v7913 = vpop.f32.mrb[0].mxu0
      %v7914 = vadd.f32 %v7864, %v7913
      %v7915 = vpop.f32.mrb[0].mxu0
      %v7916 = vpop.f32.mrb[0].mxu0
      %7917 = vdwg.mxu0
      %7918 = vmatprep.subr.bf16.mxu0 %v7345
      %7919 = vmatpush1.bf16.msra.mxu0 %v7344
      %7920 = vmatprep.subr.bf16.mxu0 %v7349
      %7921 = vmatpush1.bf16.msra.mxu0 %v7348
      %7922 = vmatprep.subr.bf16.mxu0 %v7353
      %7923 = vmatpush1.bf16.msra.mxu0 %v7352
      %7924 = vmatprep.subr.bf16.mxu0 %v7357
      %7925 = vmatpush1.bf16.msra.mxu0 %v7356
      %7926 = vmatprep.subr.bf16.mxu0 %v7361
      %7927 = vmatpush1.bf16.msra.mxu0 %v7360
      %7928 = vmatprep.subr.bf16.mxu0 %v7365
      %7929 = vmatpush1.bf16.msra.mxu0 %v7364
      %7930 = vmatprep.subr.bf16.mxu0 %v7369
      %7931 = vmatpush1.bf16.msra.mxu0 %v7368
      %7932 = vmatprep.subr.bf16.mxu0 %v7373
      %7933 = vmatpush1.bf16.msra.mxu0 %v7372
      %7934 = vmatprep.subr.bf16.mxu0 %v7377
      %7935 = vmatpush1.bf16.msra.mxu0 %v7376
      %7936 = vmatprep.subr.bf16.mxu0 %v7381
      %7937 = vmatpush1.bf16.msra.mxu0 %v7380
      %7938 = vmatprep.subr.bf16.mxu0 %v7385
      %7939 = vmatpush1.bf16.msra.mxu0 %v7384
      %7940 = vmatprep.subr.bf16.mxu0 %v7389
      %7941 = vmatpush1.bf16.msra.mxu0 %v7388
      %7942 = vmatprep.subr.bf16.mxu0 %v7393
      %7943 = vmatpush1.bf16.msra.mxu0 %v7392
      %7944 = vmatprep.subr.bf16.mxu0 %v7397
      %7945 = vmatpush1.bf16.msra.mxu0 %v7396
      %7946 = vmatprep.subr.bf16.mxu0 %v7401
      %7947 = vmatpush1.bf16.msra.mxu0 %v7400
      %7948 = vmatprep.subr.bf16.mxu0 %v7405
      %7949 = vmatpush1.bf16.msra.mxu0 %v7404
      %7950 = vmatprep.mubr.bf16.mxu0 %v6115
      %7951 = vmatmul.mubr.bf16.gmra.mrb[0].mxu0 %v6113
      %v7952 = vpop.f32.mrb[0].mxu0
      %v7953 = vadd.f32 %v7912, %v7952
      %v7954 = vpop.f32.mrb[0].mxu0
      %v7955 = vadd.f32 %v7914, %v7954
      %v7956 = vpop.f32.mrb[0].mxu0
      %v7957 = vpop.f32.mrb[0].mxu0
      %7958 = vdwg.mxu0
      %7959 = vmatprep.subr.bf16.mxu0 %v7409
      %7960 = vmatpush1.bf16.msra.mxu0 %v7408
      %7961 = vmatprep.subr.bf16.mxu0 %v7413
      %7962 = vmatpush1.bf16.msra.mxu0 %v7412
      %7963 = vmatprep.subr.bf16.mxu0 %v7417
      %7964 = vmatpush1.bf16.msra.mxu0 %v7416
      %7965 = vmatprep.subr.bf16.mxu0 %v7421
      %7966 = vmatpush1.bf16.msra.mxu0 %v7420
      %7967 = vmatprep.subr.bf16.mxu0 %v7425
      %7968 = vmatpush1.bf16.msra.mxu0 %v7424
      %7969 = vmatprep.subr.bf16.mxu0 %v7429
      %7970 = vmatpush1.bf16.msra.mxu0 %v7428
      %7971 = vmatprep.subr.bf16.mxu0 %v7433
      %7972 = vmatpush1.bf16.msra.mxu0 %v7432
      %7973 = vmatprep.subr.bf16.mxu0 %v7437
      %7974 = vmatpush1.bf16.msra.mxu0 %v7436
      %7975 = vmatprep.subr.bf16.mxu0 %v7441
      %7976 = vmatpush1.bf16.msra.mxu0 %v7440
      %7977 = vmatprep.subr.bf16.mxu0 %v7445
      %7978 = vmatpush1.bf16.msra.mxu0 %v7444
      %7979 = vmatprep.subr.bf16.mxu0 %v7449
      %7980 = vmatpush1.bf16.msra.mxu0 %v7448
      %7981 = vmatprep.subr.bf16.mxu0 %v7453
      %7982 = vmatpush1.bf16.msra.mxu0 %v7452
      %7983 = vmatprep.subr.bf16.mxu0 %v7457
      %7984 = vmatpush1.bf16.msra.mxu0 %v7456
      %7985 = vmatprep.subr.bf16.mxu0 %v7461
      %7986 = vmatpush1.bf16.msra.mxu0 %v7460
      %7987 = vmatprep.subr.bf16.mxu0 %v7465
      %7988 = vmatpush1.bf16.msra.mxu0 %v7464
      %7989 = vmatprep.subr.bf16.mxu0 %v7469
      %7990 = vmatpush1.bf16.msra.mxu0 %v7468
      %7991 = vmatprep.mubr.bf16.mxu0 %v6119
      %7992 = vmatmul.mubr.bf16.gmra.mrb[0].mxu0 %v6117
      %v7993 = vpop.f32.mrb[0].mxu0
      %v7994 = vadd.f32 %v7953, %v7993
      %v7995 = vpop.f32.mrb[0].mxu0
      %v7996 = vadd.f32 %v7955, %v7995
      %v7997 = vpop.f32.mrb[0].mxu0
      %v7998 = vpop.f32.mrb[0].mxu0
      %7999 = vdwg.mxu0
      %8000 = vmatprep.subr.bf16.mxu0 %v7473
      %8001 = vmatpush1.bf16.msra.mxu0 %v7472
      %8002 = vmatprep.subr.bf16.mxu0 %v7477
      %8003 = vmatpush1.bf16.msra.mxu0 %v7476
      %8004 = vmatprep.subr.bf16.mxu0 %v7481
      %8005 = vmatpush1.bf16.msra.mxu0 %v7480
      %8006 = vmatprep.subr.bf16.mxu0 %v7485
      %8007 = vmatpush1.bf16.msra.mxu0 %v7484
      %8008 = vmatprep.subr.bf16.mxu0 %v7489
      %8009 = vmatpush1.bf16.msra.mxu0 %v7488
      %8010 = vmatprep.subr.bf16.mxu0 %v7493
      %8011 = vmatpush1.bf16.msra.mxu0 %v7492
      %8012 = vmatprep.subr.bf16.mxu0 %v7497
      %8013 = vmatpush1.bf16.msra.mxu0 %v7496
      %8014 = vmatprep.subr.bf16.mxu0 %v7501
      %8015 = vmatpush1.bf16.msra.mxu0 %v7500
      %8016 = vmatprep.subr.bf16.mxu0 %v7505
      %8017 = vmatpush1.bf16.msra.mxu0 %v7504
      %8018 = vmatprep.subr.bf16.mxu0 %v7509
      %8019 = vmatpush1.bf16.msra.mxu0 %v7508
      %8020 = vmatprep.subr.bf16.mxu0 %v7513
      %8021 = vmatpush1.bf16.msra.mxu0 %v7512
      %8022 = vmatprep.subr.bf16.mxu0 %v7517
      %8023 = vmatpush1.bf16.msra.mxu0 %v7516
      %8024 = vmatprep.subr.bf16.mxu0 %v7521
      %8025 = vmatpush1.bf16.msra.mxu0 %v7520
      %8026 = vmatprep.subr.bf16.mxu0 %v7525
      %8027 = vmatpush1.bf16.msra.mxu0 %v7524
      %8028 = vmatprep.subr.bf16.mxu0 %v7529
      %8029 = vmatpush1.bf16.msra.mxu0 %v7528
      %8030 = vmatprep.subr.bf16.mxu0 %v7533
      %8031 = vmatpush1.bf16.msra.mxu0 %v7532
      %8032 = vmatprep.mubr.bf16.mxu0 %v6123
      %8033 = vmatmul.mubr.bf16.gmra.mrb[0].mxu0 %v6121
      %v8034 = vpop.f32.mrb[0].mxu0
      %v8035 = vadd.f32 %v7994, %v8034
      %v8036 = vpop.f32.mrb[0].mxu0
      %v8037 = vadd.f32 %v7996, %v8036
      %v8038 = vpop.f32.mrb[0].mxu0
      %v8039 = vpop.f32.mrb[0].mxu0
      %8040 = vdwg.mxu0
      %8041 = vmatprep.subr.bf16.mxu0 %v7537
      %8042 = vmatpush1.bf16.msra.mxu0 %v7536
      %8043 = vmatprep.subr.bf16.mxu0 %v7541
      %8044 = vmatpush1.bf16.msra.mxu0 %v7540
      %8045 = vmatprep.subr.bf16.mxu0 %v7545
      %8046 = vmatpush1.bf16.msra.mxu0 %v7544
      %8047 = vmatprep.subr.bf16.mxu0 %v7549
      %8048 = vmatpush1.bf16.msra.mxu0 %v7548
      %8049 = vmatprep.subr.bf16.mxu0 %v7553
      %8050 = vmatpush1.bf16.msra.mxu0 %v7552
      %8051 = vmatprep.subr.bf16.mxu0 %v7557
      %8052 = vmatpush1.bf16.msra.mxu0 %v7556
      %8053 = vmatprep.subr.bf16.mxu0 %v7561
      %8054 = vmatpush1.bf16.msra.mxu0 %v7560
      %8055 = vmatprep.subr.bf16.mxu0 %v7565
      %8056 = vmatpush1.bf16.msra.mxu0 %v7564
      %8057 = vmatprep.subr.bf16.mxu0 0
      %8058 = vmatpush1.bf16.msra.mxu0 0
      %8059 = vmatprep.subr.bf16.mxu0 0
      %8060 = vmatpush1.bf16.msra.mxu0 0
      %8061 = vmatprep.subr.bf16.mxu0 0
      %8062 = vmatpush1.bf16.msra.mxu0 0
      %8063 = vmatprep.subr.bf16.mxu0 0
      %8064 = vmatpush1.bf16.msra.mxu0 0
      %8065 = vmatprep.subr.bf16.mxu0 0
      %8066 = vmatpush1.bf16.msra.mxu0 0
      %8067 = vmatprep.subr.bf16.mxu0 0
      %8068 = vmatpush1.bf16.msra.mxu0 0
      %8069 = vmatprep.subr.bf16.mxu0 0
      %8070 = vmatpush1.bf16.msra.mxu0 0
      %8071 = vmatprep.subr.bf16.mxu0 0
      %8072 = vmatpush1.bf16.msra.mxu0 0
      %8073 = vmatprep.mubr.bf16.mxu0 0
      %8074 = vmatmul.mubr.bf16.gmra.mrb[0].mxu0 %v6125
      %v8075 = vpop.f32.mrb[0].mxu0
      %v8076 = vadd.f32 %v8035, %v8075
      %v8077 = vpop.f32.mrb[0].mxu0
      %v8078 = vadd.f32 %v8037, %v8077
      %v8079 = vpop.f32.mrb[0].mxu0
      %v8080 = vpop.f32.mrb[0].mxu0
      %8081 = vdwg.mxu0
      %8082 = vmatprep.subr.bf16.mxu0 %v7283
      %8083 = vmatpush1.bf16.msra.mxu0 %v7282
      %8084 = vmatprep.subr.bf16.mxu0 %v7287
      %8085 = vmatpush1.bf16.msra.mxu0 %v7286
      %8086 = vmatprep.subr.bf16.mxu0 %v7291
      %8087 = vmatpush1.bf16.msra.mxu0 %v7290
      %8088 = vmatprep.subr.bf16.mxu0 %v7295
      %8089 = vmatpush1.bf16.msra.mxu0 %v7294
      %8090 = vmatprep.subr.bf16.mxu0 %v7299
      %8091 = vmatpush1.bf16.msra.mxu0 %v7298
      %8092 = vmatprep.subr.bf16.mxu0 %v7303
      %8093 = vmatpush1.bf16.msra.mxu0 %v7302
      %8094 = vmatprep.subr.bf16.mxu0 %v7307
      %8095 = vmatpush1.bf16.msra.mxu0 %v7306
      %8096 = vmatprep.subr.bf16.mxu0 %v7311
      %8097 = vmatpush1.bf16.msra.mxu0 %v7310
      %8098 = vmatprep.subr.bf16.mxu0 %v7315
      %8099 = vmatpush1.bf16.msra.mxu0 %v7314
      %8100 = vmatprep.subr.bf16.mxu0 %v7319
      %8101 = vmatpush1.bf16.msra.mxu0 %v7318
      %8102 = vmatprep.subr.bf16.mxu0 %v7323
      %8103 = vmatpush1.bf16.msra.mxu0 %v7322
      %8104 = vmatprep.subr.bf16.mxu0 %v7327
      %8105 = vmatpush1.bf16.msra.mxu0 %v7326
      %8106 = vmatprep.subr.bf16.mxu0 %v7331
      %8107 = vmatpush1.bf16.msra.mxu0 %v7330
      %8108 = vmatprep.subr.bf16.mxu0 %v7335
      %8109 = vmatpush1.bf16.msra.mxu0 %v7334
      %8110 = vmatprep.subr.bf16.mxu0 %v7339
      %8111 = vmatpush1.bf16.msra.mxu0 %v7338
      %8112 = vmatprep.subr.bf16.mxu0 %v7343
      %8113 = vmatpush1.bf16.msra.mxu0 %v7342
      %8114 = vmatprep.mubr.bf16.mxu0 %v6109
      %8115 = vmatmul.mubr.bf16.gmra.mrb[0].mxu0 %v6107
      %v8116 = vpop.f32.mrb[0].mxu0
      %v8117 = vadd.f32 %v7868, %v8116
      %v8118 = vpop.f32.mrb[0].mxu0
      %v8119 = vadd.f32 %v7872, %v8118
      %v8120 = vpop.f32.mrb[0].mxu0
      %v8121 = vpop.f32.mrb[0].mxu0
      %8122 = vdwg.mxu0
      %8123 = vmatprep.subr.bf16.mxu0 %v7347
      %8124 = vmatpush1.bf16.msra.mxu0 %v7346
      %8125 = vmatprep.subr.bf16.mxu0 %v7351
      %8126 = vmatpush1.bf16.msra.mxu0 %v7350
      %8127 = vmatprep.subr.bf16.mxu0 %v7355
      %8128 = vmatpush1.bf16.msra.mxu0 %v7354
      %8129 = vmatprep.subr.bf16.mxu0 %v7359
      %8130 = vmatpush1.bf16.msra.mxu0 %v7358
      %8131 = vmatprep.subr.bf16.mxu0 %v7363
      %8132 = vmatpush1.bf16.msra.mxu0 %v7362
      %8133 = vmatprep.subr.bf16.mxu0 %v7367
      %8134 = vmatpush1.bf16.msra.mxu0 %v7366
      %8135 = vmatprep.subr.bf16.mxu0 %v7371
      %8136 = vmatpush1.bf16.msra.mxu0 %v7370
      %8137 = vmatprep.subr.bf16.mxu0 %v7375
      %8138 = vmatpush1.bf16.msra.mxu0 %v7374
      %8139 = vmatprep.subr.bf16.mxu0 %v7379
      %8140 = vmatpush1.bf16.msra.mxu0 %v7378
      %8141 = vmatprep.subr.bf16.mxu0 %v7383
      %8142 = vmatpush1.bf16.msra.mxu0 %v7382
      %8143 = vmatprep.subr.bf16.mxu0 %v7387
      %8144 = vmatpush1.bf16.msra.mxu0 %v7386
      %8145 = vmatprep.subr.bf16.mxu0 %v7391
      %8146 = vmatpush1.bf16.msra.mxu0 %v7390
      %8147 = vmatprep.subr.bf16.mxu0 %v7395
      %8148 = vmatpush1.bf16.msra.mxu0 %v7394
      %8149 = vmatprep.subr.bf16.mxu0 %v7399
      %8150 = vmatpush1.bf16.msra.mxu0 %v7398
      %8151 = vmatprep.subr.bf16.mxu0 %v7403
      %8152 = vmatpush1.bf16.msra.mxu0 %v7402
      %8153 = vmatprep.subr.bf16.mxu0 %v7407
      %8154 = vmatpush1.bf16.msra.mxu0 %v7406
      %8155 = vmatprep.mubr.bf16.mxu0 %v6115
      %8156 = vmatmul.mubr.bf16.gmra.mrb[0].mxu0 %v6113
      %v8157 = vpop.f32.mrb[0].mxu0
      %v8158 = vadd.f32 %v8117, %v8157
      %v8159 = vpop.f32.mrb[0].mxu0
      %v8160 = vadd.f32 %v8119, %v8159
      %v8161 = vpop.f32.mrb[0].mxu0
      %v8162 = vpop.f32.mrb[0].mxu0
      %8163 = vdwg.mxu0
      %8164 = vmatprep.subr.bf16.mxu0 %v7411
      %8165 = vmatpush1.bf16.msra.mxu0 %v7410
      %8166 = vmatprep.subr.bf16.mxu0 %v7415
      %8167 = vmatpush1.bf16.msra.mxu0 %v7414
      %8168 = vmatprep.subr.bf16.mxu0 %v7419
      %8169 = vmatpush1.bf16.msra.mxu0 %v7418
      %8170 = vmatprep.subr.bf16.mxu0 %v7423
      %8171 = vmatpush1.bf16.msra.mxu0 %v7422
      %8172 = vmatprep.subr.bf16.mxu0 %v7427
      %8173 = vmatpush1.bf16.msra.mxu0 %v7426
      %8174 = vmatprep.subr.bf16.mxu0 %v7431
      %8175 = vmatpush1.bf16.msra.mxu0 %v7430
      %8176 = vmatprep.subr.bf16.mxu0 %v7435
      %8177 = vmatpush1.bf16.msra.mxu0 %v7434
      %8178 = vmatprep.subr.bf16.mxu0 %v7439
      %8179 = vmatpush1.bf16.msra.mxu0 %v7438
      %8180 = vmatprep.subr.bf16.mxu0 %v7443
      %8181 = vmatpush1.bf16.msra.mxu0 %v7442
      %8182 = vmatprep.subr.bf16.mxu0 %v7447
      %8183 = vmatpush1.bf16.msra.mxu0 %v7446
      %8184 = vmatprep.subr.bf16.mxu0 %v7451
      %8185 = vmatpush1.bf16.msra.mxu0 %v7450
      %8186 = vmatprep.subr.bf16.mxu0 %v7455
      %8187 = vmatpush1.bf16.msra.mxu0 %v7454
      %8188 = vmatprep.subr.bf16.mxu0 %v7459
      %8189 = vmatpush1.bf16.msra.mxu0 %v7458
      %8190 = vmatprep.subr.bf16.mxu0 %v7463
      %8191 = vmatpush1.bf16.msra.mxu0 %v7462
      %8192 = vmatprep.subr.bf16.mxu0 %v7467
      %8193 = vmatpush1.bf16.msra.mxu0 %v7466
      %8194 = vmatprep.subr.bf16.mxu0 %v7471
      %8195 = vmatpush1.bf16.msra.mxu0 %v7470
      %8196 = vmatprep.mubr.bf16.mxu0 %v6119
      %8197 = vmatmul.mubr.bf16.gmra.mrb[0].mxu0 %v6117
      %v8198 = vpop.f32.mrb[0].mxu0
      %v8199 = vadd.f32 %v8158, %v8198
      %v8200 = vpop.f32.mrb[0].mxu0
      %v8201 = vadd.f32 %v8160, %v8200
      %v8202 = vpop.f32.mrb[0].mxu0
      %v8203 = vpop.f32.mrb[0].mxu0
      %8204 = vdwg.mxu0
      %8205 = vmatprep.subr.bf16.mxu0 %v7475
      %8206 = vmatpush1.bf16.msra.mxu0 %v7474
      %8207 = vmatprep.subr.bf16.mxu0 %v7479
      %8208 = vmatpush1.bf16.msra.mxu0 %v7478
      %8209 = vmatprep.subr.bf16.mxu0 %v7483
      %8210 = vmatpush1.bf16.msra.mxu0 %v7482
      %8211 = vmatprep.subr.bf16.mxu0 %v7487
      %8212 = vmatpush1.bf16.msra.mxu0 %v7486
      %8213 = vmatprep.subr.bf16.mxu0 %v7491
      %8214 = vmatpush1.bf16.msra.mxu0 %v7490
      %8215 = vmatprep.subr.bf16.mxu0 %v7495
      %8216 = vmatpush1.bf16.msra.mxu0 %v7494
      %8217 = vmatprep.subr.bf16.mxu0 %v7499
      %8218 = vmatpush1.bf16.msra.mxu0 %v7498
      %8219 = vmatprep.subr.bf16.mxu0 %v7503
      %8220 = vmatpush1.bf16.msra.mxu0 %v7502
      %8221 = vmatprep.subr.bf16.mxu0 %v7507
      %8222 = vmatpush1.bf16.msra.mxu0 %v7506
      %8223 = vmatprep.subr.bf16.mxu0 %v7511
      %8224 = vmatpush1.bf16.msra.mxu0 %v7510
      %8225 = vmatprep.subr.bf16.mxu0 %v7515
      %8226 = vmatpush1.bf16.msra.mxu0 %v7514
      %8227 = vmatprep.subr.bf16.mxu0 %v7519
      %8228 = vmatpush1.bf16.msra.mxu0 %v7518
      %8229 = vmatprep.subr.bf16.mxu0 %v7523
      %8230 = vmatpush1.bf16.msra.mxu0 %v7522
      %8231 = vmatprep.subr.bf16.mxu0 %v7527
      %8232 = vmatpush1.bf16.msra.mxu0 %v7526
      %8233 = vmatprep.subr.bf16.mxu0 %v7531
      %8234 = vmatpush1.bf16.msra.mxu0 %v7530
      %8235 = vmatprep.subr.bf16.mxu0 %v7535
      %8236 = vmatpush1.bf16.msra.mxu0 %v7534
      %8237 = vmatprep.mubr.bf16.mxu0 %v6123
      %8238 = vmatmul.mubr.bf16.gmra.mrb[0].mxu0 %v6121
      %v8239 = vpop.f32.mrb[0].mxu0
      %v8240 = vadd.f32 %v8199, %v8239
      %v8241 = vpop.f32.mrb[0].mxu0
      %v8242 = vadd.f32 %v8201, %v8241
      %v8243 = vpop.f32.mrb[0].mxu0
      %v8244 = vpop.f32.mrb[0].mxu0
      %8245 = vdwg.mxu0
      %8246 = vmatprep.subr.bf16.mxu0 %v7539
      %8247 = vmatpush1.bf16.msra.mxu0 %v7538
      %8248 = vmatprep.subr.bf16.mxu0 %v7543
      %8249 = vmatpush1.bf16.msra.mxu0 %v7542
      %8250 = vmatprep.subr.bf16.mxu0 %v7547
      %8251 = vmatpush1.bf16.msra.mxu0 %v7546
      %8252 = vmatprep.subr.bf16.mxu0 %v7551
      %8253 = vmatpush1.bf16.msra.mxu0 %v7550
      %8254 = vmatprep.subr.bf16.mxu0 %v7555
      %8255 = vmatpush1.bf16.msra.mxu0 %v7554
      %8256 = vmatprep.subr.bf16.mxu0 %v7559
      %8257 = vmatpush1.bf16.msra.mxu0 %v7558
      %8258 = vmatprep.subr.bf16.mxu0 %v7563
      %8259 = vmatpush1.bf16.msra.mxu0 %v7562
      %8260 = vmatprep.subr.bf16.mxu0 %v7567
      %8261 = vmatpush1.bf16.msra.mxu0 %v7566
      %8262 = vmatprep.subr.bf16.mxu0 0
      %8263 = vmatpush1.bf16.msra.mxu0 0
      %8264 = vmatprep.subr.bf16.mxu0 0
      %8265 = vmatpush1.bf16.msra.mxu0 0
      %8266 = vmatprep.subr.bf16.mxu0 0
      %8267 = vmatpush1.bf16.msra.mxu0 0
      %8268 = vmatprep.subr.bf16.mxu0 0
      %8269 = vmatpush1.bf16.msra.mxu0 0
      %8270 = vmatprep.subr.bf16.mxu0 0
      %8271 = vmatpush1.bf16.msra.mxu0 0
      %8272 = vmatprep.subr.bf16.mxu0 0
      %8273 = vmatpush1.bf16.msra.mxu0 0
      %8274 = vmatprep.subr.bf16.mxu0 0
      %8275 = vmatpush1.bf16.msra.mxu0 0
      %8276 = vmatprep.subr.bf16.mxu0 0
      %8277 = vmatpush1.bf16.msra.mxu0 0
      %8278 = vmatprep.mubr.bf16.mxu0 0
      %8279 = vmatmul.mubr.bf16.gmra.mrb[0].mxu0 %v6125
      %v8280 = vpop.f32.mrb[0].mxu0
      %v8281 = vadd.f32 %v8240, %v8280
      %v8282 = vpop.f32.mrb[0].mxu0
      %v8283 = vadd.f32 %v8242, %v8282
      %v8284 = vpop.f32.mrb[0].mxu0
      %v8285 = vpop.f32.mrb[0].mxu0
      %8286 = vdwg.mxu0
      %v8287 = vmax.f32 %v8076, 0.0
      %v8288 = vmax.f32 %v8078, 0.0
      %v8289 = vmax.f32 %v8281, 0.0
      %v8290 = vmax.f32 %v8283, 0.0
      %v8291 = vpack.c.bf16 %v8287, %v8287
      %v8292 = vpack.c.bf16 %v8288, %v8288
      %v8293 = vpack.c.bf16 %v8289, %v8289
      %v8294 = vpack.c.bf16 %v8290, %v8290
      %v8295 = vld [vmem:[%s9] sm:$0xf]
      %v8296 = vld [vmem:[%s9 + $0x4] sm:$0xf]
      %v8297 = vld [vmem:[%s9 + $0x8] sm:$0xf]
      %v8298 = vld [vmem:[%s9 + $0xc] sm:$0xf]
      %v8299 = vld [vmem:[%s9 + $0x10] sm:$0xf]
      %v8300 = vld [vmem:[%s9 + $0x14] sm:$0xf]
      %v8301 = vld [vmem:[%s9 + $0x18] sm:$0xf]
      %v8302 = vld [vmem:[%s9 + $0x1c] sm:$0xf]
      %v8303 = vld [vmem:[%s9 + $0x20] sm:$0xf]
      %v8304 = vld [vmem:[%s9 + $0x24] sm:$0xf]
      %v8305 = vld [vmem:[%s9 + $0x28] sm:$0xf]
      %v8306 = vld [vmem:[%s9 + $0x2c] sm:$0xf]
      %v8307 = vld [vmem:[%s9 + $0x30] sm:$0xf]
      %v8308 = vld [vmem:[%s9 + $0x34] sm:$0xf]
      %v8309 = vld [vmem:[%s9 + $0x38] sm:$0xf]
      %v8310 = vld [vmem:[%s9 + $0x3c] sm:$0xf]
      %v8311 = vld [vmem:[%s9 + $0x40] sm:$0xf]
      %v8312 = vld [vmem:[%s9 + $0x44] sm:$0xf]
      %v8313 = vld [vmem:[%s9 + $0x48] sm:$0xf]
      %v8314 = vld [vmem:[%s9 + $0x4c] sm:$0xf]
      %v8315 = vld [vmem:[%s9 + $0x50] sm:$0xf]
      %v8316 = vld [vmem:[%s9 + $0x54] sm:$0xf]
      %v8317 = vld [vmem:[%s9 + $0x58] sm:$0xf]
      %v8318 = vld [vmem:[%s9 + $0x5c] sm:$0xf]
      %v8319 = vld [vmem:[%s9 + $0x60] sm:$0xf]
      %v8320 = vld [vmem:[%s9 + $0x64] sm:$0xf]
      %v8321 = vld [vmem:[%s9 + $0x68] sm:$0xf]
      %v8322 = vld [vmem:[%s9 + $0x6c] sm:$0xf]
      %v8323 = vld [vmem:[%s9 + $0x70] sm:$0xf]
      %v8324 = vld [vmem:[%s9 + $0x74] sm:$0xf]
      %v8325 = vld [vmem:[%s9 + $0x78] sm:$0xf]
      %v8326 = vld [vmem:[%s9 + $0x7c] sm:$0xf]
      %v8327 = vld [vmem:[%s9 + $0x80] sm:$0xf]
      %v8328 = vld [vmem:[%s9 + $0x84] sm:$0xf]
      %v8329 = vld [vmem:[%s9 + $0x88] sm:$0xf]
      %v8330 = vld [vmem:[%s9 + $0x8c] sm:$0xf]
      %v8331 = vld [vmem:[%s9 + $0x90] sm:$0xf]
      %v8332 = vld [vmem:[%s9 + $0x94] sm:$0xf]
      %v8333 = vld [vmem:[%s9 + $0x98] sm:$0xf]
      %v8334 = vld [vmem:[%s9 + $0x9c] sm:$0xf]
      %v8335 = vld [vmem:[%s9 + $0xa0] sm:$0xf]
      %v8336 = vld [vmem:[%s9 + $0xa4] sm:$0xf]
      %v8337 = vld [vmem:[%s9 + $0xa8] sm:$0xf]
      %v8338 = vld [vmem:[%s9 + $0xac] sm:$0xf]
      %v8339 = vld [vmem:[%s9 + $0xb0] sm:$0xf]
      %v8340 = vld [vmem:[%s9 + $0xb4] sm:$0xf]
      %v8341 = vld [vmem:[%s9 + $0xb8] sm:$0xf]
      %v8342 = vld [vmem:[%s9 + $0xbc] sm:$0xf]
      %v8343 = vld [vmem:[%s9 + $0xc0] sm:$0xf]
      %v8344 = vld [vmem:[%s9 + $0xc4] sm:$0xf]
      %v8345 = vld [vmem:[%s9 + $0xc8] sm:$0xf]
      %v8346 = vld [vmem:[%s9 + $0xcc] sm:$0xf]
      %v8347 = vld [vmem:[%s9 + $0xd0] sm:$0xf]
      %v8348 = vld [vmem:[%s9 + $0xd4] sm:$0xf]
      %v8349 = vld [vmem:[%s9 + $0xd8] sm:$0xf]
      %v8350 = vld [vmem:[%s9 + $0xdc] sm:$0xf]
      %v8351 = vld [vmem:[%s9 + $0xe0] sm:$0xf]
      %v8352 = vld [vmem:[%s9 + $0xe4] sm:$0xf]
      %v8353 = vld [vmem:[%s9 + $0xe8] sm:$0xf]
      %v8354 = vld [vmem:[%s9 + $0xec] sm:$0xf]
      %v8355 = vld [vmem:[%s9 + $0xf0] sm:$0xf]
      %v8356 = vld [vmem:[%s9 + $0xf4] sm:$0xf]
      %v8357 = vld [vmem:[%s9 + $0xf8] sm:$0xf]
      %v8358 = vld [vmem:[%s9 + $0xfc] sm:$0xf]
      %v8359 = vld [vmem:[%s10] sm:$0x1]
      %v8424 = vunpack.c.l.b16 %v8295
      %v8425 = vunpack.c.l.b16 %v8296
      %v8426 = vunpack.c.l.b16 %v8297
      %v8427 = vunpack.c.l.b16 %v8298
      %v8428 = vunpack.c.l.b16 %v8299
      %v8429 = vunpack.c.l.b16 %v8300
      %v8430 = vunpack.c.l.b16 %v8301
      %v8431 = vunpack.c.l.b16 %v8302
      %v8432 = vunpack.c.l.b16 %v8303
      %v8433 = vunpack.c.l.b16 %v8304
      %v8434 = vunpack.c.l.b16 %v8305
      %v8435 = vunpack.c.l.b16 %v8306
      %v8436 = vunpack.c.l.b16 %v8307
      %v8437 = vunpack.c.l.b16 %v8308
      %v8438 = vunpack.c.l.b16 %v8309
      %v8439 = vunpack.c.l.b16 %v8310
      %v8440 = vunpack.c.l.b16 %v8311
      %v8441 = vunpack.c.l.b16 %v8312
      %v8442 = vunpack.c.l.b16 %v8313
      %v8443 = vunpack.c.l.b16 %v8314
      %v8444 = vunpack.c.l.b16 %v8315
      %v8445 = vunpack.c.l.b16 %v8316
      %v8446 = vunpack.c.l.b16 %v8317
      %v8447 = vunpack.c.l.b16 %v8318
      %v8448 = vunpack.c.l.b16 %v8319
      %v8449 = vunpack.c.l.b16 %v8320
      %v8450 = vunpack.c.l.b16 %v8321
      %v8451 = vunpack.c.l.b16 %v8322
      %v8452 = vunpack.c.l.b16 %v8323
      %v8453 = vunpack.c.l.b16 %v8324
      %v8454 = vunpack.c.l.b16 %v8325
      %v8455 = vunpack.c.l.b16 %v8326
      %v8456 = vunpack.c.l.b16 %v8327
      %v8457 = vunpack.c.l.b16 %v8328
      %v8458 = vunpack.c.l.b16 %v8329
      %v8459 = vunpack.c.l.b16 %v8330
      %v8460 = vunpack.c.l.b16 %v8331
      %v8461 = vunpack.c.l.b16 %v8332
      %v8462 = vunpack.c.l.b16 %v8333
      %v8463 = vunpack.c.l.b16 %v8334
      %v8464 = vunpack.c.l.b16 %v8335
      %v8465 = vunpack.c.l.b16 %v8336
      %v8466 = vunpack.c.l.b16 %v8337
      %v8467 = vunpack.c.l.b16 %v8338
      %v8468 = vunpack.c.l.b16 %v8339
      %v8469 = vunpack.c.l.b16 %v8340
      %v8470 = vunpack.c.l.b16 %v8341
      %v8471 = vunpack.c.l.b16 %v8342
      %v8472 = vunpack.c.l.b16 %v8343
      %v8473 = vunpack.c.l.b16 %v8344
      %v8474 = vunpack.c.l.b16 %v8345
      %v8475 = vunpack.c.l.b16 %v8346
      %v8476 = vunpack.c.l.b16 %v8347
      %v8477 = vunpack.c.l.b16 %v8348
      %v8478 = vunpack.c.l.b16 %v8349
      %v8479 = vunpack.c.l.b16 %v8350
      %v8480 = vunpack.c.l.b16 %v8351
      %v8481 = vunpack.c.l.b16 %v8352
      %v8482 = vunpack.c.l.b16 %v8353
      %v8483 = vunpack.c.l.b16 %v8354
      %v8484 = vunpack.c.l.b16 %v8355
      %v8485 = vunpack.c.l.b16 %v8356
      %v8486 = vunpack.c.l.b16 %v8357
      %v8487 = vunpack.c.l.b16 %v8358
      %v8488 = vpack.c.b16 %v8425, %v8424
      %v8489 = vpack.c.b16 %v8427, %v8426
      %v8490 = vpack.c.b16 %v8429, %v8428
      %v8491 = vpack.c.b16 %v8431, %v8430
      %v8492 = vpack.c.b16 %v8433, %v8432
      %v8493 = vpack.c.b16 %v8435, %v8434
      %v8494 = vpack.c.b16 %v8437, %v8436
      %v8495 = vpack.c.b16 %v8439, %v8438
      %v8496 = vpack.c.b16 %v8441, %v8440
      %v8497 = vpack.c.b16 %v8443, %v8442
      %v8498 = vpack.c.b16 %v8445, %v8444
      %v8499 = vpack.c.b16 %v8447, %v8446
      %v8500 = vpack.c.b16 %v8449, %v8448
      %v8501 = vpack.c.b16 %v8451, %v8450
      %v8502 = vpack.c.b16 %v8453, %v8452
      %v8503 = vpack.c.b16 %v8455, %v8454
      %v8504 = vpack.c.b16 %v8457, %v8456
      %v8505 = vpack.c.b16 %v8459, %v8458
      %v8506 = vpack.c.b16 %v8461, %v8460
      %v8507 = vpack.c.b16 %v8463, %v8462
      %v8508 = vpack.c.b16 %v8465, %v8464
      %v8509 = vpack.c.b16 %v8467, %v8466
      %v8510 = vpack.c.b16 %v8469, %v8468
      %v8511 = vpack.c.b16 %v8471, %v8470
      %v8512 = vpack.c.b16 %v8473, %v8472
      %v8513 = vpack.c.b16 %v8475, %v8474
      %v8514 = vpack.c.b16 %v8477, %v8476
      %v8515 = vpack.c.b16 %v8479, %v8478
      %v8516 = vpack.c.b16 %v8481, %v8480
      %v8517 = vpack.c.b16 %v8483, %v8482
      %v8518 = vpack.c.b16 %v8485, %v8484
      %v8519 = vpack.c.b16 %v8487, %v8486
      %8552 = vmatprep.subr.bf16.mxu0 0
      %8553 = vmatpush1.bf16.msra.mxu0 %v8488
      %8554 = vmatprep.subr.bf16.mxu0 0
      %8555 = vmatpush1.bf16.msra.mxu0 %v8489
      %8556 = vmatprep.subr.bf16.mxu0 0
      %8557 = vmatpush1.bf16.msra.mxu0 %v8490
      %8558 = vmatprep.subr.bf16.mxu0 0
      %8559 = vmatpush1.bf16.msra.mxu0 %v8491
      %8560 = vmatprep.subr.bf16.mxu0 0
      %8561 = vmatpush1.bf16.msra.mxu0 %v8492
      %8562 = vmatprep.subr.bf16.mxu0 0
      %8563 = vmatpush1.bf16.msra.mxu0 %v8493
      %8564 = vmatprep.subr.bf16.mxu0 0
      %8565 = vmatpush1.bf16.msra.mxu0 %v8494
      %8566 = vmatprep.subr.bf16.mxu0 0
      %8567 = vmatpush1.bf16.msra.mxu0 %v8495
      %8568 = vmatprep.subr.bf16.mxu0 0
      %8569 = vmatpush1.bf16.msra.mxu0 %v8496
      %8570 = vmatprep.subr.bf16.mxu0 0
      %8571 = vmatpush1.bf16.msra.mxu0 %v8497
      %8572 = vmatprep.subr.bf16.mxu0 0
      %8573 = vmatpush1.bf16.msra.mxu0 %v8498
      %8574 = vmatprep.subr.bf16.mxu0 0
      %8575 = vmatpush1.bf16.msra.mxu0 %v8499
      %8576 = vmatprep.subr.bf16.mxu0 0
      %8577 = vmatpush1.bf16.msra.mxu0 %v8500
      %8578 = vmatprep.subr.bf16.mxu0 0
      %8579 = vmatpush1.bf16.msra.mxu0 %v8501
      %8580 = vmatprep.subr.bf16.mxu0 0
      %8581 = vmatpush1.bf16.msra.mxu0 %v8502
      %8582 = vmatprep.subr.bf16.mxu0 0
      %8583 = vmatpush1.bf16.msra.mxu0 %v8503
      %8584 = vmatprep.mubr.bf16.mxu0 %v8292
      %8585 = vmatmul.mubr.bf16.gmra.mrb[0].mxu0 %v8291
      %v8586 = vpop.f32.mrb[0].mxu0
      %v8587 = vadd.f32 %v8359, %v8586
      %v8588 = vpop.f32.mrb[0].mxu0
      %v8589 = vpop.f32.mrb[0].mxu0
      %v8590 = vpop.f32.mrb[0].mxu0
      %8591 = vdwg.mxu0
      %8592 = vmatprep.subr.bf16.mxu0 0
      %8593 = vmatpush1.bf16.msra.mxu0 %v8504
      %8594 = vmatprep.subr.bf16.mxu0 0
      %8595 = vmatpush1.bf16.msra.mxu0 %v8505
      %8596 = vmatprep.subr.bf16.mxu0 0
      %8597 = vmatpush1.bf16.msra.mxu0 %v8506
      %8598 = vmatprep.subr.bf16.mxu0 0
      %8599 = vmatpush1.bf16.msra.mxu0 %v8507
      %8600 = vmatprep.subr.bf16.mxu0 0
      %8601 = vmatpush1.bf16.msra.mxu0 %v8508
      %8602 = vmatprep.subr.bf16.mxu0 0
      %8603 = vmatpush1.bf16.msra.mxu0 %v8509
      %8604 = vmatprep.subr.bf16.mxu0 0
      %8605 = vmatpush1.bf16.msra.mxu0 %v8510
      %8606 = vmatprep.subr.bf16.mxu0 0
      %8607 = vmatpush1.bf16.msra.mxu0 %v8511
      %8608 = vmatprep.subr.bf16.mxu0 0
      %8609 = vmatpush1.bf16.msra.mxu0 %v8512
      %8610 = vmatprep.subr.bf16.mxu0 0
      %8611 = vmatpush1.bf16.msra.mxu0 %v8513
      %8612 = vmatprep.subr.bf16.mxu0 0
      %8613 = vmatpush1.bf16.msra.mxu0 %v8514
      %8614 = vmatprep.subr.bf16.mxu0 0
      %8615 = vmatpush1.bf16.msra.mxu0 %v8515
      %8616 = vmatprep.subr.bf16.mxu0 0
      %8617 = vmatpush1.bf16.msra.mxu0 %v8516
      %8618 = vmatprep.subr.bf16.mxu0 0
      %8619 = vmatpush1.bf16.msra.mxu0 %v8517
      %8620 = vmatprep.subr.bf16.mxu0 0
      %8621 = vmatpush1.bf16.msra.mxu0 %v8518
      %8622 = vmatprep.subr.bf16.mxu0 0
      %8623 = vmatpush1.bf16.msra.mxu0 %v8519
      %8624 = vmatprep.mubr.bf16.mxu0 %v8294
      %8625 = vmatmul.mubr.bf16.gmra.mrb[0].mxu0 %v8293
      %v8626 = vpop.f32.mrb[0].mxu0
      %v8627 = vadd.f32 %v8587, %v8626
      %v8628 = vpop.f32.mrb[0].mxu0
      %v8629 = vpop.f32.mrb[0].mxu0
      %v8630 = vpop.f32.mrb[0].mxu0
      %8631 = vdwg.mxu0
      %v8632 = vlaneseq
      %v8633 = vshrl.u32 %v8632, 7
      %v8634 = vsub.s32 0, %v8633
      %v8635 = vrot.slane %v8627, %v8634
      %8636 = vst [vmem:[%s384] sm:$0xff] %v8635
      %p8637 = scmp.lt.s32.totalorder %s22, 1
      %s8638 = scalar_select %p8637, %s22, 1
      %s8639 = smul.addr %s8638, 8
      %s8640 = scalar_lea.vmem %s11, %s8639
      // Predicated region
      $region65: #{forward.1} parent=63 // pred_check
        %p8641 = pneg %p276
      $region66: #{forward.1} parent=63 // pred_check_branch
        %8643 = sbr.rel (%p8641) target = $region68
      $region67: #{forward.1} parent=63 // pred_region
        _
      $region68: #{forward.1} parent=63 // pred_fallthru
        _
    $region64: #{forward.1} parent=5 // pred_fallthru
      _
    %p8644 = scmp.le.s32.totalorder 2, %s17
    // Predicated region
    $region69: #{forward.1} parent=5 // pred_check
      %p8645 = pneg %p8644
    $region70: #{forward.1} parent=5 // pred_check_branch
      %8647 = sbr.rel (%p8645) target = $region72
    $region71: #{forward.1} parent=5 // pred_region
      %s8648 = ssub.s32 %s17, 2
      // Predicated region
      $region73: #{forward.1} parent=71 // pred_check
        %p8649 = pneg %p282
      $region74: #{forward.1} parent=71 // pred_check_branch
        %8651 = sbr.rel (%p8649) target = $region76
      $region75: #{forward.1} parent=71 // pred_region
        %p8652 = scmp.lt.s32.totalorder %s23, 1
        %s8653 = scalar_select %p8652, %s23, 1
        %s8654 = smul.addr %s8653, 8
        %s8655 = scalar_lea.vmem %s11, %s8654
      $region76: #{forward.1} parent=71 // pred_fallthru
        _
    $region72: #{forward.1} parent=5 // pred_fallthru
      _
  $region6: #{forward.1} parent=0 // loop_footer
    %s21 = sadd.s32 1, %s17
  $region7: #{forward.1} parent=0 // loop_footer_branch
    %16 = sbr.rel target = $region3
  $region8: #{forward.1} parent=0 // loop_exit
    _

</llo_original>
